<compile_context>
chip_gen: v7x
topology: tpu7x:2x2x1
jax: 0.10.0
libtpu: 0.0.40
codegen_flags: <defaults>
</compile_context>

<pallas_src>
import functools
import math

import numpy as np
import jax
import jax.numpy as jnp
from jax.experimental import pallas as pl
from jax.experimental.pallas import tpu as pltpu


# ---------------------------------------------------------------------------
# Single fused kernel: conv1 -> BN1/ReLU -> conv2 -> BN2/ReLU -> mean-pool ->
#                      Linear -> ReLU -> Linear -> ReLU -> LayerNorm -> Linear
# ---------------------------------------------------------------------------
def _transe_fused_kernel(col1_ref, w1_ref, b1_ref, g1_ref, be1_ref,
                         w2_ref, b2_ref, g2_ref, be2_ref,
                         wt1_ref, bt1_ref, wt2_ref, bt2_ref,
                         lng_ref, lnb_ref, wt3_ref, bt3_ref,
                         o_ref,
                         pad_ref,
                         *, B, H, W, mxu_dtype):
    f32 = jnp.float32
    Chid = w1_ref.shape[1]
    M = B * H * W

    def mm(a, b):
        # MXU matmul: bf16 operands by default on all generations, f32 accumulation.
        return jnp.dot(a.astype(mxu_dtype), b.astype(mxu_dtype),
                       preferred_element_type=f32)

    def bn_scale_shift(h, g, be, n_chunks=4):
        # Train-mode BatchNorm (biased batch stats) folded into y*a + c.
        # Chunked per-channel sum / sum-of-squares: no full-size (y-mu) or
        # (y-mu)^2 temporaries are ever live -> bounded vreg pressure.
        n, c = h.shape
        s1 = jnp.zeros((1, c), f32)
        s2 = jnp.zeros((1, c), f32)
        step = n // n_chunks
        for i in range(n_chunks):
            lo = i * step
            hi = n if i == n_chunks - 1 else lo + step
            blk = h[lo:hi]
            s1 = s1 + jnp.sum(blk, axis=0, keepdims=True)
            s2 = s2 + jnp.sum(blk * blk, axis=0, keepdims=True)
        mu = s1 * (1.0 / n)
        var = s2 * (1.0 / n) - mu * mu
        a = g * jax.lax.rsqrt(var + 1e-5)
        return a, be - mu * a

    # ---- conv1: single K = 9*Cin matmul (im2col hoisted to the wrapper) ----
    h = mm(col1_ref[...], w1_ref[...]) + b1_ref[...]              # (M, Chid) f32
    a1, c1 = bn_scale_shift(h, g1_ref[...], be1_ref[...])
    h = jnp.maximum(h * a1 + c1, 0.0)                             # BN1 + ReLU

    # ---- SAME padding: zero ONLY the halo strips of the padded buffer ------
    pad_ref[:, 0:1, :, :] = jnp.zeros((B, 1, W + 2, Chid), f32)
    pad_ref[:, H + 1:H + 2, :, :] = jnp.zeros((B, 1, W + 2, Chid), f32)
    pad_ref[:, 1:H + 1, 0:1, :] = jnp.zeros((B, H, 1, Chid), f32)
    pad_ref[:, 1:H + 1, W + 1:W + 2, :] = jnp.zeros((B, H, 1, Chid), f32)
    # Interior written exactly once (full-lane stores, no per-tap scatter).
    pad_ref[:, 1:H + 1, 1:W + 1, :] = h.reshape(B, H, W, Chid)

    # ---- conv2: 9 accumulated matmuls over shifted-window READS ------------
    acc = None
    for kh in range(3):
        for kw in range(3):
            lhs = pad_ref[:, kh:kh + H, kw:kw + W, :].reshape(M, Chid)
            part = mm(lhs, w2_ref[kh * 3 + kw, :, :])
            acc = part if acc is None else acc + part
    h = acc + b2_ref[...]                                         # (M, Chid) f32
    a2, c2 = bn_scale_shift(h, g2_ref[...], be2_ref[...])
    h = jnp.maximum(h * a2 + c2, 0.0)                             # BN2 + ReLU

    # ---- global mean pool over (H, W) --------------------------------------
    hp = jnp.mean(h.reshape(B, H * W, Chid), axis=1)              # (B, Chid)

    # ---- tail: Linear -> ReLU -> Linear -> ReLU -> LayerNorm -> Linear -----
    z = jnp.maximum(mm(hp, wt1_ref[...]) + bt1_ref[...], 0.0)
    z = jnp.maximum(mm(z, wt2_ref[...]) + bt2_ref[...], 0.0)
    mu = jnp.mean(z, axis=-1, keepdims=True)
    var = jnp.mean((z - mu) ** 2, axis=-1, keepdims=True)
    zn = (z - mu) * jax.lax.rsqrt(var + 1e-5) * lng_ref[...] + lnb_ref[...]
    o_ref[...] = mm(zn, wt3_ref[...]) + bt3_ref[...]


# ---------------------------------------------------------------------------
# TransE.forward(obs) — obs in NCHW (PyTorch convention), returns (B, emb).
# ---------------------------------------------------------------------------
def transe_forward(obs_nchw, params, *, mxu_dtype=jnp.bfloat16):
    B, Cin, H, W = obs_nchw.shape
    Chid = params["c1_w"].shape[-1]
    Emb = params["w3"].shape[-1]
    M = B * H * W

    # Tiny XLA-side prep (<100 KiB): NCHW->NHWC, conv1 im2col, weight reshapes
    # and the one-time cast of all matmul operands to the MXU dtype.
    x = jnp.transpose(obs_nchw, (0, 2, 3, 1))                     # NHWC
    xp = jnp.pad(x, ((0, 0), (1, 1), (1, 1), (0, 0)))
    col1 = jnp.concatenate(
        [xp[:, kh:kh + H, kw:kw + W, :] for kh in range(3) for kw in range(3)],
        axis=-1).reshape(M, 9 * Cin).astype(mxu_dtype)
    # HWIO conv weights -> matmul/per-tap form; tap index = kh*3 + kw,
    # feature order (tap, channel) matches col1.
    w1 = params["c1_w"].reshape(9 * Cin, Chid).astype(mxu_dtype)
    w2 = params["c2_w"].reshape(9, Chid, Chid).astype(mxu_dtype)
    wt1 = params["w1"].astype(mxu_dtype)
    wt2 = params["w2"].astype(mxu_dtype)
    wt3 = params["w3"].astype(mxu_dtype)

    isz = jnp.dtype(mxu_dtype).itemsize
    cost = pl.CostEstimate(
        flops=2 * M * Chid * (9 * Cin + 9 * Chid) + 2 * B * Chid * (2 * Chid + Emb),
        transcendentals=2 * Chid + B,
        bytes_accessed=(M * 9 * Cin + 9 * Cin * Chid + 9 * Chid * Chid
                        + 2 * Chid * Chid + Chid * Emb) * isz
                       + (12 * Chid + Emb + B * Emb) * 4)

    kernel = functools.partial(_transe_fused_kernel, B=B, H=H, W=W,
                               mxu_dtype=mxu_dtype)
    return pl.pallas_call(
        kernel,
        out_shape=jax.ShapeDtypeStruct((B, Emb), jnp.float32),
        scratch_shapes=[
            # Zero-haloed conv1 activation (SAME padding lives here).
            pltpu.VMEM((B, H + 2, W + 2, Chid), jnp.float32),
        ],
        cost_estimate=cost,
    )(col1, w1,
      params["c1_b"].reshape(1, -1), params["bn1_g"].reshape(1, -1),
      params["bn1_b"].reshape(1, -1),
      w2,
      params["c2_b"].reshape(1, -1), params["bn2_g"].reshape(1, -1),
      params["bn2_b"].reshape(1, -1),
      wt1, params["b1"].reshape(1, -1),
      wt2, params["b2"].reshape(1, -1),
      params["ln_g"].reshape(1, -1), params["ln_b"].reshape(1, -1),
      wt3, params["b3"].reshape(1, -1))


# ---------------------------------------------------------------------------
# Pure-JAX reference.  mxu_dtype lets us build a reference with the SAME
# matmul-operand casts as the kernel's bf16 path (f32 accumulation), so the
# shipped bf16 configuration is validated tightly as well.
# ---------------------------------------------------------------------------
def _ref_forward(obs_nchw, p, *, mxu_dtype=jnp.float32):
    dt = mxu_dtype
    f32 = jnp.float32
    x = jnp.transpose(obs_nchw, (0, 2, 3, 1))
    dn = ("NHWC", "HWIO", "NHWC")

    def conv(x, w, b):
        y = jax.lax.conv_general_dilated(x.astype(dt), w.astype(dt), (1, 1),
                                         "SAME", dimension_numbers=dn,
                                         preferred_element_type=f32)
        return y + b[None, None, None, :]

    def bnrelu(y, g, b):
        mean = jnp.mean(y, axis=(0, 1, 2), keepdims=True)
        var = jnp.mean((y - mean) ** 2, axis=(0, 1, 2), keepdims=True)
        z = (y - mean) * jax.lax.rsqrt(var + 1e-5) * g + b
        return jnp.maximum(z, 0.0)

    def mm(a, b):
        return jnp.dot(a.astype(dt), b.astype(dt), preferred_element_type=f32)

    h = bnrelu(conv(x, p["c1_w"], p["c1_b"]), p["bn1_g"], p["bn1_b"])
    h = bnrelu(conv(h, p["c2_w"], p["c2_b"]), p["bn2_g"], p["bn2_b"])
    hp = jnp.mean(h, axis=(1, 2))
    z = jnp.maximum(mm(hp, p["w1"]) + p["b1"], 0.0)
    z = jnp.maximum(mm(z, p["w2"]) + p["b2"], 0.0)
    mu = jnp.mean(z, axis=-1, keepdims=True)
    var = jnp.mean((z - mu) ** 2, axis=-1, keepdims=True)
    zn = (z - mu) * jax.lax.rsqrt(var + 1e-5) * p["ln_g"] + p["ln_b"]
    return mm(zn, p["w3"]) + p["b3"]


def init_params(key, num_channels, hidden_dim, embedding_dim):
    ks = jax.random.split(key, 12)

    def lin(k, fan_in, shape):
        return jax.random.normal(k, shape, jnp.float32) / math.sqrt(fan_in)

    return {
        "c1_w": lin(ks[0], 9 * num_channels, (3, 3, num_channels, hidden_dim)),
        "c1_b": lin(ks[1], 9 * num_channels, (hidden_dim,)),
        "bn1_g": 1.0 + 0.1 * jax.random.normal(ks[2], (hidden_dim,), jnp.float32),
        "bn1_b": 0.1 * jax.random.normal(ks[3], (hidden_dim,), jnp.float32),
        "c2_w": lin(ks[4], 9 * hidden_dim, (3, 3, hidden_dim, hidden_dim)),
        "c2_b": lin(ks[5], 9 * hidden_dim, (hidden_dim,)),
        "bn2_g": 1.0 + 0.1 * jax.random.normal(ks[6], (hidden_dim,), jnp.float32),
        "bn2_b": 0.1 * jax.random.normal(ks[7], (hidden_dim,), jnp.float32),
        "w1": lin(ks[8], hidden_dim, (hidden_dim, hidden_dim)),
        "b1": jnp.zeros((hidden_dim,), jnp.float32),
        "w2": lin(ks[9], hidden_dim, (hidden_dim, hidden_dim)),
        "b2": jnp.zeros((hidden_dim,), jnp.float32),
        "ln_g": jnp.ones((hidden_dim,), jnp.float32),
        "ln_b": jnp.zeros((hidden_dim,), jnp.float32),
        "w3": lin(ks[10], hidden_dim, (hidden_dim, embedding_dim)),
        "b3": lin(ks[11], hidden_dim, (embedding_dim,)),
    }


if __name__ == "__main__":
    B, C, H, W = 8, 4, 8, 8          # input_dims = (4, 8, 8), gridworld-sized
    hidden_dim, embedding_dim = 32, 16

    key = jax.random.PRNGKey(0)
    k_obs, k_par = jax.random.split(key)
    obs = jax.random.normal(k_obs, (B, C, H, W), jnp.float32)   # NCHW, like PyTorch
    params = init_params(k_par, C, hidden_dim, embedding_dim)

    # f32-MXU path: tight check against the exact f32 reference.
    out_f32 = jax.block_until_ready(
        jax.jit(functools.partial(transe_forward, mxu_dtype=jnp.float32))(obs, params))
    ref_f32 = jax.block_until_ready(jax.jit(_ref_forward)(obs, params))
    assert out_f32.shape == (B, embedding_dim)
    np.testing.assert_allclose(np.asarray(out_f32), np.asarray(ref_f32),
                               rtol=2e-3, atol=2e-3)

    # Shipped bf16-MXU path (the default): tight check against a reference with
    # matching bf16 operand casts, plus a loose check against the pure-f32 math.
    out_bf16 = jax.block_until_ready(jax.jit(transe_forward)(obs, params))
    ref_bf16 = jax.block_until_ready(
        jax.jit(functools.partial(_ref_forward, mxu_dtype=jnp.bfloat16))(obs, params))
    assert out_bf16.shape == (B, embedding_dim)
    np.testing.assert_allclose(np.asarray(out_bf16), np.asarray(ref_bf16),
                               rtol=2e-3, atol=2e-3)
    np.testing.assert_allclose(np.asarray(out_bf16), np.asarray(ref_f32),
                               rtol=1e-1, atol=1e-1)

    print("KERNEL_OK")
</pallas_src>

<mosaic_0001>
module attributes {stable_mosaic.version = 11 : i64} {
  func.func @_transe_fused_kernel(%arg0: memref<512x36xf32, #tpu.memory_space<vmem>>, %arg1: memref<36x32xf32, #tpu.memory_space<vmem>>, %arg2: memref<1x32xf32, #tpu.memory_space<vmem>>, %arg3: memref<1x32xf32, #tpu.memory_space<vmem>>, %arg4: memref<1x32xf32, #tpu.memory_space<vmem>>, %arg5: memref<9x32x32xf32, #tpu.memory_space<vmem>>, %arg6: memref<1x32xf32, #tpu.memory_space<vmem>>, %arg7: memref<1x32xf32, #tpu.memory_space<vmem>>, %arg8: memref<1x32xf32, #tpu.memory_space<vmem>>, %arg9: memref<32x32xf32, #tpu.memory_space<vmem>>, %arg10: memref<1x32xf32, #tpu.memory_space<vmem>>, %arg11: memref<32x32xf32, #tpu.memory_space<vmem>>, %arg12: memref<1x32xf32, #tpu.memory_space<vmem>>, %arg13: memref<1x32xf32, #tpu.memory_space<vmem>>, %arg14: memref<1x32xf32, #tpu.memory_space<vmem>>, %arg15: memref<32x16xf32, #tpu.memory_space<vmem>>, %arg16: memref<1x16xf32, #tpu.memory_space<vmem>>, %arg17: memref<8x16xf32, #tpu.memory_space<vmem>>, %arg18: memref<8x10x10x32xf32, #tpu.memory_space<vmem>>) attributes {dimension_semantics = [], scalar_prefetch = 0 : i64, scratch_operands = 1 : i64, tpu.core_type = #tpu.core_type<tc>} {
    %c0 = arith.constant 0 : index
    %c0_0 = arith.constant 0 : index
    %0 = vector.load %arg0[%c0, %c0_0] : memref<512x36xf32, #tpu.memory_space<vmem>>, vector<512x36xf32>
    %c0_1 = arith.constant 0 : index
    %c0_2 = arith.constant 0 : index
    %1 = vector.load %arg1[%c0_1, %c0_2] : memref<36x32xf32, #tpu.memory_space<vmem>>, vector<36x32xf32>
    %cst = arith.constant dense<0.000000e+00> : vector<512x32xf32>
    %2 = tpu.matmul %0, %1, %cst {dimension_numbers = #tpu.dot_dimension_numbers<[1], [0], [0], [1], [0, 0, 1, 1], [], []>} : vector<512x36xf32>, vector<36x32xf32>, vector<512x32xf32> -> vector<512x32xf32>
    %c0_3 = arith.constant 0 : index
    %c0_4 = arith.constant 0 : index
    %3 = vector.load %arg2[%c0_3, %c0_4] : memref<1x32xf32, #tpu.memory_space<vmem>>, vector<1x32xf32>
    %4 = vector.broadcast %3 : vector<1x32xf32> to vector<512x32xf32>
    %5 = arith.addf %2, %4 : vector<512x32xf32>
    %c0_5 = arith.constant 0 : index
    %c0_6 = arith.constant 0 : index
    %6 = vector.load %arg3[%c0_5, %c0_6] : memref<1x32xf32, #tpu.memory_space<vmem>>, vector<1x32xf32>
    %c0_7 = arith.constant 0 : index
    %c0_8 = arith.constant 0 : index
    %7 = vector.load %arg4[%c0_7, %c0_8] : memref<1x32xf32, #tpu.memory_space<vmem>>, vector<1x32xf32>
    %cst_9 = arith.constant 0.000000e+00 : f32
    %8 = vector.broadcast %cst_9 : f32 to vector<1x32xf32>
    %cst_10 = arith.constant 0.000000e+00 : f32
    %9 = vector.broadcast %cst_10 : f32 to vector<1x32xf32>
    %10 = vector.extract_strided_slice %5 {offsets = [0, 0], sizes = [128, 32], strides = [1, 1]} : vector<512x32xf32> to vector<128x32xf32>
    %cst_11 = arith.constant dense<0.000000e+00> : vector<32xf32>
    %11 = vector.multi_reduction <add>, %10, %cst_11 [0] : vector<128x32xf32> to vector<32xf32>
    %12 = vector.shape_cast %11 : vector<32xf32> to vector<1x32xf32>
    %13 = arith.addf %8, %12 : vector<1x32xf32>
    %14 = arith.mulf %10, %10 : vector<128x32xf32>
    %cst_12 = arith.constant dense<0.000000e+00> : vector<32xf32>
    %15 = vector.multi_reduction <add>, %14, %cst_12 [0] : vector<128x32xf32> to vector<32xf32>
    %16 = vector.shape_cast %15 : vector<32xf32> to vector<1x32xf32>
    %17 = arith.addf %9, %16 : vector<1x32xf32>
    %18 = vector.extract_strided_slice %5 {offsets = [128, 0], sizes = [128, 32], strides = [1, 1]} : vector<512x32xf32> to vector<128x32xf32>
    %cst_13 = arith.constant dense<0.000000e+00> : vector<32xf32>
    %19 = vector.multi_reduction <add>, %18, %cst_13 [0] : vector<128x32xf32> to vector<32xf32>
    %20 = vector.shape_cast %19 : vector<32xf32> to vector<1x32xf32>
    %21 = arith.addf %13, %20 : vector<1x32xf32>
    %22 = arith.mulf %18, %18 : vector<128x32xf32>
    %cst_14 = arith.constant dense<0.000000e+00> : vector<32xf32>
    %23 = vector.multi_reduction <add>, %22, %cst_14 [0] : vector<128x32xf32> to vector<32xf32>
    %24 = vector.shape_cast %23 : vector<32xf32> to vector<1x32xf32>
    %25 = arith.addf %17, %24 : vector<1x32xf32>
    %26 = vector.extract_strided_slice %5 {offsets = [256, 0], sizes = [128, 32], strides = [1, 1]} : vector<512x32xf32> to vector<128x32xf32>
    %cst_15 = arith.constant dense<0.000000e+00> : vector<32xf32>
    %27 = vector.multi_reduction <add>, %26, %cst_15 [0] : vector<128x32xf32> to vector<32xf32>
    %28 = vector.shape_cast %27 : vector<32xf32> to vector<1x32xf32>
    %29 = arith.addf %21, %28 : vector<1x32xf32>
    %30 = arith.mulf %26, %26 : vector<128x32xf32>
    %cst_16 = arith.constant dense<0.000000e+00> : vector<32xf32>
    %31 = vector.multi_reduction <add>, %30, %cst_16 [0] : vector<128x32xf32> to vector<32xf32>
    %32 = vector.shape_cast %31 : vector<32xf32> to vector<1x32xf32>
    %33 = arith.addf %25, %32 : vector<1x32xf32>
    %34 = vector.extract_strided_slice %5 {offsets = [384, 0], sizes = [128, 32], strides = [1, 1]} : vector<512x32xf32> to vector<128x32xf32>
    %cst_17 = arith.constant dense<0.000000e+00> : vector<32xf32>
    %35 = vector.multi_reduction <add>, %34, %cst_17 [0] : vector<128x32xf32> to vector<32xf32>
    %36 = vector.shape_cast %35 : vector<32xf32> to vector<1x32xf32>
    %37 = arith.addf %29, %36 : vector<1x32xf32>
    %38 = arith.mulf %34, %34 : vector<128x32xf32>
    %cst_18 = arith.constant dense<0.000000e+00> : vector<32xf32>
    %39 = vector.multi_reduction <add>, %38, %cst_18 [0] : vector<128x32xf32> to vector<32xf32>
    %40 = vector.shape_cast %39 : vector<32xf32> to vector<1x32xf32>
    %41 = arith.addf %33, %40 : vector<1x32xf32>
    %cst_19 = arith.constant 0.001953125 : f32
    %42 = vector.broadcast %cst_19 : f32 to vector<1x32xf32>
    %43 = arith.mulf %37, %42 : vector<1x32xf32>
    %cst_20 = arith.constant 0.001953125 : f32
    %44 = vector.broadcast %cst_20 : f32 to vector<1x32xf32>
    %45 = arith.mulf %41, %44 : vector<1x32xf32>
    %46 = arith.mulf %43, %43 : vector<1x32xf32>
    %47 = arith.subf %45, %46 : vector<1x32xf32>
    %cst_21 = arith.constant 9.99999974E-6 : f32
    %48 = vector.broadcast %cst_21 : f32 to vector<1x32xf32>
    %49 = arith.addf %47, %48 : vector<1x32xf32>
    %50 = math.rsqrt %49 : vector<1x32xf32>
    %51 = arith.mulf %6, %50 : vector<1x32xf32>
    %52 = arith.mulf %43, %51 : vector<1x32xf32>
    %53 = arith.subf %7, %52 : vector<1x32xf32>
    %54 = vector.broadcast %51 : vector<1x32xf32> to vector<512x32xf32>
    %55 = arith.mulf %5, %54 : vector<512x32xf32>
    %56 = vector.broadcast %53 : vector<1x32xf32> to vector<512x32xf32>
    %57 = arith.addf %55, %56 : vector<512x32xf32>
    %cst_22 = arith.constant 0.000000e+00 : f32
    %58 = vector.broadcast %cst_22 : f32 to vector<512x32xf32>
    %59 = arith.maximumf %57, %58 : vector<512x32xf32>
    %cst_23 = arith.constant 0.000000e+00 : f32
    %60 = vector.broadcast %cst_23 : f32 to vector<8x1x10x32xf32>
    %c0_24 = arith.constant 0 : index
    %c0_25 = arith.constant 0 : index
    %c0_26 = arith.constant 0 : index
    %c0_27 = arith.constant 0 : index
    %61 = vector.load %arg18[%c0_24, %c0_25, %c0_26, %c0_27] : memref<8x10x10x32xf32, #tpu.memory_space<vmem>>, vector<8x1x10x32xf32>
    tpu.vector_store %arg18[%c0_24, %c0_25, %c0_26, %c0_27], %60 {strides = array<i32>} : memref<8x10x10x32xf32, #tpu.memory_space<vmem>>, vector<8x1x10x32xf32>,
    %cst_28 = arith.constant 0.000000e+00 : f32
    %62 = vector.broadcast %cst_28 : f32 to vector<8x1x10x32xf32>
    %c0_29 = arith.constant 0 : index
    %c9 = arith.constant 9 : index
    %c0_30 = arith.constant 0 : index
    %c0_31 = arith.constant 0 : index
    %63 = vector.load %arg18[%c0_29, %c9, %c0_30, %c0_31] : memref<8x10x10x32xf32, #tpu.memory_space<vmem>>, vector<8x1x10x32xf32>
    tpu.vector_store %arg18[%c0_29, %c9, %c0_30, %c0_31], %62 {strides = array<i32>} : memref<8x10x10x32xf32, #tpu.memory_space<vmem>>, vector<8x1x10x32xf32>,
    %cst_32 = arith.constant 0.000000e+00 : f32
    %64 = vector.broadcast %cst_32 : f32 to vector<8x8x1x32xf32>
    %c0_33 = arith.constant 0 : index
    %c1 = arith.constant 1 : index
    %c0_34 = arith.constant 0 : index
    %c0_35 = arith.constant 0 : index
    %65 = vector.load %arg18[%c0_33, %c1, %c0_34, %c0_35] : memref<8x10x10x32xf32, #tpu.memory_space<vmem>>, vector<8x8x1x32xf32>
    tpu.vector_store %arg18[%c0_33, %c1, %c0_34, %c0_35], %64 {strides = array<i32>} : memref<8x10x10x32xf32, #tpu.memory_space<vmem>>, vector<8x8x1x32xf32>,
    %cst_36 = arith.constant 0.000000e+00 : f32
    %66 = vector.broadcast %cst_36 : f32 to vector<8x8x1x32xf32>
    %c0_37 = arith.constant 0 : index
    %c1_38 = arith.constant 1 : index
    %c9_39 = arith.constant 9 : index
    %c0_40 = arith.constant 0 : index
    %67 = vector.load %arg18[%c0_37, %c1_38, %c9_39, %c0_40] : memref<8x10x10x32xf32, #tpu.memory_space<vmem>>, vector<8x8x1x32xf32>
    tpu.vector_store %arg18[%c0_37, %c1_38, %c9_39, %c0_40], %66 {strides = array<i32>} : memref<8x10x10x32xf32, #tpu.memory_space<vmem>>, vector<8x8x1x32xf32>,
    %68 = vector.shape_cast %59 : vector<512x32xf32> to vector<8x8x8x32xf32>
    %c0_41 = arith.constant 0 : index
    %c1_42 = arith.constant 1 : index
    %c1_43 = arith.constant 1 : index
    %c0_44 = arith.constant 0 : index
    %69 = vector.load %arg18[%c0_41, %c1_42, %c1_43, %c0_44] : memref<8x10x10x32xf32, #tpu.memory_space<vmem>>, vector<8x8x8x32xf32>
    tpu.vector_store %arg18[%c0_41, %c1_42, %c1_43, %c0_44], %68 {strides = array<i32>} : memref<8x10x10x32xf32, #tpu.memory_space<vmem>>, vector<8x8x8x32xf32>,
    %c0_45 = arith.constant 0 : index
    %c0_46 = arith.constant 0 : index
    %c0_47 = arith.constant 0 : index
    %c0_48 = arith.constant 0 : index
    %70 = vector.load %arg18[%c0_45, %c0_46, %c0_47, %c0_48] : memref<8x10x10x32xf32, #tpu.memory_space<vmem>>, vector<8x8x8x32xf32>
    %71 = vector.shape_cast %70 : vector<8x8x8x32xf32> to vector<512x32xf32>
    %c0_49 = arith.constant 0 : index
    %c0_50 = arith.constant 0 : index
    %c0_51 = arith.constant 0 : index
    %72 = vector.load %arg5[%c0_49, %c0_50, %c0_51] : memref<9x32x32xf32, #tpu.memory_space<vmem>>, vector<1x32x32xf32>
    %73 = vector.shape_cast %72 : vector<1x32x32xf32> to vector<32x32xf32>
    %cst_52 = arith.constant dense<0.000000e+00> : vector<512x32xf32>
    %74 = tpu.matmul %71, %73, %cst_52 {dimension_numbers = #tpu.dot_dimension_numbers<[1], [0], [0], [1], [0, 0, 1, 1], [], []>} : vector<512x32xf32>, vector<32x32xf32>, vector<512x32xf32> -> vector<512x32xf32>
    %c0_53 = arith.constant 0 : index
    %c0_54 = arith.constant 0 : index
    %c1_55 = arith.constant 1 : index
    %c0_56 = arith.constant 0 : index
    %75 = vector.load %arg18[%c0_53, %c0_54, %c1_55, %c0_56] : memref<8x10x10x32xf32, #tpu.memory_space<vmem>>, vector<8x8x8x32xf32>
    %76 = vector.shape_cast %75 : vector<8x8x8x32xf32> to vector<512x32xf32>
    %c1_57 = arith.constant 1 : index
    %c0_58 = arith.constant 0 : index
    %c0_59 = arith.constant 0 : index
    %77 = vector.load %arg5[%c1_57, %c0_58, %c0_59] : memref<9x32x32xf32, #tpu.memory_space<vmem>>, vector<1x32x32xf32>
    %78 = vector.shape_cast %77 : vector<1x32x32xf32> to vector<32x32xf32>
    %cst_60 = arith.constant dense<0.000000e+00> : vector<512x32xf32>
    %79 = tpu.matmul %76, %78, %cst_60 {dimension_numbers = #tpu.dot_dimension_numbers<[1], [0], [0], [1], [0, 0, 1, 1], [], []>} : vector<512x32xf32>, vector<32x32xf32>, vector<512x32xf32> -> vector<512x32xf32>
    %80 = arith.addf %74, %79 : vector<512x32xf32>
    %c0_61 = arith.constant 0 : index
    %c0_62 = arith.constant 0 : index
    %c2 = arith.constant 2 : index
    %c0_63 = arith.constant 0 : index
    %81 = vector.load %arg18[%c0_61, %c0_62, %c2, %c0_63] : memref<8x10x10x32xf32, #tpu.memory_space<vmem>>, vector<8x8x8x32xf32>
    %82 = vector.shape_cast %81 : vector<8x8x8x32xf32> to vector<512x32xf32>
    %c2_64 = arith.constant 2 : index
    %c0_65 = arith.constant 0 : index
    %c0_66 = arith.constant 0 : index
    %83 = vector.load %arg5[%c2_64, %c0_65, %c0_66] : memref<9x32x32xf32, #tpu.memory_space<vmem>>, vector<1x32x32xf32>
    %84 = vector.shape_cast %83 : vector<1x32x32xf32> to vector<32x32xf32>
    %cst_67 = arith.constant dense<0.000000e+00> : vector<512x32xf32>
    %85 = tpu.matmul %82, %84, %cst_67 {dimension_numbers = #tpu.dot_dimension_numbers<[1], [0], [0], [1], [0, 0, 1, 1], [], []>} : vector<512x32xf32>, vector<32x32xf32>, vector<512x32xf32> -> vector<512x32xf32>
    %86 = arith.addf %80, %85 : vector<512x32xf32>
    %c0_68 = arith.constant 0 : index
    %c1_69 = arith.constant 1 : index
    %c0_70 = arith.constant 0 : index
    %c0_71 = arith.constant 0 : index
    %87 = vector.load %arg18[%c0_68, %c1_69, %c0_70, %c0_71] : memref<8x10x10x32xf32, #tpu.memory_space<vmem>>, vector<8x8x8x32xf32>
    %88 = vector.shape_cast %87 : vector<8x8x8x32xf32> to vector<512x32xf32>
    %c3 = arith.constant 3 : index
    %c0_72 = arith.constant 0 : index
    %c0_73 = arith.constant 0 : index
    %89 = vector.load %arg5[%c3, %c0_72, %c0_73] : memref<9x32x32xf32, #tpu.memory_space<vmem>>, vector<1x32x32xf32>
    %90 = vector.shape_cast %89 : vector<1x32x32xf32> to vector<32x32xf32>
    %cst_74 = arith.constant dense<0.000000e+00> : vector<512x32xf32>
    %91 = tpu.matmul %88, %90, %cst_74 {dimension_numbers = #tpu.dot_dimension_numbers<[1], [0], [0], [1], [0, 0, 1, 1], [], []>} : vector<512x32xf32>, vector<32x32xf32>, vector<512x32xf32> -> vector<512x32xf32>
    %92 = arith.addf %86, %91 : vector<512x32xf32>
    %c0_75 = arith.constant 0 : index
    %c1_76 = arith.constant 1 : index
    %c1_77 = arith.constant 1 : index
    %c0_78 = arith.constant 0 : index
    %93 = vector.load %arg18[%c0_75, %c1_76, %c1_77, %c0_78] : memref<8x10x10x32xf32, #tpu.memory_space<vmem>>, vector<8x8x8x32xf32>
    %94 = vector.shape_cast %93 : vector<8x8x8x32xf32> to vector<512x32xf32>
    %c4 = arith.constant 4 : index
    %c0_79 = arith.constant 0 : index
    %c0_80 = arith.constant 0 : index
    %95 = vector.load %arg5[%c4, %c0_79, %c0_80] : memref<9x32x32xf32, #tpu.memory_space<vmem>>, vector<1x32x32xf32>
    %96 = vector.shape_cast %95 : vector<1x32x32xf32> to vector<32x32xf32>
    %cst_81 = arith.constant dense<0.000000e+00> : vector<512x32xf32>
    %97 = tpu.matmul %94, %96, %cst_81 {dimension_numbers = #tpu.dot_dimension_numbers<[1], [0], [0], [1], [0, 0, 1, 1], [], []>} : vector<512x32xf32>, vector<32x32xf32>, vector<512x32xf32> -> vector<512x32xf32>
    %98 = arith.addf %92, %97 : vector<512x32xf32>
    %c0_82 = arith.constant 0 : index
    %c1_83 = arith.constant 1 : index
    %c2_84 = arith.constant 2 : index
    %c0_85 = arith.constant 0 : index
    %99 = vector.load %arg18[%c0_82, %c1_83, %c2_84, %c0_85] : memref<8x10x10x32xf32, #tpu.memory_space<vmem>>, vector<8x8x8x32xf32>
    %100 = vector.shape_cast %99 : vector<8x8x8x32xf32> to vector<512x32xf32>
    %c5 = arith.constant 5 : index
    %c0_86 = arith.constant 0 : index
    %c0_87 = arith.constant 0 : index
    %101 = vector.load %arg5[%c5, %c0_86, %c0_87] : memref<9x32x32xf32, #tpu.memory_space<vmem>>, vector<1x32x32xf32>
    %102 = vector.shape_cast %101 : vector<1x32x32xf32> to vector<32x32xf32>
    %cst_88 = arith.constant dense<0.000000e+00> : vector<512x32xf32>
    %103 = tpu.matmul %100, %102, %cst_88 {dimension_numbers = #tpu.dot_dimension_numbers<[1], [0], [0], [1], [0, 0, 1, 1], [], []>} : vector<512x32xf32>, vector<32x32xf32>, vector<512x32xf32> -> vector<512x32xf32>
    %104 = arith.addf %98, %103 : vector<512x32xf32>
    %c0_89 = arith.constant 0 : index
    %c2_90 = arith.constant 2 : index
    %c0_91 = arith.constant 0 : index
    %c0_92 = arith.constant 0 : index
    %105 = vector.load %arg18[%c0_89, %c2_90, %c0_91, %c0_92] : memref<8x10x10x32xf32, #tpu.memory_space<vmem>>, vector<8x8x8x32xf32>
    %106 = vector.shape_cast %105 : vector<8x8x8x32xf32> to vector<512x32xf32>
    %c6 = arith.constant 6 : index
    %c0_93 = arith.constant 0 : index
    %c0_94 = arith.constant 0 : index
    %107 = vector.load %arg5[%c6, %c0_93, %c0_94] : memref<9x32x32xf32, #tpu.memory_space<vmem>>, vector<1x32x32xf32>
    %108 = vector.shape_cast %107 : vector<1x32x32xf32> to vector<32x32xf32>
    %cst_95 = arith.constant dense<0.000000e+00> : vector<512x32xf32>
    %109 = tpu.matmul %106, %108, %cst_95 {dimension_numbers = #tpu.dot_dimension_numbers<[1], [0], [0], [1], [0, 0, 1, 1], [], []>} : vector<512x32xf32>, vector<32x32xf32>, vector<512x32xf32> -> vector<512x32xf32>
    %110 = arith.addf %104, %109 : vector<512x32xf32>
    %c0_96 = arith.constant 0 : index
    %c2_97 = arith.constant 2 : index
    %c1_98 = arith.constant 1 : index
    %c0_99 = arith.constant 0 : index
    %111 = vector.load %arg18[%c0_96, %c2_97, %c1_98, %c0_99] : memref<8x10x10x32xf32, #tpu.memory_space<vmem>>, vector<8x8x8x32xf32>
    %112 = vector.shape_cast %111 : vector<8x8x8x32xf32> to vector<512x32xf32>
    %c7 = arith.constant 7 : index
    %c0_100 = arith.constant 0 : index
    %c0_101 = arith.constant 0 : index
    %113 = vector.load %arg5[%c7, %c0_100, %c0_101] : memref<9x32x32xf32, #tpu.memory_space<vmem>>, vector<1x32x32xf32>
    %114 = vector.shape_cast %113 : vector<1x32x32xf32> to vector<32x32xf32>
    %cst_102 = arith.constant dense<0.000000e+00> : vector<512x32xf32>
    %115 = tpu.matmul %112, %114, %cst_102 {dimension_numbers = #tpu.dot_dimension_numbers<[1], [0], [0], [1], [0, 0, 1, 1], [], []>} : vector<512x32xf32>, vector<32x32xf32>, vector<512x32xf32> -> vector<512x32xf32>
    %116 = arith.addf %110, %115 : vector<512x32xf32>
    %c0_103 = arith.constant 0 : index
    %c2_104 = arith.constant 2 : index
    %c2_105 = arith.constant 2 : index
    %c0_106 = arith.constant 0 : index
    %117 = vector.load %arg18[%c0_103, %c2_104, %c2_105, %c0_106] : memref<8x10x10x32xf32, #tpu.memory_space<vmem>>, vector<8x8x8x32xf32>
    %118 = vector.shape_cast %117 : vector<8x8x8x32xf32> to vector<512x32xf32>
    %c8 = arith.constant 8 : index
    %c0_107 = arith.constant 0 : index
    %c0_108 = arith.constant 0 : index
    %119 = vector.load %arg5[%c8, %c0_107, %c0_108] : memref<9x32x32xf32, #tpu.memory_space<vmem>>, vector<1x32x32xf32>
    %120 = vector.shape_cast %119 : vector<1x32x32xf32> to vector<32x32xf32>
    %cst_109 = arith.constant dense<0.000000e+00> : vector<512x32xf32>
    %121 = tpu.matmul %118, %120, %cst_109 {dimension_numbers = #tpu.dot_dimension_numbers<[1], [0], [0], [1], [0, 0, 1, 1], [], []>} : vector<512x32xf32>, vector<32x32xf32>, vector<512x32xf32> -> vector<512x32xf32>
    %122 = arith.addf %116, %121 : vector<512x32xf32>
    %c0_110 = arith.constant 0 : index
    %c0_111 = arith.constant 0 : index
    %123 = vector.load %arg6[%c0_110, %c0_111] : memref<1x32xf32, #tpu.memory_space<vmem>>, vector<1x32xf32>
    %124 = vector.broadcast %123 : vector<1x32xf32> to vector<512x32xf32>
    %125 = arith.addf %122, %124 : vector<512x32xf32>
    %c0_112 = arith.constant 0 : index
    %c0_113 = arith.constant 0 : index
    %126 = vector.load %arg7[%c0_112, %c0_113] : memref<1x32xf32, #tpu.memory_space<vmem>>, vector<1x32xf32>
    %c0_114 = arith.constant 0 : index
    %c0_115 = arith.constant 0 : index
    %127 = vector.load %arg8[%c0_114, %c0_115] : memref<1x32xf32, #tpu.memory_space<vmem>>, vector<1x32xf32>
    %cst_116 = arith.constant 0.000000e+00 : f32
    %128 = vector.broadcast %cst_116 : f32 to vector<1x32xf32>
    %cst_117 = arith.constant 0.000000e+00 : f32
    %129 = vector.broadcast %cst_117 : f32 to vector<1x32xf32>
    %130 = vector.extract_strided_slice %125 {offsets = [0, 0], sizes = [128, 32], strides = [1, 1]} : vector<512x32xf32> to vector<128x32xf32>
    %cst_118 = arith.constant dense<0.000000e+00> : vector<32xf32>
    %131 = vector.multi_reduction <add>, %130, %cst_118 [0] : vector<128x32xf32> to vector<32xf32>
    %132 = vector.shape_cast %131 : vector<32xf32> to vector<1x32xf32>
    %133 = arith.addf %128, %132 : vector<1x32xf32>
    %134 = arith.mulf %130, %130 : vector<128x32xf32>
    %cst_119 = arith.constant dense<0.000000e+00> : vector<32xf32>
    %135 = vector.multi_reduction <add>, %134, %cst_119 [0] : vector<128x32xf32> to vector<32xf32>
    %136 = vector.shape_cast %135 : vector<32xf32> to vector<1x32xf32>
    %137 = arith.addf %129, %136 : vector<1x32xf32>
    %138 = vector.extract_strided_slice %125 {offsets = [128, 0], sizes = [128, 32], strides = [1, 1]} : vector<512x32xf32> to vector<128x32xf32>
    %cst_120 = arith.constant dense<0.000000e+00> : vector<32xf32>
    %139 = vector.multi_reduction <add>, %138, %cst_120 [0] : vector<128x32xf32> to vector<32xf32>
    %140 = vector.shape_cast %139 : vector<32xf32> to vector<1x32xf32>
    %141 = arith.addf %133, %140 : vector<1x32xf32>
    %142 = arith.mulf %138, %138 : vector<128x32xf32>
    %cst_121 = arith.constant dense<0.000000e+00> : vector<32xf32>
    %143 = vector.multi_reduction <add>, %142, %cst_121 [0] : vector<128x32xf32> to vector<32xf32>
    %144 = vector.shape_cast %143 : vector<32xf32> to vector<1x32xf32>
    %145 = arith.addf %137, %144 : vector<1x32xf32>
    %146 = vector.extract_strided_slice %125 {offsets = [256, 0], sizes = [128, 32], strides = [1, 1]} : vector<512x32xf32> to vector<128x32xf32>
    %cst_122 = arith.constant dense<0.000000e+00> : vector<32xf32>
    %147 = vector.multi_reduction <add>, %146, %cst_122 [0] : vector<128x32xf32> to vector<32xf32>
    %148 = vector.shape_cast %147 : vector<32xf32> to vector<1x32xf32>
    %149 = arith.addf %141, %148 : vector<1x32xf32>
    %150 = arith.mulf %146, %146 : vector<128x32xf32>
    %cst_123 = arith.constant dense<0.000000e+00> : vector<32xf32>
    %151 = vector.multi_reduction <add>, %150, %cst_123 [0] : vector<128x32xf32> to vector<32xf32>
    %152 = vector.shape_cast %151 : vector<32xf32> to vector<1x32xf32>
    %153 = arith.addf %145, %152 : vector<1x32xf32>
    %154 = vector.extract_strided_slice %125 {offsets = [384, 0], sizes = [128, 32], strides = [1, 1]} : vector<512x32xf32> to vector<128x32xf32>
    %cst_124 = arith.constant dense<0.000000e+00> : vector<32xf32>
    %155 = vector.multi_reduction <add>, %154, %cst_124 [0] : vector<128x32xf32> to vector<32xf32>
    %156 = vector.shape_cast %155 : vector<32xf32> to vector<1x32xf32>
    %157 = arith.addf %149, %156 : vector<1x32xf32>
    %158 = arith.mulf %154, %154 : vector<128x32xf32>
    %cst_125 = arith.constant dense<0.000000e+00> : vector<32xf32>
    %159 = vector.multi_reduction <add>, %158, %cst_125 [0] : vector<128x32xf32> to vector<32xf32>
    %160 = vector.shape_cast %159 : vector<32xf32> to vector<1x32xf32>
    %161 = arith.addf %153, %160 : vector<1x32xf32>
    %cst_126 = arith.constant 0.001953125 : f32
    %162 = vector.broadcast %cst_126 : f32 to vector<1x32xf32>
    %163 = arith.mulf %157, %162 : vector<1x32xf32>
    %cst_127 = arith.constant 0.001953125 : f32
    %164 = vector.broadcast %cst_127 : f32 to vector<1x32xf32>
    %165 = arith.mulf %161, %164 : vector<1x32xf32>
    %166 = arith.mulf %163, %163 : vector<1x32xf32>
    %167 = arith.subf %165, %166 : vector<1x32xf32>
    %cst_128 = arith.constant 9.99999974E-6 : f32
    %168 = vector.broadcast %cst_128 : f32 to vector<1x32xf32>
    %169 = arith.addf %167, %168 : vector<1x32xf32>
    %170 = math.rsqrt %169 : vector<1x32xf32>
    %171 = arith.mulf %126, %170 : vector<1x32xf32>
    %172 = arith.mulf %163, %171 : vector<1x32xf32>
    %173 = arith.subf %127, %172 : vector<1x32xf32>
    %174 = vector.broadcast %171 : vector<1x32xf32> to vector<512x32xf32>
    %175 = arith.mulf %125, %174 : vector<512x32xf32>
    %176 = vector.broadcast %173 : vector<1x32xf32> to vector<512x32xf32>
    %177 = arith.addf %175, %176 : vector<512x32xf32>
    %cst_129 = arith.constant 0.000000e+00 : f32
    %178 = vector.broadcast %cst_129 : f32 to vector<512x32xf32>
    %179 = arith.maximumf %177, %178 : vector<512x32xf32>
    %180 = vector.shape_cast %179 : vector<512x32xf32> to vector<8x64x32xf32>
    %cst_130 = arith.constant dense<0.000000e+00> : vector<8x32xf32>
    %181 = vector.multi_reduction <add>, %180, %cst_130 [1] : vector<8x64x32xf32> to vector<8x32xf32>
    %cst_131 = arith.constant 6.400000e+01 : f32
    %182 = vector.broadcast %cst_131 : f32 to vector<8x32xf32>
    %183 = arith.divf %181, %182 : vector<8x32xf32>
    %c0_132 = arith.constant 0 : index
    %c0_133 = arith.constant 0 : index
    %184 = vector.load %arg9[%c0_132, %c0_133] : memref<32x32xf32, #tpu.memory_space<vmem>>, vector<32x32xf32>
    %cst_134 = arith.constant dense<0.000000e+00> : vector<8x32xf32>
    %185 = tpu.matmul %183, %184, %cst_134 {dimension_numbers = #tpu.dot_dimension_numbers<[1], [0], [0], [1], [0, 0, 1, 1], [], []>} : vector<8x32xf32>, vector<32x32xf32>, vector<8x32xf32> -> vector<8x32xf32>
    %c0_135 = arith.constant 0 : index
    %c0_136 = arith.constant 0 : index
    %186 = vector.load %arg10[%c0_135, %c0_136] : memref<1x32xf32, #tpu.memory_space<vmem>>, vector<1x32xf32>
    %187 = vector.broadcast %186 : vector<1x32xf32> to vector<8x32xf32>
    %188 = arith.addf %185, %187 : vector<8x32xf32>
    %cst_137 = arith.constant 0.000000e+00 : f32
    %189 = vector.broadcast %cst_137 : f32 to vector<8x32xf32>
    %190 = arith.maximumf %188, %189 : vector<8x32xf32>
    %c0_138 = arith.constant 0 : index
    %c0_139 = arith.constant 0 : index
    %191 = vector.load %arg11[%c0_138, %c0_139] : memref<32x32xf32, #tpu.memory_space<vmem>>, vector<32x32xf32>
    %cst_140 = arith.constant dense<0.000000e+00> : vector<8x32xf32>
    %192 = tpu.matmul %190, %191, %cst_140 {dimension_numbers = #tpu.dot_dimension_numbers<[1], [0], [0], [1], [0, 0, 1, 1], [], []>} : vector<8x32xf32>, vector<32x32xf32>, vector<8x32xf32> -> vector<8x32xf32>
    %c0_141 = arith.constant 0 : index
    %c0_142 = arith.constant 0 : index
    %193 = vector.load %arg12[%c0_141, %c0_142] : memref<1x32xf32, #tpu.memory_space<vmem>>, vector<1x32xf32>
    %194 = vector.broadcast %193 : vector<1x32xf32> to vector<8x32xf32>
    %195 = arith.addf %192, %194 : vector<8x32xf32>
    %cst_143 = arith.constant 0.000000e+00 : f32
    %196 = vector.broadcast %cst_143 : f32 to vector<8x32xf32>
    %197 = arith.maximumf %195, %196 : vector<8x32xf32>
    %cst_144 = arith.constant dense<0.000000e+00> : vector<8xf32>
    %198 = vector.multi_reduction <add>, %197, %cst_144 [1] : vector<8x32xf32> to vector<8xf32>
    %199 = vector.shape_cast %198 : vector<8xf32> to vector<8x1xf32>
    %cst_145 = arith.constant 3.200000e+01 : f32
    %200 = vector.broadcast %cst_145 : f32 to vector<8x1xf32>
    %201 = arith.divf %199, %200 : vector<8x1xf32>
    %202 = vector.broadcast %201 : vector<8x1xf32> to vector<8x32xf32>
    %203 = arith.subf %197, %202 : vector<8x32xf32>
    %204 = arith.mulf %203, %203 : vector<8x32xf32>
    %cst_146 = arith.constant dense<0.000000e+00> : vector<8xf32>
    %205 = vector.multi_reduction <add>, %204, %cst_146 [1] : vector<8x32xf32> to vector<8xf32>
    %206 = vector.shape_cast %205 : vector<8xf32> to vector<8x1xf32>
    %cst_147 = arith.constant 3.200000e+01 : f32
    %207 = vector.broadcast %cst_147 : f32 to vector<8x1xf32>
    %208 = arith.divf %206, %207 : vector<8x1xf32>
    %209 = vector.broadcast %201 : vector<8x1xf32> to vector<8x32xf32>
    %210 = arith.subf %197, %209 : vector<8x32xf32>
    %cst_148 = arith.constant 9.99999974E-6 : f32
    %211 = vector.broadcast %cst_148 : f32 to vector<8x1xf32>
    %212 = arith.addf %208, %211 : vector<8x1xf32>
    %213 = math.rsqrt %212 : vector<8x1xf32>
    %214 = vector.broadcast %213 : vector<8x1xf32> to vector<8x32xf32>
    %215 = arith.mulf %210, %214 : vector<8x32xf32>
    %c0_149 = arith.constant 0 : index
    %c0_150 = arith.constant 0 : index
    %216 = vector.load %arg13[%c0_149, %c0_150] : memref<1x32xf32, #tpu.memory_space<vmem>>, vector<1x32xf32>
    %217 = vector.broadcast %216 : vector<1x32xf32> to vector<8x32xf32>
    %218 = arith.mulf %215, %217 : vector<8x32xf32>
    %c0_151 = arith.constant 0 : index
    %c0_152 = arith.constant 0 : index
    %219 = vector.load %arg14[%c0_151, %c0_152] : memref<1x32xf32, #tpu.memory_space<vmem>>, vector<1x32xf32>
    %220 = vector.broadcast %219 : vector<1x32xf32> to vector<8x32xf32>
    %221 = arith.addf %218, %220 : vector<8x32xf32>
    %c0_153 = arith.constant 0 : index
    %c0_154 = arith.constant 0 : index
    %222 = vector.load %arg15[%c0_153, %c0_154] : memref<32x16xf32, #tpu.memory_space<vmem>>, vector<32x16xf32>
    %cst_155 = arith.constant dense<0.000000e+00> : vector<8x16xf32>
    %223 = tpu.matmul %221, %222, %cst_155 {dimension_numbers = #tpu.dot_dimension_numbers<[1], [0], [0], [1], [0, 0, 1, 1], [], []>} : vector<8x32xf32>, vector<32x16xf32>, vector<8x16xf32> -> vector<8x16xf32>
    %c0_156 = arith.constant 0 : index
    %c0_157 = arith.constant 0 : index
    %224 = vector.load %arg16[%c0_156, %c0_157] : memref<1x16xf32, #tpu.memory_space<vmem>>, vector<1x16xf32>
    %225 = vector.broadcast %224 : vector<1x16xf32> to vector<8x16xf32>
    %226 = arith.addf %223, %225 : vector<8x16xf32>
    %c0_158 = arith.constant 0 : index
    %c0_159 = arith.constant 0 : index
    %227 = vector.load %arg17[%c0_158, %c0_159] : memref<8x16xf32, #tpu.memory_space<vmem>>, vector<8x16xf32>
    tpu.vector_store %arg17[%c0_158, %c0_159], %226 {strides = array<i32>} : memref<8x16xf32, #tpu.memory_space<vmem>>, vector<8x16xf32>,
    return
  }
}

</mosaic_0001>

<llo_original>
// kernel: transe_forward.1
$region0: #{transe_forward.1}
  #allocation0 [shape = 'u32[]', space=smem, size = 0x4, offset = 0x4, fixed_abs, tag = 'smem constant byte address 0x4 - core index']
  #allocation1 [shape = 'u32[144,128]{1,0:T(1,128)}', space=vmem, size = 0x12000, scoped, tag = 'internal scratch']
  #allocation2 [shape = 'f32[8,10,10,32]{3,2,1,0:T(8,128)}', space=vmem, size = 0xa0000, scoped, tag = 'scratch operand']
  %s0 = inlined_call_operand.vmem [shape: f32[512,36], index: 0, kind: input, shape index: {}]
  %s1 = inlined_call_operand.vmem [shape: f32[36,32], index: 1, kind: input, shape index: {}]
  %s2 = inlined_call_operand.vmem [shape: f32[1,32], index: 2, kind: input, shape index: {}]
  %s3 = inlined_call_operand.vmem [shape: f32[1,32], index: 3, kind: input, shape index: {}]
  %s4 = inlined_call_operand.vmem [shape: f32[1,32], index: 4, kind: input, shape index: {}]
  %s5 = inlined_call_operand.vmem [shape: f32[9,32,32], index: 5, kind: input, shape index: {}]
  %s6 = inlined_call_operand.vmem [shape: f32[1,32], index: 6, kind: input, shape index: {}]
  %s7 = inlined_call_operand.vmem [shape: f32[1,32], index: 7, kind: input, shape index: {}]
  %s8 = inlined_call_operand.vmem [shape: f32[1,32], index: 8, kind: input, shape index: {}]
  %s9 = inlined_call_operand.vmem [shape: f32[32,32], index: 9, kind: input, shape index: {}]
  %s10 = inlined_call_operand.vmem [shape: f32[1,32], index: 10, kind: input, shape index: {}]
  %s11 = inlined_call_operand.vmem [shape: f32[32,32], index: 11, kind: input, shape index: {}]
  %s12 = inlined_call_operand.vmem [shape: f32[1,32], index: 12, kind: input, shape index: {}]
  %s13 = inlined_call_operand.vmem [shape: f32[1,32], index: 13, kind: input, shape index: {}]
  %s14 = inlined_call_operand.vmem [shape: f32[1,32], index: 14, kind: input, shape index: {}]
  %s15 = inlined_call_operand.vmem [shape: f32[32,16], index: 15, kind: input, shape index: {}]
  %s16 = inlined_call_operand.vmem [shape: f32[1,16], index: 16, kind: input, shape index: {}]
  %s17 = inlined_call_operand.hbm [shape: f32[8,16], index: 17, kind: output, shape index: {}]
  %s18 = sld [smem:[#allocation0]]
  $region78: #{transe_forward.1} parent=0
    _
  %s20 = ssub.s32 1, %s18
  %s21 = scalar_select 0, %s20, %s18
  $region1: #{transe_forward.1} parent=0
    #allocation3 [shape = 'u8[4096]{0}', space=vmem, size = 0x1000, scoped, tag = 'output window, operand 0, single buffered']
    #allocation4 [shape = 's32[1]{0}', space=sflag, size = 0x4, scoped, tag = 'scoped memory for transe_forward.1']
    %22 = vsyncpa [#allocation4], 0
    // Predicated region
    $region2: #{transe_forward.1} parent=1 // pred_check
      _
    $region3: #{transe_forward.1} parent=1 // pred_check_branch
      %24 = sbr.rel (0) target = $region5
    $region4: #{transe_forward.1} parent=1 // pred_region
      _
    $region5: #{transe_forward.1} parent=1 // pred_fallthru
      _
    // Predicated region
    $region6: #{transe_forward.1} parent=1 // pred_check
      _
    $region7: #{transe_forward.1} parent=1 // pred_check_branch
      %26 = sbr.rel (0) target = $region9
    $region8: #{transe_forward.1} parent=1 // pred_region
      _
    $region9: #{transe_forward.1} parent=1 // pred_fallthru
      _
    // Predicated region
    $region10: #{transe_forward.1} parent=1 // pred_check
      _
    $region11: #{transe_forward.1} parent=1 // pred_check_branch
      %28 = sbr.rel (0) target = $region13
    $region12: #{transe_forward.1} parent=1 // pred_region
      _
    $region13: #{transe_forward.1} parent=1 // pred_fallthru
      _
    // Predicated region
    $region14: #{transe_forward.1} parent=1 // pred_check
      _
    $region15: #{transe_forward.1} parent=1 // pred_check_branch
      %30 = sbr.rel (0) target = $region17
    $region16: #{transe_forward.1} parent=1 // pred_region
      _
    $region17: #{transe_forward.1} parent=1 // pred_fallthru
      _
    // Predicated region
    $region18: #{transe_forward.1} parent=1 // pred_check
      _
    $region19: #{transe_forward.1} parent=1 // pred_check_branch
      %32 = sbr.rel (0) target = $region21
    $region20: #{transe_forward.1} parent=1 // pred_region
      _
    $region21: #{transe_forward.1} parent=1 // pred_fallthru
      _
    // Predicated region
    $region22: #{transe_forward.1} parent=1 // pred_check
      _
    $region23: #{transe_forward.1} parent=1 // pred_check_branch
      %34 = sbr.rel (0) target = $region25
    $region24: #{transe_forward.1} parent=1 // pred_region
      _
    $region25: #{transe_forward.1} parent=1 // pred_fallthru
      _
    // Predicated region
    $region26: #{transe_forward.1} parent=1 // pred_check
      _
    $region27: #{transe_forward.1} parent=1 // pred_check_branch
      %36 = sbr.rel (0) target = $region29
    $region28: #{transe_forward.1} parent=1 // pred_region
      _
    $region29: #{transe_forward.1} parent=1 // pred_fallthru
      _
    // Predicated region
    $region30: #{transe_forward.1} parent=1 // pred_check
      _
    $region31: #{transe_forward.1} parent=1 // pred_check_branch
      %38 = sbr.rel (0) target = $region33
    $region32: #{transe_forward.1} parent=1 // pred_region
      _
    $region33: #{transe_forward.1} parent=1 // pred_fallthru
      _
    // Predicated region
    $region34: #{transe_forward.1} parent=1 // pred_check
      _
    $region35: #{transe_forward.1} parent=1 // pred_check_branch
      %40 = sbr.rel (0) target = $region37
    $region36: #{transe_forward.1} parent=1 // pred_region
      _
    $region37: #{transe_forward.1} parent=1 // pred_fallthru
      _
    // Predicated region
    $region38: #{transe_forward.1} parent=1 // pred_check
      _
    $region39: #{transe_forward.1} parent=1 // pred_check_branch
      %42 = sbr.rel (0) target = $region41
    $region40: #{transe_forward.1} parent=1 // pred_region
      _
    $region41: #{transe_forward.1} parent=1 // pred_fallthru
      _
    // Predicated region
    $region42: #{transe_forward.1} parent=1 // pred_check
      _
    $region43: #{transe_forward.1} parent=1 // pred_check_branch
      %44 = sbr.rel (0) target = $region45
    $region44: #{transe_forward.1} parent=1 // pred_region
      _
    $region45: #{transe_forward.1} parent=1 // pred_fallthru
      _
    // Predicated region
    $region46: #{transe_forward.1} parent=1 // pred_check
      _
    $region47: #{transe_forward.1} parent=1 // pred_check_branch
      %46 = sbr.rel (0) target = $region49
    $region48: #{transe_forward.1} parent=1 // pred_region
      _
    $region49: #{transe_forward.1} parent=1 // pred_fallthru
      _
    // Predicated region
    $region50: #{transe_forward.1} parent=1 // pred_check
      _
    $region51: #{transe_forward.1} parent=1 // pred_check_branch
      %48 = sbr.rel (0) target = $region53
    $region52: #{transe_forward.1} parent=1 // pred_region
      _
    $region53: #{transe_forward.1} parent=1 // pred_fallthru
      _
    // Predicated region
    $region54: #{transe_forward.1} parent=1 // pred_check
      _
    $region55: #{transe_forward.1} parent=1 // pred_check_branch
      %50 = sbr.rel (0) target = $region57
    $region56: #{transe_forward.1} parent=1 // pred_region
      _
    $region57: #{transe_forward.1} parent=1 // pred_fallthru
      _
    // Predicated region
    $region58: #{transe_forward.1} parent=1 // pred_check
      _
    $region59: #{transe_forward.1} parent=1 // pred_check_branch
      %52 = sbr.rel (0) target = $region61
    $region60: #{transe_forward.1} parent=1 // pred_region
      _
    $region61: #{transe_forward.1} parent=1 // pred_fallthru
      _
    // Predicated region
    $region62: #{transe_forward.1} parent=1 // pred_check
      _
    $region63: #{transe_forward.1} parent=1 // pred_check_branch
      %54 = sbr.rel (0) target = $region65
    $region64: #{transe_forward.1} parent=1 // pred_region
      _
    $region65: #{transe_forward.1} parent=1 // pred_fallthru
      _
    // Predicated region
    $region66: #{transe_forward.1} parent=1 // pred_check
      _
    $region67: #{transe_forward.1} parent=1 // pred_check_branch
      %56 = sbr.rel (0) target = $region69
    $region68: #{transe_forward.1} parent=1 // pred_region
      _
    $region69: #{transe_forward.1} parent=1 // pred_fallthru
      _
    %v57 = vld [vmem:[%s0] sm:$0xff]
    %v58 = vld [vmem:[%s0 + $0x8] sm:$0xff]
    %v59 = vld [vmem:[%s0 + $0x10] sm:$0xff]
    %v60 = vld [vmem:[%s0 + $0x18] sm:$0xff]
    %v61 = vld [vmem:[%s0 + $0x20] sm:$0xff]
    %v62 = vld [vmem:[%s0 + $0x28] sm:$0xff]
    %v63 = vld [vmem:[%s0 + $0x30] sm:$0xff]
    %v64 = vld [vmem:[%s0 + $0x38] sm:$0xff]
    %v65 = vld [vmem:[%s0 + $0x40] sm:$0xff]
    %v66 = vld [vmem:[%s0 + $0x48] sm:$0xff]
    %v67 = vld [vmem:[%s0 + $0x50] sm:$0xff]
    %v68 = vld [vmem:[%s0 + $0x58] sm:$0xff]
    %v69 = vld [vmem:[%s0 + $0x60] sm:$0xff]
    %v70 = vld [vmem:[%s0 + $0x68] sm:$0xff]
    %v71 = vld [vmem:[%s0 + $0x70] sm:$0xff]
    %v72 = vld [vmem:[%s0 + $0x78] sm:$0xff]
    %v73 = vld [vmem:[%s0 + $0x80] sm:$0xff]
    %v74 = vld [vmem:[%s0 + $0x88] sm:$0xff]
    %v75 = vld [vmem:[%s0 + $0x90] sm:$0xff]
    %v76 = vld [vmem:[%s0 + $0x98] sm:$0xff]
    %v77 = vld [vmem:[%s0 + $0xa0] sm:$0xff]
    %v78 = vld [vmem:[%s0 + $0xa8] sm:$0xff]
    %v79 = vld [vmem:[%s0 + $0xb0] sm:$0xff]
    %v80 = vld [vmem:[%s0 + $0xb8] sm:$0xff]
    %v81 = vld [vmem:[%s0 + $0xc0] sm:$0xff]
    %v82 = vld [vmem:[%s0 + $0xc8] sm:$0xff]
    %v83 = vld [vmem:[%s0 + $0xd0] sm:$0xff]
    %v84 = vld [vmem:[%s0 + $0xd8] sm:$0xff]
    %v85 = vld [vmem:[%s0 + $0xe0] sm:$0xff]
    %v86 = vld [vmem:[%s0 + $0xe8] sm:$0xff]
    %v87 = vld [vmem:[%s0 + $0xf0] sm:$0xff]
    %v88 = vld [vmem:[%s0 + $0xf8] sm:$0xff]
    %v89 = vld [vmem:[%s0 + $0x100] sm:$0xff]
    %v90 = vld [vmem:[%s0 + $0x108] sm:$0xff]
    %v91 = vld [vmem:[%s0 + $0x110] sm:$0xff]
    %v92 = vld [vmem:[%s0 + $0x118] sm:$0xff]
    %v93 = vld [vmem:[%s0 + $0x120] sm:$0xff]
    %v94 = vld [vmem:[%s0 + $0x128] sm:$0xff]
    %v95 = vld [vmem:[%s0 + $0x130] sm:$0xff]
    %v96 = vld [vmem:[%s0 + $0x138] sm:$0xff]
    %v97 = vld [vmem:[%s0 + $0x140] sm:$0xff]
    %v98 = vld [vmem:[%s0 + $0x148] sm:$0xff]
    %v99 = vld [vmem:[%s0 + $0x150] sm:$0xff]
    %v100 = vld [vmem:[%s0 + $0x158] sm:$0xff]
    %v101 = vld [vmem:[%s0 + $0x160] sm:$0xff]
    %v102 = vld [vmem:[%s0 + $0x168] sm:$0xff]
    %v103 = vld [vmem:[%s0 + $0x170] sm:$0xff]
    %v104 = vld [vmem:[%s0 + $0x178] sm:$0xff]
    %v105 = vld [vmem:[%s0 + $0x180] sm:$0xff]
    %v106 = vld [vmem:[%s0 + $0x188] sm:$0xff]
    %v107 = vld [vmem:[%s0 + $0x190] sm:$0xff]
    %v108 = vld [vmem:[%s0 + $0x198] sm:$0xff]
    %v109 = vld [vmem:[%s0 + $0x1a0] sm:$0xff]
    %v110 = vld [vmem:[%s0 + $0x1a8] sm:$0xff]
    %v111 = vld [vmem:[%s0 + $0x1b0] sm:$0xff]
    %v112 = vld [vmem:[%s0 + $0x1b8] sm:$0xff]
    %v113 = vld [vmem:[%s0 + $0x1c0] sm:$0xff]
    %v114 = vld [vmem:[%s0 + $0x1c8] sm:$0xff]
    %v115 = vld [vmem:[%s0 + $0x1d0] sm:$0xff]
    %v116 = vld [vmem:[%s0 + $0x1d8] sm:$0xff]
    %v117 = vld [vmem:[%s0 + $0x1e0] sm:$0xff]
    %v118 = vld [vmem:[%s0 + $0x1e8] sm:$0xff]
    %v119 = vld [vmem:[%s0 + $0x1f0] sm:$0xff]
    %v120 = vld [vmem:[%s0 + $0x1f8] sm:$0xff]
    %v121 = vld [vmem:[%s1] sm:$0xff]
    %v122 = vld [vmem:[%s1 + $0x8] sm:$0xff]
    %v123 = vld [vmem:[%s1 + $0x10] sm:$0xff]
    %v124 = vld [vmem:[%s1 + $0x18] sm:$0xff]
    %v125 = vld [vmem:[%s1 + $0x20] sm:$0xf]
    %v126 = vld [vmem:[%s2] sm:$0x1]
    %v128 = vlaneseq
    %v129 = vshrl.u32 %v128, 7
    %v130 = vsub.s32 0, %v129
    %v131 = vrot.slane %v126, %v130
    %vm133 = vcmask 293888
    %v135 = vsel %vm133, %v57, 0
    %v138 = vsel %vm133, %v58, 0
    %v141 = vsel %vm133, %v59, 0
    %v144 = vsel %vm133, %v60, 0
    %v147 = vsel %vm133, %v61, 0
    %v150 = vsel %vm133, %v62, 0
    %v153 = vsel %vm133, %v63, 0
    %v156 = vsel %vm133, %v64, 0
    %v159 = vsel %vm133, %v65, 0
    %v162 = vsel %vm133, %v66, 0
    %v165 = vsel %vm133, %v67, 0
    %v168 = vsel %vm133, %v68, 0
    %v171 = vsel %vm133, %v69, 0
    %v174 = vsel %vm133, %v70, 0
    %v177 = vsel %vm133, %v71, 0
    %v180 = vsel %vm133, %v72, 0
    %v183 = vsel %vm133, %v73, 0
    %v186 = vsel %vm133, %v74, 0
    %v189 = vsel %vm133, %v75, 0
    %v192 = vsel %vm133, %v76, 0
    %v195 = vsel %vm133, %v77, 0
    %v198 = vsel %vm133, %v78, 0
    %v201 = vsel %vm133, %v79, 0
    %v204 = vsel %vm133, %v80, 0
    %v207 = vsel %vm133, %v81, 0
    %v210 = vsel %vm133, %v82, 0
    %v213 = vsel %vm133, %v83, 0
    %v216 = vsel %vm133, %v84, 0
    %v219 = vsel %vm133, %v85, 0
    %v222 = vsel %vm133, %v86, 0
    %v225 = vsel %vm133, %v87, 0
    %v228 = vsel %vm133, %v88, 0
    %v231 = vsel %vm133, %v89, 0
    %v234 = vsel %vm133, %v90, 0
    %v237 = vsel %vm133, %v91, 0
    %v240 = vsel %vm133, %v92, 0
    %v243 = vsel %vm133, %v93, 0
    %v246 = vsel %vm133, %v94, 0
    %v249 = vsel %vm133, %v95, 0
    %v252 = vsel %vm133, %v96, 0
    %v255 = vsel %vm133, %v97, 0
    %v258 = vsel %vm133, %v98, 0
    %v261 = vsel %vm133, %v99, 0
    %v264 = vsel %vm133, %v100, 0
    %v267 = vsel %vm133, %v101, 0
    %v270 = vsel %vm133, %v102, 0
    %v273 = vsel %vm133, %v103, 0
    %v276 = vsel %vm133, %v104, 0
    %v279 = vsel %vm133, %v105, 0
    %v282 = vsel %vm133, %v106, 0
    %v285 = vsel %vm133, %v107, 0
    %v288 = vsel %vm133, %v108, 0
    %v291 = vsel %vm133, %v109, 0
    %v294 = vsel %vm133, %v110, 0
    %v297 = vsel %vm133, %v111, 0
    %v300 = vsel %vm133, %v112, 0
    %v303 = vsel %vm133, %v113, 0
    %v306 = vsel %vm133, %v114, 0
    %v309 = vsel %vm133, %v115, 0
    %v312 = vsel %vm133, %v116, 0
    %v315 = vsel %vm133, %v117, 0
    %v318 = vsel %vm133, %v118, 0
    %v321 = vsel %vm133, %v119, 0
    %v324 = vsel %vm133, %v120, 0
    %vm326 = vcmask 1043456
    %v328 = vsel %vm326, %v125, 0
    %330 = vmatprep.subr.mxu0 0.0
    %331 = vmatpush1.msra.mxu0 %v121
    %332 = vmatprep.subr.mxu0 0.0
    %333 = vmatpush1.msra.mxu0 %v122
    %334 = vmatprep.subr.mxu0 0.0
    %335 = vmatpush1.msra.mxu0 %v123
    %336 = vmatprep.subr.mxu0 0.0
    %337 = vmatpush1.msra.mxu0 %v124
    %338 = vmatprep.subr.mxu0 0.0
    %339 = vmatpush1.msra.mxu0 %v328
    %340 = vmatprep.subr.mxu0 0.0
    %341 = vmatpush1.msra.mxu0 0.0
    %342 = vmatprep.subr.mxu0 0.0
    %343 = vmatpush1.msra.mxu0 0.0
    %344 = vmatprep.subr.mxu0 0.0
    %345 = vmatpush1.msra.mxu0 0.0
    %346 = vmatprep.subr.mxu0 0.0
    %347 = vmatpush1.msra.mxu0 0.0
    %348 = vmatprep.subr.mxu0 0.0
    %349 = vmatpush1.msra.mxu0 0.0
    %350 = vmatprep.subr.mxu0 0.0
    %351 = vmatpush1.msra.mxu0 0.0
    %352 = vmatprep.subr.mxu0 0.0
    %353 = vmatpush1.msra.mxu0 0.0
    %354 = vmatprep.subr.mxu0 0.0
    %355 = vmatpush1.msra.mxu0 0.0
    %356 = vmatprep.subr.mxu0 0.0
    %357 = vmatpush1.msra.mxu0 0.0
    %358 = vmatprep.subr.mxu0 0.0
    %359 = vmatpush1.msra.mxu0 0.0
    %360 = vmatprep.subr.mxu0 0.0
    %361 = vmatpush1.msra.mxu0 0.0
    %362 = vmatprep.subr.mxu0 0.0
    %363 = vmatpush1.msra.mxu0 0.0
    %364 = vmatprep.subr.mxu0 0.0
    %365 = vmatpush1.msra.mxu0 0.0
    %366 = vmatprep.subr.mxu0 0.0
    %367 = vmatpush1.msra.mxu0 0.0
    %368 = vmatprep.subr.mxu0 0.0
    %369 = vmatpush1.msra.mxu0 0.0
    %370 = vmatprep.subr.mxu0 0.0
    %371 = vmatpush1.msra.mxu0 0.0
    %372 = vmatprep.subr.mxu0 0.0
    %373 = vmatpush1.msra.mxu0 0.0
    %374 = vmatprep.subr.mxu0 0.0
    %375 = vmatpush1.msra.mxu0 0.0
    %376 = vmatprep.subr.mxu0 0.0
    %377 = vmatpush1.msra.mxu0 0.0
    %378 = vmatprep.subr.mxu0 0.0
    %379 = vmatpush1.msra.mxu0 0.0
    %380 = vmatprep.subr.mxu0 0.0
    %381 = vmatpush1.msra.mxu0 0.0
    %382 = vmatprep.subr.mxu0 0.0
    %383 = vmatpush1.msra.mxu0 0.0
    %384 = vmatprep.subr.mxu0 0.0
    %385 = vmatpush1.msra.mxu0 0.0
    %386 = vmatprep.subr.mxu0 0.0
    %387 = vmatpush1.msra.mxu0 0.0
    %388 = vmatprep.subr.mxu0 0.0
    %389 = vmatpush1.msra.mxu0 0.0
    %390 = vmatprep.subr.mxu0 0.0
    %391 = vmatpush1.msra.mxu0 0.0
    %392 = vmatprep.subr.mxu0 0.0
    %393 = vmatpush1.msra.mxu0 0.0
    %394 = vmatprep.mubr.f32.mxu0 0.0
    %395 = vmatmul.mubr.f32.gmra.mrb[0].mxu0 %v135
    %v396 = vpop.f32.mrb[0].mxu0
    %v397 = vadd.f32 %v131, %v396
    %v398 = vpop.f32.mrb[0].mxu0
    %399 = vmatprep.mubr.f32.mxu0 0.0
    %400 = vmatmul.mubr.f32.gmra.mrb[0].mxu0 %v138
    %v401 = vpop.f32.mrb[0].mxu0
    %v402 = vadd.f32 %v131, %v401
    %v403 = vpop.f32.mrb[0].mxu0
    %404 = vmatprep.mubr.f32.mxu0 0.0
    %405 = vmatmul.mubr.f32.gmra.mrb[0].mxu0 %v141
    %v406 = vpop.f32.mrb[0].mxu0
    %v407 = vadd.f32 %v131, %v406
    %v408 = vpop.f32.mrb[0].mxu0
    %409 = vmatprep.mubr.f32.mxu0 0.0
    %410 = vmatmul.mubr.f32.gmra.mrb[0].mxu0 %v144
    %v411 = vpop.f32.mrb[0].mxu0
    %v412 = vadd.f32 %v131, %v411
    %v413 = vpop.f32.mrb[0].mxu0
    %414 = vmatprep.mubr.f32.mxu0 0.0
    %415 = vmatmul.mubr.f32.gmra.mrb[0].mxu0 %v147
    %v416 = vpop.f32.mrb[0].mxu0
    %v417 = vadd.f32 %v131, %v416
    %v418 = vpop.f32.mrb[0].mxu0
    %419 = vmatprep.mubr.f32.mxu0 0.0
    %420 = vmatmul.mubr.f32.gmra.mrb[0].mxu0 %v150
    %v421 = vpop.f32.mrb[0].mxu0
    %v422 = vadd.f32 %v131, %v421
    %v423 = vpop.f32.mrb[0].mxu0
    %424 = vmatprep.mubr.f32.mxu0 0.0
    %425 = vmatmul.mubr.f32.gmra.mrb[0].mxu0 %v153
    %v426 = vpop.f32.mrb[0].mxu0
    %v427 = vadd.f32 %v131, %v426
    %v428 = vpop.f32.mrb[0].mxu0
    %429 = vmatprep.mubr.f32.mxu0 0.0
    %430 = vmatmul.mubr.f32.gmra.mrb[0].mxu0 %v156
    %v431 = vpop.f32.mrb[0].mxu0
    %v432 = vadd.f32 %v131, %v431
    %v433 = vpop.f32.mrb[0].mxu0
    %434 = vmatprep.mubr.f32.mxu0 0.0
    %435 = vmatmul.mubr.f32.gmra.mrb[0].mxu0 %v159
    %v436 = vpop.f32.mrb[0].mxu0
    %v437 = vadd.f32 %v131, %v436
    %v438 = vpop.f32.mrb[0].mxu0
    %439 = vmatprep.mubr.f32.mxu0 0.0
    %440 = vmatmul.mubr.f32.gmra.mrb[0].mxu0 %v162
    %v441 = vpop.f32.mrb[0].mxu0
    %v442 = vadd.f32 %v131, %v441
    %v443 = vpop.f32.mrb[0].mxu0
    %444 = vmatprep.mubr.f32.mxu0 0.0
    %445 = vmatmul.mubr.f32.gmra.mrb[0].mxu0 %v165
    %v446 = vpop.f32.mrb[0].mxu0
    %v447 = vadd.f32 %v131, %v446
    %v448 = vpop.f32.mrb[0].mxu0
    %449 = vmatprep.mubr.f32.mxu0 0.0
    %450 = vmatmul.mubr.f32.gmra.mrb[0].mxu0 %v168
    %v451 = vpop.f32.mrb[0].mxu0
    %v452 = vadd.f32 %v131, %v451
    %v453 = vpop.f32.mrb[0].mxu0
    %454 = vmatprep.mubr.f32.mxu0 0.0
    %455 = vmatmul.mubr.f32.gmra.mrb[0].mxu0 %v171
    %v456 = vpop.f32.mrb[0].mxu0
    %v457 = vadd.f32 %v131, %v456
    %v458 = vpop.f32.mrb[0].mxu0
    %459 = vmatprep.mubr.f32.mxu0 0.0
    %460 = vmatmul.mubr.f32.gmra.mrb[0].mxu0 %v174
    %v461 = vpop.f32.mrb[0].mxu0
    %v462 = vadd.f32 %v131, %v461
    %v463 = vpop.f32.mrb[0].mxu0
    %464 = vmatprep.mubr.f32.mxu0 0.0
    %465 = vmatmul.mubr.f32.gmra.mrb[0].mxu0 %v177
    %v466 = vpop.f32.mrb[0].mxu0
    %v467 = vadd.f32 %v131, %v466
    %v468 = vpop.f32.mrb[0].mxu0
    %469 = vmatprep.mubr.f32.mxu0 0.0
    %470 = vmatmul.mubr.f32.gmra.mrb[0].mxu0 %v180
    %v471 = vpop.f32.mrb[0].mxu0
    %v472 = vadd.f32 %v131, %v471
    %v473 = vpop.f32.mrb[0].mxu0
    %474 = vmatprep.mubr.f32.mxu0 0.0
    %475 = vmatmul.mubr.f32.gmra.mrb[0].mxu0 %v183
    %v476 = vpop.f32.mrb[0].mxu0
    %v477 = vadd.f32 %v131, %v476
    %v478 = vpop.f32.mrb[0].mxu0
    %479 = vmatprep.mubr.f32.mxu0 0.0
    %480 = vmatmul.mubr.f32.gmra.mrb[0].mxu0 %v186
    %v481 = vpop.f32.mrb[0].mxu0
    %v482 = vadd.f32 %v131, %v481
    %v483 = vpop.f32.mrb[0].mxu0
    %484 = vmatprep.mubr.f32.mxu0 0.0
    %485 = vmatmul.mubr.f32.gmra.mrb[0].mxu0 %v189
    %v486 = vpop.f32.mrb[0].mxu0
    %v487 = vadd.f32 %v131, %v486
    %v488 = vpop.f32.mrb[0].mxu0
    %489 = vmatprep.mubr.f32.mxu0 0.0
    %490 = vmatmul.mubr.f32.gmra.mrb[0].mxu0 %v192
    %v491 = vpop.f32.mrb[0].mxu0
    %v492 = vadd.f32 %v131, %v491
    %v493 = vpop.f32.mrb[0].mxu0
    %494 = vmatprep.mubr.f32.mxu0 0.0
    %495 = vmatmul.mubr.f32.gmra.mrb[0].mxu0 %v195
    %v496 = vpop.f32.mrb[0].mxu0
    %v497 = vadd.f32 %v131, %v496
    %v498 = vpop.f32.mrb[0].mxu0
    %499 = vmatprep.mubr.f32.mxu0 0.0
    %500 = vmatmul.mubr.f32.gmra.mrb[0].mxu0 %v198
    %v501 = vpop.f32.mrb[0].mxu0
    %v502 = vadd.f32 %v131, %v501
    %v503 = vpop.f32.mrb[0].mxu0
    %504 = vmatprep.mubr.f32.mxu0 0.0
    %505 = vmatmul.mubr.f32.gmra.mrb[0].mxu0 %v201
    %v506 = vpop.f32.mrb[0].mxu0
    %v507 = vadd.f32 %v131, %v506
    %v508 = vpop.f32.mrb[0].mxu0
    %509 = vmatprep.mubr.f32.mxu0 0.0
    %510 = vmatmul.mubr.f32.gmra.mrb[0].mxu0 %v204
    %v511 = vpop.f32.mrb[0].mxu0
    %v512 = vadd.f32 %v131, %v511
    %v513 = vpop.f32.mrb[0].mxu0
    %514 = vmatprep.mubr.f32.mxu0 0.0
    %515 = vmatmul.mubr.f32.gmra.mrb[0].mxu0 %v207
    %v516 = vpop.f32.mrb[0].mxu0
    %v517 = vadd.f32 %v131, %v516
    %v518 = vpop.f32.mrb[0].mxu0
    %519 = vmatprep.mubr.f32.mxu0 0.0
    %520 = vmatmul.mubr.f32.gmra.mrb[0].mxu0 %v210
    %v521 = vpop.f32.mrb[0].mxu0
    %v522 = vadd.f32 %v131, %v521
    %v523 = vpop.f32.mrb[0].mxu0
    %524 = vmatprep.mubr.f32.mxu0 0.0
    %525 = vmatmul.mubr.f32.gmra.mrb[0].mxu0 %v213
    %v526 = vpop.f32.mrb[0].mxu0
    %v527 = vadd.f32 %v131, %v526
    %v528 = vpop.f32.mrb[0].mxu0
    %529 = vmatprep.mubr.f32.mxu0 0.0
    %530 = vmatmul.mubr.f32.gmra.mrb[0].mxu0 %v216
    %v531 = vpop.f32.mrb[0].mxu0
    %v532 = vadd.f32 %v131, %v531
    %v533 = vpop.f32.mrb[0].mxu0
    %534 = vmatprep.mubr.f32.mxu0 0.0
    %535 = vmatmul.mubr.f32.gmra.mrb[0].mxu0 %v219
    %v536 = vpop.f32.mrb[0].mxu0
    %v537 = vadd.f32 %v131, %v536
    %v538 = vpop.f32.mrb[0].mxu0
    %539 = vmatprep.mubr.f32.mxu0 0.0
    %540 = vmatmul.mubr.f32.gmra.mrb[0].mxu0 %v222
    %v541 = vpop.f32.mrb[0].mxu0
    %v542 = vadd.f32 %v131, %v541
    %v543 = vpop.f32.mrb[0].mxu0
    %544 = vmatprep.mubr.f32.mxu0 0.0
    %545 = vmatmul.mubr.f32.gmra.mrb[0].mxu0 %v225
    %v546 = vpop.f32.mrb[0].mxu0
    %v547 = vadd.f32 %v131, %v546
    %v548 = vpop.f32.mrb[0].mxu0
    %549 = vmatprep.mubr.f32.mxu0 0.0
    %550 = vmatmul.mubr.f32.gmra.mrb[0].mxu0 %v228
    %v551 = vpop.f32.mrb[0].mxu0
    %v552 = vadd.f32 %v131, %v551
    %v553 = vpop.f32.mrb[0].mxu0
    %554 = vmatprep.mubr.f32.mxu0 0.0
    %555 = vmatmul.mubr.f32.gmra.mrb[0].mxu0 %v231
    %v556 = vpop.f32.mrb[0].mxu0
    %v557 = vadd.f32 %v131, %v556
    %v558 = vpop.f32.mrb[0].mxu0
    %559 = vmatprep.mubr.f32.mxu0 0.0
    %560 = vmatmul.mubr.f32.gmra.mrb[0].mxu0 %v234
    %v561 = vpop.f32.mrb[0].mxu0
    %v562 = vadd.f32 %v131, %v561
    %v563 = vpop.f32.mrb[0].mxu0
    %564 = vmatprep.mubr.f32.mxu0 0.0
    %565 = vmatmul.mubr.f32.gmra.mrb[0].mxu0 %v237
    %v566 = vpop.f32.mrb[0].mxu0
    %v567 = vadd.f32 %v131, %v566
    %v568 = vpop.f32.mrb[0].mxu0
    %569 = vmatprep.mubr.f32.mxu0 0.0
    %570 = vmatmul.mubr.f32.gmra.mrb[0].mxu0 %v240
    %v571 = vpop.f32.mrb[0].mxu0
    %v572 = vadd.f32 %v131, %v571
    %v573 = vpop.f32.mrb[0].mxu0
    %574 = vmatprep.mubr.f32.mxu0 0.0
    %575 = vmatmul.mubr.f32.gmra.mrb[0].mxu0 %v243
    %v576 = vpop.f32.mrb[0].mxu0
    %v577 = vadd.f32 %v131, %v576
    %v578 = vpop.f32.mrb[0].mxu0
    %579 = vmatprep.mubr.f32.mxu0 0.0
    %580 = vmatmul.mubr.f32.gmra.mrb[0].mxu0 %v246
    %v581 = vpop.f32.mrb[0].mxu0
    %v582 = vadd.f32 %v131, %v581
    %v583 = vpop.f32.mrb[0].mxu0
    %584 = vmatprep.mubr.f32.mxu0 0.0
    %585 = vmatmul.mubr.f32.gmra.mrb[0].mxu0 %v249
    %v586 = vpop.f32.mrb[0].mxu0
    %v587 = vadd.f32 %v131, %v586
    %v588 = vpop.f32.mrb[0].mxu0
    %589 = vmatprep.mubr.f32.mxu0 0.0
    %590 = vmatmul.mubr.f32.gmra.mrb[0].mxu0 %v252
    %v591 = vpop.f32.mrb[0].mxu0
    %v592 = vadd.f32 %v131, %v591
    %v593 = vpop.f32.mrb[0].mxu0
    %594 = vmatprep.mubr.f32.mxu0 0.0
    %595 = vmatmul.mubr.f32.gmra.mrb[0].mxu0 %v255
    %v596 = vpop.f32.mrb[0].mxu0
    %v597 = vadd.f32 %v131, %v596
    %v598 = vpop.f32.mrb[0].mxu0
    %599 = vmatprep.mubr.f32.mxu0 0.0
    %600 = vmatmul.mubr.f32.gmra.mrb[0].mxu0 %v258
    %v601 = vpop.f32.mrb[0].mxu0
    %v602 = vadd.f32 %v131, %v601
    %v603 = vpop.f32.mrb[0].mxu0
    %604 = vmatprep.mubr.f32.mxu0 0.0
    %605 = vmatmul.mubr.f32.gmra.mrb[0].mxu0 %v261
    %v606 = vpop.f32.mrb[0].mxu0
    %v607 = vadd.f32 %v131, %v606
    %v608 = vpop.f32.mrb[0].mxu0
    %609 = vmatprep.mubr.f32.mxu0 0.0
    %610 = vmatmul.mubr.f32.gmra.mrb[0].mxu0 %v264
    %v611 = vpop.f32.mrb[0].mxu0
    %v612 = vadd.f32 %v131, %v611
    %v613 = vpop.f32.mrb[0].mxu0
    %614 = vmatprep.mubr.f32.mxu0 0.0
    %615 = vmatmul.mubr.f32.gmra.mrb[0].mxu0 %v267
    %v616 = vpop.f32.mrb[0].mxu0
    %v617 = vadd.f32 %v131, %v616
    %v618 = vpop.f32.mrb[0].mxu0
    %619 = vmatprep.mubr.f32.mxu0 0.0
    %620 = vmatmul.mubr.f32.gmra.mrb[0].mxu0 %v270
    %v621 = vpop.f32.mrb[0].mxu0
    %v622 = vadd.f32 %v131, %v621
    %v623 = vpop.f32.mrb[0].mxu0
    %624 = vmatprep.mubr.f32.mxu0 0.0
    %625 = vmatmul.mubr.f32.gmra.mrb[0].mxu0 %v273
    %v626 = vpop.f32.mrb[0].mxu0
    %v627 = vadd.f32 %v131, %v626
    %v628 = vpop.f32.mrb[0].mxu0
    %629 = vmatprep.mubr.f32.mxu0 0.0
    %630 = vmatmul.mubr.f32.gmra.mrb[0].mxu0 %v276
    %v631 = vpop.f32.mrb[0].mxu0
    %v632 = vadd.f32 %v131, %v631
    %v633 = vpop.f32.mrb[0].mxu0
    %634 = vmatprep.mubr.f32.mxu0 0.0
    %635 = vmatmul.mubr.f32.gmra.mrb[0].mxu0 %v279
    %v636 = vpop.f32.mrb[0].mxu0
    %v637 = vadd.f32 %v131, %v636
    %v638 = vpop.f32.mrb[0].mxu0
    %639 = vmatprep.mubr.f32.mxu0 0.0
    %640 = vmatmul.mubr.f32.gmra.mrb[0].mxu0 %v282
    %v641 = vpop.f32.mrb[0].mxu0
    %v642 = vadd.f32 %v131, %v641
    %v643 = vpop.f32.mrb[0].mxu0
    %644 = vmatprep.mubr.f32.mxu0 0.0
    %645 = vmatmul.mubr.f32.gmra.mrb[0].mxu0 %v285
    %v646 = vpop.f32.mrb[0].mxu0
    %v647 = vadd.f32 %v131, %v646
    %v648 = vpop.f32.mrb[0].mxu0
    %649 = vmatprep.mubr.f32.mxu0 0.0
    %650 = vmatmul.mubr.f32.gmra.mrb[0].mxu0 %v288
    %v651 = vpop.f32.mrb[0].mxu0
    %v652 = vadd.f32 %v131, %v651
    %v653 = vpop.f32.mrb[0].mxu0
    %654 = vmatprep.mubr.f32.mxu0 0.0
    %655 = vmatmul.mubr.f32.gmra.mrb[0].mxu0 %v291
    %v656 = vpop.f32.mrb[0].mxu0
    %v657 = vadd.f32 %v131, %v656
    %v658 = vpop.f32.mrb[0].mxu0
    %659 = vmatprep.mubr.f32.mxu0 0.0
    %660 = vmatmul.mubr.f32.gmra.mrb[0].mxu0 %v294
    %v661 = vpop.f32.mrb[0].mxu0
    %v662 = vadd.f32 %v131, %v661
    %v663 = vpop.f32.mrb[0].mxu0
    %664 = vmatprep.mubr.f32.mxu0 0.0
    %665 = vmatmul.mubr.f32.gmra.mrb[0].mxu0 %v297
    %v666 = vpop.f32.mrb[0].mxu0
    %v667 = vadd.f32 %v131, %v666
    %v668 = vpop.f32.mrb[0].mxu0
    %669 = vmatprep.mubr.f32.mxu0 0.0
    %670 = vmatmul.mubr.f32.gmra.mrb[0].mxu0 %v300
    %v671 = vpop.f32.mrb[0].mxu0
    %v672 = vadd.f32 %v131, %v671
    %v673 = vpop.f32.mrb[0].mxu0
    %674 = vmatprep.mubr.f32.mxu0 0.0
    %675 = vmatmul.mubr.f32.gmra.mrb[0].mxu0 %v303
    %v676 = vpop.f32.mrb[0].mxu0
    %v677 = vadd.f32 %v131, %v676
    %v678 = vpop.f32.mrb[0].mxu0
    %679 = vmatprep.mubr.f32.mxu0 0.0
    %680 = vmatmul.mubr.f32.gmra.mrb[0].mxu0 %v306
    %v681 = vpop.f32.mrb[0].mxu0
    %v682 = vadd.f32 %v131, %v681
    %v683 = vpop.f32.mrb[0].mxu0
    %684 = vmatprep.mubr.f32.mxu0 0.0
    %685 = vmatmul.mubr.f32.gmra.mrb[0].mxu0 %v309
    %v686 = vpop.f32.mrb[0].mxu0
    %v687 = vadd.f32 %v131, %v686
    %v688 = vpop.f32.mrb[0].mxu0
    %689 = vmatprep.mubr.f32.mxu0 0.0
    %690 = vmatmul.mubr.f32.gmra.mrb[0].mxu0 %v312
    %v691 = vpop.f32.mrb[0].mxu0
    %v692 = vadd.f32 %v131, %v691
    %v693 = vpop.f32.mrb[0].mxu0
    %694 = vmatprep.mubr.f32.mxu0 0.0
    %695 = vmatmul.mubr.f32.gmra.mrb[0].mxu0 %v315
    %v696 = vpop.f32.mrb[0].mxu0
    %v697 = vadd.f32 %v131, %v696
    %v698 = vpop.f32.mrb[0].mxu0
    %699 = vmatprep.mubr.f32.mxu0 0.0
    %700 = vmatmul.mubr.f32.gmra.mrb[0].mxu0 %v318
    %v701 = vpop.f32.mrb[0].mxu0
    %v702 = vadd.f32 %v131, %v701
    %v703 = vpop.f32.mrb[0].mxu0
    %704 = vmatprep.mubr.f32.mxu0 0.0
    %705 = vmatmul.mubr.f32.gmra.mrb[0].mxu0 %v321
    %v706 = vpop.f32.mrb[0].mxu0
    %v707 = vadd.f32 %v131, %v706
    %v708 = vpop.f32.mrb[0].mxu0
    %709 = vmatprep.mubr.f32.mxu0 0.0
    %710 = vmatmul.mubr.f32.gmra.mrb[0].mxu0 %v324
    %v711 = vpop.f32.mrb[0].mxu0
    %v712 = vadd.f32 %v131, %v711
    %v713 = vpop.f32.mrb[0].mxu0
    %714 = vdwg.mxu0
    %v715 = vld [vmem:[%s3] sm:$0x1]
    %v716 = vld [vmem:[%s4] sm:$0x1]
    %vm717 = vcmask 261120
    %v718 = vsel %vm717, %v397, 0.0
    %v719 = vsel %vm717, %v402, 0.0
    %v720 = vadd.f32 %v718, %v719
    %v721 = vsel %vm717, %v407, 0.0
    %v722 = vadd.f32 %v720, %v721
    %v723 = vsel %vm717, %v412, 0.0
    %v724 = vadd.f32 %v722, %v723
    %v725 = vsel %vm717, %v417, 0.0
    %v726 = vadd.f32 %v724, %v725
    %v727 = vsel %vm717, %v422, 0.0
    %v728 = vadd.f32 %v726, %v727
    %v729 = vsel %vm717, %v427, 0.0
    %v730 = vadd.f32 %v728, %v729
    %v731 = vsel %vm717, %v432, 0.0
    %v732 = vadd.f32 %v730, %v731
    %v733 = vsel %vm717, %v437, 0.0
    %v734 = vadd.f32 %v732, %v733
    %v735 = vsel %vm717, %v442, 0.0
    %v736 = vadd.f32 %v734, %v735
    %v737 = vsel %vm717, %v447, 0.0
    %v738 = vadd.f32 %v736, %v737
    %v739 = vsel %vm717, %v452, 0.0
    %v740 = vadd.f32 %v738, %v739
    %v741 = vsel %vm717, %v457, 0.0
    %v742 = vadd.f32 %v740, %v741
    %v743 = vsel %vm717, %v462, 0.0
    %v744 = vadd.f32 %v742, %v743
    %v745 = vsel %vm717, %v467, 0.0
    %v746 = vadd.f32 %v744, %v745
    %v747 = vsel %vm717, %v472, 0.0
    %v748 = vadd.f32 %v746, %v747
    %v749 = vrot.slane %v748, 4
    %v750 = vadd.f32 %v748, %v749
    %v751 = vrot.slane %v750, 2
    %v752 = vadd.f32 %v750, %v751
    %v753 = vrot.slane %v752, 1
    %v754 = vadd.f32 %v752, %v753
    %v755 = vadd.f32 %v754, 0.0
    %v756 = vmul.f32 %v397, %v397
    %v757 = vmul.f32 %v402, %v402
    %v758 = vmul.f32 %v407, %v407
    %v759 = vmul.f32 %v412, %v412
    %v760 = vmul.f32 %v417, %v417
    %v761 = vmul.f32 %v422, %v422
    %v762 = vmul.f32 %v427, %v427
    %v763 = vmul.f32 %v432, %v432
    %v764 = vmul.f32 %v437, %v437
    %v765 = vmul.f32 %v442, %v442
    %v766 = vmul.f32 %v447, %v447
    %v767 = vmul.f32 %v452, %v452
    %v768 = vmul.f32 %v457, %v457
    %v769 = vmul.f32 %v462, %v462
    %v770 = vmul.f32 %v467, %v467
    %v771 = vmul.f32 %v472, %v472
    %v772 = vsel %vm717, %v756, 0.0
    %v773 = vsel %vm717, %v757, 0.0
    %v774 = vadd.f32 %v772, %v773
    %v775 = vsel %vm717, %v758, 0.0
    %v776 = vadd.f32 %v774, %v775
    %v777 = vsel %vm717, %v759, 0.0
    %v778 = vadd.f32 %v776, %v777
    %v779 = vsel %vm717, %v760, 0.0
    %v780 = vadd.f32 %v778, %v779
    %v781 = vsel %vm717, %v761, 0.0
    %v782 = vadd.f32 %v780, %v781
    %v783 = vsel %vm717, %v762, 0.0
    %v784 = vadd.f32 %v782, %v783
    %v785 = vsel %vm717, %v763, 0.0
    %v786 = vadd.f32 %v784, %v785
    %v787 = vsel %vm717, %v764, 0.0
    %v788 = vadd.f32 %v786, %v787
    %v789 = vsel %vm717, %v765, 0.0
    %v790 = vadd.f32 %v788, %v789
    %v791 = vsel %vm717, %v766, 0.0
    %v792 = vadd.f32 %v790, %v791
    %v793 = vsel %vm717, %v767, 0.0
    %v794 = vadd.f32 %v792, %v793
    %v795 = vsel %vm717, %v768, 0.0
    %v796 = vadd.f32 %v794, %v795
    %v797 = vsel %vm717, %v769, 0.0
    %v798 = vadd.f32 %v796, %v797
    %v799 = vsel %vm717, %v770, 0.0
    %v800 = vadd.f32 %v798, %v799
    %v801 = vsel %vm717, %v771, 0.0
    %v802 = vadd.f32 %v800, %v801
    %v803 = vrot.slane %v802, 4
    %v804 = vadd.f32 %v802, %v803
    %v805 = vrot.slane %v804, 2
    %v806 = vadd.f32 %v804, %v805
    %v807 = vrot.slane %v806, 1
    %v808 = vadd.f32 %v806, %v807
    %v809 = vadd.f32 %v808, 0.0
    %v810 = vsel %vm717, %v477, 0.0
    %v811 = vsel %vm717, %v482, 0.0
    %v812 = vadd.f32 %v810, %v811
    %v813 = vsel %vm717, %v487, 0.0
    %v814 = vadd.f32 %v812, %v813
    %v815 = vsel %vm717, %v492, 0.0
    %v816 = vadd.f32 %v814, %v815
    %v817 = vsel %vm717, %v497, 0.0
    %v818 = vadd.f32 %v816, %v817
    %v819 = vsel %vm717, %v502, 0.0
    %v820 = vadd.f32 %v818, %v819
    %v821 = vsel %vm717, %v507, 0.0
    %v822 = vadd.f32 %v820, %v821
    %v823 = vsel %vm717, %v512, 0.0
    %v824 = vadd.f32 %v822, %v823
    %v825 = vsel %vm717, %v517, 0.0
    %v826 = vadd.f32 %v824, %v825
    %v827 = vsel %vm717, %v522, 0.0
    %v828 = vadd.f32 %v826, %v827
    %v829 = vsel %vm717, %v527, 0.0
    %v830 = vadd.f32 %v828, %v829
    %v831 = vsel %vm717, %v532, 0.0
    %v832 = vadd.f32 %v830, %v831
    %v833 = vsel %vm717, %v537, 0.0
    %v834 = vadd.f32 %v832, %v833
    %v835 = vsel %vm717, %v542, 0.0
    %v836 = vadd.f32 %v834, %v835
    %v837 = vsel %vm717, %v547, 0.0
    %v838 = vadd.f32 %v836, %v837
    %v839 = vsel %vm717, %v552, 0.0
    %v840 = vadd.f32 %v838, %v839
    %v841 = vrot.slane %v840, 4
    %v842 = vadd.f32 %v840, %v841
    %v843 = vrot.slane %v842, 2
    %v844 = vadd.f32 %v842, %v843
    %v845 = vrot.slane %v844, 1
    %v846 = vadd.f32 %v844, %v845
    %v847 = vadd.f32 %v755, %v846
    %v848 = vmul.f32 %v477, %v477
    %v849 = vmul.f32 %v482, %v482
    %v850 = vmul.f32 %v487, %v487
    %v851 = vmul.f32 %v492, %v492
    %v852 = vmul.f32 %v497, %v497
    %v853 = vmul.f32 %v502, %v502
    %v854 = vmul.f32 %v507, %v507
    %v855 = vmul.f32 %v512, %v512
    %v856 = vmul.f32 %v517, %v517
    %v857 = vmul.f32 %v522, %v522
    %v858 = vmul.f32 %v527, %v527
    %v859 = vmul.f32 %v532, %v532
    %v860 = vmul.f32 %v537, %v537
    %v861 = vmul.f32 %v542, %v542
    %v862 = vmul.f32 %v547, %v547
    %v863 = vmul.f32 %v552, %v552
    %v864 = vsel %vm717, %v848, 0.0
    %v865 = vsel %vm717, %v849, 0.0
    %v866 = vadd.f32 %v864, %v865
    %v867 = vsel %vm717, %v850, 0.0
    %v868 = vadd.f32 %v866, %v867
    %v869 = vsel %vm717, %v851, 0.0
    %v870 = vadd.f32 %v868, %v869
    %v871 = vsel %vm717, %v852, 0.0
    %v872 = vadd.f32 %v870, %v871
    %v873 = vsel %vm717, %v853, 0.0
    %v874 = vadd.f32 %v872, %v873
    %v875 = vsel %vm717, %v854, 0.0
    %v876 = vadd.f32 %v874, %v875
    %v877 = vsel %vm717, %v855, 0.0
    %v878 = vadd.f32 %v876, %v877
    %v879 = vsel %vm717, %v856, 0.0
    %v880 = vadd.f32 %v878, %v879
    %v881 = vsel %vm717, %v857, 0.0
    %v882 = vadd.f32 %v880, %v881
    %v883 = vsel %vm717, %v858, 0.0
    %v884 = vadd.f32 %v882, %v883
    %v885 = vsel %vm717, %v859, 0.0
    %v886 = vadd.f32 %v884, %v885
    %v887 = vsel %vm717, %v860, 0.0
    %v888 = vadd.f32 %v886, %v887
    %v889 = vsel %vm717, %v861, 0.0
    %v890 = vadd.f32 %v888, %v889
    %v891 = vsel %vm717, %v862, 0.0
    %v892 = vadd.f32 %v890, %v891
    %v893 = vsel %vm717, %v863, 0.0
    %v894 = vadd.f32 %v892, %v893
    %v895 = vrot.slane %v894, 4
    %v896 = vadd.f32 %v894, %v895
    %v897 = vrot.slane %v896, 2
    %v898 = vadd.f32 %v896, %v897
    %v899 = vrot.slane %v898, 1
    %v900 = vadd.f32 %v898, %v899
    %v901 = vadd.f32 %v809, %v900
    %v902 = vsel %vm717, %v557, 0.0
    %v903 = vsel %vm717, %v562, 0.0
    %v904 = vadd.f32 %v902, %v903
    %v905 = vsel %vm717, %v567, 0.0
    %v906 = vadd.f32 %v904, %v905
    %v907 = vsel %vm717, %v572, 0.0
    %v908 = vadd.f32 %v906, %v907
    %v909 = vsel %vm717, %v577, 0.0
    %v910 = vadd.f32 %v908, %v909
    %v911 = vsel %vm717, %v582, 0.0
    %v912 = vadd.f32 %v910, %v911
    %v913 = vsel %vm717, %v587, 0.0
    %v914 = vadd.f32 %v912, %v913
    %v915 = vsel %vm717, %v592, 0.0
    %v916 = vadd.f32 %v914, %v915
    %v917 = vsel %vm717, %v597, 0.0
    %v918 = vadd.f32 %v916, %v917
    %v919 = vsel %vm717, %v602, 0.0
    %v920 = vadd.f32 %v918, %v919
    %v921 = vsel %vm717, %v607, 0.0
    %v922 = vadd.f32 %v920, %v921
    %v923 = vsel %vm717, %v612, 0.0
    %v924 = vadd.f32 %v922, %v923
    %v925 = vsel %vm717, %v617, 0.0
    %v926 = vadd.f32 %v924, %v925
    %v927 = vsel %vm717, %v622, 0.0
    %v928 = vadd.f32 %v926, %v927
    %v929 = vsel %vm717, %v627, 0.0
    %v930 = vadd.f32 %v928, %v929
    %v931 = vsel %vm717, %v632, 0.0
    %v932 = vadd.f32 %v930, %v931
    %v933 = vrot.slane %v932, 4
    %v934 = vadd.f32 %v932, %v933
    %v935 = vrot.slane %v934, 2
    %v936 = vadd.f32 %v934, %v935
    %v937 = vrot.slane %v936, 1
    %v938 = vadd.f32 %v936, %v937
    %v939 = vadd.f32 %v847, %v938
    %v940 = vmul.f32 %v557, %v557
    %v941 = vmul.f32 %v562, %v562
    %v942 = vmul.f32 %v567, %v567
    %v943 = vmul.f32 %v572, %v572
    %v944 = vmul.f32 %v577, %v577
    %v945 = vmul.f32 %v582, %v582
    %v946 = vmul.f32 %v587, %v587
    %v947 = vmul.f32 %v592, %v592
    %v948 = vmul.f32 %v597, %v597
    %v949 = vmul.f32 %v602, %v602
    %v950 = vmul.f32 %v607, %v607
    %v951 = vmul.f32 %v612, %v612
    %v952 = vmul.f32 %v617, %v617
    %v953 = vmul.f32 %v622, %v622
    %v954 = vmul.f32 %v627, %v627
    %v955 = vmul.f32 %v632, %v632
    %v956 = vsel %vm717, %v940, 0.0
    %v957 = vsel %vm717, %v941, 0.0
    %v958 = vadd.f32 %v956, %v957
    %v959 = vsel %vm717, %v942, 0.0
    %v960 = vadd.f32 %v958, %v959
    %v961 = vsel %vm717, %v943, 0.0
    %v962 = vadd.f32 %v960, %v961
    %v963 = vsel %vm717, %v944, 0.0
    %v964 = vadd.f32 %v962, %v963
    %v965 = vsel %vm717, %v945, 0.0
    %v966 = vadd.f32 %v964, %v965
    %v967 = vsel %vm717, %v946, 0.0
    %v968 = vadd.f32 %v966, %v967
    %v969 = vsel %vm717, %v947, 0.0
    %v970 = vadd.f32 %v968, %v969
    %v971 = vsel %vm717, %v948, 0.0
    %v972 = vadd.f32 %v970, %v971
    %v973 = vsel %vm717, %v949, 0.0
    %v974 = vadd.f32 %v972, %v973
    %v975 = vsel %vm717, %v950, 0.0
    %v976 = vadd.f32 %v974, %v975
    %v977 = vsel %vm717, %v951, 0.0
    %v978 = vadd.f32 %v976, %v977
    %v979 = vsel %vm717, %v952, 0.0
    %v980 = vadd.f32 %v978, %v979
    %v981 = vsel %vm717, %v953, 0.0
    %v982 = vadd.f32 %v980, %v981
    %v983 = vsel %vm717, %v954, 0.0
    %v984 = vadd.f32 %v982, %v983
    %v985 = vsel %vm717, %v955, 0.0
    %v986 = vadd.f32 %v984, %v985
    %v987 = vrot.slane %v986, 4
    %v988 = vadd.f32 %v986, %v987
    %v989 = vrot.slane %v988, 2
    %v990 = vadd.f32 %v988, %v989
    %v991 = vrot.slane %v990, 1
    %v992 = vadd.f32 %v990, %v991
    %v993 = vadd.f32 %v901, %v992
    %v994 = vsel %vm717, %v637, 0.0
    %v995 = vsel %vm717, %v642, 0.0
    %v996 = vadd.f32 %v994, %v995
    %v997 = vsel %vm717, %v647, 0.0
    %v998 = vadd.f32 %v996, %v997
    %v999 = vsel %vm717, %v652, 0.0
    %v1000 = vadd.f32 %v998, %v999
    %v1001 = vsel %vm717, %v657, 0.0
    %v1002 = vadd.f32 %v1000, %v1001
    %v1003 = vsel %vm717, %v662, 0.0
    %v1004 = vadd.f32 %v1002, %v1003
    %v1005 = vsel %vm717, %v667, 0.0
    %v1006 = vadd.f32 %v1004, %v1005
    %v1007 = vsel %vm717, %v672, 0.0
    %v1008 = vadd.f32 %v1006, %v1007
    %v1009 = vsel %vm717, %v677, 0.0
    %v1010 = vadd.f32 %v1008, %v1009
    %v1011 = vsel %vm717, %v682, 0.0
    %v1012 = vadd.f32 %v1010, %v1011
    %v1013 = vsel %vm717, %v687, 0.0
    %v1014 = vadd.f32 %v1012, %v1013
    %v1015 = vsel %vm717, %v692, 0.0
    %v1016 = vadd.f32 %v1014, %v1015
    %v1017 = vsel %vm717, %v697, 0.0
    %v1018 = vadd.f32 %v1016, %v1017
    %v1019 = vsel %vm717, %v702, 0.0
    %v1020 = vadd.f32 %v1018, %v1019
    %v1021 = vsel %vm717, %v707, 0.0
    %v1022 = vadd.f32 %v1020, %v1021
    %v1023 = vsel %vm717, %v712, 0.0
    %v1024 = vadd.f32 %v1022, %v1023
    %v1025 = vrot.slane %v1024, 4
    %v1026 = vadd.f32 %v1024, %v1025
    %v1027 = vrot.slane %v1026, 2
    %v1028 = vadd.f32 %v1026, %v1027
    %v1029 = vrot.slane %v1028, 1
    %v1030 = vadd.f32 %v1028, %v1029
    %v1031 = vadd.f32 %v939, %v1030
    %v1032 = vmul.f32 %v637, %v637
    %v1033 = vmul.f32 %v642, %v642
    %v1034 = vmul.f32 %v647, %v647
    %v1035 = vmul.f32 %v652, %v652
    %v1036 = vmul.f32 %v657, %v657
    %v1037 = vmul.f32 %v662, %v662
    %v1038 = vmul.f32 %v667, %v667
    %v1039 = vmul.f32 %v672, %v672
    %v1040 = vmul.f32 %v677, %v677
    %v1041 = vmul.f32 %v682, %v682
    %v1042 = vmul.f32 %v687, %v687
    %v1043 = vmul.f32 %v692, %v692
    %v1044 = vmul.f32 %v697, %v697
    %v1045 = vmul.f32 %v702, %v702
    %v1046 = vmul.f32 %v707, %v707
    %v1047 = vmul.f32 %v712, %v712
    %v1048 = vsel %vm717, %v1032, 0.0
    %v1049 = vsel %vm717, %v1033, 0.0
    %v1050 = vadd.f32 %v1048, %v1049
    %v1051 = vsel %vm717, %v1034, 0.0
    %v1052 = vadd.f32 %v1050, %v1051
    %v1053 = vsel %vm717, %v1035, 0.0
    %v1054 = vadd.f32 %v1052, %v1053
    %v1055 = vsel %vm717, %v1036, 0.0
    %v1056 = vadd.f32 %v1054, %v1055
    %v1057 = vsel %vm717, %v1037, 0.0
    %v1058 = vadd.f32 %v1056, %v1057
    %v1059 = vsel %vm717, %v1038, 0.0
    %v1060 = vadd.f32 %v1058, %v1059
    %v1061 = vsel %vm717, %v1039, 0.0
    %v1062 = vadd.f32 %v1060, %v1061
    %v1063 = vsel %vm717, %v1040, 0.0
    %v1064 = vadd.f32 %v1062, %v1063
    %v1065 = vsel %vm717, %v1041, 0.0
    %v1066 = vadd.f32 %v1064, %v1065
    %v1067 = vsel %vm717, %v1042, 0.0
    %v1068 = vadd.f32 %v1066, %v1067
    %v1069 = vsel %vm717, %v1043, 0.0
    %v1070 = vadd.f32 %v1068, %v1069
    %v1071 = vsel %vm717, %v1044, 0.0
    %v1072 = vadd.f32 %v1070, %v1071
    %v1073 = vsel %vm717, %v1045, 0.0
    %v1074 = vadd.f32 %v1072, %v1073
    %v1075 = vsel %vm717, %v1046, 0.0
    %v1076 = vadd.f32 %v1074, %v1075
    %v1077 = vsel %vm717, %v1047, 0.0
    %v1078 = vadd.f32 %v1076, %v1077
    %v1079 = vrot.slane %v1078, 4
    %v1080 = vadd.f32 %v1078, %v1079
    %v1081 = vrot.slane %v1080, 2
    %v1082 = vadd.f32 %v1080, %v1081
    %v1083 = vrot.slane %v1082, 1
    %v1084 = vadd.f32 %v1082, %v1083
    %v1085 = vadd.f32 %v993, %v1084
    %v1086 = vmul.f32 %v1031, 0.001953125
    %v1087 = vmul.f32 %v1085, 0.001953125
    %v1088 = vmul.f32 %v1086, %v1086
    %v1089 = vsub.f32 %v1087, %v1088
    %v1090 = vadd.f32 %v1089, 1e-05
    %v1091 = vrsqrt.pop %v1090
    %v1092 = vmul.f32 %v715, %v1091
    %v1093 = vmul.f32 %v1086, %v1092
    %v1094 = vsub.f32 %v716, %v1093
    %v1096 = vlaneseq
    %v1097 = vshrl.u32 %v1096, 7
    %v1098 = vsub.s32 0, %v1097
    %v1099 = vrot.slane %v1092, %v1098
    %v1101 = vmul.f32 %v397, %v1099
    %v1102 = vmul.f32 %v402, %v1099
    %v1103 = vmul.f32 %v407, %v1099
    %v1104 = vmul.f32 %v412, %v1099
    %v1105 = vmul.f32 %v417, %v1099
    %v1106 = vmul.f32 %v422, %v1099
    %v1107 = vmul.f32 %v427, %v1099
    %v1108 = vmul.f32 %v432, %v1099
    %v1109 = vmul.f32 %v437, %v1099
    %v1110 = vmul.f32 %v442, %v1099
    %v1111 = vmul.f32 %v447, %v1099
    %v1112 = vmul.f32 %v452, %v1099
    %v1113 = vmul.f32 %v457, %v1099
    %v1114 = vmul.f32 %v462, %v1099
    %v1115 = vmul.f32 %v467, %v1099
    %v1116 = vmul.f32 %v472, %v1099
    %v1117 = vmul.f32 %v477, %v1099
    %v1118 = vmul.f32 %v482, %v1099
    %v1119 = vmul.f32 %v487, %v1099
    %v1120 = vmul.f32 %v492, %v1099
    %v1121 = vmul.f32 %v497, %v1099
    %v1122 = vmul.f32 %v502, %v1099
    %v1123 = vmul.f32 %v507, %v1099
    %v1124 = vmul.f32 %v512, %v1099
    %v1125 = vmul.f32 %v517, %v1099
    %v1126 = vmul.f32 %v522, %v1099
    %v1127 = vmul.f32 %v527, %v1099
    %v1128 = vmul.f32 %v532, %v1099
    %v1129 = vmul.f32 %v537, %v1099
    %v1130 = vmul.f32 %v542, %v1099
    %v1131 = vmul.f32 %v547, %v1099
    %v1132 = vmul.f32 %v552, %v1099
    %v1133 = vmul.f32 %v557, %v1099
    %v1134 = vmul.f32 %v562, %v1099
    %v1135 = vmul.f32 %v567, %v1099
    %v1136 = vmul.f32 %v572, %v1099
    %v1137 = vmul.f32 %v577, %v1099
    %v1138 = vmul.f32 %v582, %v1099
    %v1139 = vmul.f32 %v587, %v1099
    %v1140 = vmul.f32 %v592, %v1099
    %v1141 = vmul.f32 %v597, %v1099
    %v1142 = vmul.f32 %v602, %v1099
    %v1143 = vmul.f32 %v607, %v1099
    %v1144 = vmul.f32 %v612, %v1099
    %v1145 = vmul.f32 %v617, %v1099
    %v1146 = vmul.f32 %v622, %v1099
    %v1147 = vmul.f32 %v627, %v1099
    %v1148 = vmul.f32 %v632, %v1099
    %v1149 = vmul.f32 %v637, %v1099
    %v1150 = vmul.f32 %v642, %v1099
    %v1151 = vmul.f32 %v647, %v1099
    %v1152 = vmul.f32 %v652, %v1099
    %v1153 = vmul.f32 %v657, %v1099
    %v1154 = vmul.f32 %v662, %v1099
    %v1155 = vmul.f32 %v667, %v1099
    %v1156 = vmul.f32 %v672, %v1099
    %v1157 = vmul.f32 %v677, %v1099
    %v1158 = vmul.f32 %v682, %v1099
    %v1159 = vmul.f32 %v687, %v1099
    %v1160 = vmul.f32 %v692, %v1099
    %v1161 = vmul.f32 %v697, %v1099
    %v1162 = vmul.f32 %v702, %v1099
    %v1163 = vmul.f32 %v707, %v1099
    %v1164 = vmul.f32 %v712, %v1099
    %v1166 = vlaneseq
    %v1167 = vshrl.u32 %v1166, 7
    %v1168 = vsub.s32 0, %v1167
    %v1169 = vrot.slane %v1094, %v1168
    %v1171 = vadd.f32 %v1101, %v1169
    %v1172 = vadd.f32 %v1102, %v1169
    %v1173 = vadd.f32 %v1103, %v1169
    %v1174 = vadd.f32 %v1104, %v1169
    %v1175 = vadd.f32 %v1105, %v1169
    %v1176 = vadd.f32 %v1106, %v1169
    %v1177 = vadd.f32 %v1107, %v1169
    %v1178 = vadd.f32 %v1108, %v1169
    %v1179 = vadd.f32 %v1109, %v1169
    %v1180 = vadd.f32 %v1110, %v1169
    %v1181 = vadd.f32 %v1111, %v1169
    %v1182 = vadd.f32 %v1112, %v1169
    %v1183 = vadd.f32 %v1113, %v1169
    %v1184 = vadd.f32 %v1114, %v1169
    %v1185 = vadd.f32 %v1115, %v1169
    %v1186 = vadd.f32 %v1116, %v1169
    %v1187 = vadd.f32 %v1117, %v1169
    %v1188 = vadd.f32 %v1118, %v1169
    %v1189 = vadd.f32 %v1119, %v1169
    %v1190 = vadd.f32 %v1120, %v1169
    %v1191 = vadd.f32 %v1121, %v1169
    %v1192 = vadd.f32 %v1122, %v1169
    %v1193 = vadd.f32 %v1123, %v1169
    %v1194 = vadd.f32 %v1124, %v1169
    %v1195 = vadd.f32 %v1125, %v1169
    %v1196 = vadd.f32 %v1126, %v1169
    %v1197 = vadd.f32 %v1127, %v1169
    %v1198 = vadd.f32 %v1128, %v1169
    %v1199 = vadd.f32 %v1129, %v1169
    %v1200 = vadd.f32 %v1130, %v1169
    %v1201 = vadd.f32 %v1131, %v1169
    %v1202 = vadd.f32 %v1132, %v1169
    %v1203 = vadd.f32 %v1133, %v1169
    %v1204 = vadd.f32 %v1134, %v1169
    %v1205 = vadd.f32 %v1135, %v1169
    %v1206 = vadd.f32 %v1136, %v1169
    %v1207 = vadd.f32 %v1137, %v1169
    %v1208 = vadd.f32 %v1138, %v1169
    %v1209 = vadd.f32 %v1139, %v1169
    %v1210 = vadd.f32 %v1140, %v1169
    %v1211 = vadd.f32 %v1141, %v1169
    %v1212 = vadd.f32 %v1142, %v1169
    %v1213 = vadd.f32 %v1143, %v1169
    %v1214 = vadd.f32 %v1144, %v1169
    %v1215 = vadd.f32 %v1145, %v1169
    %v1216 = vadd.f32 %v1146, %v1169
    %v1217 = vadd.f32 %v1147, %v1169
    %v1218 = vadd.f32 %v1148, %v1169
    %v1219 = vadd.f32 %v1149, %v1169
    %v1220 = vadd.f32 %v1150, %v1169
    %v1221 = vadd.f32 %v1151, %v1169
    %v1222 = vadd.f32 %v1152, %v1169
    %v1223 = vadd.f32 %v1153, %v1169
    %v1224 = vadd.f32 %v1154, %v1169
    %v1225 = vadd.f32 %v1155, %v1169
    %v1226 = vadd.f32 %v1156, %v1169
    %v1227 = vadd.f32 %v1157, %v1169
    %v1228 = vadd.f32 %v1158, %v1169
    %v1229 = vadd.f32 %v1159, %v1169
    %v1230 = vadd.f32 %v1160, %v1169
    %v1231 = vadd.f32 %v1161, %v1169
    %v1232 = vadd.f32 %v1162, %v1169
    %v1233 = vadd.f32 %v1163, %v1169
    %v1234 = vadd.f32 %v1164, %v1169
    %v1235 = vmax.f32 %v1171, 0.0
    %v1236 = vmax.f32 %v1172, 0.0
    %v1237 = vmax.f32 %v1173, 0.0
    %v1238 = vmax.f32 %v1174, 0.0
    %v1239 = vmax.f32 %v1175, 0.0
    %v1240 = vmax.f32 %v1176, 0.0
    %v1241 = vmax.f32 %v1177, 0.0
    %v1242 = vmax.f32 %v1178, 0.0
    %v1243 = vmax.f32 %v1179, 0.0
    %v1244 = vmax.f32 %v1180, 0.0
    %v1245 = vmax.f32 %v1181, 0.0
    %v1246 = vmax.f32 %v1182, 0.0
    %v1247 = vmax.f32 %v1183, 0.0
    %v1248 = vmax.f32 %v1184, 0.0
    %v1249 = vmax.f32 %v1185, 0.0
    %v1250 = vmax.f32 %v1186, 0.0
    %v1251 = vmax.f32 %v1187, 0.0
    %v1252 = vmax.f32 %v1188, 0.0
    %v1253 = vmax.f32 %v1189, 0.0
    %v1254 = vmax.f32 %v1190, 0.0
    %v1255 = vmax.f32 %v1191, 0.0
    %v1256 = vmax.f32 %v1192, 0.0
    %v1257 = vmax.f32 %v1193, 0.0
    %v1258 = vmax.f32 %v1194, 0.0
    %v1259 = vmax.f32 %v1195, 0.0
    %v1260 = vmax.f32 %v1196, 0.0
    %v1261 = vmax.f32 %v1197, 0.0
    %v1262 = vmax.f32 %v1198, 0.0
    %v1263 = vmax.f32 %v1199, 0.0
    %v1264 = vmax.f32 %v1200, 0.0
    %v1265 = vmax.f32 %v1201, 0.0
    %v1266 = vmax.f32 %v1202, 0.0
    %v1267 = vmax.f32 %v1203, 0.0
    %v1268 = vmax.f32 %v1204, 0.0
    %v1269 = vmax.f32 %v1205, 0.0
    %v1270 = vmax.f32 %v1206, 0.0
    %v1271 = vmax.f32 %v1207, 0.0
    %v1272 = vmax.f32 %v1208, 0.0
    %v1273 = vmax.f32 %v1209, 0.0
    %v1274 = vmax.f32 %v1210, 0.0
    %v1275 = vmax.f32 %v1211, 0.0
    %v1276 = vmax.f32 %v1212, 0.0
    %v1277 = vmax.f32 %v1213, 0.0
    %v1278 = vmax.f32 %v1214, 0.0
    %v1279 = vmax.f32 %v1215, 0.0
    %v1280 = vmax.f32 %v1216, 0.0
    %v1281 = vmax.f32 %v1217, 0.0
    %v1282 = vmax.f32 %v1218, 0.0
    %v1283 = vmax.f32 %v1219, 0.0
    %v1284 = vmax.f32 %v1220, 0.0
    %v1285 = vmax.f32 %v1221, 0.0
    %v1286 = vmax.f32 %v1222, 0.0
    %v1287 = vmax.f32 %v1223, 0.0
    %v1288 = vmax.f32 %v1224, 0.0
    %v1289 = vmax.f32 %v1225, 0.0
    %v1290 = vmax.f32 %v1226, 0.0
    %v1291 = vmax.f32 %v1227, 0.0
    %v1292 = vmax.f32 %v1228, 0.0
    %v1293 = vmax.f32 %v1229, 0.0
    %v1294 = vmax.f32 %v1230, 0.0
    %v1295 = vmax.f32 %v1231, 0.0
    %v1296 = vmax.f32 %v1232, 0.0
    %v1297 = vmax.f32 %v1233, 0.0
    %v1298 = vmax.f32 %v1234, 0.0
    %1299 = vst.msk [vmem:[#allocation2] sm:$0xff] %vm717, 0.0
    %vm1300 = vcmask 254976
    %1301 = vst.msk [vmem:[#allocation2 + $0x8] sm:$0x3] %vm1300, 0.0
    %1302 = vst.msk [vmem:[#allocation2 + $0xa0] sm:$0xff] %vm717, 0.0
    %1303 = vst.msk [vmem:[#allocation2 + $0xa8] sm:$0x3] %vm1300, 0.0
    %1304 = vst.msk [vmem:[#allocation2 + $0x140] sm:$0xff] %vm717, 0.0
    %1305 = vst.msk [vmem:[#allocation2 + $0x148] sm:$0x3] %vm1300, 0.0
    %1306 = vst.msk [vmem:[#allocation2 + $0x1e0] sm:$0xff] %vm717, 0.0
    %1307 = vst.msk [vmem:[#allocation2 + $0x1e8] sm:$0x3] %vm1300, 0.0
    %1308 = vst.msk [vmem:[#allocation2 + $0x280] sm:$0xff] %vm717, 0.0
    %1309 = vst.msk [vmem:[#allocation2 + $0x288] sm:$0x3] %vm1300, 0.0
    %1310 = vst.msk [vmem:[#allocation2 + $0x320] sm:$0xff] %vm717, 0.0
    %1311 = vst.msk [vmem:[#allocation2 + $0x328] sm:$0x3] %vm1300, 0.0
    %1312 = vst.msk [vmem:[#allocation2 + $0x3c0] sm:$0xff] %vm717, 0.0
    %1313 = vst.msk [vmem:[#allocation2 + $0x3c8] sm:$0x3] %vm1300, 0.0
    %1314 = vst.msk [vmem:[#allocation2 + $0x460] sm:$0xff] %vm717, 0.0
    %1315 = vst.msk [vmem:[#allocation2 + $0x468] sm:$0x3] %vm1300, 0.0
    %s1316 = scalar_lea.vmem [#allocation2], 144
    %1317 = vst.msk [vmem:[%s1316] sm:$0xff] %vm717, 0.0
    %1318 = vst.msk [vmem:[%s1316 + $0x8] sm:$0x3] %vm1300, 0.0
    %1319 = vst.msk [vmem:[%s1316 + $0xa0] sm:$0xff] %vm717, 0.0
    %1320 = vst.msk [vmem:[%s1316 + $0xa8] sm:$0x3] %vm1300, 0.0
    %1321 = vst.msk [vmem:[%s1316 + $0x140] sm:$0xff] %vm717, 0.0
    %1322 = vst.msk [vmem:[%s1316 + $0x148] sm:$0x3] %vm1300, 0.0
    %1323 = vst.msk [vmem:[%s1316 + $0x1e0] sm:$0xff] %vm717, 0.0
    %1324 = vst.msk [vmem:[%s1316 + $0x1e8] sm:$0x3] %vm1300, 0.0
    %1325 = vst.msk [vmem:[%s1316 + $0x280] sm:$0xff] %vm717, 0.0
    %1326 = vst.msk [vmem:[%s1316 + $0x288] sm:$0x3] %vm1300, 0.0
    %1327 = vst.msk [vmem:[%s1316 + $0x320] sm:$0xff] %vm717, 0.0
    %1328 = vst.msk [vmem:[%s1316 + $0x328] sm:$0x3] %vm1300, 0.0
    %1329 = vst.msk [vmem:[%s1316 + $0x3c0] sm:$0xff] %vm717, 0.0
    %1330 = vst.msk [vmem:[%s1316 + $0x3c8] sm:$0x3] %vm1300, 0.0
    %1331 = vst.msk [vmem:[%s1316 + $0x460] sm:$0xff] %vm717, 0.0
    %1332 = vst.msk [vmem:[%s1316 + $0x468] sm:$0x3] %vm1300, 0.0
    %s1333 = scalar_lea.vmem [#allocation2], 16
    %vm1334 = vcmask 253952
    %1335 = vst.msk [vmem:[%s1333] sm:$0x1] %vm1334, 0.0
    %1336 = vst.msk [vmem:[%s1333 + $0x10] sm:$0x1] %vm1334, 0.0
    %1337 = vst.msk [vmem:[%s1333 + $0x20] sm:$0x1] %vm1334, 0.0
    %1338 = vst.msk [vmem:[%s1333 + $0x30] sm:$0x1] %vm1334, 0.0
    %1339 = vst.msk [vmem:[%s1333 + $0x40] sm:$0x1] %vm1334, 0.0
    %1340 = vst.msk [vmem:[%s1333 + $0x50] sm:$0x1] %vm1334, 0.0
    %1341 = vst.msk [vmem:[%s1333 + $0x60] sm:$0x1] %vm1334, 0.0
    %1342 = vst.msk [vmem:[%s1333 + $0x70] sm:$0x1] %vm1334, 0.0
    %1343 = vst.msk [vmem:[%s1333 + $0xa0] sm:$0x1] %vm1334, 0.0
    %1344 = vst.msk [vmem:[%s1333 + $0xb0] sm:$0x1] %vm1334, 0.0
    %1345 = vst.msk [vmem:[%s1333 + $0xc0] sm:$0x1] %vm1334, 0.0
    %1346 = vst.msk [vmem:[%s1333 + $0xd0] sm:$0x1] %vm1334, 0.0
    %1347 = vst.msk [vmem:[%s1333 + $0xe0] sm:$0x1] %vm1334, 0.0
    %1348 = vst.msk [vmem:[%s1333 + $0xf0] sm:$0x1] %vm1334, 0.0
    %1349 = vst.msk [vmem:[%s1333 + $0x100] sm:$0x1] %vm1334, 0.0
    %1350 = vst.msk [vmem:[%s1333 + $0x110] sm:$0x1] %vm1334, 0.0
    %1351 = vst.msk [vmem:[%s1333 + $0x140] sm:$0x1] %vm1334, 0.0
    %1352 = vst.msk [vmem:[%s1333 + $0x150] sm:$0x1] %vm1334, 0.0
    %1353 = vst.msk [vmem:[%s1333 + $0x160] sm:$0x1] %vm1334, 0.0
    %1354 = vst.msk [vmem:[%s1333 + $0x170] sm:$0x1] %vm1334, 0.0
    %1355 = vst.msk [vmem:[%s1333 + $0x180] sm:$0x1] %vm1334, 0.0
    %1356 = vst.msk [vmem:[%s1333 + $0x190] sm:$0x1] %vm1334, 0.0
    %1357 = vst.msk [vmem:[%s1333 + $0x1a0] sm:$0x1] %vm1334, 0.0
    %1358 = vst.msk [vmem:[%s1333 + $0x1b0] sm:$0x1] %vm1334, 0.0
    %1359 = vst.msk [vmem:[%s1333 + $0x1e0] sm:$0x1] %vm1334, 0.0
    %1360 = vst.msk [vmem:[%s1333 + $0x1f0] sm:$0x1] %vm1334, 0.0
    %1361 = vst.msk [vmem:[%s1333 + $0x200] sm:$0x1] %vm1334, 0.0
    %1362 = vst.msk [vmem:[%s1333 + $0x210] sm:$0x1] %vm1334, 0.0
    %1363 = vst.msk [vmem:[%s1333 + $0x220] sm:$0x1] %vm1334, 0.0
    %1364 = vst.msk [vmem:[%s1333 + $0x230] sm:$0x1] %vm1334, 0.0
    %1365 = vst.msk [vmem:[%s1333 + $0x240] sm:$0x1] %vm1334, 0.0
    %1366 = vst.msk [vmem:[%s1333 + $0x250] sm:$0x1] %vm1334, 0.0
    %1367 = vst.msk [vmem:[%s1333 + $0x280] sm:$0x1] %vm1334, 0.0
    %1368 = vst.msk [vmem:[%s1333 + $0x290] sm:$0x1] %vm1334, 0.0
    %1369 = vst.msk [vmem:[%s1333 + $0x2a0] sm:$0x1] %vm1334, 0.0
    %1370 = vst.msk [vmem:[%s1333 + $0x2b0] sm:$0x1] %vm1334, 0.0
    %1371 = vst.msk [vmem:[%s1333 + $0x2c0] sm:$0x1] %vm1334, 0.0
    %1372 = vst.msk [vmem:[%s1333 + $0x2d0] sm:$0x1] %vm1334, 0.0
    %1373 = vst.msk [vmem:[%s1333 + $0x2e0] sm:$0x1] %vm1334, 0.0
    %1374 = vst.msk [vmem:[%s1333 + $0x2f0] sm:$0x1] %vm1334, 0.0
    %1375 = vst.msk [vmem:[%s1333 + $0x320] sm:$0x1] %vm1334, 0.0
    %1376 = vst.msk [vmem:[%s1333 + $0x330] sm:$0x1] %vm1334, 0.0
    %1377 = vst.msk [vmem:[%s1333 + $0x340] sm:$0x1] %vm1334, 0.0
    %1378 = vst.msk [vmem:[%s1333 + $0x350] sm:$0x1] %vm1334, 0.0
    %1379 = vst.msk [vmem:[%s1333 + $0x360] sm:$0x1] %vm1334, 0.0
    %1380 = vst.msk [vmem:[%s1333 + $0x370] sm:$0x1] %vm1334, 0.0
    %1381 = vst.msk [vmem:[%s1333 + $0x380] sm:$0x1] %vm1334, 0.0
    %1382 = vst.msk [vmem:[%s1333 + $0x390] sm:$0x1] %vm1334, 0.0
    %1383 = vst.msk [vmem:[%s1333 + $0x3c0] sm:$0x1] %vm1334, 0.0
    %1384 = vst.msk [vmem:[%s1333 + $0x3d0] sm:$0x1] %vm1334, 0.0
    %1385 = vst.msk [vmem:[%s1333 + $0x3e0] sm:$0x1] %vm1334, 0.0
    %1386 = vst.msk [vmem:[%s1333 + $0x3f0] sm:$0x1] %vm1334, 0.0
    %1387 = vst.msk [vmem:[%s1333 + $0x400] sm:$0x1] %vm1334, 0.0
    %1388 = vst.msk [vmem:[%s1333 + $0x410] sm:$0x1] %vm1334, 0.0
    %1389 = vst.msk [vmem:[%s1333 + $0x420] sm:$0x1] %vm1334, 0.0
    %1390 = vst.msk [vmem:[%s1333 + $0x430] sm:$0x1] %vm1334, 0.0
    %1391 = vst.msk [vmem:[%s1333 + $0x460] sm:$0x1] %vm1334, 0.0
    %1392 = vst.msk [vmem:[%s1333 + $0x470] sm:$0x1] %vm1334, 0.0
    %1393 = vst.msk [vmem:[%s1333 + $0x480] sm:$0x1] %vm1334, 0.0
    %1394 = vst.msk [vmem:[%s1333 + $0x490] sm:$0x1] %vm1334, 0.0
    %1395 = vst.msk [vmem:[%s1333 + $0x4a0] sm:$0x1] %vm1334, 0.0
    %1396 = vst.msk [vmem:[%s1333 + $0x4b0] sm:$0x1] %vm1334, 0.0
    %1397 = vst.msk [vmem:[%s1333 + $0x4c0] sm:$0x1] %vm1334, 0.0
    %1398 = vst.msk [vmem:[%s1333 + $0x4d0] sm:$0x1] %vm1334, 0.0
    %1399 = vst.msk [vmem:[%s1333 + $0x9] sm:$0x1] %vm1334, 0.0
    %1400 = vst.msk [vmem:[%s1333 + $0x19] sm:$0x1] %vm1334, 0.0
    %1401 = vst.msk [vmem:[%s1333 + $0x29] sm:$0x1] %vm1334, 0.0
    %1402 = vst.msk [vmem:[%s1333 + $0x39] sm:$0x1] %vm1334, 0.0
    %1403 = vst.msk [vmem:[%s1333 + $0x49] sm:$0x1] %vm1334, 0.0
    %1404 = vst.msk [vmem:[%s1333 + $0x59] sm:$0x1] %vm1334, 0.0
    %1405 = vst.msk [vmem:[%s1333 + $0x69] sm:$0x1] %vm1334, 0.0
    %1406 = vst.msk [vmem:[%s1333 + $0x79] sm:$0x1] %vm1334, 0.0
    %1407 = vst.msk [vmem:[%s1333 + $0xa9] sm:$0x1] %vm1334, 0.0
    %1408 = vst.msk [vmem:[%s1333 + $0xb9] sm:$0x1] %vm1334, 0.0
    %1409 = vst.msk [vmem:[%s1333 + $0xc9] sm:$0x1] %vm1334, 0.0
    %1410 = vst.msk [vmem:[%s1333 + $0xd9] sm:$0x1] %vm1334, 0.0
    %1411 = vst.msk [vmem:[%s1333 + $0xe9] sm:$0x1] %vm1334, 0.0
    %1412 = vst.msk [vmem:[%s1333 + $0xf9] sm:$0x1] %vm1334, 0.0
    %1413 = vst.msk [vmem:[%s1333 + $0x109] sm:$0x1] %vm1334, 0.0
    %1414 = vst.msk [vmem:[%s1333 + $0x119] sm:$0x1] %vm1334, 0.0
    %1415 = vst.msk [vmem:[%s1333 + $0x149] sm:$0x1] %vm1334, 0.0
    %1416 = vst.msk [vmem:[%s1333 + $0x159] sm:$0x1] %vm1334, 0.0
    %1417 = vst.msk [vmem:[%s1333 + $0x169] sm:$0x1] %vm1334, 0.0
    %1418 = vst.msk [vmem:[%s1333 + $0x179] sm:$0x1] %vm1334, 0.0
    %1419 = vst.msk [vmem:[%s1333 + $0x189] sm:$0x1] %vm1334, 0.0
    %1420 = vst.msk [vmem:[%s1333 + $0x199] sm:$0x1] %vm1334, 0.0
    %1421 = vst.msk [vmem:[%s1333 + $0x1a9] sm:$0x1] %vm1334, 0.0
    %1422 = vst.msk [vmem:[%s1333 + $0x1b9] sm:$0x1] %vm1334, 0.0
    %1423 = vst.msk [vmem:[%s1333 + $0x1e9] sm:$0x1] %vm1334, 0.0
    %1424 = vst.msk [vmem:[%s1333 + $0x1f9] sm:$0x1] %vm1334, 0.0
    %1425 = vst.msk [vmem:[%s1333 + $0x209] sm:$0x1] %vm1334, 0.0
    %1426 = vst.msk [vmem:[%s1333 + $0x219] sm:$0x1] %vm1334, 0.0
    %1427 = vst.msk [vmem:[%s1333 + $0x229] sm:$0x1] %vm1334, 0.0
    %1428 = vst.msk [vmem:[%s1333 + $0x239] sm:$0x1] %vm1334, 0.0
    %1429 = vst.msk [vmem:[%s1333 + $0x249] sm:$0x1] %vm1334, 0.0
    %1430 = vst.msk [vmem:[%s1333 + $0x259] sm:$0x1] %vm1334, 0.0
    %1431 = vst.msk [vmem:[%s1333 + $0x289] sm:$0x1] %vm1334, 0.0
    %1432 = vst.msk [vmem:[%s1333 + $0x299] sm:$0x1] %vm1334, 0.0
    %1433 = vst.msk [vmem:[%s1333 + $0x2a9] sm:$0x1] %vm1334, 0.0
    %1434 = vst.msk [vmem:[%s1333 + $0x2b9] sm:$0x1] %vm1334, 0.0
    %1435 = vst.msk [vmem:[%s1333 + $0x2c9] sm:$0x1] %vm1334, 0.0
    %1436 = vst.msk [vmem:[%s1333 + $0x2d9] sm:$0x1] %vm1334, 0.0
    %1437 = vst.msk [vmem:[%s1333 + $0x2e9] sm:$0x1] %vm1334, 0.0
    %1438 = vst.msk [vmem:[%s1333 + $0x2f9] sm:$0x1] %vm1334, 0.0
    %1439 = vst.msk [vmem:[%s1333 + $0x329] sm:$0x1] %vm1334, 0.0
    %1440 = vst.msk [vmem:[%s1333 + $0x339] sm:$0x1] %vm1334, 0.0
    %1441 = vst.msk [vmem:[%s1333 + $0x349] sm:$0x1] %vm1334, 0.0
    %1442 = vst.msk [vmem:[%s1333 + $0x359] sm:$0x1] %vm1334, 0.0
    %1443 = vst.msk [vmem:[%s1333 + $0x369] sm:$0x1] %vm1334, 0.0
    %1444 = vst.msk [vmem:[%s1333 + $0x379] sm:$0x1] %vm1334, 0.0
    %1445 = vst.msk [vmem:[%s1333 + $0x389] sm:$0x1] %vm1334, 0.0
    %1446 = vst.msk [vmem:[%s1333 + $0x399] sm:$0x1] %vm1334, 0.0
    %1447 = vst.msk [vmem:[%s1333 + $0x3c9] sm:$0x1] %vm1334, 0.0
    %1448 = vst.msk [vmem:[%s1333 + $0x3d9] sm:$0x1] %vm1334, 0.0
    %1449 = vst.msk [vmem:[%s1333 + $0x3e9] sm:$0x1] %vm1334, 0.0
    %1450 = vst.msk [vmem:[%s1333 + $0x3f9] sm:$0x1] %vm1334, 0.0
    %1451 = vst.msk [vmem:[%s1333 + $0x409] sm:$0x1] %vm1334, 0.0
    %1452 = vst.msk [vmem:[%s1333 + $0x419] sm:$0x1] %vm1334, 0.0
    %1453 = vst.msk [vmem:[%s1333 + $0x429] sm:$0x1] %vm1334, 0.0
    %1454 = vst.msk [vmem:[%s1333 + $0x439] sm:$0x1] %vm1334, 0.0
    %1455 = vst.msk [vmem:[%s1333 + $0x469] sm:$0x1] %vm1334, 0.0
    %1456 = vst.msk [vmem:[%s1333 + $0x479] sm:$0x1] %vm1334, 0.0
    %1457 = vst.msk [vmem:[%s1333 + $0x489] sm:$0x1] %vm1334, 0.0
    %1458 = vst.msk [vmem:[%s1333 + $0x499] sm:$0x1] %vm1334, 0.0
    %1459 = vst.msk [vmem:[%s1333 + $0x4a9] sm:$0x1] %vm1334, 0.0
    %1460 = vst.msk [vmem:[%s1333 + $0x4b9] sm:$0x1] %vm1334, 0.0
    %1461 = vst.msk [vmem:[%s1333 + $0x4c9] sm:$0x1] %vm1334, 0.0
    %1462 = vst.msk [vmem:[%s1333 + $0x4d9] sm:$0x1] %vm1334, 0.0
    %1463 = vst.msk [vmem:[%s1333 + $0x1] sm:$0xff] %vm717, %v1235
    %1464 = vst.msk [vmem:[%s1333 + $0x11] sm:$0xff] %vm717, %v1236
    %1465 = vst.msk [vmem:[%s1333 + $0x21] sm:$0xff] %vm717, %v1237
    %1466 = vst.msk [vmem:[%s1333 + $0x31] sm:$0xff] %vm717, %v1238
    %1467 = vst.msk [vmem:[%s1333 + $0x41] sm:$0xff] %vm717, %v1239
    %1468 = vst.msk [vmem:[%s1333 + $0x51] sm:$0xff] %vm717, %v1240
    %1469 = vst.msk [vmem:[%s1333 + $0x61] sm:$0xff] %vm717, %v1241
    %1470 = vst.msk [vmem:[%s1333 + $0x71] sm:$0xff] %vm717, %v1242
    %1471 = vst.msk [vmem:[%s1333 + $0xa1] sm:$0xff] %vm717, %v1243
    %1472 = vst.msk [vmem:[%s1333 + $0xb1] sm:$0xff] %vm717, %v1244
    %1473 = vst.msk [vmem:[%s1333 + $0xc1] sm:$0xff] %vm717, %v1245
    %1474 = vst.msk [vmem:[%s1333 + $0xd1] sm:$0xff] %vm717, %v1246
    %1475 = vst.msk [vmem:[%s1333 + $0xe1] sm:$0xff] %vm717, %v1247
    %1476 = vst.msk [vmem:[%s1333 + $0xf1] sm:$0xff] %vm717, %v1248
    %1477 = vst.msk [vmem:[%s1333 + $0x101] sm:$0xff] %vm717, %v1249
    %1478 = vst.msk [vmem:[%s1333 + $0x111] sm:$0xff] %vm717, %v1250
    %1479 = vst.msk [vmem:[%s1333 + $0x141] sm:$0xff] %vm717, %v1251
    %1480 = vst.msk [vmem:[%s1333 + $0x151] sm:$0xff] %vm717, %v1252
    %1481 = vst.msk [vmem:[%s1333 + $0x161] sm:$0xff] %vm717, %v1253
    %1482 = vst.msk [vmem:[%s1333 + $0x171] sm:$0xff] %vm717, %v1254
    %1483 = vst.msk [vmem:[%s1333 + $0x181] sm:$0xff] %vm717, %v1255
    %1484 = vst.msk [vmem:[%s1333 + $0x191] sm:$0xff] %vm717, %v1256
    %1485 = vst.msk [vmem:[%s1333 + $0x1a1] sm:$0xff] %vm717, %v1257
    %1486 = vst.msk [vmem:[%s1333 + $0x1b1] sm:$0xff] %vm717, %v1258
    %1487 = vst.msk [vmem:[%s1333 + $0x1e1] sm:$0xff] %vm717, %v1259
    %1488 = vst.msk [vmem:[%s1333 + $0x1f1] sm:$0xff] %vm717, %v1260
    %1489 = vst.msk [vmem:[%s1333 + $0x201] sm:$0xff] %vm717, %v1261
    %1490 = vst.msk [vmem:[%s1333 + $0x211] sm:$0xff] %vm717, %v1262
    %1491 = vst.msk [vmem:[%s1333 + $0x221] sm:$0xff] %vm717, %v1263
    %1492 = vst.msk [vmem:[%s1333 + $0x231] sm:$0xff] %vm717, %v1264
    %1493 = vst.msk [vmem:[%s1333 + $0x241] sm:$0xff] %vm717, %v1265
    %1494 = vst.msk [vmem:[%s1333 + $0x251] sm:$0xff] %vm717, %v1266
    %1495 = vst.msk [vmem:[%s1333 + $0x281] sm:$0xff] %vm717, %v1267
    %1496 = vst.msk [vmem:[%s1333 + $0x291] sm:$0xff] %vm717, %v1268
    %1497 = vst.msk [vmem:[%s1333 + $0x2a1] sm:$0xff] %vm717, %v1269
    %1498 = vst.msk [vmem:[%s1333 + $0x2b1] sm:$0xff] %vm717, %v1270
    %1499 = vst.msk [vmem:[%s1333 + $0x2c1] sm:$0xff] %vm717, %v1271
    %1500 = vst.msk [vmem:[%s1333 + $0x2d1] sm:$0xff] %vm717, %v1272
    %1501 = vst.msk [vmem:[%s1333 + $0x2e1] sm:$0xff] %vm717, %v1273
    %1502 = vst.msk [vmem:[%s1333 + $0x2f1] sm:$0xff] %vm717, %v1274
    %1503 = vst.msk [vmem:[%s1333 + $0x321] sm:$0xff] %vm717, %v1275
    %1504 = vst.msk [vmem:[%s1333 + $0x331] sm:$0xff] %vm717, %v1276
    %1505 = vst.msk [vmem:[%s1333 + $0x341] sm:$0xff] %vm717, %v1277
    %1506 = vst.msk [vmem:[%s1333 + $0x351] sm:$0xff] %vm717, %v1278
    %1507 = vst.msk [vmem:[%s1333 + $0x361] sm:$0xff] %vm717, %v1279
    %1508 = vst.msk [vmem:[%s1333 + $0x371] sm:$0xff] %vm717, %v1280
    %1509 = vst.msk [vmem:[%s1333 + $0x381] sm:$0xff] %vm717, %v1281
    %1510 = vst.msk [vmem:[%s1333 + $0x391] sm:$0xff] %vm717, %v1282
    %1511 = vst.msk [vmem:[%s1333 + $0x3c1] sm:$0xff] %vm717, %v1283
    %1512 = vst.msk [vmem:[%s1333 + $0x3d1] sm:$0xff] %vm717, %v1284
    %1513 = vst.msk [vmem:[%s1333 + $0x3e1] sm:$0xff] %vm717, %v1285
    %1514 = vst.msk [vmem:[%s1333 + $0x3f1] sm:$0xff] %vm717, %v1286
    %1515 = vst.msk [vmem:[%s1333 + $0x401] sm:$0xff] %vm717, %v1287
    %1516 = vst.msk [vmem:[%s1333 + $0x411] sm:$0xff] %vm717, %v1288
    %1517 = vst.msk [vmem:[%s1333 + $0x421] sm:$0xff] %vm717, %v1289
    %1518 = vst.msk [vmem:[%s1333 + $0x431] sm:$0xff] %vm717, %v1290
    %1519 = vst.msk [vmem:[%s1333 + $0x461] sm:$0xff] %vm717, %v1291
    %1520 = vst.msk [vmem:[%s1333 + $0x471] sm:$0xff] %vm717, %v1292
    %1521 = vst.msk [vmem:[%s1333 + $0x481] sm:$0xff] %vm717, %v1293
    %1522 = vst.msk [vmem:[%s1333 + $0x491] sm:$0xff] %vm717, %v1294
    %1523 = vst.msk [vmem:[%s1333 + $0x4a1] sm:$0xff] %vm717, %v1295
    %1524 = vst.msk [vmem:[%s1333 + $0x4b1] sm:$0xff] %vm717, %v1296
    %1525 = vst.msk [vmem:[%s1333 + $0x4c1] sm:$0xff] %vm717, %v1297
    %1526 = vst.msk [vmem:[%s1333 + $0x4d1] sm:$0xff] %vm717, %v1298
    %v1527 = vld [vmem:[#allocation2] sm:$0xff]
    %v1528 = vld [vmem:[#allocation2 + $0x10] sm:$0xff]
    %v1529 = vld [vmem:[#allocation2 + $0x20] sm:$0xff]
    %v1530 = vld [vmem:[#allocation2 + $0x30] sm:$0xff]
    %v1531 = vld [vmem:[#allocation2 + $0x40] sm:$0xff]
    %v1532 = vld [vmem:[#allocation2 + $0x50] sm:$0xff]
    %v1533 = vld [vmem:[#allocation2 + $0x60] sm:$0xff]
    %v1534 = vld [vmem:[#allocation2 + $0x70] sm:$0xff]
    %v1535 = vld [vmem:[#allocation2 + $0xa0] sm:$0xff]
    %v1536 = vld [vmem:[#allocation2 + $0xb0] sm:$0xff]
    %v1537 = vld [vmem:[#allocation2 + $0xc0] sm:$0xff]
    %v1538 = vld [vmem:[#allocation2 + $0xd0] sm:$0xff]
    %v1539 = vld [vmem:[#allocation2 + $0xe0] sm:$0xff]
    %v1540 = vld [vmem:[#allocation2 + $0xf0] sm:$0xff]
    %v1541 = vld [vmem:[#allocation2 + $0x100] sm:$0xff]
    %v1542 = vld [vmem:[#allocation2 + $0x110] sm:$0xff]
    %v1543 = vld [vmem:[#allocation2 + $0x140] sm:$0xff]
    %v1544 = vld [vmem:[#allocation2 + $0x150] sm:$0xff]
    %v1545 = vld [vmem:[#allocation2 + $0x160] sm:$0xff]
    %v1546 = vld [vmem:[#allocation2 + $0x170] sm:$0xff]
    %v1547 = vld [vmem:[#allocation2 + $0x180] sm:$0xff]
    %v1548 = vld [vmem:[#allocation2 + $0x190] sm:$0xff]
    %v1549 = vld [vmem:[#allocation2 + $0x1a0] sm:$0xff]
    %v1550 = vld [vmem:[#allocation2 + $0x1b0] sm:$0xff]
    %v1551 = vld [vmem:[#allocation2 + $0x1e0] sm:$0xff]
    %v1552 = vld [vmem:[#allocation2 + $0x1f0] sm:$0xff]
    %v1553 = vld [vmem:[#allocation2 + $0x200] sm:$0xff]
    %v1554 = vld [vmem:[#allocation2 + $0x210] sm:$0xff]
    %v1555 = vld [vmem:[#allocation2 + $0x220] sm:$0xff]
    %v1556 = vld [vmem:[#allocation2 + $0x230] sm:$0xff]
    %v1557 = vld [vmem:[#allocation2 + $0x240] sm:$0xff]
    %v1558 = vld [vmem:[#allocation2 + $0x250] sm:$0xff]
    %v1559 = vld [vmem:[#allocation2 + $0x280] sm:$0xff]
    %v1560 = vld [vmem:[#allocation2 + $0x290] sm:$0xff]
    %v1561 = vld [vmem:[#allocation2 + $0x2a0] sm:$0xff]
    %v1562 = vld [vmem:[#allocation2 + $0x2b0] sm:$0xff]
    %v1563 = vld [vmem:[#allocation2 + $0x2c0] sm:$0xff]
    %v1564 = vld [vmem:[#allocation2 + $0x2d0] sm:$0xff]
    %v1565 = vld [vmem:[#allocation2 + $0x2e0] sm:$0xff]
    %v1566 = vld [vmem:[#allocation2 + $0x2f0] sm:$0xff]
    %v1567 = vld [vmem:[#allocation2 + $0x320] sm:$0xff]
    %v1568 = vld [vmem:[#allocation2 + $0x330] sm:$0xff]
    %v1569 = vld [vmem:[#allocation2 + $0x340] sm:$0xff]
    %v1570 = vld [vmem:[#allocation2 + $0x350] sm:$0xff]
    %v1571 = vld [vmem:[#allocation2 + $0x360] sm:$0xff]
    %v1572 = vld [vmem:[#allocation2 + $0x370] sm:$0xff]
    %v1573 = vld [vmem:[#allocation2 + $0x380] sm:$0xff]
    %v1574 = vld [vmem:[#allocation2 + $0x390] sm:$0xff]
    %v1575 = vld [vmem:[#allocation2 + $0x3c0] sm:$0xff]
    %v1576 = vld [vmem:[#allocation2 + $0x3d0] sm:$0xff]
    %v1577 = vld [vmem:[#allocation2 + $0x3e0] sm:$0xff]
    %v1578 = vld [vmem:[#allocation2 + $0x3f0] sm:$0xff]
    %v1579 = vld [vmem:[#allocation2 + $0x400] sm:$0xff]
    %v1580 = vld [vmem:[#allocation2 + $0x410] sm:$0xff]
    %v1581 = vld [vmem:[#allocation2 + $0x420] sm:$0xff]
    %v1582 = vld [vmem:[#allocation2 + $0x430] sm:$0xff]
    %v1583 = vld [vmem:[#allocation2 + $0x460] sm:$0xff]
    %v1584 = vld [vmem:[#allocation2 + $0x470] sm:$0xff]
    %v1585 = vld [vmem:[#allocation2 + $0x480] sm:$0xff]
    %v1586 = vld [vmem:[#allocation2 + $0x490] sm:$0xff]
    %v1587 = vld [vmem:[#allocation2 + $0x4a0] sm:$0xff]
    %v1588 = vld [vmem:[#allocation2 + $0x4b0] sm:$0xff]
    %v1589 = vld [vmem:[#allocation2 + $0x4c0] sm:$0xff]
    %v1590 = vld [vmem:[#allocation2 + $0x4d0] sm:$0xff]
    %v1591 = vld [vmem:[%s5] sm:$0xff]
    %v1592 = vld [vmem:[%s5 + $0x8] sm:$0xff]
    %v1593 = vld [vmem:[%s5 + $0x10] sm:$0xff]
    %v1594 = vld [vmem:[%s5 + $0x18] sm:$0xff]
    %v1595 = vld [vmem:[#allocation2 + $0x1] sm:$0xff]
    %v1596 = vld [vmem:[#allocation2 + $0x11] sm:$0xff]
    %v1597 = vld [vmem:[#allocation2 + $0x21] sm:$0xff]
    %v1598 = vld [vmem:[#allocation2 + $0x31] sm:$0xff]
    %v1599 = vld [vmem:[#allocation2 + $0x41] sm:$0xff]
    %v1600 = vld [vmem:[#allocation2 + $0x51] sm:$0xff]
    %v1601 = vld [vmem:[#allocation2 + $0x61] sm:$0xff]
    %v1602 = vld [vmem:[#allocation2 + $0x71] sm:$0xff]
    %v1603 = vld [vmem:[#allocation2 + $0xa1] sm:$0xff]
    %v1604 = vld [vmem:[#allocation2 + $0xb1] sm:$0xff]
    %v1605 = vld [vmem:[#allocation2 + $0xc1] sm:$0xff]
    %v1606 = vld [vmem:[#allocation2 + $0xd1] sm:$0xff]
    %v1607 = vld [vmem:[#allocation2 + $0xe1] sm:$0xff]
    %v1608 = vld [vmem:[#allocation2 + $0xf1] sm:$0xff]
    %v1609 = vld [vmem:[#allocation2 + $0x101] sm:$0xff]
    %v1610 = vld [vmem:[#allocation2 + $0x111] sm:$0xff]
    %v1611 = vld [vmem:[#allocation2 + $0x141] sm:$0xff]
    %v1612 = vld [vmem:[#allocation2 + $0x151] sm:$0xff]
    %v1613 = vld [vmem:[#allocation2 + $0x161] sm:$0xff]
    %v1614 = vld [vmem:[#allocation2 + $0x171] sm:$0xff]
    %v1615 = vld [vmem:[#allocation2 + $0x181] sm:$0xff]
    %v1616 = vld [vmem:[#allocation2 + $0x191] sm:$0xff]
    %v1617 = vld [vmem:[#allocation2 + $0x1a1] sm:$0xff]
    %v1618 = vld [vmem:[#allocation2 + $0x1b1] sm:$0xff]
    %v1619 = vld [vmem:[#allocation2 + $0x1e1] sm:$0xff]
    %v1620 = vld [vmem:[#allocation2 + $0x1f1] sm:$0xff]
    %v1621 = vld [vmem:[#allocation2 + $0x201] sm:$0xff]
    %v1622 = vld [vmem:[#allocation2 + $0x211] sm:$0xff]
    %v1623 = vld [vmem:[#allocation2 + $0x221] sm:$0xff]
    %v1624 = vld [vmem:[#allocation2 + $0x231] sm:$0xff]
    %v1625 = vld [vmem:[#allocation2 + $0x241] sm:$0xff]
    %v1626 = vld [vmem:[#allocation2 + $0x251] sm:$0xff]
    %v1627 = vld [vmem:[#allocation2 + $0x281] sm:$0xff]
    %v1628 = vld [vmem:[#allocation2 + $0x291] sm:$0xff]
    %v1629 = vld [vmem:[#allocation2 + $0x2a1] sm:$0xff]
    %v1630 = vld [vmem:[#allocation2 + $0x2b1] sm:$0xff]
    %v1631 = vld [vmem:[#allocation2 + $0x2c1] sm:$0xff]
    %v1632 = vld [vmem:[#allocation2 + $0x2d1] sm:$0xff]
    %v1633 = vld [vmem:[#allocation2 + $0x2e1] sm:$0xff]
    %v1634 = vld [vmem:[#allocation2 + $0x2f1] sm:$0xff]
    %v1635 = vld [vmem:[#allocation2 + $0x321] sm:$0xff]
    %v1636 = vld [vmem:[#allocation2 + $0x331] sm:$0xff]
    %v1637 = vld [vmem:[#allocation2 + $0x341] sm:$0xff]
    %v1638 = vld [vmem:[#allocation2 + $0x351] sm:$0xff]
    %v1639 = vld [vmem:[#allocation2 + $0x361] sm:$0xff]
    %v1640 = vld [vmem:[#allocation2 + $0x371] sm:$0xff]
    %v1641 = vld [vmem:[#allocation2 + $0x381] sm:$0xff]
    %v1642 = vld [vmem:[#allocation2 + $0x391] sm:$0xff]
    %v1643 = vld [vmem:[#allocation2 + $0x3c1] sm:$0xff]
    %v1644 = vld [vmem:[#allocation2 + $0x3d1] sm:$0xff]
    %v1645 = vld [vmem:[#allocation2 + $0x3e1] sm:$0xff]
    %v1646 = vld [vmem:[#allocation2 + $0x3f1] sm:$0xff]
    %v1647 = vld [vmem:[#allocation2 + $0x401] sm:$0xff]
    %v1648 = vld [vmem:[#allocation2 + $0x411] sm:$0xff]
    %v1649 = vld [vmem:[#allocation2 + $0x421] sm:$0xff]
    %v1650 = vld [vmem:[#allocation2 + $0x431] sm:$0xff]
    %v1651 = vld [vmem:[#allocation2 + $0x461] sm:$0xff]
    %v1652 = vld [vmem:[#allocation2 + $0x471] sm:$0xff]
    %v1653 = vld [vmem:[#allocation2 + $0x481] sm:$0xff]
    %v1654 = vld [vmem:[#allocation2 + $0x491] sm:$0xff]
    %v1655 = vld [vmem:[#allocation2 + $0x4a1] sm:$0xff]
    %v1656 = vld [vmem:[#allocation2 + $0x4b1] sm:$0xff]
    %v1657 = vld [vmem:[#allocation2 + $0x4c1] sm:$0xff]
    %v1658 = vld [vmem:[#allocation2 + $0x4d1] sm:$0xff]
    %s1659 = scalar_lea.vmem %s5, 32
    %v1660 = vld [vmem:[%s1659] sm:$0xff]
    %v1661 = vld [vmem:[%s1659 + $0x8] sm:$0xff]
    %v1662 = vld [vmem:[%s1659 + $0x10] sm:$0xff]
    %v1663 = vld [vmem:[%s1659 + $0x18] sm:$0xff]
    %v1665 = vsel %vm717, %v1595, 0
    %v1668 = vsel %vm717, %v1596, 0
    %v1671 = vsel %vm717, %v1597, 0
    %v1674 = vsel %vm717, %v1598, 0
    %v1677 = vsel %vm717, %v1599, 0
    %v1680 = vsel %vm717, %v1600, 0
    %v1683 = vsel %vm717, %v1601, 0
    %v1686 = vsel %vm717, %v1602, 0
    %v1689 = vsel %vm717, %v1603, 0
    %v1692 = vsel %vm717, %v1604, 0
    %v1695 = vsel %vm717, %v1605, 0
    %v1698 = vsel %vm717, %v1606, 0
    %v1701 = vsel %vm717, %v1607, 0
    %v1704 = vsel %vm717, %v1608, 0
    %v1707 = vsel %vm717, %v1609, 0
    %v1710 = vsel %vm717, %v1610, 0
    %v1713 = vsel %vm717, %v1611, 0
    %v1716 = vsel %vm717, %v1612, 0
    %v1719 = vsel %vm717, %v1613, 0
    %v1722 = vsel %vm717, %v1614, 0
    %v1725 = vsel %vm717, %v1615, 0
    %v1728 = vsel %vm717, %v1616, 0
    %v1731 = vsel %vm717, %v1617, 0
    %v1734 = vsel %vm717, %v1618, 0
    %v1737 = vsel %vm717, %v1619, 0
    %v1740 = vsel %vm717, %v1620, 0
    %v1743 = vsel %vm717, %v1621, 0
    %v1746 = vsel %vm717, %v1622, 0
    %v1749 = vsel %vm717, %v1623, 0
    %v1752 = vsel %vm717, %v1624, 0
    %v1755 = vsel %vm717, %v1625, 0
    %v1758 = vsel %vm717, %v1626, 0
    %v1761 = vsel %vm717, %v1627, 0
    %v1764 = vsel %vm717, %v1628, 0
    %v1767 = vsel %vm717, %v1629, 0
    %v1770 = vsel %vm717, %v1630, 0
    %v1773 = vsel %vm717, %v1631, 0
    %v1776 = vsel %vm717, %v1632, 0
    %v1779 = vsel %vm717, %v1633, 0
    %v1782 = vsel %vm717, %v1634, 0
    %v1785 = vsel %vm717, %v1635, 0
    %v1788 = vsel %vm717, %v1636, 0
    %v1791 = vsel %vm717, %v1637, 0
    %v1794 = vsel %vm717, %v1638, 0
    %v1797 = vsel %vm717, %v1639, 0
    %v1800 = vsel %vm717, %v1640, 0
    %v1803 = vsel %vm717, %v1641, 0
    %v1806 = vsel %vm717, %v1642, 0
    %v1809 = vsel %vm717, %v1643, 0
    %v1812 = vsel %vm717, %v1644, 0
    %v1815 = vsel %vm717, %v1645, 0
    %v1818 = vsel %vm717, %v1646, 0
    %v1821 = vsel %vm717, %v1647, 0
    %v1824 = vsel %vm717, %v1648, 0
    %v1827 = vsel %vm717, %v1649, 0
    %v1830 = vsel %vm717, %v1650, 0
    %v1833 = vsel %vm717, %v1651, 0
    %v1836 = vsel %vm717, %v1652, 0
    %v1839 = vsel %vm717, %v1653, 0
    %v1842 = vsel %vm717, %v1654, 0
    %v1845 = vsel %vm717, %v1655, 0
    %v1848 = vsel %vm717, %v1656, 0
    %v1851 = vsel %vm717, %v1657, 0
    %v1854 = vsel %vm717, %v1658, 0
    %1856 = vmatprep.subr.mxu0 0.0
    %1857 = vmatpush1.msra.mxu0 %v1660
    %1858 = vmatprep.subr.mxu0 0.0
    %1859 = vmatpush1.msra.mxu0 %v1661
    %1860 = vmatprep.subr.mxu0 0.0
    %1861 = vmatpush1.msra.mxu0 %v1662
    %1862 = vmatprep.subr.mxu0 0.0
    %1863 = vmatpush1.msra.mxu0 %v1663
    %1864 = vmatprep.subr.mxu0 0.0
    %1865 = vmatpush1.msra.mxu0 0.0
    %1866 = vmatprep.subr.mxu0 0.0
    %1867 = vmatpush1.msra.mxu0 0.0
    %1868 = vmatprep.subr.mxu0 0.0
    %1869 = vmatpush1.msra.mxu0 0.0
    %1870 = vmatprep.subr.mxu0 0.0
    %1871 = vmatpush1.msra.mxu0 0.0
    %1872 = vmatprep.subr.mxu0 0.0
    %1873 = vmatpush1.msra.mxu0 0.0
    %1874 = vmatprep.subr.mxu0 0.0
    %1875 = vmatpush1.msra.mxu0 0.0
    %1876 = vmatprep.subr.mxu0 0.0
    %1877 = vmatpush1.msra.mxu0 0.0
    %1878 = vmatprep.subr.mxu0 0.0
    %1879 = vmatpush1.msra.mxu0 0.0
    %1880 = vmatprep.subr.mxu0 0.0
    %1881 = vmatpush1.msra.mxu0 0.0
    %1882 = vmatprep.subr.mxu0 0.0
    %1883 = vmatpush1.msra.mxu0 0.0
    %1884 = vmatprep.subr.mxu0 0.0
    %1885 = vmatpush1.msra.mxu0 0.0
    %1886 = vmatprep.subr.mxu0 0.0
    %1887 = vmatpush1.msra.mxu0 0.0
    %1888 = vmatprep.subr.mxu0 0.0
    %1889 = vmatpush1.msra.mxu0 0.0
    %1890 = vmatprep.subr.mxu0 0.0
    %1891 = vmatpush1.msra.mxu0 0.0
    %1892 = vmatprep.subr.mxu0 0.0
    %1893 = vmatpush1.msra.mxu0 0.0
    %1894 = vmatprep.subr.mxu0 0.0
    %1895 = vmatpush1.msra.mxu0 0.0
    %1896 = vmatprep.subr.mxu0 0.0
    %1897 = vmatpush1.msra.mxu0 0.0
    %1898 = vmatprep.subr.mxu0 0.0
    %1899 = vmatpush1.msra.mxu0 0.0
    %1900 = vmatprep.subr.mxu0 0.0
    %1901 = vmatpush1.msra.mxu0 0.0
    %1902 = vmatprep.subr.mxu0 0.0
    %1903 = vmatpush1.msra.mxu0 0.0
    %1904 = vmatprep.subr.mxu0 0.0
    %1905 = vmatpush1.msra.mxu0 0.0
    %1906 = vmatprep.subr.mxu0 0.0
    %1907 = vmatpush1.msra.mxu0 0.0
    %1908 = vmatprep.subr.mxu0 0.0
    %1909 = vmatpush1.msra.mxu0 0.0
    %1910 = vmatprep.subr.mxu0 0.0
    %1911 = vmatpush1.msra.mxu0 0.0
    %1912 = vmatprep.subr.mxu0 0.0
    %1913 = vmatpush1.msra.mxu0 0.0
    %1914 = vmatprep.subr.mxu0 0.0
    %1915 = vmatpush1.msra.mxu0 0.0
    %1916 = vmatprep.subr.mxu0 0.0
    %1917 = vmatpush1.msra.mxu0 0.0
    %1918 = vmatprep.subr.mxu0 0.0
    %1919 = vmatpush1.msra.mxu0 0.0
    %1920 = vmatprep.mubr.f32.mxu0 0.0
    %1921 = vmatmul.mubr.f32.gmra.mrb[0].mxu0 %v1665
    %v1922 = vpop.f32.mrb[0].mxu0
    %v1923 = vadd.f32 0.0, %v1922
    %v1924 = vpop.f32.mrb[0].mxu0
    %1925 = vmatprep.mubr.f32.mxu0 0.0
    %1926 = vmatmul.mubr.f32.gmra.mrb[0].mxu0 %v1668
    %v1927 = vpop.f32.mrb[0].mxu0
    %v1928 = vadd.f32 0.0, %v1927
    %v1929 = vpop.f32.mrb[0].mxu0
    %1930 = vmatprep.mubr.f32.mxu0 0.0
    %1931 = vmatmul.mubr.f32.gmra.mrb[0].mxu0 %v1671
    %v1932 = vpop.f32.mrb[0].mxu0
    %v1933 = vadd.f32 0.0, %v1932
    %v1934 = vpop.f32.mrb[0].mxu0
    %1935 = vmatprep.mubr.f32.mxu0 0.0
    %1936 = vmatmul.mubr.f32.gmra.mrb[0].mxu0 %v1674
    %v1937 = vpop.f32.mrb[0].mxu0
    %v1938 = vadd.f32 0.0, %v1937
    %v1939 = vpop.f32.mrb[0].mxu0
    %1940 = vmatprep.mubr.f32.mxu0 0.0
    %1941 = vmatmul.mubr.f32.gmra.mrb[0].mxu0 %v1677
    %v1942 = vpop.f32.mrb[0].mxu0
    %v1943 = vadd.f32 0.0, %v1942
    %v1944 = vpop.f32.mrb[0].mxu0
    %1945 = vmatprep.mubr.f32.mxu0 0.0
    %1946 = vmatmul.mubr.f32.gmra.mrb[0].mxu0 %v1680
    %v1947 = vpop.f32.mrb[0].mxu0
    %v1948 = vadd.f32 0.0, %v1947
    %v1949 = vpop.f32.mrb[0].mxu0
    %1950 = vmatprep.mubr.f32.mxu0 0.0
    %1951 = vmatmul.mubr.f32.gmra.mrb[0].mxu0 %v1683
    %v1952 = vpop.f32.mrb[0].mxu0
    %v1953 = vadd.f32 0.0, %v1952
    %v1954 = vpop.f32.mrb[0].mxu0
    %1955 = vmatprep.mubr.f32.mxu0 0.0
    %1956 = vmatmul.mubr.f32.gmra.mrb[0].mxu0 %v1686
    %v1957 = vpop.f32.mrb[0].mxu0
    %v1958 = vadd.f32 0.0, %v1957
    %v1959 = vpop.f32.mrb[0].mxu0
    %1960 = vmatprep.mubr.f32.mxu0 0.0
    %1961 = vmatmul.mubr.f32.gmra.mrb[0].mxu0 %v1689
    %v1962 = vpop.f32.mrb[0].mxu0
    %v1963 = vadd.f32 0.0, %v1962
    %v1964 = vpop.f32.mrb[0].mxu0
    %1965 = vmatprep.mubr.f32.mxu0 0.0
    %1966 = vmatmul.mubr.f32.gmra.mrb[0].mxu0 %v1692
    %v1967 = vpop.f32.mrb[0].mxu0
    %v1968 = vadd.f32 0.0, %v1967
    %v1969 = vpop.f32.mrb[0].mxu0
    %1970 = vmatprep.mubr.f32.mxu0 0.0
    %1971 = vmatmul.mubr.f32.gmra.mrb[0].mxu0 %v1695
    %v1972 = vpop.f32.mrb[0].mxu0
    %v1973 = vadd.f32 0.0, %v1972
    %v1974 = vpop.f32.mrb[0].mxu0
    %1975 = vmatprep.mubr.f32.mxu0 0.0
    %1976 = vmatmul.mubr.f32.gmra.mrb[0].mxu0 %v1698
    %v1977 = vpop.f32.mrb[0].mxu0
    %v1978 = vadd.f32 0.0, %v1977
    %v1979 = vpop.f32.mrb[0].mxu0
    %1980 = vmatprep.mubr.f32.mxu0 0.0
    %1981 = vmatmul.mubr.f32.gmra.mrb[0].mxu0 %v1701
    %v1982 = vpop.f32.mrb[0].mxu0
    %v1983 = vadd.f32 0.0, %v1982
    %v1984 = vpop.f32.mrb[0].mxu0
    %1985 = vmatprep.mubr.f32.mxu0 0.0
    %1986 = vmatmul.mubr.f32.gmra.mrb[0].mxu0 %v1704
    %v1987 = vpop.f32.mrb[0].mxu0
    %v1988 = vadd.f32 0.0, %v1987
    %v1989 = vpop.f32.mrb[0].mxu0
    %1990 = vmatprep.mubr.f32.mxu0 0.0
    %1991 = vmatmul.mubr.f32.gmra.mrb[0].mxu0 %v1707
    %v1992 = vpop.f32.mrb[0].mxu0
    %v1993 = vadd.f32 0.0, %v1992
    %v1994 = vpop.f32.mrb[0].mxu0
    %1995 = vmatprep.mubr.f32.mxu0 0.0
    %1996 = vmatmul.mubr.f32.gmra.mrb[0].mxu0 %v1710
    %v1997 = vpop.f32.mrb[0].mxu0
    %v1998 = vadd.f32 0.0, %v1997
    %v1999 = vpop.f32.mrb[0].mxu0
    %2000 = vmatprep.mubr.f32.mxu0 0.0
    %2001 = vmatmul.mubr.f32.gmra.mrb[0].mxu0 %v1713
    %v2002 = vpop.f32.mrb[0].mxu0
    %v2003 = vadd.f32 0.0, %v2002
    %v2004 = vpop.f32.mrb[0].mxu0
    %2005 = vmatprep.mubr.f32.mxu0 0.0
    %2006 = vmatmul.mubr.f32.gmra.mrb[0].mxu0 %v1716
    %v2007 = vpop.f32.mrb[0].mxu0
    %v2008 = vadd.f32 0.0, %v2007
    %v2009 = vpop.f32.mrb[0].mxu0
    %2010 = vmatprep.mubr.f32.mxu0 0.0
    %2011 = vmatmul.mubr.f32.gmra.mrb[0].mxu0 %v1719
    %v2012 = vpop.f32.mrb[0].mxu0
    %v2013 = vadd.f32 0.0, %v2012
    %v2014 = vpop.f32.mrb[0].mxu0
    %2015 = vmatprep.mubr.f32.mxu0 0.0
    %2016 = vmatmul.mubr.f32.gmra.mrb[0].mxu0 %v1722
    %v2017 = vpop.f32.mrb[0].mxu0
    %v2018 = vadd.f32 0.0, %v2017
    %v2019 = vpop.f32.mrb[0].mxu0
    %2020 = vmatprep.mubr.f32.mxu0 0.0
    %2021 = vmatmul.mubr.f32.gmra.mrb[0].mxu0 %v1725
    %v2022 = vpop.f32.mrb[0].mxu0
    %v2023 = vadd.f32 0.0, %v2022
    %v2024 = vpop.f32.mrb[0].mxu0
    %2025 = vmatprep.mubr.f32.mxu0 0.0
    %2026 = vmatmul.mubr.f32.gmra.mrb[0].mxu0 %v1728
    %v2027 = vpop.f32.mrb[0].mxu0
    %v2028 = vadd.f32 0.0, %v2027
    %v2029 = vpop.f32.mrb[0].mxu0
    %2030 = vmatprep.mubr.f32.mxu0 0.0
    %2031 = vmatmul.mubr.f32.gmra.mrb[0].mxu0 %v1731
    %v2032 = vpop.f32.mrb[0].mxu0
    %v2033 = vadd.f32 0.0, %v2032
    %v2034 = vpop.f32.mrb[0].mxu0
    %2035 = vmatprep.mubr.f32.mxu0 0.0
    %2036 = vmatmul.mubr.f32.gmra.mrb[0].mxu0 %v1734
    %v2037 = vpop.f32.mrb[0].mxu0
    %v2038 = vadd.f32 0.0, %v2037
    %v2039 = vpop.f32.mrb[0].mxu0
    %2040 = vmatprep.mubr.f32.mxu0 0.0
    %2041 = vmatmul.mubr.f32.gmra.mrb[0].mxu0 %v1737
    %v2042 = vpop.f32.mrb[0].mxu0
    %v2043 = vadd.f32 0.0, %v2042
    %v2044 = vpop.f32.mrb[0].mxu0
    %2045 = vmatprep.mubr.f32.mxu0 0.0
    %2046 = vmatmul.mubr.f32.gmra.mrb[0].mxu0 %v1740
    %v2047 = vpop.f32.mrb[0].mxu0
    %v2048 = vadd.f32 0.0, %v2047
    %v2049 = vpop.f32.mrb[0].mxu0
    %2050 = vmatprep.mubr.f32.mxu0 0.0
    %2051 = vmatmul.mubr.f32.gmra.mrb[0].mxu0 %v1743
    %v2052 = vpop.f32.mrb[0].mxu0
    %v2053 = vadd.f32 0.0, %v2052
    %v2054 = vpop.f32.mrb[0].mxu0
    %2055 = vmatprep.mubr.f32.mxu0 0.0
    %2056 = vmatmul.mubr.f32.gmra.mrb[0].mxu0 %v1746
    %v2057 = vpop.f32.mrb[0].mxu0
    %v2058 = vadd.f32 0.0, %v2057
    %v2059 = vpop.f32.mrb[0].mxu0
    %2060 = vmatprep.mubr.f32.mxu0 0.0
    %2061 = vmatmul.mubr.f32.gmra.mrb[0].mxu0 %v1749
    %v2062 = vpop.f32.mrb[0].mxu0
    %v2063 = vadd.f32 0.0, %v2062
    %v2064 = vpop.f32.mrb[0].mxu0
    %2065 = vmatprep.mubr.f32.mxu0 0.0
    %2066 = vmatmul.mubr.f32.gmra.mrb[0].mxu0 %v1752
    %v2067 = vpop.f32.mrb[0].mxu0
    %v2068 = vadd.f32 0.0, %v2067
    %v2069 = vpop.f32.mrb[0].mxu0
    %2070 = vmatprep.mubr.f32.mxu0 0.0
    %2071 = vmatmul.mubr.f32.gmra.mrb[0].mxu0 %v1755
    %v2072 = vpop.f32.mrb[0].mxu0
    %v2073 = vadd.f32 0.0, %v2072
    %v2074 = vpop.f32.mrb[0].mxu0
    %2075 = vmatprep.mubr.f32.mxu0 0.0
    %2076 = vmatmul.mubr.f32.gmra.mrb[0].mxu0 %v1758
    %v2077 = vpop.f32.mrb[0].mxu0
    %v2078 = vadd.f32 0.0, %v2077
    %v2079 = vpop.f32.mrb[0].mxu0
    %2080 = vmatprep.mubr.f32.mxu0 0.0
    %2081 = vmatmul.mubr.f32.gmra.mrb[0].mxu0 %v1761
    %v2082 = vpop.f32.mrb[0].mxu0
    %v2083 = vadd.f32 0.0, %v2082
    %v2084 = vpop.f32.mrb[0].mxu0
    %2085 = vmatprep.mubr.f32.mxu0 0.0
    %2086 = vmatmul.mubr.f32.gmra.mrb[0].mxu0 %v1764
    %v2087 = vpop.f32.mrb[0].mxu0
    %v2088 = vadd.f32 0.0, %v2087
    %v2089 = vpop.f32.mrb[0].mxu0
    %2090 = vmatprep.mubr.f32.mxu0 0.0
    %2091 = vmatmul.mubr.f32.gmra.mrb[0].mxu0 %v1767
    %v2092 = vpop.f32.mrb[0].mxu0
    %v2093 = vadd.f32 0.0, %v2092
    %v2094 = vpop.f32.mrb[0].mxu0
    %2095 = vmatprep.mubr.f32.mxu0 0.0
    %2096 = vmatmul.mubr.f32.gmra.mrb[0].mxu0 %v1770
    %v2097 = vpop.f32.mrb[0].mxu0
    %v2098 = vadd.f32 0.0, %v2097
    %v2099 = vpop.f32.mrb[0].mxu0
    %2100 = vmatprep.mubr.f32.mxu0 0.0
    %2101 = vmatmul.mubr.f32.gmra.mrb[0].mxu0 %v1773
    %v2102 = vpop.f32.mrb[0].mxu0
    %v2103 = vadd.f32 0.0, %v2102
    %v2104 = vpop.f32.mrb[0].mxu0
    %2105 = vmatprep.mubr.f32.mxu0 0.0
    %2106 = vmatmul.mubr.f32.gmra.mrb[0].mxu0 %v1776
    %v2107 = vpop.f32.mrb[0].mxu0
    %v2108 = vadd.f32 0.0, %v2107
    %v2109 = vpop.f32.mrb[0].mxu0
    %2110 = vmatprep.mubr.f32.mxu0 0.0
    %2111 = vmatmul.mubr.f32.gmra.mrb[0].mxu0 %v1779
    %v2112 = vpop.f32.mrb[0].mxu0
    %v2113 = vadd.f32 0.0, %v2112
    %v2114 = vpop.f32.mrb[0].mxu0
    %2115 = vmatprep.mubr.f32.mxu0 0.0
    %2116 = vmatmul.mubr.f32.gmra.mrb[0].mxu0 %v1782
    %v2117 = vpop.f32.mrb[0].mxu0
    %v2118 = vadd.f32 0.0, %v2117
    %v2119 = vpop.f32.mrb[0].mxu0
    %2120 = vmatprep.mubr.f32.mxu0 0.0
    %2121 = vmatmul.mubr.f32.gmra.mrb[0].mxu0 %v1785
    %v2122 = vpop.f32.mrb[0].mxu0
    %v2123 = vadd.f32 0.0, %v2122
    %v2124 = vpop.f32.mrb[0].mxu0
    %2125 = vmatprep.mubr.f32.mxu0 0.0
    %2126 = vmatmul.mubr.f32.gmra.mrb[0].mxu0 %v1788
    %v2127 = vpop.f32.mrb[0].mxu0
    %v2128 = vadd.f32 0.0, %v2127
    %v2129 = vpop.f32.mrb[0].mxu0
    %2130 = vmatprep.mubr.f32.mxu0 0.0
    %2131 = vmatmul.mubr.f32.gmra.mrb[0].mxu0 %v1791
    %v2132 = vpop.f32.mrb[0].mxu0
    %v2133 = vadd.f32 0.0, %v2132
    %v2134 = vpop.f32.mrb[0].mxu0
    %2135 = vmatprep.mubr.f32.mxu0 0.0
    %2136 = vmatmul.mubr.f32.gmra.mrb[0].mxu0 %v1794
    %v2137 = vpop.f32.mrb[0].mxu0
    %v2138 = vadd.f32 0.0, %v2137
    %v2139 = vpop.f32.mrb[0].mxu0
    %2140 = vmatprep.mubr.f32.mxu0 0.0
    %2141 = vmatmul.mubr.f32.gmra.mrb[0].mxu0 %v1797
    %v2142 = vpop.f32.mrb[0].mxu0
    %v2143 = vadd.f32 0.0, %v2142
    %v2144 = vpop.f32.mrb[0].mxu0
    %2145 = vmatprep.mubr.f32.mxu0 0.0
    %2146 = vmatmul.mubr.f32.gmra.mrb[0].mxu0 %v1800
    %v2147 = vpop.f32.mrb[0].mxu0
    %v2148 = vadd.f32 0.0, %v2147
    %v2149 = vpop.f32.mrb[0].mxu0
    %2150 = vmatprep.mubr.f32.mxu0 0.0
    %2151 = vmatmul.mubr.f32.gmra.mrb[0].mxu0 %v1803
    %v2152 = vpop.f32.mrb[0].mxu0
    %v2153 = vadd.f32 0.0, %v2152
    %v2154 = vpop.f32.mrb[0].mxu0
    %2155 = vmatprep.mubr.f32.mxu0 0.0
    %2156 = vmatmul.mubr.f32.gmra.mrb[0].mxu0 %v1806
    %v2157 = vpop.f32.mrb[0].mxu0
    %v2158 = vadd.f32 0.0, %v2157
    %v2159 = vpop.f32.mrb[0].mxu0
    %2160 = vmatprep.mubr.f32.mxu0 0.0
    %2161 = vmatmul.mubr.f32.gmra.mrb[0].mxu0 %v1809
    %v2162 = vpop.f32.mrb[0].mxu0
    %v2163 = vadd.f32 0.0, %v2162
    %v2164 = vpop.f32.mrb[0].mxu0
    %2165 = vmatprep.mubr.f32.mxu0 0.0
    %2166 = vmatmul.mubr.f32.gmra.mrb[0].mxu0 %v1812
    %v2167 = vpop.f32.mrb[0].mxu0
    %v2168 = vadd.f32 0.0, %v2167
    %v2169 = vpop.f32.mrb[0].mxu0
    %2170 = vmatprep.mubr.f32.mxu0 0.0
    %2171 = vmatmul.mubr.f32.gmra.mrb[0].mxu0 %v1815
    %v2172 = vpop.f32.mrb[0].mxu0
    %v2173 = vadd.f32 0.0, %v2172
    %v2174 = vpop.f32.mrb[0].mxu0
    %2175 = vmatprep.mubr.f32.mxu0 0.0
    %2176 = vmatmul.mubr.f32.gmra.mrb[0].mxu0 %v1818
    %v2177 = vpop.f32.mrb[0].mxu0
    %v2178 = vadd.f32 0.0, %v2177
    %v2179 = vpop.f32.mrb[0].mxu0
    %2180 = vmatprep.mubr.f32.mxu0 0.0
    %2181 = vmatmul.mubr.f32.gmra.mrb[0].mxu0 %v1821
    %v2182 = vpop.f32.mrb[0].mxu0
    %v2183 = vadd.f32 0.0, %v2182
    %v2184 = vpop.f32.mrb[0].mxu0
    %2185 = vmatprep.mubr.f32.mxu0 0.0
    %2186 = vmatmul.mubr.f32.gmra.mrb[0].mxu0 %v1824
    %v2187 = vpop.f32.mrb[0].mxu0
    %v2188 = vadd.f32 0.0, %v2187
    %v2189 = vpop.f32.mrb[0].mxu0
    %2190 = vmatprep.mubr.f32.mxu0 0.0
    %2191 = vmatmul.mubr.f32.gmra.mrb[0].mxu0 %v1827
    %v2192 = vpop.f32.mrb[0].mxu0
    %v2193 = vadd.f32 0.0, %v2192
    %v2194 = vpop.f32.mrb[0].mxu0
    %2195 = vmatprep.mubr.f32.mxu0 0.0
    %2196 = vmatmul.mubr.f32.gmra.mrb[0].mxu0 %v1830
    %v2197 = vpop.f32.mrb[0].mxu0
    %v2198 = vadd.f32 0.0, %v2197
    %v2199 = vpop.f32.mrb[0].mxu0
    %2200 = vmatprep.mubr.f32.mxu0 0.0
    %2201 = vmatmul.mubr.f32.gmra.mrb[0].mxu0 %v1833
    %v2202 = vpop.f32.mrb[0].mxu0
    %v2203 = vadd.f32 0.0, %v2202
    %v2204 = vpop.f32.mrb[0].mxu0
    %2205 = vmatprep.mubr.f32.mxu0 0.0
    %2206 = vmatmul.mubr.f32.gmra.mrb[0].mxu0 %v1836
    %v2207 = vpop.f32.mrb[0].mxu0
    %v2208 = vadd.f32 0.0, %v2207
    %v2209 = vpop.f32.mrb[0].mxu0
    %2210 = vmatprep.mubr.f32.mxu0 0.0
    %2211 = vmatmul.mubr.f32.gmra.mrb[0].mxu0 %v1839
    %v2212 = vpop.f32.mrb[0].mxu0
    %v2213 = vadd.f32 0.0, %v2212
    %v2214 = vpop.f32.mrb[0].mxu0
    %2215 = vmatprep.mubr.f32.mxu0 0.0
    %2216 = vmatmul.mubr.f32.gmra.mrb[0].mxu0 %v1842
    %v2217 = vpop.f32.mrb[0].mxu0
    %v2218 = vadd.f32 0.0, %v2217
    %v2219 = vpop.f32.mrb[0].mxu0
    %2220 = vmatprep.mubr.f32.mxu0 0.0
    %2221 = vmatmul.mubr.f32.gmra.mrb[0].mxu0 %v1845
    %v2222 = vpop.f32.mrb[0].mxu0
    %v2223 = vadd.f32 0.0, %v2222
    %v2224 = vpop.f32.mrb[0].mxu0
    %2225 = vmatprep.mubr.f32.mxu0 0.0
    %2226 = vmatmul.mubr.f32.gmra.mrb[0].mxu0 %v1848
    %v2227 = vpop.f32.mrb[0].mxu0
    %v2228 = vadd.f32 0.0, %v2227
    %v2229 = vpop.f32.mrb[0].mxu0
    %2230 = vmatprep.mubr.f32.mxu0 0.0
    %2231 = vmatmul.mubr.f32.gmra.mrb[0].mxu0 %v1851
    %v2232 = vpop.f32.mrb[0].mxu0
    %v2233 = vadd.f32 0.0, %v2232
    %v2234 = vpop.f32.mrb[0].mxu0
    %2235 = vmatprep.mubr.f32.mxu0 0.0
    %2236 = vmatmul.mubr.f32.gmra.mrb[0].mxu0 %v1854
    %v2237 = vpop.f32.mrb[0].mxu0
    %v2238 = vadd.f32 0.0, %v2237
    %v2239 = vpop.f32.mrb[0].mxu0
    %2240 = vdwg.mxu0
    %v2242 = vsel %vm717, %v1527, 0
    %v2245 = vsel %vm717, %v1528, 0
    %v2248 = vsel %vm717, %v1529, 0
    %v2251 = vsel %vm717, %v1530, 0
    %v2254 = vsel %vm717, %v1531, 0
    %v2257 = vsel %vm717, %v1532, 0
    %v2260 = vsel %vm717, %v1533, 0
    %v2263 = vsel %vm717, %v1534, 0
    %v2266 = vsel %vm717, %v1535, 0
    %v2269 = vsel %vm717, %v1536, 0
    %v2272 = vsel %vm717, %v1537, 0
    %v2275 = vsel %vm717, %v1538, 0
    %v2278 = vsel %vm717, %v1539, 0
    %v2281 = vsel %vm717, %v1540, 0
    %v2284 = vsel %vm717, %v1541, 0
    %v2287 = vsel %vm717, %v1542, 0
    %v2290 = vsel %vm717, %v1543, 0
    %v2293 = vsel %vm717, %v1544, 0
    %v2296 = vsel %vm717, %v1545, 0
    %v2299 = vsel %vm717, %v1546, 0
    %v2302 = vsel %vm717, %v1547, 0
    %v2305 = vsel %vm717, %v1548, 0
    %v2308 = vsel %vm717, %v1549, 0
    %v2311 = vsel %vm717, %v1550, 0
    %v2314 = vsel %vm717, %v1551, 0
    %v2317 = vsel %vm717, %v1552, 0
    %v2320 = vsel %vm717, %v1553, 0
    %v2323 = vsel %vm717, %v1554, 0
    %v2326 = vsel %vm717, %v1555, 0
    %v2329 = vsel %vm717, %v1556, 0
    %v2332 = vsel %vm717, %v1557, 0
    %v2335 = vsel %vm717, %v1558, 0
    %v2338 = vsel %vm717, %v1559, 0
    %v2341 = vsel %vm717, %v1560, 0
    %v2344 = vsel %vm717, %v1561, 0
    %v2347 = vsel %vm717, %v1562, 0
    %v2350 = vsel %vm717, %v1563, 0
    %v2353 = vsel %vm717, %v1564, 0
    %v2356 = vsel %vm717, %v1565, 0
    %v2359 = vsel %vm717, %v1566, 0
    %v2362 = vsel %vm717, %v1567, 0
    %v2365 = vsel %vm717, %v1568, 0
    %v2368 = vsel %vm717, %v1569, 0
    %v2371 = vsel %vm717, %v1570, 0
    %v2374 = vsel %vm717, %v1571, 0
    %v2377 = vsel %vm717, %v1572, 0
    %v2380 = vsel %vm717, %v1573, 0
    %v2383 = vsel %vm717, %v1574, 0
    %v2386 = vsel %vm717, %v1575, 0
    %v2389 = vsel %vm717, %v1576, 0
    %v2392 = vsel %vm717, %v1577, 0
    %v2395 = vsel %vm717, %v1578, 0
    %v2398 = vsel %vm717, %v1579, 0
    %v2401 = vsel %vm717, %v1580, 0
    %v2404 = vsel %vm717, %v1581, 0
    %v2407 = vsel %vm717, %v1582, 0
    %v2410 = vsel %vm717, %v1583, 0
    %v2413 = vsel %vm717, %v1584, 0
    %v2416 = vsel %vm717, %v1585, 0
    %v2419 = vsel %vm717, %v1586, 0
    %v2422 = vsel %vm717, %v1587, 0
    %v2425 = vsel %vm717, %v1588, 0
    %v2428 = vsel %vm717, %v1589, 0
    %v2431 = vsel %vm717, %v1590, 0
    %2433 = vmatprep.subr.mxu0 0.0
    %2434 = vmatpush1.msra.mxu0 %v1591
    %2435 = vmatprep.subr.mxu0 0.0
    %2436 = vmatpush1.msra.mxu0 %v1592
    %2437 = vmatprep.subr.mxu0 0.0
    %2438 = vmatpush1.msra.mxu0 %v1593
    %2439 = vmatprep.subr.mxu0 0.0
    %2440 = vmatpush1.msra.mxu0 %v1594
    %2441 = vmatprep.subr.mxu0 0.0
    %2442 = vmatpush1.msra.mxu0 0.0
    %2443 = vmatprep.subr.mxu0 0.0
    %2444 = vmatpush1.msra.mxu0 0.0
    %2445 = vmatprep.subr.mxu0 0.0
    %2446 = vmatpush1.msra.mxu0 0.0
    %2447 = vmatprep.subr.mxu0 0.0
    %2448 = vmatpush1.msra.mxu0 0.0
    %2449 = vmatprep.subr.mxu0 0.0
    %2450 = vmatpush1.msra.mxu0 0.0
    %2451 = vmatprep.subr.mxu0 0.0
    %2452 = vmatpush1.msra.mxu0 0.0
    %2453 = vmatprep.subr.mxu0 0.0
    %2454 = vmatpush1.msra.mxu0 0.0
    %2455 = vmatprep.subr.mxu0 0.0
    %2456 = vmatpush1.msra.mxu0 0.0
    %2457 = vmatprep.subr.mxu0 0.0
    %2458 = vmatpush1.msra.mxu0 0.0
    %2459 = vmatprep.subr.mxu0 0.0
    %2460 = vmatpush1.msra.mxu0 0.0
    %2461 = vmatprep.subr.mxu0 0.0
    %2462 = vmatpush1.msra.mxu0 0.0
    %2463 = vmatprep.subr.mxu0 0.0
    %2464 = vmatpush1.msra.mxu0 0.0
    %2465 = vmatprep.subr.mxu0 0.0
    %2466 = vmatpush1.msra.mxu0 0.0
    %2467 = vmatprep.subr.mxu0 0.0
    %2468 = vmatpush1.msra.mxu0 0.0
    %2469 = vmatprep.subr.mxu0 0.0
    %2470 = vmatpush1.msra.mxu0 0.0
    %2471 = vmatprep.subr.mxu0 0.0
    %2472 = vmatpush1.msra.mxu0 0.0
    %2473 = vmatprep.subr.mxu0 0.0
    %2474 = vmatpush1.msra.mxu0 0.0
    %2475 = vmatprep.subr.mxu0 0.0
    %2476 = vmatpush1.msra.mxu0 0.0
    %2477 = vmatprep.subr.mxu0 0.0
    %2478 = vmatpush1.msra.mxu0 0.0
    %2479 = vmatprep.subr.mxu0 0.0
    %2480 = vmatpush1.msra.mxu0 0.0
    %2481 = vmatprep.subr.mxu0 0.0
    %2482 = vmatpush1.msra.mxu0 0.0
    %2483 = vmatprep.subr.mxu0 0.0
    %2484 = vmatpush1.msra.mxu0 0.0
    %2485 = vmatprep.subr.mxu0 0.0
    %2486 = vmatpush1.msra.mxu0 0.0
    %2487 = vmatprep.subr.mxu0 0.0
    %2488 = vmatpush1.msra.mxu0 0.0
    %2489 = vmatprep.subr.mxu0 0.0
    %2490 = vmatpush1.msra.mxu0 0.0
    %2491 = vmatprep.subr.mxu0 0.0
    %2492 = vmatpush1.msra.mxu0 0.0
    %2493 = vmatprep.subr.mxu0 0.0
    %2494 = vmatpush1.msra.mxu0 0.0
    %2495 = vmatprep.subr.mxu0 0.0
    %2496 = vmatpush1.msra.mxu0 0.0
    %2497 = vmatprep.mubr.f32.mxu0 0.0
    %2498 = vmatmul.mubr.f32.gmra.mrb[0].mxu0 %v2242
    %v2499 = vpop.f32.mrb[0].mxu0
    %v2500 = vadd.f32 %v1923, %v2499
    %v2501 = vpop.f32.mrb[0].mxu0
    %2502 = vmatprep.mubr.f32.mxu0 0.0
    %2503 = vmatmul.mubr.f32.gmra.mrb[0].mxu0 %v2245
    %v2504 = vpop.f32.mrb[0].mxu0
    %v2505 = vadd.f32 %v1928, %v2504
    %v2506 = vpop.f32.mrb[0].mxu0
    %2507 = vmatprep.mubr.f32.mxu0 0.0
    %2508 = vmatmul.mubr.f32.gmra.mrb[0].mxu0 %v2248
    %v2509 = vpop.f32.mrb[0].mxu0
    %v2510 = vadd.f32 %v1933, %v2509
    %v2511 = vpop.f32.mrb[0].mxu0
    %2512 = vmatprep.mubr.f32.mxu0 0.0
    %2513 = vmatmul.mubr.f32.gmra.mrb[0].mxu0 %v2251
    %v2514 = vpop.f32.mrb[0].mxu0
    %v2515 = vadd.f32 %v1938, %v2514
    %v2516 = vpop.f32.mrb[0].mxu0
    %2517 = vmatprep.mubr.f32.mxu0 0.0
    %2518 = vmatmul.mubr.f32.gmra.mrb[0].mxu0 %v2254
    %v2519 = vpop.f32.mrb[0].mxu0
    %v2520 = vadd.f32 %v1943, %v2519
    %v2521 = vpop.f32.mrb[0].mxu0
    %2522 = vmatprep.mubr.f32.mxu0 0.0
    %2523 = vmatmul.mubr.f32.gmra.mrb[0].mxu0 %v2257
    %v2524 = vpop.f32.mrb[0].mxu0
    %v2525 = vadd.f32 %v1948, %v2524
    %v2526 = vpop.f32.mrb[0].mxu0
    %2527 = vmatprep.mubr.f32.mxu0 0.0
    %2528 = vmatmul.mubr.f32.gmra.mrb[0].mxu0 %v2260
    %v2529 = vpop.f32.mrb[0].mxu0
    %v2530 = vadd.f32 %v1953, %v2529
    %v2531 = vpop.f32.mrb[0].mxu0
    %2532 = vmatprep.mubr.f32.mxu0 0.0
    %2533 = vmatmul.mubr.f32.gmra.mrb[0].mxu0 %v2263
    %v2534 = vpop.f32.mrb[0].mxu0
    %v2535 = vadd.f32 %v1958, %v2534
    %v2536 = vpop.f32.mrb[0].mxu0
    %2537 = vmatprep.mubr.f32.mxu0 0.0
    %2538 = vmatmul.mubr.f32.gmra.mrb[0].mxu0 %v2266
    %v2539 = vpop.f32.mrb[0].mxu0
    %v2540 = vadd.f32 %v1963, %v2539
    %v2541 = vpop.f32.mrb[0].mxu0
    %2542 = vmatprep.mubr.f32.mxu0 0.0
    %2543 = vmatmul.mubr.f32.gmra.mrb[0].mxu0 %v2269
    %v2544 = vpop.f32.mrb[0].mxu0
    %v2545 = vadd.f32 %v1968, %v2544
    %v2546 = vpop.f32.mrb[0].mxu0
    %2547 = vmatprep.mubr.f32.mxu0 0.0
    %2548 = vmatmul.mubr.f32.gmra.mrb[0].mxu0 %v2272
    %v2549 = vpop.f32.mrb[0].mxu0
    %v2550 = vadd.f32 %v1973, %v2549
    %v2551 = vpop.f32.mrb[0].mxu0
    %2552 = vmatprep.mubr.f32.mxu0 0.0
    %2553 = vmatmul.mubr.f32.gmra.mrb[0].mxu0 %v2275
    %v2554 = vpop.f32.mrb[0].mxu0
    %v2555 = vadd.f32 %v1978, %v2554
    %v2556 = vpop.f32.mrb[0].mxu0
    %2557 = vmatprep.mubr.f32.mxu0 0.0
    %2558 = vmatmul.mubr.f32.gmra.mrb[0].mxu0 %v2278
    %v2559 = vpop.f32.mrb[0].mxu0
    %v2560 = vadd.f32 %v1983, %v2559
    %v2561 = vpop.f32.mrb[0].mxu0
    %2562 = vmatprep.mubr.f32.mxu0 0.0
    %2563 = vmatmul.mubr.f32.gmra.mrb[0].mxu0 %v2281
    %v2564 = vpop.f32.mrb[0].mxu0
    %v2565 = vadd.f32 %v1988, %v2564
    %v2566 = vpop.f32.mrb[0].mxu0
    %2567 = vmatprep.mubr.f32.mxu0 0.0
    %2568 = vmatmul.mubr.f32.gmra.mrb[0].mxu0 %v2284
    %v2569 = vpop.f32.mrb[0].mxu0
    %v2570 = vadd.f32 %v1993, %v2569
    %v2571 = vpop.f32.mrb[0].mxu0
    %2572 = vmatprep.mubr.f32.mxu0 0.0
    %2573 = vmatmul.mubr.f32.gmra.mrb[0].mxu0 %v2287
    %v2574 = vpop.f32.mrb[0].mxu0
    %v2575 = vadd.f32 %v1998, %v2574
    %v2576 = vpop.f32.mrb[0].mxu0
    %2577 = vmatprep.mubr.f32.mxu0 0.0
    %2578 = vmatmul.mubr.f32.gmra.mrb[0].mxu0 %v2290
    %v2579 = vpop.f32.mrb[0].mxu0
    %v2580 = vadd.f32 %v2003, %v2579
    %v2581 = vpop.f32.mrb[0].mxu0
    %2582 = vmatprep.mubr.f32.mxu0 0.0
    %2583 = vmatmul.mubr.f32.gmra.mrb[0].mxu0 %v2293
    %v2584 = vpop.f32.mrb[0].mxu0
    %v2585 = vadd.f32 %v2008, %v2584
    %v2586 = vpop.f32.mrb[0].mxu0
    %2587 = vmatprep.mubr.f32.mxu0 0.0
    %2588 = vmatmul.mubr.f32.gmra.mrb[0].mxu0 %v2296
    %v2589 = vpop.f32.mrb[0].mxu0
    %v2590 = vadd.f32 %v2013, %v2589
    %v2591 = vpop.f32.mrb[0].mxu0
    %2592 = vmatprep.mubr.f32.mxu0 0.0
    %2593 = vmatmul.mubr.f32.gmra.mrb[0].mxu0 %v2299
    %v2594 = vpop.f32.mrb[0].mxu0
    %v2595 = vadd.f32 %v2018, %v2594
    %v2596 = vpop.f32.mrb[0].mxu0
    %2597 = vmatprep.mubr.f32.mxu0 0.0
    %2598 = vmatmul.mubr.f32.gmra.mrb[0].mxu0 %v2302
    %v2599 = vpop.f32.mrb[0].mxu0
    %v2600 = vadd.f32 %v2023, %v2599
    %v2601 = vpop.f32.mrb[0].mxu0
    %2602 = vmatprep.mubr.f32.mxu0 0.0
    %2603 = vmatmul.mubr.f32.gmra.mrb[0].mxu0 %v2305
    %v2604 = vpop.f32.mrb[0].mxu0
    %v2605 = vadd.f32 %v2028, %v2604
    %v2606 = vpop.f32.mrb[0].mxu0
    %2607 = vmatprep.mubr.f32.mxu0 0.0
    %2608 = vmatmul.mubr.f32.gmra.mrb[0].mxu0 %v2308
    %v2609 = vpop.f32.mrb[0].mxu0
    %v2610 = vadd.f32 %v2033, %v2609
    %v2611 = vpop.f32.mrb[0].mxu0
    %2612 = vmatprep.mubr.f32.mxu0 0.0
    %2613 = vmatmul.mubr.f32.gmra.mrb[0].mxu0 %v2311
    %v2614 = vpop.f32.mrb[0].mxu0
    %v2615 = vadd.f32 %v2038, %v2614
    %v2616 = vpop.f32.mrb[0].mxu0
    %2617 = vmatprep.mubr.f32.mxu0 0.0
    %2618 = vmatmul.mubr.f32.gmra.mrb[0].mxu0 %v2314
    %v2619 = vpop.f32.mrb[0].mxu0
    %v2620 = vadd.f32 %v2043, %v2619
    %v2621 = vpop.f32.mrb[0].mxu0
    %2622 = vmatprep.mubr.f32.mxu0 0.0
    %2623 = vmatmul.mubr.f32.gmra.mrb[0].mxu0 %v2317
    %v2624 = vpop.f32.mrb[0].mxu0
    %v2625 = vadd.f32 %v2048, %v2624
    %v2626 = vpop.f32.mrb[0].mxu0
    %2627 = vmatprep.mubr.f32.mxu0 0.0
    %2628 = vmatmul.mubr.f32.gmra.mrb[0].mxu0 %v2320
    %v2629 = vpop.f32.mrb[0].mxu0
    %v2630 = vadd.f32 %v2053, %v2629
    %v2631 = vpop.f32.mrb[0].mxu0
    %2632 = vmatprep.mubr.f32.mxu0 0.0
    %2633 = vmatmul.mubr.f32.gmra.mrb[0].mxu0 %v2323
    %v2634 = vpop.f32.mrb[0].mxu0
    %v2635 = vadd.f32 %v2058, %v2634
    %v2636 = vpop.f32.mrb[0].mxu0
    %2637 = vmatprep.mubr.f32.mxu0 0.0
    %2638 = vmatmul.mubr.f32.gmra.mrb[0].mxu0 %v2326
    %v2639 = vpop.f32.mrb[0].mxu0
    %v2640 = vadd.f32 %v2063, %v2639
    %v2641 = vpop.f32.mrb[0].mxu0
    %2642 = vmatprep.mubr.f32.mxu0 0.0
    %2643 = vmatmul.mubr.f32.gmra.mrb[0].mxu0 %v2329
    %v2644 = vpop.f32.mrb[0].mxu0
    %v2645 = vadd.f32 %v2068, %v2644
    %v2646 = vpop.f32.mrb[0].mxu0
    %2647 = vmatprep.mubr.f32.mxu0 0.0
    %2648 = vmatmul.mubr.f32.gmra.mrb[0].mxu0 %v2332
    %v2649 = vpop.f32.mrb[0].mxu0
    %v2650 = vadd.f32 %v2073, %v2649
    %v2651 = vpop.f32.mrb[0].mxu0
    %2652 = vmatprep.mubr.f32.mxu0 0.0
    %2653 = vmatmul.mubr.f32.gmra.mrb[0].mxu0 %v2335
    %v2654 = vpop.f32.mrb[0].mxu0
    %v2655 = vadd.f32 %v2078, %v2654
    %v2656 = vpop.f32.mrb[0].mxu0
    %2657 = vmatprep.mubr.f32.mxu0 0.0
    %2658 = vmatmul.mubr.f32.gmra.mrb[0].mxu0 %v2338
    %v2659 = vpop.f32.mrb[0].mxu0
    %v2660 = vadd.f32 %v2083, %v2659
    %v2661 = vpop.f32.mrb[0].mxu0
    %2662 = vmatprep.mubr.f32.mxu0 0.0
    %2663 = vmatmul.mubr.f32.gmra.mrb[0].mxu0 %v2341
    %v2664 = vpop.f32.mrb[0].mxu0
    %v2665 = vadd.f32 %v2088, %v2664
    %v2666 = vpop.f32.mrb[0].mxu0
    %2667 = vmatprep.mubr.f32.mxu0 0.0
    %2668 = vmatmul.mubr.f32.gmra.mrb[0].mxu0 %v2344
    %v2669 = vpop.f32.mrb[0].mxu0
    %v2670 = vadd.f32 %v2093, %v2669
    %v2671 = vpop.f32.mrb[0].mxu0
    %2672 = vmatprep.mubr.f32.mxu0 0.0
    %2673 = vmatmul.mubr.f32.gmra.mrb[0].mxu0 %v2347
    %v2674 = vpop.f32.mrb[0].mxu0
    %v2675 = vadd.f32 %v2098, %v2674
    %v2676 = vpop.f32.mrb[0].mxu0
    %2677 = vmatprep.mubr.f32.mxu0 0.0
    %2678 = vmatmul.mubr.f32.gmra.mrb[0].mxu0 %v2350
    %v2679 = vpop.f32.mrb[0].mxu0
    %v2680 = vadd.f32 %v2103, %v2679
    %v2681 = vpop.f32.mrb[0].mxu0
    %2682 = vmatprep.mubr.f32.mxu0 0.0
    %2683 = vmatmul.mubr.f32.gmra.mrb[0].mxu0 %v2353
    %v2684 = vpop.f32.mrb[0].mxu0
    %v2685 = vadd.f32 %v2108, %v2684
    %v2686 = vpop.f32.mrb[0].mxu0
    %2687 = vmatprep.mubr.f32.mxu0 0.0
    %2688 = vmatmul.mubr.f32.gmra.mrb[0].mxu0 %v2356
    %v2689 = vpop.f32.mrb[0].mxu0
    %v2690 = vadd.f32 %v2113, %v2689
    %v2691 = vpop.f32.mrb[0].mxu0
    %2692 = vmatprep.mubr.f32.mxu0 0.0
    %2693 = vmatmul.mubr.f32.gmra.mrb[0].mxu0 %v2359
    %v2694 = vpop.f32.mrb[0].mxu0
    %v2695 = vadd.f32 %v2118, %v2694
    %v2696 = vpop.f32.mrb[0].mxu0
    %2697 = vmatprep.mubr.f32.mxu0 0.0
    %2698 = vmatmul.mubr.f32.gmra.mrb[0].mxu0 %v2362
    %v2699 = vpop.f32.mrb[0].mxu0
    %v2700 = vadd.f32 %v2123, %v2699
    %v2701 = vpop.f32.mrb[0].mxu0
    %2702 = vmatprep.mubr.f32.mxu0 0.0
    %2703 = vmatmul.mubr.f32.gmra.mrb[0].mxu0 %v2365
    %v2704 = vpop.f32.mrb[0].mxu0
    %v2705 = vadd.f32 %v2128, %v2704
    %v2706 = vpop.f32.mrb[0].mxu0
    %2707 = vmatprep.mubr.f32.mxu0 0.0
    %2708 = vmatmul.mubr.f32.gmra.mrb[0].mxu0 %v2368
    %v2709 = vpop.f32.mrb[0].mxu0
    %v2710 = vadd.f32 %v2133, %v2709
    %v2711 = vpop.f32.mrb[0].mxu0
    %2712 = vmatprep.mubr.f32.mxu0 0.0
    %2713 = vmatmul.mubr.f32.gmra.mrb[0].mxu0 %v2371
    %v2714 = vpop.f32.mrb[0].mxu0
    %v2715 = vadd.f32 %v2138, %v2714
    %v2716 = vpop.f32.mrb[0].mxu0
    %2717 = vmatprep.mubr.f32.mxu0 0.0
    %2718 = vmatmul.mubr.f32.gmra.mrb[0].mxu0 %v2374
    %v2719 = vpop.f32.mrb[0].mxu0
    %v2720 = vadd.f32 %v2143, %v2719
    %v2721 = vpop.f32.mrb[0].mxu0
    %2722 = vmatprep.mubr.f32.mxu0 0.0
    %2723 = vmatmul.mubr.f32.gmra.mrb[0].mxu0 %v2377
    %v2724 = vpop.f32.mrb[0].mxu0
    %v2725 = vadd.f32 %v2148, %v2724
    %v2726 = vpop.f32.mrb[0].mxu0
    %2727 = vmatprep.mubr.f32.mxu0 0.0
    %2728 = vmatmul.mubr.f32.gmra.mrb[0].mxu0 %v2380
    %v2729 = vpop.f32.mrb[0].mxu0
    %v2730 = vadd.f32 %v2153, %v2729
    %v2731 = vpop.f32.mrb[0].mxu0
    %2732 = vmatprep.mubr.f32.mxu0 0.0
    %2733 = vmatmul.mubr.f32.gmra.mrb[0].mxu0 %v2383
    %v2734 = vpop.f32.mrb[0].mxu0
    %v2735 = vadd.f32 %v2158, %v2734
    %v2736 = vpop.f32.mrb[0].mxu0
    %2737 = vmatprep.mubr.f32.mxu0 0.0
    %2738 = vmatmul.mubr.f32.gmra.mrb[0].mxu0 %v2386
    %v2739 = vpop.f32.mrb[0].mxu0
    %v2740 = vadd.f32 %v2163, %v2739
    %v2741 = vpop.f32.mrb[0].mxu0
    %2742 = vmatprep.mubr.f32.mxu0 0.0
    %2743 = vmatmul.mubr.f32.gmra.mrb[0].mxu0 %v2389
    %v2744 = vpop.f32.mrb[0].mxu0
    %v2745 = vadd.f32 %v2168, %v2744
    %v2746 = vpop.f32.mrb[0].mxu0
    %2747 = vmatprep.mubr.f32.mxu0 0.0
    %2748 = vmatmul.mubr.f32.gmra.mrb[0].mxu0 %v2392
    %v2749 = vpop.f32.mrb[0].mxu0
    %v2750 = vadd.f32 %v2173, %v2749
    %v2751 = vpop.f32.mrb[0].mxu0
    %2752 = vmatprep.mubr.f32.mxu0 0.0
    %2753 = vmatmul.mubr.f32.gmra.mrb[0].mxu0 %v2395
    %v2754 = vpop.f32.mrb[0].mxu0
    %v2755 = vadd.f32 %v2178, %v2754
    %v2756 = vpop.f32.mrb[0].mxu0
    %2757 = vmatprep.mubr.f32.mxu0 0.0
    %2758 = vmatmul.mubr.f32.gmra.mrb[0].mxu0 %v2398
    %v2759 = vpop.f32.mrb[0].mxu0
    %v2760 = vadd.f32 %v2183, %v2759
    %v2761 = vpop.f32.mrb[0].mxu0
    %2762 = vmatprep.mubr.f32.mxu0 0.0
    %2763 = vmatmul.mubr.f32.gmra.mrb[0].mxu0 %v2401
    %v2764 = vpop.f32.mrb[0].mxu0
    %v2765 = vadd.f32 %v2188, %v2764
    %v2766 = vpop.f32.mrb[0].mxu0
    %2767 = vmatprep.mubr.f32.mxu0 0.0
    %2768 = vmatmul.mubr.f32.gmra.mrb[0].mxu0 %v2404
    %v2769 = vpop.f32.mrb[0].mxu0
    %v2770 = vadd.f32 %v2193, %v2769
    %v2771 = vpop.f32.mrb[0].mxu0
    %2772 = vmatprep.mubr.f32.mxu0 0.0
    %2773 = vmatmul.mubr.f32.gmra.mrb[0].mxu0 %v2407
    %v2774 = vpop.f32.mrb[0].mxu0
    %v2775 = vadd.f32 %v2198, %v2774
    %v2776 = vpop.f32.mrb[0].mxu0
    %2777 = vmatprep.mubr.f32.mxu0 0.0
    %2778 = vmatmul.mubr.f32.gmra.mrb[0].mxu0 %v2410
    %v2779 = vpop.f32.mrb[0].mxu0
    %v2780 = vadd.f32 %v2203, %v2779
    %v2781 = vpop.f32.mrb[0].mxu0
    %2782 = vmatprep.mubr.f32.mxu0 0.0
    %2783 = vmatmul.mubr.f32.gmra.mrb[0].mxu0 %v2413
    %v2784 = vpop.f32.mrb[0].mxu0
    %v2785 = vadd.f32 %v2208, %v2784
    %v2786 = vpop.f32.mrb[0].mxu0
    %2787 = vmatprep.mubr.f32.mxu0 0.0
    %2788 = vmatmul.mubr.f32.gmra.mrb[0].mxu0 %v2416
    %v2789 = vpop.f32.mrb[0].mxu0
    %v2790 = vadd.f32 %v2213, %v2789
    %v2791 = vpop.f32.mrb[0].mxu0
    %2792 = vmatprep.mubr.f32.mxu0 0.0
    %2793 = vmatmul.mubr.f32.gmra.mrb[0].mxu0 %v2419
    %v2794 = vpop.f32.mrb[0].mxu0
    %v2795 = vadd.f32 %v2218, %v2794
    %v2796 = vpop.f32.mrb[0].mxu0
    %2797 = vmatprep.mubr.f32.mxu0 0.0
    %2798 = vmatmul.mubr.f32.gmra.mrb[0].mxu0 %v2422
    %v2799 = vpop.f32.mrb[0].mxu0
    %v2800 = vadd.f32 %v2223, %v2799
    %v2801 = vpop.f32.mrb[0].mxu0
    %2802 = vmatprep.mubr.f32.mxu0 0.0
    %2803 = vmatmul.mubr.f32.gmra.mrb[0].mxu0 %v2425
    %v2804 = vpop.f32.mrb[0].mxu0
    %v2805 = vadd.f32 %v2228, %v2804
    %v2806 = vpop.f32.mrb[0].mxu0
    %2807 = vmatprep.mubr.f32.mxu0 0.0
    %2808 = vmatmul.mubr.f32.gmra.mrb[0].mxu0 %v2428
    %v2809 = vpop.f32.mrb[0].mxu0
    %v2810 = vadd.f32 %v2233, %v2809
    %v2811 = vpop.f32.mrb[0].mxu0
    %2812 = vmatprep.mubr.f32.mxu0 0.0
    %2813 = vmatmul.mubr.f32.gmra.mrb[0].mxu0 %v2431
    %v2814 = vpop.f32.mrb[0].mxu0
    %v2815 = vadd.f32 %v2238, %v2814
    %v2816 = vpop.f32.mrb[0].mxu0
    %2817 = vdwg.mxu0
    %v2818 = vld [vmem:[#allocation2 + $0x2] sm:$0xff]
    %v2819 = vld [vmem:[#allocation2 + $0x12] sm:$0xff]
    %v2820 = vld [vmem:[#allocation2 + $0x22] sm:$0xff]
    %v2821 = vld [vmem:[#allocation2 + $0x32] sm:$0xff]
    %v2822 = vld [vmem:[#allocation2 + $0x42] sm:$0xff]
    %v2823 = vld [vmem:[#allocation2 + $0x52] sm:$0xff]
    %v2824 = vld [vmem:[#allocation2 + $0x62] sm:$0xff]
    %v2825 = vld [vmem:[#allocation2 + $0x72] sm:$0xff]
    %v2826 = vld [vmem:[#allocation2 + $0xa2] sm:$0xff]
    %v2827 = vld [vmem:[#allocation2 + $0xb2] sm:$0xff]
    %v2828 = vld [vmem:[#allocation2 + $0xc2] sm:$0xff]
    %v2829 = vld [vmem:[#allocation2 + $0xd2] sm:$0xff]
    %v2830 = vld [vmem:[#allocation2 + $0xe2] sm:$0xff]
    %v2831 = vld [vmem:[#allocation2 + $0xf2] sm:$0xff]
    %v2832 = vld [vmem:[#allocation2 + $0x102] sm:$0xff]
    %v2833 = vld [vmem:[#allocation2 + $0x112] sm:$0xff]
    %v2834 = vld [vmem:[#allocation2 + $0x142] sm:$0xff]
    %v2835 = vld [vmem:[#allocation2 + $0x152] sm:$0xff]
    %v2836 = vld [vmem:[#allocation2 + $0x162] sm:$0xff]
    %v2837 = vld [vmem:[#allocation2 + $0x172] sm:$0xff]
    %v2838 = vld [vmem:[#allocation2 + $0x182] sm:$0xff]
    %v2839 = vld [vmem:[#allocation2 + $0x192] sm:$0xff]
    %v2840 = vld [vmem:[#allocation2 + $0x1a2] sm:$0xff]
    %v2841 = vld [vmem:[#allocation2 + $0x1b2] sm:$0xff]
    %v2842 = vld [vmem:[#allocation2 + $0x1e2] sm:$0xff]
    %v2843 = vld [vmem:[#allocation2 + $0x1f2] sm:$0xff]
    %v2844 = vld [vmem:[#allocation2 + $0x202] sm:$0xff]
    %v2845 = vld [vmem:[#allocation2 + $0x212] sm:$0xff]
    %v2846 = vld [vmem:[#allocation2 + $0x222] sm:$0xff]
    %v2847 = vld [vmem:[#allocation2 + $0x232] sm:$0xff]
    %v2848 = vld [vmem:[#allocation2 + $0x242] sm:$0xff]
    %v2849 = vld [vmem:[#allocation2 + $0x252] sm:$0xff]
    %v2850 = vld [vmem:[#allocation2 + $0x282] sm:$0xff]
    %v2851 = vld [vmem:[#allocation2 + $0x292] sm:$0xff]
    %v2852 = vld [vmem:[#allocation2 + $0x2a2] sm:$0xff]
    %v2853 = vld [vmem:[#allocation2 + $0x2b2] sm:$0xff]
    %v2854 = vld [vmem:[#allocation2 + $0x2c2] sm:$0xff]
    %v2855 = vld [vmem:[#allocation2 + $0x2d2] sm:$0xff]
    %v2856 = vld [vmem:[#allocation2 + $0x2e2] sm:$0xff]
    %v2857 = vld [vmem:[#allocation2 + $0x2f2] sm:$0xff]
    %v2858 = vld [vmem:[#allocation2 + $0x322] sm:$0xff]
    %v2859 = vld [vmem:[#allocation2 + $0x332] sm:$0xff]
    %v2860 = vld [vmem:[#allocation2 + $0x342] sm:$0xff]
    %v2861 = vld [vmem:[#allocation2 + $0x352] sm:$0xff]
    %v2862 = vld [vmem:[#allocation2 + $0x362] sm:$0xff]
    %v2863 = vld [vmem:[#allocation2 + $0x372] sm:$0xff]
    %v2864 = vld [vmem:[#allocation2 + $0x382] sm:$0xff]
    %v2865 = vld [vmem:[#allocation2 + $0x392] sm:$0xff]
    %v2866 = vld [vmem:[#allocation2 + $0x3c2] sm:$0xff]
    %v2867 = vld [vmem:[#allocation2 + $0x3d2] sm:$0xff]
    %v2868 = vld [vmem:[#allocation2 + $0x3e2] sm:$0xff]
    %v2869 = vld [vmem:[#allocation2 + $0x3f2] sm:$0xff]
    %v2870 = vld [vmem:[#allocation2 + $0x402] sm:$0xff]
    %v2871 = vld [vmem:[#allocation2 + $0x412] sm:$0xff]
    %v2872 = vld [vmem:[#allocation2 + $0x422] sm:$0xff]
    %v2873 = vld [vmem:[#allocation2 + $0x432] sm:$0xff]
    %v2874 = vld [vmem:[#allocation2 + $0x462] sm:$0xff]
    %v2875 = vld [vmem:[#allocation2 + $0x472] sm:$0xff]
    %v2876 = vld [vmem:[#allocation2 + $0x482] sm:$0xff]
    %v2877 = vld [vmem:[#allocation2 + $0x492] sm:$0xff]
    %v2878 = vld [vmem:[#allocation2 + $0x4a2] sm:$0xff]
    %v2879 = vld [vmem:[#allocation2 + $0x4b2] sm:$0xff]
    %v2880 = vld [vmem:[#allocation2 + $0x4c2] sm:$0xff]
    %v2881 = vld [vmem:[#allocation2 + $0x4d2] sm:$0xff]
    %s2882 = scalar_lea.vmem %s5, 64
    %v2883 = vld [vmem:[%s2882] sm:$0xff]
    %v2884 = vld [vmem:[%s2882 + $0x8] sm:$0xff]
    %v2885 = vld [vmem:[%s2882 + $0x10] sm:$0xff]
    %v2886 = vld [vmem:[%s2882 + $0x18] sm:$0xff]
    %v2888 = vsel %vm717, %v2818, 0
    %v2891 = vsel %vm717, %v2819, 0
    %v2894 = vsel %vm717, %v2820, 0
    %v2897 = vsel %vm717, %v2821, 0
    %v2900 = vsel %vm717, %v2822, 0
    %v2903 = vsel %vm717, %v2823, 0
    %v2906 = vsel %vm717, %v2824, 0
    %v2909 = vsel %vm717, %v2825, 0
    %v2912 = vsel %vm717, %v2826, 0
    %v2915 = vsel %vm717, %v2827, 0
    %v2918 = vsel %vm717, %v2828, 0
    %v2921 = vsel %vm717, %v2829, 0
    %v2924 = vsel %vm717, %v2830, 0
    %v2927 = vsel %vm717, %v2831, 0
    %v2930 = vsel %vm717, %v2832, 0
    %v2933 = vsel %vm717, %v2833, 0
    %v2936 = vsel %vm717, %v2834, 0
    %v2939 = vsel %vm717, %v2835, 0
    %v2942 = vsel %vm717, %v2836, 0
    %v2945 = vsel %vm717, %v2837, 0
    %v2948 = vsel %vm717, %v2838, 0
    %v2951 = vsel %vm717, %v2839, 0
    %v2954 = vsel %vm717, %v2840, 0
    %v2957 = vsel %vm717, %v2841, 0
    %v2960 = vsel %vm717, %v2842, 0
    %v2963 = vsel %vm717, %v2843, 0
    %v2966 = vsel %vm717, %v2844, 0
    %v2969 = vsel %vm717, %v2845, 0
    %v2972 = vsel %vm717, %v2846, 0
    %v2975 = vsel %vm717, %v2847, 0
    %v2978 = vsel %vm717, %v2848, 0
    %v2981 = vsel %vm717, %v2849, 0
    %v2984 = vsel %vm717, %v2850, 0
    %v2987 = vsel %vm717, %v2851, 0
    %v2990 = vsel %vm717, %v2852, 0
    %v2993 = vsel %vm717, %v2853, 0
    %v2996 = vsel %vm717, %v2854, 0
    %v2999 = vsel %vm717, %v2855, 0
    %v3002 = vsel %vm717, %v2856, 0
    %v3005 = vsel %vm717, %v2857, 0
    %v3008 = vsel %vm717, %v2858, 0
    %v3011 = vsel %vm717, %v2859, 0
    %v3014 = vsel %vm717, %v2860, 0
    %v3017 = vsel %vm717, %v2861, 0
    %v3020 = vsel %vm717, %v2862, 0
    %v3023 = vsel %vm717, %v2863, 0
    %v3026 = vsel %vm717, %v2864, 0
    %v3029 = vsel %vm717, %v2865, 0
    %v3032 = vsel %vm717, %v2866, 0
    %v3035 = vsel %vm717, %v2867, 0
    %v3038 = vsel %vm717, %v2868, 0
    %v3041 = vsel %vm717, %v2869, 0
    %v3044 = vsel %vm717, %v2870, 0
    %v3047 = vsel %vm717, %v2871, 0
    %v3050 = vsel %vm717, %v2872, 0
    %v3053 = vsel %vm717, %v2873, 0
    %v3056 = vsel %vm717, %v2874, 0
    %v3059 = vsel %vm717, %v2875, 0
    %v3062 = vsel %vm717, %v2876, 0
    %v3065 = vsel %vm717, %v2877, 0
    %v3068 = vsel %vm717, %v2878, 0
    %v3071 = vsel %vm717, %v2879, 0
    %v3074 = vsel %vm717, %v2880, 0
    %v3077 = vsel %vm717, %v2881, 0
    %3079 = vmatprep.subr.mxu0 0.0
    %3080 = vmatpush1.msra.mxu0 %v2883
    %3081 = vmatprep.subr.mxu0 0.0
    %3082 = vmatpush1.msra.mxu0 %v2884
    %3083 = vmatprep.subr.mxu0 0.0
    %3084 = vmatpush1.msra.mxu0 %v2885
    %3085 = vmatprep.subr.mxu0 0.0
    %3086 = vmatpush1.msra.mxu0 %v2886
    %3087 = vmatprep.subr.mxu0 0.0
    %3088 = vmatpush1.msra.mxu0 0.0
    %3089 = vmatprep.subr.mxu0 0.0
    %3090 = vmatpush1.msra.mxu0 0.0
    %3091 = vmatprep.subr.mxu0 0.0
    %3092 = vmatpush1.msra.mxu0 0.0
    %3093 = vmatprep.subr.mxu0 0.0
    %3094 = vmatpush1.msra.mxu0 0.0
    %3095 = vmatprep.subr.mxu0 0.0
    %3096 = vmatpush1.msra.mxu0 0.0
    %3097 = vmatprep.subr.mxu0 0.0
    %3098 = vmatpush1.msra.mxu0 0.0
    %3099 = vmatprep.subr.mxu0 0.0
    %3100 = vmatpush1.msra.mxu0 0.0
    %3101 = vmatprep.subr.mxu0 0.0
    %3102 = vmatpush1.msra.mxu0 0.0
    %3103 = vmatprep.subr.mxu0 0.0
    %3104 = vmatpush1.msra.mxu0 0.0
    %3105 = vmatprep.subr.mxu0 0.0
    %3106 = vmatpush1.msra.mxu0 0.0
    %3107 = vmatprep.subr.mxu0 0.0
    %3108 = vmatpush1.msra.mxu0 0.0
    %3109 = vmatprep.subr.mxu0 0.0
    %3110 = vmatpush1.msra.mxu0 0.0
    %3111 = vmatprep.subr.mxu0 0.0
    %3112 = vmatpush1.msra.mxu0 0.0
    %3113 = vmatprep.subr.mxu0 0.0
    %3114 = vmatpush1.msra.mxu0 0.0
    %3115 = vmatprep.subr.mxu0 0.0
    %3116 = vmatpush1.msra.mxu0 0.0
    %3117 = vmatprep.subr.mxu0 0.0
    %3118 = vmatpush1.msra.mxu0 0.0
    %3119 = vmatprep.subr.mxu0 0.0
    %3120 = vmatpush1.msra.mxu0 0.0
    %3121 = vmatprep.subr.mxu0 0.0
    %3122 = vmatpush1.msra.mxu0 0.0
    %3123 = vmatprep.subr.mxu0 0.0
    %3124 = vmatpush1.msra.mxu0 0.0
    %3125 = vmatprep.subr.mxu0 0.0
    %3126 = vmatpush1.msra.mxu0 0.0
    %3127 = vmatprep.subr.mxu0 0.0
    %3128 = vmatpush1.msra.mxu0 0.0
    %3129 = vmatprep.subr.mxu0 0.0
    %3130 = vmatpush1.msra.mxu0 0.0
    %3131 = vmatprep.subr.mxu0 0.0
    %3132 = vmatpush1.msra.mxu0 0.0
    %3133 = vmatprep.subr.mxu0 0.0
    %3134 = vmatpush1.msra.mxu0 0.0
    %3135 = vmatprep.subr.mxu0 0.0
    %3136 = vmatpush1.msra.mxu0 0.0
    %3137 = vmatprep.subr.mxu0 0.0
    %3138 = vmatpush1.msra.mxu0 0.0
    %3139 = vmatprep.subr.mxu0 0.0
    %3140 = vmatpush1.msra.mxu0 0.0
    %3141 = vmatprep.subr.mxu0 0.0
    %3142 = vmatpush1.msra.mxu0 0.0
    %3143 = vmatprep.mubr.f32.mxu0 0.0
    %3144 = vmatmul.mubr.f32.gmra.mrb[0].mxu0 %v2888
    %v3145 = vpop.f32.mrb[0].mxu0
    %v3146 = vadd.f32 0.0, %v3145
    %v3147 = vpop.f32.mrb[0].mxu0
    %3148 = vmatprep.mubr.f32.mxu0 0.0
    %3149 = vmatmul.mubr.f32.gmra.mrb[0].mxu0 %v2891
    %v3150 = vpop.f32.mrb[0].mxu0
    %v3151 = vadd.f32 0.0, %v3150
    %v3152 = vpop.f32.mrb[0].mxu0
    %3153 = vmatprep.mubr.f32.mxu0 0.0
    %3154 = vmatmul.mubr.f32.gmra.mrb[0].mxu0 %v2894
    %v3155 = vpop.f32.mrb[0].mxu0
    %v3156 = vadd.f32 0.0, %v3155
    %v3157 = vpop.f32.mrb[0].mxu0
    %3158 = vmatprep.mubr.f32.mxu0 0.0
    %3159 = vmatmul.mubr.f32.gmra.mrb[0].mxu0 %v2897
    %v3160 = vpop.f32.mrb[0].mxu0
    %v3161 = vadd.f32 0.0, %v3160
    %v3162 = vpop.f32.mrb[0].mxu0
    %3163 = vmatprep.mubr.f32.mxu0 0.0
    %3164 = vmatmul.mubr.f32.gmra.mrb[0].mxu0 %v2900
    %v3165 = vpop.f32.mrb[0].mxu0
    %v3166 = vadd.f32 0.0, %v3165
    %v3167 = vpop.f32.mrb[0].mxu0
    %3168 = vmatprep.mubr.f32.mxu0 0.0
    %3169 = vmatmul.mubr.f32.gmra.mrb[0].mxu0 %v2903
    %v3170 = vpop.f32.mrb[0].mxu0
    %v3171 = vadd.f32 0.0, %v3170
    %v3172 = vpop.f32.mrb[0].mxu0
    %3173 = vmatprep.mubr.f32.mxu0 0.0
    %3174 = vmatmul.mubr.f32.gmra.mrb[0].mxu0 %v2906
    %v3175 = vpop.f32.mrb[0].mxu0
    %v3176 = vadd.f32 0.0, %v3175
    %v3177 = vpop.f32.mrb[0].mxu0
    %3178 = vmatprep.mubr.f32.mxu0 0.0
    %3179 = vmatmul.mubr.f32.gmra.mrb[0].mxu0 %v2909
    %v3180 = vpop.f32.mrb[0].mxu0
    %v3181 = vadd.f32 0.0, %v3180
    %v3182 = vpop.f32.mrb[0].mxu0
    %3183 = vmatprep.mubr.f32.mxu0 0.0
    %3184 = vmatmul.mubr.f32.gmra.mrb[0].mxu0 %v2912
    %v3185 = vpop.f32.mrb[0].mxu0
    %v3186 = vadd.f32 0.0, %v3185
    %v3187 = vpop.f32.mrb[0].mxu0
    %3188 = vmatprep.mubr.f32.mxu0 0.0
    %3189 = vmatmul.mubr.f32.gmra.mrb[0].mxu0 %v2915
    %v3190 = vpop.f32.mrb[0].mxu0
    %v3191 = vadd.f32 0.0, %v3190
    %v3192 = vpop.f32.mrb[0].mxu0
    %3193 = vmatprep.mubr.f32.mxu0 0.0
    %3194 = vmatmul.mubr.f32.gmra.mrb[0].mxu0 %v2918
    %v3195 = vpop.f32.mrb[0].mxu0
    %v3196 = vadd.f32 0.0, %v3195
    %v3197 = vpop.f32.mrb[0].mxu0
    %3198 = vmatprep.mubr.f32.mxu0 0.0
    %3199 = vmatmul.mubr.f32.gmra.mrb[0].mxu0 %v2921
    %v3200 = vpop.f32.mrb[0].mxu0
    %v3201 = vadd.f32 0.0, %v3200
    %v3202 = vpop.f32.mrb[0].mxu0
    %3203 = vmatprep.mubr.f32.mxu0 0.0
    %3204 = vmatmul.mubr.f32.gmra.mrb[0].mxu0 %v2924
    %v3205 = vpop.f32.mrb[0].mxu0
    %v3206 = vadd.f32 0.0, %v3205
    %v3207 = vpop.f32.mrb[0].mxu0
    %3208 = vmatprep.mubr.f32.mxu0 0.0
    %3209 = vmatmul.mubr.f32.gmra.mrb[0].mxu0 %v2927
    %v3210 = vpop.f32.mrb[0].mxu0
    %v3211 = vadd.f32 0.0, %v3210
    %v3212 = vpop.f32.mrb[0].mxu0
    %3213 = vmatprep.mubr.f32.mxu0 0.0
    %3214 = vmatmul.mubr.f32.gmra.mrb[0].mxu0 %v2930
    %v3215 = vpop.f32.mrb[0].mxu0
    %v3216 = vadd.f32 0.0, %v3215
    %v3217 = vpop.f32.mrb[0].mxu0
    %3218 = vmatprep.mubr.f32.mxu0 0.0
    %3219 = vmatmul.mubr.f32.gmra.mrb[0].mxu0 %v2933
    %v3220 = vpop.f32.mrb[0].mxu0
    %v3221 = vadd.f32 0.0, %v3220
    %v3222 = vpop.f32.mrb[0].mxu0
    %3223 = vmatprep.mubr.f32.mxu0 0.0
    %3224 = vmatmul.mubr.f32.gmra.mrb[0].mxu0 %v2936
    %v3225 = vpop.f32.mrb[0].mxu0
    %v3226 = vadd.f32 0.0, %v3225
    %v3227 = vpop.f32.mrb[0].mxu0
    %3228 = vmatprep.mubr.f32.mxu0 0.0
    %3229 = vmatmul.mubr.f32.gmra.mrb[0].mxu0 %v2939
    %v3230 = vpop.f32.mrb[0].mxu0
    %v3231 = vadd.f32 0.0, %v3230
    %v3232 = vpop.f32.mrb[0].mxu0
    %3233 = vmatprep.mubr.f32.mxu0 0.0
    %3234 = vmatmul.mubr.f32.gmra.mrb[0].mxu0 %v2942
    %v3235 = vpop.f32.mrb[0].mxu0
    %v3236 = vadd.f32 0.0, %v3235
    %v3237 = vpop.f32.mrb[0].mxu0
    %3238 = vmatprep.mubr.f32.mxu0 0.0
    %3239 = vmatmul.mubr.f32.gmra.mrb[0].mxu0 %v2945
    %v3240 = vpop.f32.mrb[0].mxu0
    %v3241 = vadd.f32 0.0, %v3240
    %v3242 = vpop.f32.mrb[0].mxu0
    %3243 = vmatprep.mubr.f32.mxu0 0.0
    %3244 = vmatmul.mubr.f32.gmra.mrb[0].mxu0 %v2948
    %v3245 = vpop.f32.mrb[0].mxu0
    %v3246 = vadd.f32 0.0, %v3245
    %v3247 = vpop.f32.mrb[0].mxu0
    %3248 = vmatprep.mubr.f32.mxu0 0.0
    %3249 = vmatmul.mubr.f32.gmra.mrb[0].mxu0 %v2951
    %v3250 = vpop.f32.mrb[0].mxu0
    %v3251 = vadd.f32 0.0, %v3250
    %v3252 = vpop.f32.mrb[0].mxu0
    %3253 = vmatprep.mubr.f32.mxu0 0.0
    %3254 = vmatmul.mubr.f32.gmra.mrb[0].mxu0 %v2954
    %v3255 = vpop.f32.mrb[0].mxu0
    %v3256 = vadd.f32 0.0, %v3255
    %v3257 = vpop.f32.mrb[0].mxu0
    %3258 = vmatprep.mubr.f32.mxu0 0.0
    %3259 = vmatmul.mubr.f32.gmra.mrb[0].mxu0 %v2957
    %v3260 = vpop.f32.mrb[0].mxu0
    %v3261 = vadd.f32 0.0, %v3260
    %v3262 = vpop.f32.mrb[0].mxu0
    %3263 = vmatprep.mubr.f32.mxu0 0.0
    %3264 = vmatmul.mubr.f32.gmra.mrb[0].mxu0 %v2960
    %v3265 = vpop.f32.mrb[0].mxu0
    %v3266 = vadd.f32 0.0, %v3265
    %v3267 = vpop.f32.mrb[0].mxu0
    %3268 = vmatprep.mubr.f32.mxu0 0.0
    %3269 = vmatmul.mubr.f32.gmra.mrb[0].mxu0 %v2963
    %v3270 = vpop.f32.mrb[0].mxu0
    %v3271 = vadd.f32 0.0, %v3270
    %v3272 = vpop.f32.mrb[0].mxu0
    %3273 = vmatprep.mubr.f32.mxu0 0.0
    %3274 = vmatmul.mubr.f32.gmra.mrb[0].mxu0 %v2966
    %v3275 = vpop.f32.mrb[0].mxu0
    %v3276 = vadd.f32 0.0, %v3275
    %v3277 = vpop.f32.mrb[0].mxu0
    %3278 = vmatprep.mubr.f32.mxu0 0.0
    %3279 = vmatmul.mubr.f32.gmra.mrb[0].mxu0 %v2969
    %v3280 = vpop.f32.mrb[0].mxu0
    %v3281 = vadd.f32 0.0, %v3280
    %v3282 = vpop.f32.mrb[0].mxu0
    %3283 = vmatprep.mubr.f32.mxu0 0.0
    %3284 = vmatmul.mubr.f32.gmra.mrb[0].mxu0 %v2972
    %v3285 = vpop.f32.mrb[0].mxu0
    %v3286 = vadd.f32 0.0, %v3285
    %v3287 = vpop.f32.mrb[0].mxu0
    %3288 = vmatprep.mubr.f32.mxu0 0.0
    %3289 = vmatmul.mubr.f32.gmra.mrb[0].mxu0 %v2975
    %v3290 = vpop.f32.mrb[0].mxu0
    %v3291 = vadd.f32 0.0, %v3290
    %v3292 = vpop.f32.mrb[0].mxu0
    %3293 = vmatprep.mubr.f32.mxu0 0.0
    %3294 = vmatmul.mubr.f32.gmra.mrb[0].mxu0 %v2978
    %v3295 = vpop.f32.mrb[0].mxu0
    %v3296 = vadd.f32 0.0, %v3295
    %v3297 = vpop.f32.mrb[0].mxu0
    %3298 = vmatprep.mubr.f32.mxu0 0.0
    %3299 = vmatmul.mubr.f32.gmra.mrb[0].mxu0 %v2981
    %v3300 = vpop.f32.mrb[0].mxu0
    %v3301 = vadd.f32 0.0, %v3300
    %v3302 = vpop.f32.mrb[0].mxu0
    %3303 = vmatprep.mubr.f32.mxu0 0.0
    %3304 = vmatmul.mubr.f32.gmra.mrb[0].mxu0 %v2984
    %v3305 = vpop.f32.mrb[0].mxu0
    %v3306 = vadd.f32 0.0, %v3305
    %v3307 = vpop.f32.mrb[0].mxu0
    %3308 = vmatprep.mubr.f32.mxu0 0.0
    %3309 = vmatmul.mubr.f32.gmra.mrb[0].mxu0 %v2987
    %v3310 = vpop.f32.mrb[0].mxu0
    %v3311 = vadd.f32 0.0, %v3310
    %v3312 = vpop.f32.mrb[0].mxu0
    %3313 = vmatprep.mubr.f32.mxu0 0.0
    %3314 = vmatmul.mubr.f32.gmra.mrb[0].mxu0 %v2990
    %v3315 = vpop.f32.mrb[0].mxu0
    %v3316 = vadd.f32 0.0, %v3315
    %v3317 = vpop.f32.mrb[0].mxu0
    %3318 = vmatprep.mubr.f32.mxu0 0.0
    %3319 = vmatmul.mubr.f32.gmra.mrb[0].mxu0 %v2993
    %v3320 = vpop.f32.mrb[0].mxu0
    %v3321 = vadd.f32 0.0, %v3320
    %v3322 = vpop.f32.mrb[0].mxu0
    %3323 = vmatprep.mubr.f32.mxu0 0.0
    %3324 = vmatmul.mubr.f32.gmra.mrb[0].mxu0 %v2996
    %v3325 = vpop.f32.mrb[0].mxu0
    %v3326 = vadd.f32 0.0, %v3325
    %v3327 = vpop.f32.mrb[0].mxu0
    %3328 = vmatprep.mubr.f32.mxu0 0.0
    %3329 = vmatmul.mubr.f32.gmra.mrb[0].mxu0 %v2999
    %v3330 = vpop.f32.mrb[0].mxu0
    %v3331 = vadd.f32 0.0, %v3330
    %v3332 = vpop.f32.mrb[0].mxu0
    %3333 = vmatprep.mubr.f32.mxu0 0.0
    %3334 = vmatmul.mubr.f32.gmra.mrb[0].mxu0 %v3002
    %v3335 = vpop.f32.mrb[0].mxu0
    %v3336 = vadd.f32 0.0, %v3335
    %v3337 = vpop.f32.mrb[0].mxu0
    %3338 = vmatprep.mubr.f32.mxu0 0.0
    %3339 = vmatmul.mubr.f32.gmra.mrb[0].mxu0 %v3005
    %v3340 = vpop.f32.mrb[0].mxu0
    %v3341 = vadd.f32 0.0, %v3340
    %v3342 = vpop.f32.mrb[0].mxu0
    %3343 = vmatprep.mubr.f32.mxu0 0.0
    %3344 = vmatmul.mubr.f32.gmra.mrb[0].mxu0 %v3008
    %v3345 = vpop.f32.mrb[0].mxu0
    %v3346 = vadd.f32 0.0, %v3345
    %v3347 = vpop.f32.mrb[0].mxu0
    %3348 = vmatprep.mubr.f32.mxu0 0.0
    %3349 = vmatmul.mubr.f32.gmra.mrb[0].mxu0 %v3011
    %v3350 = vpop.f32.mrb[0].mxu0
    %v3351 = vadd.f32 0.0, %v3350
    %v3352 = vpop.f32.mrb[0].mxu0
    %3353 = vmatprep.mubr.f32.mxu0 0.0
    %3354 = vmatmul.mubr.f32.gmra.mrb[0].mxu0 %v3014
    %v3355 = vpop.f32.mrb[0].mxu0
    %v3356 = vadd.f32 0.0, %v3355
    %v3357 = vpop.f32.mrb[0].mxu0
    %3358 = vmatprep.mubr.f32.mxu0 0.0
    %3359 = vmatmul.mubr.f32.gmra.mrb[0].mxu0 %v3017
    %v3360 = vpop.f32.mrb[0].mxu0
    %v3361 = vadd.f32 0.0, %v3360
    %v3362 = vpop.f32.mrb[0].mxu0
    %3363 = vmatprep.mubr.f32.mxu0 0.0
    %3364 = vmatmul.mubr.f32.gmra.mrb[0].mxu0 %v3020
    %v3365 = vpop.f32.mrb[0].mxu0
    %v3366 = vadd.f32 0.0, %v3365
    %v3367 = vpop.f32.mrb[0].mxu0
    %3368 = vmatprep.mubr.f32.mxu0 0.0
    %3369 = vmatmul.mubr.f32.gmra.mrb[0].mxu0 %v3023
    %v3370 = vpop.f32.mrb[0].mxu0
    %v3371 = vadd.f32 0.0, %v3370
    %v3372 = vpop.f32.mrb[0].mxu0
    %3373 = vmatprep.mubr.f32.mxu0 0.0
    %3374 = vmatmul.mubr.f32.gmra.mrb[0].mxu0 %v3026
    %v3375 = vpop.f32.mrb[0].mxu0
    %v3376 = vadd.f32 0.0, %v3375
    %v3377 = vpop.f32.mrb[0].mxu0
    %3378 = vmatprep.mubr.f32.mxu0 0.0
    %3379 = vmatmul.mubr.f32.gmra.mrb[0].mxu0 %v3029
    %v3380 = vpop.f32.mrb[0].mxu0
    %v3381 = vadd.f32 0.0, %v3380
    %v3382 = vpop.f32.mrb[0].mxu0
    %3383 = vmatprep.mubr.f32.mxu0 0.0
    %3384 = vmatmul.mubr.f32.gmra.mrb[0].mxu0 %v3032
    %v3385 = vpop.f32.mrb[0].mxu0
    %v3386 = vadd.f32 0.0, %v3385
    %v3387 = vpop.f32.mrb[0].mxu0
    %3388 = vmatprep.mubr.f32.mxu0 0.0
    %3389 = vmatmul.mubr.f32.gmra.mrb[0].mxu0 %v3035
    %v3390 = vpop.f32.mrb[0].mxu0
    %v3391 = vadd.f32 0.0, %v3390
    %v3392 = vpop.f32.mrb[0].mxu0
    %3393 = vmatprep.mubr.f32.mxu0 0.0
    %3394 = vmatmul.mubr.f32.gmra.mrb[0].mxu0 %v3038
    %v3395 = vpop.f32.mrb[0].mxu0
    %v3396 = vadd.f32 0.0, %v3395
    %v3397 = vpop.f32.mrb[0].mxu0
    %3398 = vmatprep.mubr.f32.mxu0 0.0
    %3399 = vmatmul.mubr.f32.gmra.mrb[0].mxu0 %v3041
    %v3400 = vpop.f32.mrb[0].mxu0
    %v3401 = vadd.f32 0.0, %v3400
    %v3402 = vpop.f32.mrb[0].mxu0
    %3403 = vmatprep.mubr.f32.mxu0 0.0
    %3404 = vmatmul.mubr.f32.gmra.mrb[0].mxu0 %v3044
    %v3405 = vpop.f32.mrb[0].mxu0
    %v3406 = vadd.f32 0.0, %v3405
    %v3407 = vpop.f32.mrb[0].mxu0
    %3408 = vmatprep.mubr.f32.mxu0 0.0
    %3409 = vmatmul.mubr.f32.gmra.mrb[0].mxu0 %v3047
    %v3410 = vpop.f32.mrb[0].mxu0
    %v3411 = vadd.f32 0.0, %v3410
    %v3412 = vpop.f32.mrb[0].mxu0
    %3413 = vmatprep.mubr.f32.mxu0 0.0
    %3414 = vmatmul.mubr.f32.gmra.mrb[0].mxu0 %v3050
    %v3415 = vpop.f32.mrb[0].mxu0
    %v3416 = vadd.f32 0.0, %v3415
    %v3417 = vpop.f32.mrb[0].mxu0
    %3418 = vmatprep.mubr.f32.mxu0 0.0
    %3419 = vmatmul.mubr.f32.gmra.mrb[0].mxu0 %v3053
    %v3420 = vpop.f32.mrb[0].mxu0
    %v3421 = vadd.f32 0.0, %v3420
    %v3422 = vpop.f32.mrb[0].mxu0
    %3423 = vmatprep.mubr.f32.mxu0 0.0
    %3424 = vmatmul.mubr.f32.gmra.mrb[0].mxu0 %v3056
    %v3425 = vpop.f32.mrb[0].mxu0
    %v3426 = vadd.f32 0.0, %v3425
    %v3427 = vpop.f32.mrb[0].mxu0
    %3428 = vmatprep.mubr.f32.mxu0 0.0
    %3429 = vmatmul.mubr.f32.gmra.mrb[0].mxu0 %v3059
    %v3430 = vpop.f32.mrb[0].mxu0
    %v3431 = vadd.f32 0.0, %v3430
    %v3432 = vpop.f32.mrb[0].mxu0
    %3433 = vmatprep.mubr.f32.mxu0 0.0
    %3434 = vmatmul.mubr.f32.gmra.mrb[0].mxu0 %v3062
    %v3435 = vpop.f32.mrb[0].mxu0
    %v3436 = vadd.f32 0.0, %v3435
    %v3437 = vpop.f32.mrb[0].mxu0
    %3438 = vmatprep.mubr.f32.mxu0 0.0
    %3439 = vmatmul.mubr.f32.gmra.mrb[0].mxu0 %v3065
    %v3440 = vpop.f32.mrb[0].mxu0
    %v3441 = vadd.f32 0.0, %v3440
    %v3442 = vpop.f32.mrb[0].mxu0
    %3443 = vmatprep.mubr.f32.mxu0 0.0
    %3444 = vmatmul.mubr.f32.gmra.mrb[0].mxu0 %v3068
    %v3445 = vpop.f32.mrb[0].mxu0
    %v3446 = vadd.f32 0.0, %v3445
    %v3447 = vpop.f32.mrb[0].mxu0
    %3448 = vmatprep.mubr.f32.mxu0 0.0
    %3449 = vmatmul.mubr.f32.gmra.mrb[0].mxu0 %v3071
    %v3450 = vpop.f32.mrb[0].mxu0
    %v3451 = vadd.f32 0.0, %v3450
    %v3452 = vpop.f32.mrb[0].mxu0
    %3453 = vmatprep.mubr.f32.mxu0 0.0
    %3454 = vmatmul.mubr.f32.gmra.mrb[0].mxu0 %v3074
    %v3455 = vpop.f32.mrb[0].mxu0
    %v3456 = vadd.f32 0.0, %v3455
    %v3457 = vpop.f32.mrb[0].mxu0
    %3458 = vmatprep.mubr.f32.mxu0 0.0
    %3459 = vmatmul.mubr.f32.gmra.mrb[0].mxu0 %v3077
    %v3460 = vpop.f32.mrb[0].mxu0
    %v3461 = vadd.f32 0.0, %v3460
    %v3462 = vpop.f32.mrb[0].mxu0
    %3463 = vdwg.mxu0
    %v3464 = vadd.f32 %v2500, %v3146
    %v3465 = vadd.f32 %v2505, %v3151
    %v3466 = vadd.f32 %v2510, %v3156
    %v3467 = vadd.f32 %v2515, %v3161
    %v3468 = vadd.f32 %v2520, %v3166
    %v3469 = vadd.f32 %v2525, %v3171
    %v3470 = vadd.f32 %v2530, %v3176
    %v3471 = vadd.f32 %v2535, %v3181
    %v3472 = vadd.f32 %v2540, %v3186
    %v3473 = vadd.f32 %v2545, %v3191
    %v3474 = vadd.f32 %v2550, %v3196
    %v3475 = vadd.f32 %v2555, %v3201
    %v3476 = vadd.f32 %v2560, %v3206
    %v3477 = vadd.f32 %v2565, %v3211
    %v3478 = vadd.f32 %v2570, %v3216
    %v3479 = vadd.f32 %v2575, %v3221
    %v3480 = vadd.f32 %v2580, %v3226
    %v3481 = vadd.f32 %v2585, %v3231
    %v3482 = vadd.f32 %v2590, %v3236
    %v3483 = vadd.f32 %v2595, %v3241
    %v3484 = vadd.f32 %v2600, %v3246
    %v3485 = vadd.f32 %v2605, %v3251
    %v3486 = vadd.f32 %v2610, %v3256
    %v3487 = vadd.f32 %v2615, %v3261
    %v3488 = vadd.f32 %v2620, %v3266
    %v3489 = vadd.f32 %v2625, %v3271
    %v3490 = vadd.f32 %v2630, %v3276
    %v3491 = vadd.f32 %v2635, %v3281
    %v3492 = vadd.f32 %v2640, %v3286
    %v3493 = vadd.f32 %v2645, %v3291
    %v3494 = vadd.f32 %v2650, %v3296
    %v3495 = vadd.f32 %v2655, %v3301
    %v3496 = vadd.f32 %v2660, %v3306
    %v3497 = vadd.f32 %v2665, %v3311
    %v3498 = vadd.f32 %v2670, %v3316
    %v3499 = vadd.f32 %v2675, %v3321
    %v3500 = vadd.f32 %v2680, %v3326
    %v3501 = vadd.f32 %v2685, %v3331
    %v3502 = vadd.f32 %v2690, %v3336
    %v3503 = vadd.f32 %v2695, %v3341
    %v3504 = vadd.f32 %v2700, %v3346
    %v3505 = vadd.f32 %v2705, %v3351
    %v3506 = vadd.f32 %v2710, %v3356
    %v3507 = vadd.f32 %v2715, %v3361
    %v3508 = vadd.f32 %v2720, %v3366
    %v3509 = vadd.f32 %v2725, %v3371
    %v3510 = vadd.f32 %v2730, %v3376
    %v3511 = vadd.f32 %v2735, %v3381
    %v3512 = vadd.f32 %v2740, %v3386
    %v3513 = vadd.f32 %v2745, %v3391
    %v3514 = vadd.f32 %v2750, %v3396
    %v3515 = vadd.f32 %v2755, %v3401
    %v3516 = vadd.f32 %v2760, %v3406
    %v3517 = vadd.f32 %v2765, %v3411
    %v3518 = vadd.f32 %v2770, %v3416
    %v3519 = vadd.f32 %v2775, %v3421
    %v3520 = vadd.f32 %v2780, %v3426
    %v3521 = vadd.f32 %v2785, %v3431
    %v3522 = vadd.f32 %v2790, %v3436
    %v3523 = vadd.f32 %v2795, %v3441
    %v3524 = vadd.f32 %v2800, %v3446
    %v3525 = vadd.f32 %v2805, %v3451
    %v3526 = vadd.f32 %v2810, %v3456
    %v3527 = vadd.f32 %v2815, %v3461
    %v3528 = vld [vmem:[%s1333] sm:$0xff]
    %v3529 = vld [vmem:[%s1333 + $0x10] sm:$0xff]
    %v3530 = vld [vmem:[%s1333 + $0x20] sm:$0xff]
    %v3531 = vld [vmem:[%s1333 + $0x30] sm:$0xff]
    %v3532 = vld [vmem:[%s1333 + $0x40] sm:$0xff]
    %v3533 = vld [vmem:[%s1333 + $0x50] sm:$0xff]
    %v3534 = vld [vmem:[%s1333 + $0x60] sm:$0xff]
    %v3535 = vld [vmem:[%s1333 + $0x70] sm:$0xff]
    %v3536 = vld [vmem:[%s1333 + $0xa0] sm:$0xff]
    %v3537 = vld [vmem:[%s1333 + $0xb0] sm:$0xff]
    %v3538 = vld [vmem:[%s1333 + $0xc0] sm:$0xff]
    %v3539 = vld [vmem:[%s1333 + $0xd0] sm:$0xff]
    %v3540 = vld [vmem:[%s1333 + $0xe0] sm:$0xff]
    %v3541 = vld [vmem:[%s1333 + $0xf0] sm:$0xff]
    %v3542 = vld [vmem:[%s1333 + $0x100] sm:$0xff]
    %v3543 = vld [vmem:[%s1333 + $0x110] sm:$0xff]
    %v3544 = vld [vmem:[%s1333 + $0x140] sm:$0xff]
    %v3545 = vld [vmem:[%s1333 + $0x150] sm:$0xff]
    %v3546 = vld [vmem:[%s1333 + $0x160] sm:$0xff]
    %v3547 = vld [vmem:[%s1333 + $0x170] sm:$0xff]
    %v3548 = vld [vmem:[%s1333 + $0x180] sm:$0xff]
    %v3549 = vld [vmem:[%s1333 + $0x190] sm:$0xff]
    %v3550 = vld [vmem:[%s1333 + $0x1a0] sm:$0xff]
    %v3551 = vld [vmem:[%s1333 + $0x1b0] sm:$0xff]
    %v3552 = vld [vmem:[%s1333 + $0x1e0] sm:$0xff]
    %v3553 = vld [vmem:[%s1333 + $0x1f0] sm:$0xff]
    %v3554 = vld [vmem:[%s1333 + $0x200] sm:$0xff]
    %v3555 = vld [vmem:[%s1333 + $0x210] sm:$0xff]
    %v3556 = vld [vmem:[%s1333 + $0x220] sm:$0xff]
    %v3557 = vld [vmem:[%s1333 + $0x230] sm:$0xff]
    %v3558 = vld [vmem:[%s1333 + $0x240] sm:$0xff]
    %v3559 = vld [vmem:[%s1333 + $0x250] sm:$0xff]
    %v3560 = vld [vmem:[%s1333 + $0x280] sm:$0xff]
    %v3561 = vld [vmem:[%s1333 + $0x290] sm:$0xff]
    %v3562 = vld [vmem:[%s1333 + $0x2a0] sm:$0xff]
    %v3563 = vld [vmem:[%s1333 + $0x2b0] sm:$0xff]
    %v3564 = vld [vmem:[%s1333 + $0x2c0] sm:$0xff]
    %v3565 = vld [vmem:[%s1333 + $0x2d0] sm:$0xff]
    %v3566 = vld [vmem:[%s1333 + $0x2e0] sm:$0xff]
    %v3567 = vld [vmem:[%s1333 + $0x2f0] sm:$0xff]
    %v3568 = vld [vmem:[%s1333 + $0x320] sm:$0xff]
    %v3569 = vld [vmem:[%s1333 + $0x330] sm:$0xff]
    %v3570 = vld [vmem:[%s1333 + $0x340] sm:$0xff]
    %v3571 = vld [vmem:[%s1333 + $0x350] sm:$0xff]
    %v3572 = vld [vmem:[%s1333 + $0x360] sm:$0xff]
    %v3573 = vld [vmem:[%s1333 + $0x370] sm:$0xff]
    %v3574 = vld [vmem:[%s1333 + $0x380] sm:$0xff]
    %v3575 = vld [vmem:[%s1333 + $0x390] sm:$0xff]
    %v3576 = vld [vmem:[%s1333 + $0x3c0] sm:$0xff]
    %v3577 = vld [vmem:[%s1333 + $0x3d0] sm:$0xff]
    %v3578 = vld [vmem:[%s1333 + $0x3e0] sm:$0xff]
    %v3579 = vld [vmem:[%s1333 + $0x3f0] sm:$0xff]
    %v3580 = vld [vmem:[%s1333 + $0x400] sm:$0xff]
    %v3581 = vld [vmem:[%s1333 + $0x410] sm:$0xff]
    %v3582 = vld [vmem:[%s1333 + $0x420] sm:$0xff]
    %v3583 = vld [vmem:[%s1333 + $0x430] sm:$0xff]
    %v3584 = vld [vmem:[%s1333 + $0x460] sm:$0xff]
    %v3585 = vld [vmem:[%s1333 + $0x470] sm:$0xff]
    %v3586 = vld [vmem:[%s1333 + $0x480] sm:$0xff]
    %v3587 = vld [vmem:[%s1333 + $0x490] sm:$0xff]
    %v3588 = vld [vmem:[%s1333 + $0x4a0] sm:$0xff]
    %v3589 = vld [vmem:[%s1333 + $0x4b0] sm:$0xff]
    %v3590 = vld [vmem:[%s1333 + $0x4c0] sm:$0xff]
    %v3591 = vld [vmem:[%s1333 + $0x4d0] sm:$0xff]
    %s3592 = scalar_lea.vmem %s5, 96
    %v3593 = vld [vmem:[%s3592] sm:$0xff]
    %v3594 = vld [vmem:[%s3592 + $0x8] sm:$0xff]
    %v3595 = vld [vmem:[%s3592 + $0x10] sm:$0xff]
    %v3596 = vld [vmem:[%s3592 + $0x18] sm:$0xff]
    %v3598 = vsel %vm717, %v3528, 0
    %v3601 = vsel %vm717, %v3529, 0
    %v3604 = vsel %vm717, %v3530, 0
    %v3607 = vsel %vm717, %v3531, 0
    %v3610 = vsel %vm717, %v3532, 0
    %v3613 = vsel %vm717, %v3533, 0
    %v3616 = vsel %vm717, %v3534, 0
    %v3619 = vsel %vm717, %v3535, 0
    %v3622 = vsel %vm717, %v3536, 0
    %v3625 = vsel %vm717, %v3537, 0
    %v3628 = vsel %vm717, %v3538, 0
    %v3631 = vsel %vm717, %v3539, 0
    %v3634 = vsel %vm717, %v3540, 0
    %v3637 = vsel %vm717, %v3541, 0
    %v3640 = vsel %vm717, %v3542, 0
    %v3643 = vsel %vm717, %v3543, 0
    %v3646 = vsel %vm717, %v3544, 0
    %v3649 = vsel %vm717, %v3545, 0
    %v3652 = vsel %vm717, %v3546, 0
    %v3655 = vsel %vm717, %v3547, 0
    %v3658 = vsel %vm717, %v3548, 0
    %v3661 = vsel %vm717, %v3549, 0
    %v3664 = vsel %vm717, %v3550, 0
    %v3667 = vsel %vm717, %v3551, 0
    %v3670 = vsel %vm717, %v3552, 0
    %v3673 = vsel %vm717, %v3553, 0
    %v3676 = vsel %vm717, %v3554, 0
    %v3679 = vsel %vm717, %v3555, 0
    %v3682 = vsel %vm717, %v3556, 0
    %v3685 = vsel %vm717, %v3557, 0
    %v3688 = vsel %vm717, %v3558, 0
    %v3691 = vsel %vm717, %v3559, 0
    %v3694 = vsel %vm717, %v3560, 0
    %v3697 = vsel %vm717, %v3561, 0
    %v3700 = vsel %vm717, %v3562, 0
    %v3703 = vsel %vm717, %v3563, 0
    %v3706 = vsel %vm717, %v3564, 0
    %v3709 = vsel %vm717, %v3565, 0
    %v3712 = vsel %vm717, %v3566, 0
    %v3715 = vsel %vm717, %v3567, 0
    %v3718 = vsel %vm717, %v3568, 0
    %v3721 = vsel %vm717, %v3569, 0
    %v3724 = vsel %vm717, %v3570, 0
    %v3727 = vsel %vm717, %v3571, 0
    %v3730 = vsel %vm717, %v3572, 0
    %v3733 = vsel %vm717, %v3573, 0
    %v3736 = vsel %vm717, %v3574, 0
    %v3739 = vsel %vm717, %v3575, 0
    %v3742 = vsel %vm717, %v3576, 0
    %v3745 = vsel %vm717, %v3577, 0
    %v3748 = vsel %vm717, %v3578, 0
    %v3751 = vsel %vm717, %v3579, 0
    %v3754 = vsel %vm717, %v3580, 0
    %v3757 = vsel %vm717, %v3581, 0
    %v3760 = vsel %vm717, %v3582, 0
    %v3763 = vsel %vm717, %v3583, 0
    %v3766 = vsel %vm717, %v3584, 0
    %v3769 = vsel %vm717, %v3585, 0
    %v3772 = vsel %vm717, %v3586, 0
    %v3775 = vsel %vm717, %v3587, 0
    %v3778 = vsel %vm717, %v3588, 0
    %v3781 = vsel %vm717, %v3589, 0
    %v3784 = vsel %vm717, %v3590, 0
    %v3787 = vsel %vm717, %v3591, 0
    %3789 = vmatprep.subr.mxu0 0.0
    %3790 = vmatpush1.msra.mxu0 %v3593
    %3791 = vmatprep.subr.mxu0 0.0
    %3792 = vmatpush1.msra.mxu0 %v3594
    %3793 = vmatprep.subr.mxu0 0.0
    %3794 = vmatpush1.msra.mxu0 %v3595
    %3795 = vmatprep.subr.mxu0 0.0
    %3796 = vmatpush1.msra.mxu0 %v3596
    %3797 = vmatprep.subr.mxu0 0.0
    %3798 = vmatpush1.msra.mxu0 0.0
    %3799 = vmatprep.subr.mxu0 0.0
    %3800 = vmatpush1.msra.mxu0 0.0
    %3801 = vmatprep.subr.mxu0 0.0
    %3802 = vmatpush1.msra.mxu0 0.0
    %3803 = vmatprep.subr.mxu0 0.0
    %3804 = vmatpush1.msra.mxu0 0.0
    %3805 = vmatprep.subr.mxu0 0.0
    %3806 = vmatpush1.msra.mxu0 0.0
    %3807 = vmatprep.subr.mxu0 0.0
    %3808 = vmatpush1.msra.mxu0 0.0
    %3809 = vmatprep.subr.mxu0 0.0
    %3810 = vmatpush1.msra.mxu0 0.0
    %3811 = vmatprep.subr.mxu0 0.0
    %3812 = vmatpush1.msra.mxu0 0.0
    %3813 = vmatprep.subr.mxu0 0.0
    %3814 = vmatpush1.msra.mxu0 0.0
    %3815 = vmatprep.subr.mxu0 0.0
    %3816 = vmatpush1.msra.mxu0 0.0
    %3817 = vmatprep.subr.mxu0 0.0
    %3818 = vmatpush1.msra.mxu0 0.0
    %3819 = vmatprep.subr.mxu0 0.0
    %3820 = vmatpush1.msra.mxu0 0.0
    %3821 = vmatprep.subr.mxu0 0.0
    %3822 = vmatpush1.msra.mxu0 0.0
    %3823 = vmatprep.subr.mxu0 0.0
    %3824 = vmatpush1.msra.mxu0 0.0
    %3825 = vmatprep.subr.mxu0 0.0
    %3826 = vmatpush1.msra.mxu0 0.0
    %3827 = vmatprep.subr.mxu0 0.0
    %3828 = vmatpush1.msra.mxu0 0.0
    %3829 = vmatprep.subr.mxu0 0.0
    %3830 = vmatpush1.msra.mxu0 0.0
    %3831 = vmatprep.subr.mxu0 0.0
    %3832 = vmatpush1.msra.mxu0 0.0
    %3833 = vmatprep.subr.mxu0 0.0
    %3834 = vmatpush1.msra.mxu0 0.0
    %3835 = vmatprep.subr.mxu0 0.0
    %3836 = vmatpush1.msra.mxu0 0.0
    %3837 = vmatprep.subr.mxu0 0.0
    %3838 = vmatpush1.msra.mxu0 0.0
    %3839 = vmatprep.subr.mxu0 0.0
    %3840 = vmatpush1.msra.mxu0 0.0
    %3841 = vmatprep.subr.mxu0 0.0
    %3842 = vmatpush1.msra.mxu0 0.0
    %3843 = vmatprep.subr.mxu0 0.0
    %3844 = vmatpush1.msra.mxu0 0.0
    %3845 = vmatprep.subr.mxu0 0.0
    %3846 = vmatpush1.msra.mxu0 0.0
    %3847 = vmatprep.subr.mxu0 0.0
    %3848 = vmatpush1.msra.mxu0 0.0
    %3849 = vmatprep.subr.mxu0 0.0
    %3850 = vmatpush1.msra.mxu0 0.0
    %3851 = vmatprep.subr.mxu0 0.0
    %3852 = vmatpush1.msra.mxu0 0.0
    %3853 = vmatprep.mubr.f32.mxu0 0.0
    %3854 = vmatmul.mubr.f32.gmra.mrb[0].mxu0 %v3598
    %v3855 = vpop.f32.mrb[0].mxu0
    %v3856 = vadd.f32 0.0, %v3855
    %v3857 = vpop.f32.mrb[0].mxu0
    %3858 = vmatprep.mubr.f32.mxu0 0.0
    %3859 = vmatmul.mubr.f32.gmra.mrb[0].mxu0 %v3601
    %v3860 = vpop.f32.mrb[0].mxu0
    %v3861 = vadd.f32 0.0, %v3860
    %v3862 = vpop.f32.mrb[0].mxu0
    %3863 = vmatprep.mubr.f32.mxu0 0.0
    %3864 = vmatmul.mubr.f32.gmra.mrb[0].mxu0 %v3604
    %v3865 = vpop.f32.mrb[0].mxu0
    %v3866 = vadd.f32 0.0, %v3865
    %v3867 = vpop.f32.mrb[0].mxu0
    %3868 = vmatprep.mubr.f32.mxu0 0.0
    %3869 = vmatmul.mubr.f32.gmra.mrb[0].mxu0 %v3607
    %v3870 = vpop.f32.mrb[0].mxu0
    %v3871 = vadd.f32 0.0, %v3870
    %v3872 = vpop.f32.mrb[0].mxu0
    %3873 = vmatprep.mubr.f32.mxu0 0.0
    %3874 = vmatmul.mubr.f32.gmra.mrb[0].mxu0 %v3610
    %v3875 = vpop.f32.mrb[0].mxu0
    %v3876 = vadd.f32 0.0, %v3875
    %v3877 = vpop.f32.mrb[0].mxu0
    %3878 = vmatprep.mubr.f32.mxu0 0.0
    %3879 = vmatmul.mubr.f32.gmra.mrb[0].mxu0 %v3613
    %v3880 = vpop.f32.mrb[0].mxu0
    %v3881 = vadd.f32 0.0, %v3880
    %v3882 = vpop.f32.mrb[0].mxu0
    %3883 = vmatprep.mubr.f32.mxu0 0.0
    %3884 = vmatmul.mubr.f32.gmra.mrb[0].mxu0 %v3616
    %v3885 = vpop.f32.mrb[0].mxu0
    %v3886 = vadd.f32 0.0, %v3885
    %v3887 = vpop.f32.mrb[0].mxu0
    %3888 = vmatprep.mubr.f32.mxu0 0.0
    %3889 = vmatmul.mubr.f32.gmra.mrb[0].mxu0 %v3619
    %v3890 = vpop.f32.mrb[0].mxu0
    %v3891 = vadd.f32 0.0, %v3890
    %v3892 = vpop.f32.mrb[0].mxu0
    %3893 = vmatprep.mubr.f32.mxu0 0.0
    %3894 = vmatmul.mubr.f32.gmra.mrb[0].mxu0 %v3622
    %v3895 = vpop.f32.mrb[0].mxu0
    %v3896 = vadd.f32 0.0, %v3895
    %v3897 = vpop.f32.mrb[0].mxu0
    %3898 = vmatprep.mubr.f32.mxu0 0.0
    %3899 = vmatmul.mubr.f32.gmra.mrb[0].mxu0 %v3625
    %v3900 = vpop.f32.mrb[0].mxu0
    %v3901 = vadd.f32 0.0, %v3900
    %v3902 = vpop.f32.mrb[0].mxu0
    %3903 = vmatprep.mubr.f32.mxu0 0.0
    %3904 = vmatmul.mubr.f32.gmra.mrb[0].mxu0 %v3628
    %v3905 = vpop.f32.mrb[0].mxu0
    %v3906 = vadd.f32 0.0, %v3905
    %v3907 = vpop.f32.mrb[0].mxu0
    %3908 = vmatprep.mubr.f32.mxu0 0.0
    %3909 = vmatmul.mubr.f32.gmra.mrb[0].mxu0 %v3631
    %v3910 = vpop.f32.mrb[0].mxu0
    %v3911 = vadd.f32 0.0, %v3910
    %v3912 = vpop.f32.mrb[0].mxu0
    %3913 = vmatprep.mubr.f32.mxu0 0.0
    %3914 = vmatmul.mubr.f32.gmra.mrb[0].mxu0 %v3634
    %v3915 = vpop.f32.mrb[0].mxu0
    %v3916 = vadd.f32 0.0, %v3915
    %v3917 = vpop.f32.mrb[0].mxu0
    %3918 = vmatprep.mubr.f32.mxu0 0.0
    %3919 = vmatmul.mubr.f32.gmra.mrb[0].mxu0 %v3637
    %v3920 = vpop.f32.mrb[0].mxu0
    %v3921 = vadd.f32 0.0, %v3920
    %v3922 = vpop.f32.mrb[0].mxu0
    %3923 = vmatprep.mubr.f32.mxu0 0.0
    %3924 = vmatmul.mubr.f32.gmra.mrb[0].mxu0 %v3640
    %v3925 = vpop.f32.mrb[0].mxu0
    %v3926 = vadd.f32 0.0, %v3925
    %v3927 = vpop.f32.mrb[0].mxu0
    %3928 = vmatprep.mubr.f32.mxu0 0.0
    %3929 = vmatmul.mubr.f32.gmra.mrb[0].mxu0 %v3643
    %v3930 = vpop.f32.mrb[0].mxu0
    %v3931 = vadd.f32 0.0, %v3930
    %v3932 = vpop.f32.mrb[0].mxu0
    %3933 = vmatprep.mubr.f32.mxu0 0.0
    %3934 = vmatmul.mubr.f32.gmra.mrb[0].mxu0 %v3646
    %v3935 = vpop.f32.mrb[0].mxu0
    %v3936 = vadd.f32 0.0, %v3935
    %v3937 = vpop.f32.mrb[0].mxu0
    %3938 = vmatprep.mubr.f32.mxu0 0.0
    %3939 = vmatmul.mubr.f32.gmra.mrb[0].mxu0 %v3649
    %v3940 = vpop.f32.mrb[0].mxu0
    %v3941 = vadd.f32 0.0, %v3940
    %v3942 = vpop.f32.mrb[0].mxu0
    %3943 = vmatprep.mubr.f32.mxu0 0.0
    %3944 = vmatmul.mubr.f32.gmra.mrb[0].mxu0 %v3652
    %v3945 = vpop.f32.mrb[0].mxu0
    %v3946 = vadd.f32 0.0, %v3945
    %v3947 = vpop.f32.mrb[0].mxu0
    %3948 = vmatprep.mubr.f32.mxu0 0.0
    %3949 = vmatmul.mubr.f32.gmra.mrb[0].mxu0 %v3655
    %v3950 = vpop.f32.mrb[0].mxu0
    %v3951 = vadd.f32 0.0, %v3950
    %v3952 = vpop.f32.mrb[0].mxu0
    %3953 = vmatprep.mubr.f32.mxu0 0.0
    %3954 = vmatmul.mubr.f32.gmra.mrb[0].mxu0 %v3658
    %v3955 = vpop.f32.mrb[0].mxu0
    %v3956 = vadd.f32 0.0, %v3955
    %v3957 = vpop.f32.mrb[0].mxu0
    %3958 = vmatprep.mubr.f32.mxu0 0.0
    %3959 = vmatmul.mubr.f32.gmra.mrb[0].mxu0 %v3661
    %v3960 = vpop.f32.mrb[0].mxu0
    %v3961 = vadd.f32 0.0, %v3960
    %v3962 = vpop.f32.mrb[0].mxu0
    %3963 = vmatprep.mubr.f32.mxu0 0.0
    %3964 = vmatmul.mubr.f32.gmra.mrb[0].mxu0 %v3664
    %v3965 = vpop.f32.mrb[0].mxu0
    %v3966 = vadd.f32 0.0, %v3965
    %v3967 = vpop.f32.mrb[0].mxu0
    %3968 = vmatprep.mubr.f32.mxu0 0.0
    %3969 = vmatmul.mubr.f32.gmra.mrb[0].mxu0 %v3667
    %v3970 = vpop.f32.mrb[0].mxu0
    %v3971 = vadd.f32 0.0, %v3970
    %v3972 = vpop.f32.mrb[0].mxu0
    %3973 = vmatprep.mubr.f32.mxu0 0.0
    %3974 = vmatmul.mubr.f32.gmra.mrb[0].mxu0 %v3670
    %v3975 = vpop.f32.mrb[0].mxu0
    %v3976 = vadd.f32 0.0, %v3975
    %v3977 = vpop.f32.mrb[0].mxu0
    %3978 = vmatprep.mubr.f32.mxu0 0.0
    %3979 = vmatmul.mubr.f32.gmra.mrb[0].mxu0 %v3673
    %v3980 = vpop.f32.mrb[0].mxu0
    %v3981 = vadd.f32 0.0, %v3980
    %v3982 = vpop.f32.mrb[0].mxu0
    %3983 = vmatprep.mubr.f32.mxu0 0.0
    %3984 = vmatmul.mubr.f32.gmra.mrb[0].mxu0 %v3676
    %v3985 = vpop.f32.mrb[0].mxu0
    %v3986 = vadd.f32 0.0, %v3985
    %v3987 = vpop.f32.mrb[0].mxu0
    %3988 = vmatprep.mubr.f32.mxu0 0.0
    %3989 = vmatmul.mubr.f32.gmra.mrb[0].mxu0 %v3679
    %v3990 = vpop.f32.mrb[0].mxu0
    %v3991 = vadd.f32 0.0, %v3990
    %v3992 = vpop.f32.mrb[0].mxu0
    %3993 = vmatprep.mubr.f32.mxu0 0.0
    %3994 = vmatmul.mubr.f32.gmra.mrb[0].mxu0 %v3682
    %v3995 = vpop.f32.mrb[0].mxu0
    %v3996 = vadd.f32 0.0, %v3995
    %v3997 = vpop.f32.mrb[0].mxu0
    %3998 = vmatprep.mubr.f32.mxu0 0.0
    %3999 = vmatmul.mubr.f32.gmra.mrb[0].mxu0 %v3685
    %v4000 = vpop.f32.mrb[0].mxu0
    %v4001 = vadd.f32 0.0, %v4000
    %v4002 = vpop.f32.mrb[0].mxu0
    %4003 = vmatprep.mubr.f32.mxu0 0.0
    %4004 = vmatmul.mubr.f32.gmra.mrb[0].mxu0 %v3688
    %v4005 = vpop.f32.mrb[0].mxu0
    %v4006 = vadd.f32 0.0, %v4005
    %v4007 = vpop.f32.mrb[0].mxu0
    %4008 = vmatprep.mubr.f32.mxu0 0.0
    %4009 = vmatmul.mubr.f32.gmra.mrb[0].mxu0 %v3691
    %v4010 = vpop.f32.mrb[0].mxu0
    %v4011 = vadd.f32 0.0, %v4010
    %v4012 = vpop.f32.mrb[0].mxu0
    %4013 = vmatprep.mubr.f32.mxu0 0.0
    %4014 = vmatmul.mubr.f32.gmra.mrb[0].mxu0 %v3694
    %v4015 = vpop.f32.mrb[0].mxu0
    %v4016 = vadd.f32 0.0, %v4015
    %v4017 = vpop.f32.mrb[0].mxu0
    %4018 = vmatprep.mubr.f32.mxu0 0.0
    %4019 = vmatmul.mubr.f32.gmra.mrb[0].mxu0 %v3697
    %v4020 = vpop.f32.mrb[0].mxu0
    %v4021 = vadd.f32 0.0, %v4020
    %v4022 = vpop.f32.mrb[0].mxu0
    %4023 = vmatprep.mubr.f32.mxu0 0.0
    %4024 = vmatmul.mubr.f32.gmra.mrb[0].mxu0 %v3700
    %v4025 = vpop.f32.mrb[0].mxu0
    %v4026 = vadd.f32 0.0, %v4025
    %v4027 = vpop.f32.mrb[0].mxu0
    %4028 = vmatprep.mubr.f32.mxu0 0.0
    %4029 = vmatmul.mubr.f32.gmra.mrb[0].mxu0 %v3703
    %v4030 = vpop.f32.mrb[0].mxu0
    %v4031 = vadd.f32 0.0, %v4030
    %v4032 = vpop.f32.mrb[0].mxu0
    %4033 = vmatprep.mubr.f32.mxu0 0.0
    %4034 = vmatmul.mubr.f32.gmra.mrb[0].mxu0 %v3706
    %v4035 = vpop.f32.mrb[0].mxu0
    %v4036 = vadd.f32 0.0, %v4035
    %v4037 = vpop.f32.mrb[0].mxu0
    %4038 = vmatprep.mubr.f32.mxu0 0.0
    %4039 = vmatmul.mubr.f32.gmra.mrb[0].mxu0 %v3709
    %v4040 = vpop.f32.mrb[0].mxu0
    %v4041 = vadd.f32 0.0, %v4040
    %v4042 = vpop.f32.mrb[0].mxu0
    %4043 = vmatprep.mubr.f32.mxu0 0.0
    %4044 = vmatmul.mubr.f32.gmra.mrb[0].mxu0 %v3712
    %v4045 = vpop.f32.mrb[0].mxu0
    %v4046 = vadd.f32 0.0, %v4045
    %v4047 = vpop.f32.mrb[0].mxu0
    %4048 = vmatprep.mubr.f32.mxu0 0.0
    %4049 = vmatmul.mubr.f32.gmra.mrb[0].mxu0 %v3715
    %v4050 = vpop.f32.mrb[0].mxu0
    %v4051 = vadd.f32 0.0, %v4050
    %v4052 = vpop.f32.mrb[0].mxu0
    %4053 = vmatprep.mubr.f32.mxu0 0.0
    %4054 = vmatmul.mubr.f32.gmra.mrb[0].mxu0 %v3718
    %v4055 = vpop.f32.mrb[0].mxu0
    %v4056 = vadd.f32 0.0, %v4055
    %v4057 = vpop.f32.mrb[0].mxu0
    %4058 = vmatprep.mubr.f32.mxu0 0.0
    %4059 = vmatmul.mubr.f32.gmra.mrb[0].mxu0 %v3721
    %v4060 = vpop.f32.mrb[0].mxu0
    %v4061 = vadd.f32 0.0, %v4060
    %v4062 = vpop.f32.mrb[0].mxu0
    %4063 = vmatprep.mubr.f32.mxu0 0.0
    %4064 = vmatmul.mubr.f32.gmra.mrb[0].mxu0 %v3724
    %v4065 = vpop.f32.mrb[0].mxu0
    %v4066 = vadd.f32 0.0, %v4065
    %v4067 = vpop.f32.mrb[0].mxu0
    %4068 = vmatprep.mubr.f32.mxu0 0.0
    %4069 = vmatmul.mubr.f32.gmra.mrb[0].mxu0 %v3727
    %v4070 = vpop.f32.mrb[0].mxu0
    %v4071 = vadd.f32 0.0, %v4070
    %v4072 = vpop.f32.mrb[0].mxu0
    %4073 = vmatprep.mubr.f32.mxu0 0.0
    %4074 = vmatmul.mubr.f32.gmra.mrb[0].mxu0 %v3730
    %v4075 = vpop.f32.mrb[0].mxu0
    %v4076 = vadd.f32 0.0, %v4075
    %v4077 = vpop.f32.mrb[0].mxu0
    %4078 = vmatprep.mubr.f32.mxu0 0.0
    %4079 = vmatmul.mubr.f32.gmra.mrb[0].mxu0 %v3733
    %v4080 = vpop.f32.mrb[0].mxu0
    %v4081 = vadd.f32 0.0, %v4080
    %v4082 = vpop.f32.mrb[0].mxu0
    %4083 = vmatprep.mubr.f32.mxu0 0.0
    %4084 = vmatmul.mubr.f32.gmra.mrb[0].mxu0 %v3736
    %v4085 = vpop.f32.mrb[0].mxu0
    %v4086 = vadd.f32 0.0, %v4085
    %v4087 = vpop.f32.mrb[0].mxu0
    %4088 = vmatprep.mubr.f32.mxu0 0.0
    %4089 = vmatmul.mubr.f32.gmra.mrb[0].mxu0 %v3739
    %v4090 = vpop.f32.mrb[0].mxu0
    %v4091 = vadd.f32 0.0, %v4090
    %v4092 = vpop.f32.mrb[0].mxu0
    %4093 = vmatprep.mubr.f32.mxu0 0.0
    %4094 = vmatmul.mubr.f32.gmra.mrb[0].mxu0 %v3742
    %v4095 = vpop.f32.mrb[0].mxu0
    %v4096 = vadd.f32 0.0, %v4095
    %v4097 = vpop.f32.mrb[0].mxu0
    %4098 = vmatprep.mubr.f32.mxu0 0.0
    %4099 = vmatmul.mubr.f32.gmra.mrb[0].mxu0 %v3745
    %v4100 = vpop.f32.mrb[0].mxu0
    %v4101 = vadd.f32 0.0, %v4100
    %v4102 = vpop.f32.mrb[0].mxu0
    %4103 = vmatprep.mubr.f32.mxu0 0.0
    %4104 = vmatmul.mubr.f32.gmra.mrb[0].mxu0 %v3748
    %v4105 = vpop.f32.mrb[0].mxu0
    %v4106 = vadd.f32 0.0, %v4105
    %v4107 = vpop.f32.mrb[0].mxu0
    %4108 = vmatprep.mubr.f32.mxu0 0.0
    %4109 = vmatmul.mubr.f32.gmra.mrb[0].mxu0 %v3751
    %v4110 = vpop.f32.mrb[0].mxu0
    %v4111 = vadd.f32 0.0, %v4110
    %v4112 = vpop.f32.mrb[0].mxu0
    %4113 = vmatprep.mubr.f32.mxu0 0.0
    %4114 = vmatmul.mubr.f32.gmra.mrb[0].mxu0 %v3754
    %v4115 = vpop.f32.mrb[0].mxu0
    %v4116 = vadd.f32 0.0, %v4115
    %v4117 = vpop.f32.mrb[0].mxu0
    %4118 = vmatprep.mubr.f32.mxu0 0.0
    %4119 = vmatmul.mubr.f32.gmra.mrb[0].mxu0 %v3757
    %v4120 = vpop.f32.mrb[0].mxu0
    %v4121 = vadd.f32 0.0, %v4120
    %v4122 = vpop.f32.mrb[0].mxu0
    %4123 = vmatprep.mubr.f32.mxu0 0.0
    %4124 = vmatmul.mubr.f32.gmra.mrb[0].mxu0 %v3760
    %v4125 = vpop.f32.mrb[0].mxu0
    %v4126 = vadd.f32 0.0, %v4125
    %v4127 = vpop.f32.mrb[0].mxu0
    %4128 = vmatprep.mubr.f32.mxu0 0.0
    %4129 = vmatmul.mubr.f32.gmra.mrb[0].mxu0 %v3763
    %v4130 = vpop.f32.mrb[0].mxu0
    %v4131 = vadd.f32 0.0, %v4130
    %v4132 = vpop.f32.mrb[0].mxu0
    %4133 = vmatprep.mubr.f32.mxu0 0.0
    %4134 = vmatmul.mubr.f32.gmra.mrb[0].mxu0 %v3766
    %v4135 = vpop.f32.mrb[0].mxu0
    %v4136 = vadd.f32 0.0, %v4135
    %v4137 = vpop.f32.mrb[0].mxu0
    %4138 = vmatprep.mubr.f32.mxu0 0.0
    %4139 = vmatmul.mubr.f32.gmra.mrb[0].mxu0 %v3769
    %v4140 = vpop.f32.mrb[0].mxu0
    %v4141 = vadd.f32 0.0, %v4140
    %v4142 = vpop.f32.mrb[0].mxu0
    %4143 = vmatprep.mubr.f32.mxu0 0.0
    %4144 = vmatmul.mubr.f32.gmra.mrb[0].mxu0 %v3772
    %v4145 = vpop.f32.mrb[0].mxu0
    %v4146 = vadd.f32 0.0, %v4145
    %v4147 = vpop.f32.mrb[0].mxu0
    %4148 = vmatprep.mubr.f32.mxu0 0.0
    %4149 = vmatmul.mubr.f32.gmra.mrb[0].mxu0 %v3775
    %v4150 = vpop.f32.mrb[0].mxu0
    %v4151 = vadd.f32 0.0, %v4150
    %v4152 = vpop.f32.mrb[0].mxu0
    %4153 = vmatprep.mubr.f32.mxu0 0.0
    %4154 = vmatmul.mubr.f32.gmra.mrb[0].mxu0 %v3778
    %v4155 = vpop.f32.mrb[0].mxu0
    %v4156 = vadd.f32 0.0, %v4155
    %v4157 = vpop.f32.mrb[0].mxu0
    %4158 = vmatprep.mubr.f32.mxu0 0.0
    %4159 = vmatmul.mubr.f32.gmra.mrb[0].mxu0 %v3781
    %v4160 = vpop.f32.mrb[0].mxu0
    %v4161 = vadd.f32 0.0, %v4160
    %v4162 = vpop.f32.mrb[0].mxu0
    %4163 = vmatprep.mubr.f32.mxu0 0.0
    %4164 = vmatmul.mubr.f32.gmra.mrb[0].mxu0 %v3784
    %v4165 = vpop.f32.mrb[0].mxu0
    %v4166 = vadd.f32 0.0, %v4165
    %v4167 = vpop.f32.mrb[0].mxu0
    %4168 = vmatprep.mubr.f32.mxu0 0.0
    %4169 = vmatmul.mubr.f32.gmra.mrb[0].mxu0 %v3787
    %v4170 = vpop.f32.mrb[0].mxu0
    %v4171 = vadd.f32 0.0, %v4170
    %v4172 = vpop.f32.mrb[0].mxu0
    %4173 = vdwg.mxu0
    %v4174 = vadd.f32 %v3464, %v3856
    %v4175 = vadd.f32 %v3465, %v3861
    %v4176 = vadd.f32 %v3466, %v3866
    %v4177 = vadd.f32 %v3467, %v3871
    %v4178 = vadd.f32 %v3468, %v3876
    %v4179 = vadd.f32 %v3469, %v3881
    %v4180 = vadd.f32 %v3470, %v3886
    %v4181 = vadd.f32 %v3471, %v3891
    %v4182 = vadd.f32 %v3472, %v3896
    %v4183 = vadd.f32 %v3473, %v3901
    %v4184 = vadd.f32 %v3474, %v3906
    %v4185 = vadd.f32 %v3475, %v3911
    %v4186 = vadd.f32 %v3476, %v3916
    %v4187 = vadd.f32 %v3477, %v3921
    %v4188 = vadd.f32 %v3478, %v3926
    %v4189 = vadd.f32 %v3479, %v3931
    %v4190 = vadd.f32 %v3480, %v3936
    %v4191 = vadd.f32 %v3481, %v3941
    %v4192 = vadd.f32 %v3482, %v3946
    %v4193 = vadd.f32 %v3483, %v3951
    %v4194 = vadd.f32 %v3484, %v3956
    %v4195 = vadd.f32 %v3485, %v3961
    %v4196 = vadd.f32 %v3486, %v3966
    %v4197 = vadd.f32 %v3487, %v3971
    %v4198 = vadd.f32 %v3488, %v3976
    %v4199 = vadd.f32 %v3489, %v3981
    %v4200 = vadd.f32 %v3490, %v3986
    %v4201 = vadd.f32 %v3491, %v3991
    %v4202 = vadd.f32 %v3492, %v3996
    %v4203 = vadd.f32 %v3493, %v4001
    %v4204 = vadd.f32 %v3494, %v4006
    %v4205 = vadd.f32 %v3495, %v4011
    %v4206 = vadd.f32 %v3496, %v4016
    %v4207 = vadd.f32 %v3497, %v4021
    %v4208 = vadd.f32 %v3498, %v4026
    %v4209 = vadd.f32 %v3499, %v4031
    %v4210 = vadd.f32 %v3500, %v4036
    %v4211 = vadd.f32 %v3501, %v4041
    %v4212 = vadd.f32 %v3502, %v4046
    %v4213 = vadd.f32 %v3503, %v4051
    %v4214 = vadd.f32 %v3504, %v4056
    %v4215 = vadd.f32 %v3505, %v4061
    %v4216 = vadd.f32 %v3506, %v4066
    %v4217 = vadd.f32 %v3507, %v4071
    %v4218 = vadd.f32 %v3508, %v4076
    %v4219 = vadd.f32 %v3509, %v4081
    %v4220 = vadd.f32 %v3510, %v4086
    %v4221 = vadd.f32 %v3511, %v4091
    %v4222 = vadd.f32 %v3512, %v4096
    %v4223 = vadd.f32 %v3513, %v4101
    %v4224 = vadd.f32 %v3514, %v4106
    %v4225 = vadd.f32 %v3515, %v4111
    %v4226 = vadd.f32 %v3516, %v4116
    %v4227 = vadd.f32 %v3517, %v4121
    %v4228 = vadd.f32 %v3518, %v4126
    %v4229 = vadd.f32 %v3519, %v4131
    %v4230 = vadd.f32 %v3520, %v4136
    %v4231 = vadd.f32 %v3521, %v4141
    %v4232 = vadd.f32 %v3522, %v4146
    %v4233 = vadd.f32 %v3523, %v4151
    %v4234 = vadd.f32 %v3524, %v4156
    %v4235 = vadd.f32 %v3525, %v4161
    %v4236 = vadd.f32 %v3526, %v4166
    %v4237 = vadd.f32 %v3527, %v4171
    %v4238 = vld [vmem:[%s1333 + $0x1] sm:$0xff]
    %v4239 = vld [vmem:[%s1333 + $0x11] sm:$0xff]
    %v4240 = vld [vmem:[%s1333 + $0x21] sm:$0xff]
    %v4241 = vld [vmem:[%s1333 + $0x31] sm:$0xff]
    %v4242 = vld [vmem:[%s1333 + $0x41] sm:$0xff]
    %v4243 = vld [vmem:[%s1333 + $0x51] sm:$0xff]
    %v4244 = vld [vmem:[%s1333 + $0x61] sm:$0xff]
    %v4245 = vld [vmem:[%s1333 + $0x71] sm:$0xff]
    %v4246 = vld [vmem:[%s1333 + $0xa1] sm:$0xff]
    %v4247 = vld [vmem:[%s1333 + $0xb1] sm:$0xff]
    %v4248 = vld [vmem:[%s1333 + $0xc1] sm:$0xff]
    %v4249 = vld [vmem:[%s1333 + $0xd1] sm:$0xff]
    %v4250 = vld [vmem:[%s1333 + $0xe1] sm:$0xff]
    %v4251 = vld [vmem:[%s1333 + $0xf1] sm:$0xff]
    %v4252 = vld [vmem:[%s1333 + $0x101] sm:$0xff]
    %v4253 = vld [vmem:[%s1333 + $0x111] sm:$0xff]
    %v4254 = vld [vmem:[%s1333 + $0x141] sm:$0xff]
    %v4255 = vld [vmem:[%s1333 + $0x151] sm:$0xff]
    %v4256 = vld [vmem:[%s1333 + $0x161] sm:$0xff]
    %v4257 = vld [vmem:[%s1333 + $0x171] sm:$0xff]
    %v4258 = vld [vmem:[%s1333 + $0x181] sm:$0xff]
    %v4259 = vld [vmem:[%s1333 + $0x191] sm:$0xff]
    %v4260 = vld [vmem:[%s1333 + $0x1a1] sm:$0xff]
    %v4261 = vld [vmem:[%s1333 + $0x1b1] sm:$0xff]
    %v4262 = vld [vmem:[%s1333 + $0x1e1] sm:$0xff]
    %v4263 = vld [vmem:[%s1333 + $0x1f1] sm:$0xff]
    %v4264 = vld [vmem:[%s1333 + $0x201] sm:$0xff]
    %v4265 = vld [vmem:[%s1333 + $0x211] sm:$0xff]
    %v4266 = vld [vmem:[%s1333 + $0x221] sm:$0xff]
    %v4267 = vld [vmem:[%s1333 + $0x231] sm:$0xff]
    %v4268 = vld [vmem:[%s1333 + $0x241] sm:$0xff]
    %v4269 = vld [vmem:[%s1333 + $0x251] sm:$0xff]
    %v4270 = vld [vmem:[%s1333 + $0x281] sm:$0xff]
    %v4271 = vld [vmem:[%s1333 + $0x291] sm:$0xff]
    %v4272 = vld [vmem:[%s1333 + $0x2a1] sm:$0xff]
    %v4273 = vld [vmem:[%s1333 + $0x2b1] sm:$0xff]
    %v4274 = vld [vmem:[%s1333 + $0x2c1] sm:$0xff]
    %v4275 = vld [vmem:[%s1333 + $0x2d1] sm:$0xff]
    %v4276 = vld [vmem:[%s1333 + $0x2e1] sm:$0xff]
    %v4277 = vld [vmem:[%s1333 + $0x2f1] sm:$0xff]
    %v4278 = vld [vmem:[%s1333 + $0x321] sm:$0xff]
    %v4279 = vld [vmem:[%s1333 + $0x331] sm:$0xff]
    %v4280 = vld [vmem:[%s1333 + $0x341] sm:$0xff]
    %v4281 = vld [vmem:[%s1333 + $0x351] sm:$0xff]
    %v4282 = vld [vmem:[%s1333 + $0x361] sm:$0xff]
    %v4283 = vld [vmem:[%s1333 + $0x371] sm:$0xff]
    %v4284 = vld [vmem:[%s1333 + $0x381] sm:$0xff]
    %v4285 = vld [vmem:[%s1333 + $0x391] sm:$0xff]
    %v4286 = vld [vmem:[%s1333 + $0x3c1] sm:$0xff]
    %v4287 = vld [vmem:[%s1333 + $0x3d1] sm:$0xff]
    %v4288 = vld [vmem:[%s1333 + $0x3e1] sm:$0xff]
    %v4289 = vld [vmem:[%s1333 + $0x3f1] sm:$0xff]
    %v4290 = vld [vmem:[%s1333 + $0x401] sm:$0xff]
    %v4291 = vld [vmem:[%s1333 + $0x411] sm:$0xff]
    %v4292 = vld [vmem:[%s1333 + $0x421] sm:$0xff]
    %v4293 = vld [vmem:[%s1333 + $0x431] sm:$0xff]
    %v4294 = vld [vmem:[%s1333 + $0x461] sm:$0xff]
    %v4295 = vld [vmem:[%s1333 + $0x471] sm:$0xff]
    %v4296 = vld [vmem:[%s1333 + $0x481] sm:$0xff]
    %v4297 = vld [vmem:[%s1333 + $0x491] sm:$0xff]
    %v4298 = vld [vmem:[%s1333 + $0x4a1] sm:$0xff]
    %v4299 = vld [vmem:[%s1333 + $0x4b1] sm:$0xff]
    %v4300 = vld [vmem:[%s1333 + $0x4c1] sm:$0xff]
    %v4301 = vld [vmem:[%s1333 + $0x4d1] sm:$0xff]
    %s4302 = scalar_lea.vmem %s5, 128
    %v4303 = vld [vmem:[%s4302] sm:$0xff]
    %v4304 = vld [vmem:[%s4302 + $0x8] sm:$0xff]
    %v4305 = vld [vmem:[%s4302 + $0x10] sm:$0xff]
    %v4306 = vld [vmem:[%s4302 + $0x18] sm:$0xff]
    %v4308 = vsel %vm717, %v4238, 0
    %v4311 = vsel %vm717, %v4239, 0
    %v4314 = vsel %vm717, %v4240, 0
    %v4317 = vsel %vm717, %v4241, 0
    %v4320 = vsel %vm717, %v4242, 0
    %v4323 = vsel %vm717, %v4243, 0
    %v4326 = vsel %vm717, %v4244, 0
    %v4329 = vsel %vm717, %v4245, 0
    %v4332 = vsel %vm717, %v4246, 0
    %v4335 = vsel %vm717, %v4247, 0
    %v4338 = vsel %vm717, %v4248, 0
    %v4341 = vsel %vm717, %v4249, 0
    %v4344 = vsel %vm717, %v4250, 0
    %v4347 = vsel %vm717, %v4251, 0
    %v4350 = vsel %vm717, %v4252, 0
    %v4353 = vsel %vm717, %v4253, 0
    %v4356 = vsel %vm717, %v4254, 0
    %v4359 = vsel %vm717, %v4255, 0
    %v4362 = vsel %vm717, %v4256, 0
    %v4365 = vsel %vm717, %v4257, 0
    %v4368 = vsel %vm717, %v4258, 0
    %v4371 = vsel %vm717, %v4259, 0
    %v4374 = vsel %vm717, %v4260, 0
    %v4377 = vsel %vm717, %v4261, 0
    %v4380 = vsel %vm717, %v4262, 0
    %v4383 = vsel %vm717, %v4263, 0
    %v4386 = vsel %vm717, %v4264, 0
    %v4389 = vsel %vm717, %v4265, 0
    %v4392 = vsel %vm717, %v4266, 0
    %v4395 = vsel %vm717, %v4267, 0
    %v4398 = vsel %vm717, %v4268, 0
    %v4401 = vsel %vm717, %v4269, 0
    %v4404 = vsel %vm717, %v4270, 0
    %v4407 = vsel %vm717, %v4271, 0
    %v4410 = vsel %vm717, %v4272, 0
    %v4413 = vsel %vm717, %v4273, 0
    %v4416 = vsel %vm717, %v4274, 0
    %v4419 = vsel %vm717, %v4275, 0
    %v4422 = vsel %vm717, %v4276, 0
    %v4425 = vsel %vm717, %v4277, 0
    %v4428 = vsel %vm717, %v4278, 0
    %v4431 = vsel %vm717, %v4279, 0
    %v4434 = vsel %vm717, %v4280, 0
    %v4437 = vsel %vm717, %v4281, 0
    %v4440 = vsel %vm717, %v4282, 0
    %v4443 = vsel %vm717, %v4283, 0
    %v4446 = vsel %vm717, %v4284, 0
    %v4449 = vsel %vm717, %v4285, 0
    %v4452 = vsel %vm717, %v4286, 0
    %v4455 = vsel %vm717, %v4287, 0
    %v4458 = vsel %vm717, %v4288, 0
    %v4461 = vsel %vm717, %v4289, 0
    %v4464 = vsel %vm717, %v4290, 0
    %v4467 = vsel %vm717, %v4291, 0
    %v4470 = vsel %vm717, %v4292, 0
    %v4473 = vsel %vm717, %v4293, 0
    %v4476 = vsel %vm717, %v4294, 0
    %v4479 = vsel %vm717, %v4295, 0
    %v4482 = vsel %vm717, %v4296, 0
    %v4485 = vsel %vm717, %v4297, 0
    %v4488 = vsel %vm717, %v4298, 0
    %v4491 = vsel %vm717, %v4299, 0
    %v4494 = vsel %vm717, %v4300, 0
    %v4497 = vsel %vm717, %v4301, 0
    %4499 = vmatprep.subr.mxu0 0.0
    %4500 = vmatpush1.msra.mxu0 %v4303
    %4501 = vmatprep.subr.mxu0 0.0
    %4502 = vmatpush1.msra.mxu0 %v4304
    %4503 = vmatprep.subr.mxu0 0.0
    %4504 = vmatpush1.msra.mxu0 %v4305
    %4505 = vmatprep.subr.mxu0 0.0
    %4506 = vmatpush1.msra.mxu0 %v4306
    %4507 = vmatprep.subr.mxu0 0.0
    %4508 = vmatpush1.msra.mxu0 0.0
    %4509 = vmatprep.subr.mxu0 0.0
    %4510 = vmatpush1.msra.mxu0 0.0
    %4511 = vmatprep.subr.mxu0 0.0
    %4512 = vmatpush1.msra.mxu0 0.0
    %4513 = vmatprep.subr.mxu0 0.0
    %4514 = vmatpush1.msra.mxu0 0.0
    %4515 = vmatprep.subr.mxu0 0.0
    %4516 = vmatpush1.msra.mxu0 0.0
    %4517 = vmatprep.subr.mxu0 0.0
    %4518 = vmatpush1.msra.mxu0 0.0
    %4519 = vmatprep.subr.mxu0 0.0
    %4520 = vmatpush1.msra.mxu0 0.0
    %4521 = vmatprep.subr.mxu0 0.0
    %4522 = vmatpush1.msra.mxu0 0.0
    %4523 = vmatprep.subr.mxu0 0.0
    %4524 = vmatpush1.msra.mxu0 0.0
    %4525 = vmatprep.subr.mxu0 0.0
    %4526 = vmatpush1.msra.mxu0 0.0
    %4527 = vmatprep.subr.mxu0 0.0
    %4528 = vmatpush1.msra.mxu0 0.0
    %4529 = vmatprep.subr.mxu0 0.0
    %4530 = vmatpush1.msra.mxu0 0.0
    %4531 = vmatprep.subr.mxu0 0.0
    %4532 = vmatpush1.msra.mxu0 0.0
    %4533 = vmatprep.subr.mxu0 0.0
    %4534 = vmatpush1.msra.mxu0 0.0
    %4535 = vmatprep.subr.mxu0 0.0
    %4536 = vmatpush1.msra.mxu0 0.0
    %4537 = vmatprep.subr.mxu0 0.0
    %4538 = vmatpush1.msra.mxu0 0.0
    %4539 = vmatprep.subr.mxu0 0.0
    %4540 = vmatpush1.msra.mxu0 0.0
    %4541 = vmatprep.subr.mxu0 0.0
    %4542 = vmatpush1.msra.mxu0 0.0
    %4543 = vmatprep.subr.mxu0 0.0
    %4544 = vmatpush1.msra.mxu0 0.0
    %4545 = vmatprep.subr.mxu0 0.0
    %4546 = vmatpush1.msra.mxu0 0.0
    %4547 = vmatprep.subr.mxu0 0.0
    %4548 = vmatpush1.msra.mxu0 0.0
    %4549 = vmatprep.subr.mxu0 0.0
    %4550 = vmatpush1.msra.mxu0 0.0
    %4551 = vmatprep.subr.mxu0 0.0
    %4552 = vmatpush1.msra.mxu0 0.0
    %4553 = vmatprep.subr.mxu0 0.0
    %4554 = vmatpush1.msra.mxu0 0.0
    %4555 = vmatprep.subr.mxu0 0.0
    %4556 = vmatpush1.msra.mxu0 0.0
    %4557 = vmatprep.subr.mxu0 0.0
    %4558 = vmatpush1.msra.mxu0 0.0
    %4559 = vmatprep.subr.mxu0 0.0
    %4560 = vmatpush1.msra.mxu0 0.0
    %4561 = vmatprep.subr.mxu0 0.0
    %4562 = vmatpush1.msra.mxu0 0.0
    %4563 = vmatprep.mubr.f32.mxu0 0.0
    %4564 = vmatmul.mubr.f32.gmra.mrb[0].mxu0 %v4308
    %v4565 = vpop.f32.mrb[0].mxu0
    %v4566 = vadd.f32 0.0, %v4565
    %v4567 = vpop.f32.mrb[0].mxu0
    %4568 = vmatprep.mubr.f32.mxu0 0.0
    %4569 = vmatmul.mubr.f32.gmra.mrb[0].mxu0 %v4311
    %v4570 = vpop.f32.mrb[0].mxu0
    %v4571 = vadd.f32 0.0, %v4570
    %v4572 = vpop.f32.mrb[0].mxu0
    %4573 = vmatprep.mubr.f32.mxu0 0.0
    %4574 = vmatmul.mubr.f32.gmra.mrb[0].mxu0 %v4314
    %v4575 = vpop.f32.mrb[0].mxu0
    %v4576 = vadd.f32 0.0, %v4575
    %v4577 = vpop.f32.mrb[0].mxu0
    %4578 = vmatprep.mubr.f32.mxu0 0.0
    %4579 = vmatmul.mubr.f32.gmra.mrb[0].mxu0 %v4317
    %v4580 = vpop.f32.mrb[0].mxu0
    %v4581 = vadd.f32 0.0, %v4580
    %v4582 = vpop.f32.mrb[0].mxu0
    %4583 = vmatprep.mubr.f32.mxu0 0.0
    %4584 = vmatmul.mubr.f32.gmra.mrb[0].mxu0 %v4320
    %v4585 = vpop.f32.mrb[0].mxu0
    %v4586 = vadd.f32 0.0, %v4585
    %v4587 = vpop.f32.mrb[0].mxu0
    %4588 = vmatprep.mubr.f32.mxu0 0.0
    %4589 = vmatmul.mubr.f32.gmra.mrb[0].mxu0 %v4323
    %v4590 = vpop.f32.mrb[0].mxu0
    %v4591 = vadd.f32 0.0, %v4590
    %v4592 = vpop.f32.mrb[0].mxu0
    %4593 = vmatprep.mubr.f32.mxu0 0.0
    %4594 = vmatmul.mubr.f32.gmra.mrb[0].mxu0 %v4326
    %v4595 = vpop.f32.mrb[0].mxu0
    %v4596 = vadd.f32 0.0, %v4595
    %v4597 = vpop.f32.mrb[0].mxu0
    %4598 = vmatprep.mubr.f32.mxu0 0.0
    %4599 = vmatmul.mubr.f32.gmra.mrb[0].mxu0 %v4329
    %v4600 = vpop.f32.mrb[0].mxu0
    %v4601 = vadd.f32 0.0, %v4600
    %v4602 = vpop.f32.mrb[0].mxu0
    %4603 = vmatprep.mubr.f32.mxu0 0.0
    %4604 = vmatmul.mubr.f32.gmra.mrb[0].mxu0 %v4332
    %v4605 = vpop.f32.mrb[0].mxu0
    %v4606 = vadd.f32 0.0, %v4605
    %v4607 = vpop.f32.mrb[0].mxu0
    %4608 = vmatprep.mubr.f32.mxu0 0.0
    %4609 = vmatmul.mubr.f32.gmra.mrb[0].mxu0 %v4335
    %v4610 = vpop.f32.mrb[0].mxu0
    %v4611 = vadd.f32 0.0, %v4610
    %v4612 = vpop.f32.mrb[0].mxu0
    %4613 = vmatprep.mubr.f32.mxu0 0.0
    %4614 = vmatmul.mubr.f32.gmra.mrb[0].mxu0 %v4338
    %v4615 = vpop.f32.mrb[0].mxu0
    %v4616 = vadd.f32 0.0, %v4615
    %v4617 = vpop.f32.mrb[0].mxu0
    %4618 = vmatprep.mubr.f32.mxu0 0.0
    %4619 = vmatmul.mubr.f32.gmra.mrb[0].mxu0 %v4341
    %v4620 = vpop.f32.mrb[0].mxu0
    %v4621 = vadd.f32 0.0, %v4620
    %v4622 = vpop.f32.mrb[0].mxu0
    %4623 = vmatprep.mubr.f32.mxu0 0.0
    %4624 = vmatmul.mubr.f32.gmra.mrb[0].mxu0 %v4344
    %v4625 = vpop.f32.mrb[0].mxu0
    %v4626 = vadd.f32 0.0, %v4625
    %v4627 = vpop.f32.mrb[0].mxu0
    %4628 = vmatprep.mubr.f32.mxu0 0.0
    %4629 = vmatmul.mubr.f32.gmra.mrb[0].mxu0 %v4347
    %v4630 = vpop.f32.mrb[0].mxu0
    %v4631 = vadd.f32 0.0, %v4630
    %v4632 = vpop.f32.mrb[0].mxu0
    %4633 = vmatprep.mubr.f32.mxu0 0.0
    %4634 = vmatmul.mubr.f32.gmra.mrb[0].mxu0 %v4350
    %v4635 = vpop.f32.mrb[0].mxu0
    %v4636 = vadd.f32 0.0, %v4635
    %v4637 = vpop.f32.mrb[0].mxu0
    %4638 = vmatprep.mubr.f32.mxu0 0.0
    %4639 = vmatmul.mubr.f32.gmra.mrb[0].mxu0 %v4353
    %v4640 = vpop.f32.mrb[0].mxu0
    %v4641 = vadd.f32 0.0, %v4640
    %v4642 = vpop.f32.mrb[0].mxu0
    %4643 = vmatprep.mubr.f32.mxu0 0.0
    %4644 = vmatmul.mubr.f32.gmra.mrb[0].mxu0 %v4356
    %v4645 = vpop.f32.mrb[0].mxu0
    %v4646 = vadd.f32 0.0, %v4645
    %v4647 = vpop.f32.mrb[0].mxu0
    %4648 = vmatprep.mubr.f32.mxu0 0.0
    %4649 = vmatmul.mubr.f32.gmra.mrb[0].mxu0 %v4359
    %v4650 = vpop.f32.mrb[0].mxu0
    %v4651 = vadd.f32 0.0, %v4650
    %v4652 = vpop.f32.mrb[0].mxu0
    %4653 = vmatprep.mubr.f32.mxu0 0.0
    %4654 = vmatmul.mubr.f32.gmra.mrb[0].mxu0 %v4362
    %v4655 = vpop.f32.mrb[0].mxu0
    %v4656 = vadd.f32 0.0, %v4655
    %v4657 = vpop.f32.mrb[0].mxu0
    %4658 = vmatprep.mubr.f32.mxu0 0.0
    %4659 = vmatmul.mubr.f32.gmra.mrb[0].mxu0 %v4365
    %v4660 = vpop.f32.mrb[0].mxu0
    %v4661 = vadd.f32 0.0, %v4660
    %v4662 = vpop.f32.mrb[0].mxu0
    %4663 = vmatprep.mubr.f32.mxu0 0.0
    %4664 = vmatmul.mubr.f32.gmra.mrb[0].mxu0 %v4368
    %v4665 = vpop.f32.mrb[0].mxu0
    %v4666 = vadd.f32 0.0, %v4665
    %v4667 = vpop.f32.mrb[0].mxu0
    %4668 = vmatprep.mubr.f32.mxu0 0.0
    %4669 = vmatmul.mubr.f32.gmra.mrb[0].mxu0 %v4371
    %v4670 = vpop.f32.mrb[0].mxu0
    %v4671 = vadd.f32 0.0, %v4670
    %v4672 = vpop.f32.mrb[0].mxu0
    %4673 = vmatprep.mubr.f32.mxu0 0.0
    %4674 = vmatmul.mubr.f32.gmra.mrb[0].mxu0 %v4374
    %v4675 = vpop.f32.mrb[0].mxu0
    %v4676 = vadd.f32 0.0, %v4675
    %v4677 = vpop.f32.mrb[0].mxu0
    %4678 = vmatprep.mubr.f32.mxu0 0.0
    %4679 = vmatmul.mubr.f32.gmra.mrb[0].mxu0 %v4377
    %v4680 = vpop.f32.mrb[0].mxu0
    %v4681 = vadd.f32 0.0, %v4680
    %v4682 = vpop.f32.mrb[0].mxu0
    %4683 = vmatprep.mubr.f32.mxu0 0.0
    %4684 = vmatmul.mubr.f32.gmra.mrb[0].mxu0 %v4380
    %v4685 = vpop.f32.mrb[0].mxu0
    %v4686 = vadd.f32 0.0, %v4685
    %v4687 = vpop.f32.mrb[0].mxu0
    %4688 = vmatprep.mubr.f32.mxu0 0.0
    %4689 = vmatmul.mubr.f32.gmra.mrb[0].mxu0 %v4383
    %v4690 = vpop.f32.mrb[0].mxu0
    %v4691 = vadd.f32 0.0, %v4690
    %v4692 = vpop.f32.mrb[0].mxu0
    %4693 = vmatprep.mubr.f32.mxu0 0.0
    %4694 = vmatmul.mubr.f32.gmra.mrb[0].mxu0 %v4386
    %v4695 = vpop.f32.mrb[0].mxu0
    %v4696 = vadd.f32 0.0, %v4695
    %v4697 = vpop.f32.mrb[0].mxu0
    %4698 = vmatprep.mubr.f32.mxu0 0.0
    %4699 = vmatmul.mubr.f32.gmra.mrb[0].mxu0 %v4389
    %v4700 = vpop.f32.mrb[0].mxu0
    %v4701 = vadd.f32 0.0, %v4700
    %v4702 = vpop.f32.mrb[0].mxu0
    %4703 = vmatprep.mubr.f32.mxu0 0.0
    %4704 = vmatmul.mubr.f32.gmra.mrb[0].mxu0 %v4392
    %v4705 = vpop.f32.mrb[0].mxu0
    %v4706 = vadd.f32 0.0, %v4705
    %v4707 = vpop.f32.mrb[0].mxu0
    %4708 = vmatprep.mubr.f32.mxu0 0.0
    %4709 = vmatmul.mubr.f32.gmra.mrb[0].mxu0 %v4395
    %v4710 = vpop.f32.mrb[0].mxu0
    %v4711 = vadd.f32 0.0, %v4710
    %v4712 = vpop.f32.mrb[0].mxu0
    %4713 = vmatprep.mubr.f32.mxu0 0.0
    %4714 = vmatmul.mubr.f32.gmra.mrb[0].mxu0 %v4398
    %v4715 = vpop.f32.mrb[0].mxu0
    %v4716 = vadd.f32 0.0, %v4715
    %v4717 = vpop.f32.mrb[0].mxu0
    %4718 = vmatprep.mubr.f32.mxu0 0.0
    %4719 = vmatmul.mubr.f32.gmra.mrb[0].mxu0 %v4401
    %v4720 = vpop.f32.mrb[0].mxu0
    %v4721 = vadd.f32 0.0, %v4720
    %v4722 = vpop.f32.mrb[0].mxu0
    %4723 = vmatprep.mubr.f32.mxu0 0.0
    %4724 = vmatmul.mubr.f32.gmra.mrb[0].mxu0 %v4404
    %v4725 = vpop.f32.mrb[0].mxu0
    %v4726 = vadd.f32 0.0, %v4725
    %v4727 = vpop.f32.mrb[0].mxu0
    %4728 = vmatprep.mubr.f32.mxu0 0.0
    %4729 = vmatmul.mubr.f32.gmra.mrb[0].mxu0 %v4407
    %v4730 = vpop.f32.mrb[0].mxu0
    %v4731 = vadd.f32 0.0, %v4730
    %v4732 = vpop.f32.mrb[0].mxu0
    %4733 = vmatprep.mubr.f32.mxu0 0.0
    %4734 = vmatmul.mubr.f32.gmra.mrb[0].mxu0 %v4410
    %v4735 = vpop.f32.mrb[0].mxu0
    %v4736 = vadd.f32 0.0, %v4735
    %v4737 = vpop.f32.mrb[0].mxu0
    %4738 = vmatprep.mubr.f32.mxu0 0.0
    %4739 = vmatmul.mubr.f32.gmra.mrb[0].mxu0 %v4413
    %v4740 = vpop.f32.mrb[0].mxu0
    %v4741 = vadd.f32 0.0, %v4740
    %v4742 = vpop.f32.mrb[0].mxu0
    %4743 = vmatprep.mubr.f32.mxu0 0.0
    %4744 = vmatmul.mubr.f32.gmra.mrb[0].mxu0 %v4416
    %v4745 = vpop.f32.mrb[0].mxu0
    %v4746 = vadd.f32 0.0, %v4745
    %v4747 = vpop.f32.mrb[0].mxu0
    %4748 = vmatprep.mubr.f32.mxu0 0.0
    %4749 = vmatmul.mubr.f32.gmra.mrb[0].mxu0 %v4419
    %v4750 = vpop.f32.mrb[0].mxu0
    %v4751 = vadd.f32 0.0, %v4750
    %v4752 = vpop.f32.mrb[0].mxu0
    %4753 = vmatprep.mubr.f32.mxu0 0.0
    %4754 = vmatmul.mubr.f32.gmra.mrb[0].mxu0 %v4422
    %v4755 = vpop.f32.mrb[0].mxu0
    %v4756 = vadd.f32 0.0, %v4755
    %v4757 = vpop.f32.mrb[0].mxu0
    %4758 = vmatprep.mubr.f32.mxu0 0.0
    %4759 = vmatmul.mubr.f32.gmra.mrb[0].mxu0 %v4425
    %v4760 = vpop.f32.mrb[0].mxu0
    %v4761 = vadd.f32 0.0, %v4760
    %v4762 = vpop.f32.mrb[0].mxu0
    %4763 = vmatprep.mubr.f32.mxu0 0.0
    %4764 = vmatmul.mubr.f32.gmra.mrb[0].mxu0 %v4428
    %v4765 = vpop.f32.mrb[0].mxu0
    %v4766 = vadd.f32 0.0, %v4765
    %v4767 = vpop.f32.mrb[0].mxu0
    %4768 = vmatprep.mubr.f32.mxu0 0.0
    %4769 = vmatmul.mubr.f32.gmra.mrb[0].mxu0 %v4431
    %v4770 = vpop.f32.mrb[0].mxu0
    %v4771 = vadd.f32 0.0, %v4770
    %v4772 = vpop.f32.mrb[0].mxu0
    %4773 = vmatprep.mubr.f32.mxu0 0.0
    %4774 = vmatmul.mubr.f32.gmra.mrb[0].mxu0 %v4434
    %v4775 = vpop.f32.mrb[0].mxu0
    %v4776 = vadd.f32 0.0, %v4775
    %v4777 = vpop.f32.mrb[0].mxu0
    %4778 = vmatprep.mubr.f32.mxu0 0.0
    %4779 = vmatmul.mubr.f32.gmra.mrb[0].mxu0 %v4437
    %v4780 = vpop.f32.mrb[0].mxu0
    %v4781 = vadd.f32 0.0, %v4780
    %v4782 = vpop.f32.mrb[0].mxu0
    %4783 = vmatprep.mubr.f32.mxu0 0.0
    %4784 = vmatmul.mubr.f32.gmra.mrb[0].mxu0 %v4440
    %v4785 = vpop.f32.mrb[0].mxu0
    %v4786 = vadd.f32 0.0, %v4785
    %v4787 = vpop.f32.mrb[0].mxu0
    %4788 = vmatprep.mubr.f32.mxu0 0.0
    %4789 = vmatmul.mubr.f32.gmra.mrb[0].mxu0 %v4443
    %v4790 = vpop.f32.mrb[0].mxu0
    %v4791 = vadd.f32 0.0, %v4790
    %v4792 = vpop.f32.mrb[0].mxu0
    %4793 = vmatprep.mubr.f32.mxu0 0.0
    %4794 = vmatmul.mubr.f32.gmra.mrb[0].mxu0 %v4446
    %v4795 = vpop.f32.mrb[0].mxu0
    %v4796 = vadd.f32 0.0, %v4795
    %v4797 = vpop.f32.mrb[0].mxu0
    %4798 = vmatprep.mubr.f32.mxu0 0.0
    %4799 = vmatmul.mubr.f32.gmra.mrb[0].mxu0 %v4449
    %v4800 = vpop.f32.mrb[0].mxu0
    %v4801 = vadd.f32 0.0, %v4800
    %v4802 = vpop.f32.mrb[0].mxu0
    %4803 = vmatprep.mubr.f32.mxu0 0.0
    %4804 = vmatmul.mubr.f32.gmra.mrb[0].mxu0 %v4452
    %v4805 = vpop.f32.mrb[0].mxu0
    %v4806 = vadd.f32 0.0, %v4805
    %v4807 = vpop.f32.mrb[0].mxu0
    %4808 = vmatprep.mubr.f32.mxu0 0.0
    %4809 = vmatmul.mubr.f32.gmra.mrb[0].mxu0 %v4455
    %v4810 = vpop.f32.mrb[0].mxu0
    %v4811 = vadd.f32 0.0, %v4810
    %v4812 = vpop.f32.mrb[0].mxu0
    %4813 = vmatprep.mubr.f32.mxu0 0.0
    %4814 = vmatmul.mubr.f32.gmra.mrb[0].mxu0 %v4458
    %v4815 = vpop.f32.mrb[0].mxu0
    %v4816 = vadd.f32 0.0, %v4815
    %v4817 = vpop.f32.mrb[0].mxu0
    %4818 = vmatprep.mubr.f32.mxu0 0.0
    %4819 = vmatmul.mubr.f32.gmra.mrb[0].mxu0 %v4461
    %v4820 = vpop.f32.mrb[0].mxu0
    %v4821 = vadd.f32 0.0, %v4820
    %v4822 = vpop.f32.mrb[0].mxu0
    %4823 = vmatprep.mubr.f32.mxu0 0.0
    %4824 = vmatmul.mubr.f32.gmra.mrb[0].mxu0 %v4464
    %v4825 = vpop.f32.mrb[0].mxu0
    %v4826 = vadd.f32 0.0, %v4825
    %v4827 = vpop.f32.mrb[0].mxu0
    %4828 = vmatprep.mubr.f32.mxu0 0.0
    %4829 = vmatmul.mubr.f32.gmra.mrb[0].mxu0 %v4467
    %v4830 = vpop.f32.mrb[0].mxu0
    %v4831 = vadd.f32 0.0, %v4830
    %v4832 = vpop.f32.mrb[0].mxu0
    %4833 = vmatprep.mubr.f32.mxu0 0.0
    %4834 = vmatmul.mubr.f32.gmra.mrb[0].mxu0 %v4470
    %v4835 = vpop.f32.mrb[0].mxu0
    %v4836 = vadd.f32 0.0, %v4835
    %v4837 = vpop.f32.mrb[0].mxu0
    %4838 = vmatprep.mubr.f32.mxu0 0.0
    %4839 = vmatmul.mubr.f32.gmra.mrb[0].mxu0 %v4473
    %v4840 = vpop.f32.mrb[0].mxu0
    %v4841 = vadd.f32 0.0, %v4840
    %v4842 = vpop.f32.mrb[0].mxu0
    %4843 = vmatprep.mubr.f32.mxu0 0.0
    %4844 = vmatmul.mubr.f32.gmra.mrb[0].mxu0 %v4476
    %v4845 = vpop.f32.mrb[0].mxu0
    %v4846 = vadd.f32 0.0, %v4845
    %v4847 = vpop.f32.mrb[0].mxu0
    %4848 = vmatprep.mubr.f32.mxu0 0.0
    %4849 = vmatmul.mubr.f32.gmra.mrb[0].mxu0 %v4479
    %v4850 = vpop.f32.mrb[0].mxu0
    %v4851 = vadd.f32 0.0, %v4850
    %v4852 = vpop.f32.mrb[0].mxu0
    %4853 = vmatprep.mubr.f32.mxu0 0.0
    %4854 = vmatmul.mubr.f32.gmra.mrb[0].mxu0 %v4482
    %v4855 = vpop.f32.mrb[0].mxu0
    %v4856 = vadd.f32 0.0, %v4855
    %v4857 = vpop.f32.mrb[0].mxu0
    %4858 = vmatprep.mubr.f32.mxu0 0.0
    %4859 = vmatmul.mubr.f32.gmra.mrb[0].mxu0 %v4485
    %v4860 = vpop.f32.mrb[0].mxu0
    %v4861 = vadd.f32 0.0, %v4860
    %v4862 = vpop.f32.mrb[0].mxu0
    %4863 = vmatprep.mubr.f32.mxu0 0.0
    %4864 = vmatmul.mubr.f32.gmra.mrb[0].mxu0 %v4488
    %v4865 = vpop.f32.mrb[0].mxu0
    %v4866 = vadd.f32 0.0, %v4865
    %v4867 = vpop.f32.mrb[0].mxu0
    %4868 = vmatprep.mubr.f32.mxu0 0.0
    %4869 = vmatmul.mubr.f32.gmra.mrb[0].mxu0 %v4491
    %v4870 = vpop.f32.mrb[0].mxu0
    %v4871 = vadd.f32 0.0, %v4870
    %v4872 = vpop.f32.mrb[0].mxu0
    %4873 = vmatprep.mubr.f32.mxu0 0.0
    %4874 = vmatmul.mubr.f32.gmra.mrb[0].mxu0 %v4494
    %v4875 = vpop.f32.mrb[0].mxu0
    %v4876 = vadd.f32 0.0, %v4875
    %v4877 = vpop.f32.mrb[0].mxu0
    %4878 = vmatprep.mubr.f32.mxu0 0.0
    %4879 = vmatmul.mubr.f32.gmra.mrb[0].mxu0 %v4497
    %v4880 = vpop.f32.mrb[0].mxu0
    %v4881 = vadd.f32 0.0, %v4880
    %v4882 = vpop.f32.mrb[0].mxu0
    %4883 = vdwg.mxu0
    %v4884 = vadd.f32 %v4174, %v4566
    %v4885 = vadd.f32 %v4175, %v4571
    %v4886 = vadd.f32 %v4176, %v4576
    %v4887 = vadd.f32 %v4177, %v4581
    %v4888 = vadd.f32 %v4178, %v4586
    %v4889 = vadd.f32 %v4179, %v4591
    %v4890 = vadd.f32 %v4180, %v4596
    %v4891 = vadd.f32 %v4181, %v4601
    %v4892 = vadd.f32 %v4182, %v4606
    %v4893 = vadd.f32 %v4183, %v4611
    %v4894 = vadd.f32 %v4184, %v4616
    %v4895 = vadd.f32 %v4185, %v4621
    %v4896 = vadd.f32 %v4186, %v4626
    %v4897 = vadd.f32 %v4187, %v4631
    %v4898 = vadd.f32 %v4188, %v4636
    %v4899 = vadd.f32 %v4189, %v4641
    %v4900 = vadd.f32 %v4190, %v4646
    %v4901 = vadd.f32 %v4191, %v4651
    %v4902 = vadd.f32 %v4192, %v4656
    %v4903 = vadd.f32 %v4193, %v4661
    %v4904 = vadd.f32 %v4194, %v4666
    %v4905 = vadd.f32 %v4195, %v4671
    %v4906 = vadd.f32 %v4196, %v4676
    %v4907 = vadd.f32 %v4197, %v4681
    %v4908 = vadd.f32 %v4198, %v4686
    %v4909 = vadd.f32 %v4199, %v4691
    %v4910 = vadd.f32 %v4200, %v4696
    %v4911 = vadd.f32 %v4201, %v4701
    %v4912 = vadd.f32 %v4202, %v4706
    %v4913 = vadd.f32 %v4203, %v4711
    %v4914 = vadd.f32 %v4204, %v4716
    %v4915 = vadd.f32 %v4205, %v4721
    %v4916 = vadd.f32 %v4206, %v4726
    %v4917 = vadd.f32 %v4207, %v4731
    %v4918 = vadd.f32 %v4208, %v4736
    %v4919 = vadd.f32 %v4209, %v4741
    %v4920 = vadd.f32 %v4210, %v4746
    %v4921 = vadd.f32 %v4211, %v4751
    %v4922 = vadd.f32 %v4212, %v4756
    %v4923 = vadd.f32 %v4213, %v4761
    %v4924 = vadd.f32 %v4214, %v4766
    %v4925 = vadd.f32 %v4215, %v4771
    %v4926 = vadd.f32 %v4216, %v4776
    %v4927 = vadd.f32 %v4217, %v4781
    %v4928 = vadd.f32 %v4218, %v4786
    %v4929 = vadd.f32 %v4219, %v4791
    %v4930 = vadd.f32 %v4220, %v4796
    %v4931 = vadd.f32 %v4221, %v4801
    %v4932 = vadd.f32 %v4222, %v4806
    %v4933 = vadd.f32 %v4223, %v4811
    %v4934 = vadd.f32 %v4224, %v4816
    %v4935 = vadd.f32 %v4225, %v4821
    %v4936 = vadd.f32 %v4226, %v4826
    %v4937 = vadd.f32 %v4227, %v4831
    %v4938 = vadd.f32 %v4228, %v4836
    %v4939 = vadd.f32 %v4229, %v4841
    %v4940 = vadd.f32 %v4230, %v4846
    %v4941 = vadd.f32 %v4231, %v4851
    %v4942 = vadd.f32 %v4232, %v4856
    %v4943 = vadd.f32 %v4233, %v4861
    %v4944 = vadd.f32 %v4234, %v4866
    %v4945 = vadd.f32 %v4235, %v4871
    %v4946 = vadd.f32 %v4236, %v4876
    %v4947 = vadd.f32 %v4237, %v4881
    %v4948 = vld [vmem:[%s1333 + $0x2] sm:$0xff]
    %v4949 = vld [vmem:[%s1333 + $0x12] sm:$0xff]
    %v4950 = vld [vmem:[%s1333 + $0x22] sm:$0xff]
    %v4951 = vld [vmem:[%s1333 + $0x32] sm:$0xff]
    %v4952 = vld [vmem:[%s1333 + $0x42] sm:$0xff]
    %v4953 = vld [vmem:[%s1333 + $0x52] sm:$0xff]
    %v4954 = vld [vmem:[%s1333 + $0x62] sm:$0xff]
    %v4955 = vld [vmem:[%s1333 + $0x72] sm:$0xff]
    %v4956 = vld [vmem:[%s1333 + $0xa2] sm:$0xff]
    %v4957 = vld [vmem:[%s1333 + $0xb2] sm:$0xff]
    %v4958 = vld [vmem:[%s1333 + $0xc2] sm:$0xff]
    %v4959 = vld [vmem:[%s1333 + $0xd2] sm:$0xff]
    %v4960 = vld [vmem:[%s1333 + $0xe2] sm:$0xff]
    %v4961 = vld [vmem:[%s1333 + $0xf2] sm:$0xff]
    %v4962 = vld [vmem:[%s1333 + $0x102] sm:$0xff]
    %v4963 = vld [vmem:[%s1333 + $0x112] sm:$0xff]
    %v4964 = vld [vmem:[%s1333 + $0x142] sm:$0xff]
    %v4965 = vld [vmem:[%s1333 + $0x152] sm:$0xff]
    %v4966 = vld [vmem:[%s1333 + $0x162] sm:$0xff]
    %v4967 = vld [vmem:[%s1333 + $0x172] sm:$0xff]
    %v4968 = vld [vmem:[%s1333 + $0x182] sm:$0xff]
    %v4969 = vld [vmem:[%s1333 + $0x192] sm:$0xff]
    %v4970 = vld [vmem:[%s1333 + $0x1a2] sm:$0xff]
    %v4971 = vld [vmem:[%s1333 + $0x1b2] sm:$0xff]
    %v4972 = vld [vmem:[%s1333 + $0x1e2] sm:$0xff]
    %v4973 = vld [vmem:[%s1333 + $0x1f2] sm:$0xff]
    %v4974 = vld [vmem:[%s1333 + $0x202] sm:$0xff]
    %v4975 = vld [vmem:[%s1333 + $0x212] sm:$0xff]
    %v4976 = vld [vmem:[%s1333 + $0x222] sm:$0xff]
    %v4977 = vld [vmem:[%s1333 + $0x232] sm:$0xff]
    %v4978 = vld [vmem:[%s1333 + $0x242] sm:$0xff]
    %v4979 = vld [vmem:[%s1333 + $0x252] sm:$0xff]
    %v4980 = vld [vmem:[%s1333 + $0x282] sm:$0xff]
    %v4981 = vld [vmem:[%s1333 + $0x292] sm:$0xff]
    %v4982 = vld [vmem:[%s1333 + $0x2a2] sm:$0xff]
    %v4983 = vld [vmem:[%s1333 + $0x2b2] sm:$0xff]
    %v4984 = vld [vmem:[%s1333 + $0x2c2] sm:$0xff]
    %v4985 = vld [vmem:[%s1333 + $0x2d2] sm:$0xff]
    %v4986 = vld [vmem:[%s1333 + $0x2e2] sm:$0xff]
    %v4987 = vld [vmem:[%s1333 + $0x2f2] sm:$0xff]
    %v4988 = vld [vmem:[%s1333 + $0x322] sm:$0xff]
    %v4989 = vld [vmem:[%s1333 + $0x332] sm:$0xff]
    %v4990 = vld [vmem:[%s1333 + $0x342] sm:$0xff]
    %v4991 = vld [vmem:[%s1333 + $0x352] sm:$0xff]
    %v4992 = vld [vmem:[%s1333 + $0x362] sm:$0xff]
    %v4993 = vld [vmem:[%s1333 + $0x372] sm:$0xff]
    %v4994 = vld [vmem:[%s1333 + $0x382] sm:$0xff]
    %v4995 = vld [vmem:[%s1333 + $0x392] sm:$0xff]
    %v4996 = vld [vmem:[%s1333 + $0x3c2] sm:$0xff]
    %v4997 = vld [vmem:[%s1333 + $0x3d2] sm:$0xff]
    %v4998 = vld [vmem:[%s1333 + $0x3e2] sm:$0xff]
    %v4999 = vld [vmem:[%s1333 + $0x3f2] sm:$0xff]
    %v5000 = vld [vmem:[%s1333 + $0x402] sm:$0xff]
    %v5001 = vld [vmem:[%s1333 + $0x412] sm:$0xff]
    %v5002 = vld [vmem:[%s1333 + $0x422] sm:$0xff]
    %v5003 = vld [vmem:[%s1333 + $0x432] sm:$0xff]
    %v5004 = vld [vmem:[%s1333 + $0x462] sm:$0xff]
    %v5005 = vld [vmem:[%s1333 + $0x472] sm:$0xff]
    %v5006 = vld [vmem:[%s1333 + $0x482] sm:$0xff]
    %v5007 = vld [vmem:[%s1333 + $0x492] sm:$0xff]
    %v5008 = vld [vmem:[%s1333 + $0x4a2] sm:$0xff]
    %v5009 = vld [vmem:[%s1333 + $0x4b2] sm:$0xff]
    %v5010 = vld [vmem:[%s1333 + $0x4c2] sm:$0xff]
    %v5011 = vld [vmem:[%s1333 + $0x4d2] sm:$0xff]
    %s5012 = scalar_lea.vmem %s5, 160
    %v5013 = vld [vmem:[%s5012] sm:$0xff]
    %v5014 = vld [vmem:[%s5012 + $0x8] sm:$0xff]
    %v5015 = vld [vmem:[%s5012 + $0x10] sm:$0xff]
    %v5016 = vld [vmem:[%s5012 + $0x18] sm:$0xff]
    %v5018 = vsel %vm717, %v4948, 0
    %v5021 = vsel %vm717, %v4949, 0
    %v5024 = vsel %vm717, %v4950, 0
    %v5027 = vsel %vm717, %v4951, 0
    %v5030 = vsel %vm717, %v4952, 0
    %v5033 = vsel %vm717, %v4953, 0
    %v5036 = vsel %vm717, %v4954, 0
    %v5039 = vsel %vm717, %v4955, 0
    %v5042 = vsel %vm717, %v4956, 0
    %v5045 = vsel %vm717, %v4957, 0
    %v5048 = vsel %vm717, %v4958, 0
    %v5051 = vsel %vm717, %v4959, 0
    %v5054 = vsel %vm717, %v4960, 0
    %v5057 = vsel %vm717, %v4961, 0
    %v5060 = vsel %vm717, %v4962, 0
    %v5063 = vsel %vm717, %v4963, 0
    %v5066 = vsel %vm717, %v4964, 0
    %v5069 = vsel %vm717, %v4965, 0
    %v5072 = vsel %vm717, %v4966, 0
    %v5075 = vsel %vm717, %v4967, 0
    %v5078 = vsel %vm717, %v4968, 0
    %v5081 = vsel %vm717, %v4969, 0
    %v5084 = vsel %vm717, %v4970, 0
    %v5087 = vsel %vm717, %v4971, 0
    %v5090 = vsel %vm717, %v4972, 0
    %v5093 = vsel %vm717, %v4973, 0
    %v5096 = vsel %vm717, %v4974, 0
    %v5099 = vsel %vm717, %v4975, 0
    %v5102 = vsel %vm717, %v4976, 0
    %v5105 = vsel %vm717, %v4977, 0
    %v5108 = vsel %vm717, %v4978, 0
    %v5111 = vsel %vm717, %v4979, 0
    %v5114 = vsel %vm717, %v4980, 0
    %v5117 = vsel %vm717, %v4981, 0
    %v5120 = vsel %vm717, %v4982, 0
    %v5123 = vsel %vm717, %v4983, 0
    %v5126 = vsel %vm717, %v4984, 0
    %v5129 = vsel %vm717, %v4985, 0
    %v5132 = vsel %vm717, %v4986, 0
    %v5135 = vsel %vm717, %v4987, 0
    %v5138 = vsel %vm717, %v4988, 0
    %v5141 = vsel %vm717, %v4989, 0
    %v5144 = vsel %vm717, %v4990, 0
    %v5147 = vsel %vm717, %v4991, 0
    %v5150 = vsel %vm717, %v4992, 0
    %v5153 = vsel %vm717, %v4993, 0
    %v5156 = vsel %vm717, %v4994, 0
    %v5159 = vsel %vm717, %v4995, 0
    %v5162 = vsel %vm717, %v4996, 0
    %v5165 = vsel %vm717, %v4997, 0
    %v5168 = vsel %vm717, %v4998, 0
    %v5171 = vsel %vm717, %v4999, 0
    %v5174 = vsel %vm717, %v5000, 0
    %v5177 = vsel %vm717, %v5001, 0
    %v5180 = vsel %vm717, %v5002, 0
    %v5183 = vsel %vm717, %v5003, 0
    %v5186 = vsel %vm717, %v5004, 0
    %v5189 = vsel %vm717, %v5005, 0
    %v5192 = vsel %vm717, %v5006, 0
    %v5195 = vsel %vm717, %v5007, 0
    %v5198 = vsel %vm717, %v5008, 0
    %v5201 = vsel %vm717, %v5009, 0
    %v5204 = vsel %vm717, %v5010, 0
    %v5207 = vsel %vm717, %v5011, 0
    %5209 = vmatprep.subr.mxu0 0.0
    %5210 = vmatpush1.msra.mxu0 %v5013
    %5211 = vmatprep.subr.mxu0 0.0
    %5212 = vmatpush1.msra.mxu0 %v5014
    %5213 = vmatprep.subr.mxu0 0.0
    %5214 = vmatpush1.msra.mxu0 %v5015
    %5215 = vmatprep.subr.mxu0 0.0
    %5216 = vmatpush1.msra.mxu0 %v5016
    %5217 = vmatprep.subr.mxu0 0.0
    %5218 = vmatpush1.msra.mxu0 0.0
    %5219 = vmatprep.subr.mxu0 0.0
    %5220 = vmatpush1.msra.mxu0 0.0
    %5221 = vmatprep.subr.mxu0 0.0
    %5222 = vmatpush1.msra.mxu0 0.0
    %5223 = vmatprep.subr.mxu0 0.0
    %5224 = vmatpush1.msra.mxu0 0.0
    %5225 = vmatprep.subr.mxu0 0.0
    %5226 = vmatpush1.msra.mxu0 0.0
    %5227 = vmatprep.subr.mxu0 0.0
    %5228 = vmatpush1.msra.mxu0 0.0
    %5229 = vmatprep.subr.mxu0 0.0
    %5230 = vmatpush1.msra.mxu0 0.0
    %5231 = vmatprep.subr.mxu0 0.0
    %5232 = vmatpush1.msra.mxu0 0.0
    %5233 = vmatprep.subr.mxu0 0.0
    %5234 = vmatpush1.msra.mxu0 0.0
    %5235 = vmatprep.subr.mxu0 0.0
    %5236 = vmatpush1.msra.mxu0 0.0
    %5237 = vmatprep.subr.mxu0 0.0
    %5238 = vmatpush1.msra.mxu0 0.0
    %5239 = vmatprep.subr.mxu0 0.0
    %5240 = vmatpush1.msra.mxu0 0.0
    %5241 = vmatprep.subr.mxu0 0.0
    %5242 = vmatpush1.msra.mxu0 0.0
    %5243 = vmatprep.subr.mxu0 0.0
    %5244 = vmatpush1.msra.mxu0 0.0
    %5245 = vmatprep.subr.mxu0 0.0
    %5246 = vmatpush1.msra.mxu0 0.0
    %5247 = vmatprep.subr.mxu0 0.0
    %5248 = vmatpush1.msra.mxu0 0.0
    %5249 = vmatprep.subr.mxu0 0.0
    %5250 = vmatpush1.msra.mxu0 0.0
    %5251 = vmatprep.subr.mxu0 0.0
    %5252 = vmatpush1.msra.mxu0 0.0
    %5253 = vmatprep.subr.mxu0 0.0
    %5254 = vmatpush1.msra.mxu0 0.0
    %5255 = vmatprep.subr.mxu0 0.0
    %5256 = vmatpush1.msra.mxu0 0.0
    %5257 = vmatprep.subr.mxu0 0.0
    %5258 = vmatpush1.msra.mxu0 0.0
    %5259 = vmatprep.subr.mxu0 0.0
    %5260 = vmatpush1.msra.mxu0 0.0
    %5261 = vmatprep.subr.mxu0 0.0
    %5262 = vmatpush1.msra.mxu0 0.0
    %5263 = vmatprep.subr.mxu0 0.0
    %5264 = vmatpush1.msra.mxu0 0.0
    %5265 = vmatprep.subr.mxu0 0.0
    %5266 = vmatpush1.msra.mxu0 0.0
    %5267 = vmatprep.subr.mxu0 0.0
    %5268 = vmatpush1.msra.mxu0 0.0
    %5269 = vmatprep.subr.mxu0 0.0
    %5270 = vmatpush1.msra.mxu0 0.0
    %5271 = vmatprep.subr.mxu0 0.0
    %5272 = vmatpush1.msra.mxu0 0.0
    %5273 = vmatprep.mubr.f32.mxu0 0.0
    %5274 = vmatmul.mubr.f32.gmra.mrb[0].mxu0 %v5018
    %v5275 = vpop.f32.mrb[0].mxu0
    %v5276 = vadd.f32 0.0, %v5275
    %v5277 = vpop.f32.mrb[0].mxu0
    %5278 = vmatprep.mubr.f32.mxu0 0.0
    %5279 = vmatmul.mubr.f32.gmra.mrb[0].mxu0 %v5021
    %v5280 = vpop.f32.mrb[0].mxu0
    %v5281 = vadd.f32 0.0, %v5280
    %v5282 = vpop.f32.mrb[0].mxu0
    %5283 = vmatprep.mubr.f32.mxu0 0.0
    %5284 = vmatmul.mubr.f32.gmra.mrb[0].mxu0 %v5024
    %v5285 = vpop.f32.mrb[0].mxu0
    %v5286 = vadd.f32 0.0, %v5285
    %v5287 = vpop.f32.mrb[0].mxu0
    %5288 = vmatprep.mubr.f32.mxu0 0.0
    %5289 = vmatmul.mubr.f32.gmra.mrb[0].mxu0 %v5027
    %v5290 = vpop.f32.mrb[0].mxu0
    %v5291 = vadd.f32 0.0, %v5290
    %v5292 = vpop.f32.mrb[0].mxu0
    %5293 = vmatprep.mubr.f32.mxu0 0.0
    %5294 = vmatmul.mubr.f32.gmra.mrb[0].mxu0 %v5030
    %v5295 = vpop.f32.mrb[0].mxu0
    %v5296 = vadd.f32 0.0, %v5295
    %v5297 = vpop.f32.mrb[0].mxu0
    %5298 = vmatprep.mubr.f32.mxu0 0.0
    %5299 = vmatmul.mubr.f32.gmra.mrb[0].mxu0 %v5033
    %v5300 = vpop.f32.mrb[0].mxu0
    %v5301 = vadd.f32 0.0, %v5300
    %v5302 = vpop.f32.mrb[0].mxu0
    %5303 = vmatprep.mubr.f32.mxu0 0.0
    %5304 = vmatmul.mubr.f32.gmra.mrb[0].mxu0 %v5036
    %v5305 = vpop.f32.mrb[0].mxu0
    %v5306 = vadd.f32 0.0, %v5305
    %v5307 = vpop.f32.mrb[0].mxu0
    %5308 = vmatprep.mubr.f32.mxu0 0.0
    %5309 = vmatmul.mubr.f32.gmra.mrb[0].mxu0 %v5039
    %v5310 = vpop.f32.mrb[0].mxu0
    %v5311 = vadd.f32 0.0, %v5310
    %v5312 = vpop.f32.mrb[0].mxu0
    %5313 = vmatprep.mubr.f32.mxu0 0.0
    %5314 = vmatmul.mubr.f32.gmra.mrb[0].mxu0 %v5042
    %v5315 = vpop.f32.mrb[0].mxu0
    %v5316 = vadd.f32 0.0, %v5315
    %v5317 = vpop.f32.mrb[0].mxu0
    %5318 = vmatprep.mubr.f32.mxu0 0.0
    %5319 = vmatmul.mubr.f32.gmra.mrb[0].mxu0 %v5045
    %v5320 = vpop.f32.mrb[0].mxu0
    %v5321 = vadd.f32 0.0, %v5320
    %v5322 = vpop.f32.mrb[0].mxu0
    %5323 = vmatprep.mubr.f32.mxu0 0.0
    %5324 = vmatmul.mubr.f32.gmra.mrb[0].mxu0 %v5048
    %v5325 = vpop.f32.mrb[0].mxu0
    %v5326 = vadd.f32 0.0, %v5325
    %v5327 = vpop.f32.mrb[0].mxu0
    %5328 = vmatprep.mubr.f32.mxu0 0.0
    %5329 = vmatmul.mubr.f32.gmra.mrb[0].mxu0 %v5051
    %v5330 = vpop.f32.mrb[0].mxu0
    %v5331 = vadd.f32 0.0, %v5330
    %v5332 = vpop.f32.mrb[0].mxu0
    %5333 = vmatprep.mubr.f32.mxu0 0.0
    %5334 = vmatmul.mubr.f32.gmra.mrb[0].mxu0 %v5054
    %v5335 = vpop.f32.mrb[0].mxu0
    %v5336 = vadd.f32 0.0, %v5335
    %v5337 = vpop.f32.mrb[0].mxu0
    %5338 = vmatprep.mubr.f32.mxu0 0.0
    %5339 = vmatmul.mubr.f32.gmra.mrb[0].mxu0 %v5057
    %v5340 = vpop.f32.mrb[0].mxu0
    %v5341 = vadd.f32 0.0, %v5340
    %v5342 = vpop.f32.mrb[0].mxu0
    %5343 = vmatprep.mubr.f32.mxu0 0.0
    %5344 = vmatmul.mubr.f32.gmra.mrb[0].mxu0 %v5060
    %v5345 = vpop.f32.mrb[0].mxu0
    %v5346 = vadd.f32 0.0, %v5345
    %v5347 = vpop.f32.mrb[0].mxu0
    %5348 = vmatprep.mubr.f32.mxu0 0.0
    %5349 = vmatmul.mubr.f32.gmra.mrb[0].mxu0 %v5063
    %v5350 = vpop.f32.mrb[0].mxu0
    %v5351 = vadd.f32 0.0, %v5350
    %v5352 = vpop.f32.mrb[0].mxu0
    %5353 = vmatprep.mubr.f32.mxu0 0.0
    %5354 = vmatmul.mubr.f32.gmra.mrb[0].mxu0 %v5066
    %v5355 = vpop.f32.mrb[0].mxu0
    %v5356 = vadd.f32 0.0, %v5355
    %v5357 = vpop.f32.mrb[0].mxu0
    %5358 = vmatprep.mubr.f32.mxu0 0.0
    %5359 = vmatmul.mubr.f32.gmra.mrb[0].mxu0 %v5069
    %v5360 = vpop.f32.mrb[0].mxu0
    %v5361 = vadd.f32 0.0, %v5360
    %v5362 = vpop.f32.mrb[0].mxu0
    %5363 = vmatprep.mubr.f32.mxu0 0.0
    %5364 = vmatmul.mubr.f32.gmra.mrb[0].mxu0 %v5072
    %v5365 = vpop.f32.mrb[0].mxu0
    %v5366 = vadd.f32 0.0, %v5365
    %v5367 = vpop.f32.mrb[0].mxu0
    %5368 = vmatprep.mubr.f32.mxu0 0.0
    %5369 = vmatmul.mubr.f32.gmra.mrb[0].mxu0 %v5075
    %v5370 = vpop.f32.mrb[0].mxu0
    %v5371 = vadd.f32 0.0, %v5370
    %v5372 = vpop.f32.mrb[0].mxu0
    %5373 = vmatprep.mubr.f32.mxu0 0.0
    %5374 = vmatmul.mubr.f32.gmra.mrb[0].mxu0 %v5078
    %v5375 = vpop.f32.mrb[0].mxu0
    %v5376 = vadd.f32 0.0, %v5375
    %v5377 = vpop.f32.mrb[0].mxu0
    %5378 = vmatprep.mubr.f32.mxu0 0.0
    %5379 = vmatmul.mubr.f32.gmra.mrb[0].mxu0 %v5081
    %v5380 = vpop.f32.mrb[0].mxu0
    %v5381 = vadd.f32 0.0, %v5380
    %v5382 = vpop.f32.mrb[0].mxu0
    %5383 = vmatprep.mubr.f32.mxu0 0.0
    %5384 = vmatmul.mubr.f32.gmra.mrb[0].mxu0 %v5084
    %v5385 = vpop.f32.mrb[0].mxu0
    %v5386 = vadd.f32 0.0, %v5385
    %v5387 = vpop.f32.mrb[0].mxu0
    %5388 = vmatprep.mubr.f32.mxu0 0.0
    %5389 = vmatmul.mubr.f32.gmra.mrb[0].mxu0 %v5087
    %v5390 = vpop.f32.mrb[0].mxu0
    %v5391 = vadd.f32 0.0, %v5390
    %v5392 = vpop.f32.mrb[0].mxu0
    %5393 = vmatprep.mubr.f32.mxu0 0.0
    %5394 = vmatmul.mubr.f32.gmra.mrb[0].mxu0 %v5090
    %v5395 = vpop.f32.mrb[0].mxu0
    %v5396 = vadd.f32 0.0, %v5395
    %v5397 = vpop.f32.mrb[0].mxu0
    %5398 = vmatprep.mubr.f32.mxu0 0.0
    %5399 = vmatmul.mubr.f32.gmra.mrb[0].mxu0 %v5093
    %v5400 = vpop.f32.mrb[0].mxu0
    %v5401 = vadd.f32 0.0, %v5400
    %v5402 = vpop.f32.mrb[0].mxu0
    %5403 = vmatprep.mubr.f32.mxu0 0.0
    %5404 = vmatmul.mubr.f32.gmra.mrb[0].mxu0 %v5096
    %v5405 = vpop.f32.mrb[0].mxu0
    %v5406 = vadd.f32 0.0, %v5405
    %v5407 = vpop.f32.mrb[0].mxu0
    %5408 = vmatprep.mubr.f32.mxu0 0.0
    %5409 = vmatmul.mubr.f32.gmra.mrb[0].mxu0 %v5099
    %v5410 = vpop.f32.mrb[0].mxu0
    %v5411 = vadd.f32 0.0, %v5410
    %v5412 = vpop.f32.mrb[0].mxu0
    %5413 = vmatprep.mubr.f32.mxu0 0.0
    %5414 = vmatmul.mubr.f32.gmra.mrb[0].mxu0 %v5102
    %v5415 = vpop.f32.mrb[0].mxu0
    %v5416 = vadd.f32 0.0, %v5415
    %v5417 = vpop.f32.mrb[0].mxu0
    %5418 = vmatprep.mubr.f32.mxu0 0.0
    %5419 = vmatmul.mubr.f32.gmra.mrb[0].mxu0 %v5105
    %v5420 = vpop.f32.mrb[0].mxu0
    %v5421 = vadd.f32 0.0, %v5420
    %v5422 = vpop.f32.mrb[0].mxu0
    %5423 = vmatprep.mubr.f32.mxu0 0.0
    %5424 = vmatmul.mubr.f32.gmra.mrb[0].mxu0 %v5108
    %v5425 = vpop.f32.mrb[0].mxu0
    %v5426 = vadd.f32 0.0, %v5425
    %v5427 = vpop.f32.mrb[0].mxu0
    %5428 = vmatprep.mubr.f32.mxu0 0.0
    %5429 = vmatmul.mubr.f32.gmra.mrb[0].mxu0 %v5111
    %v5430 = vpop.f32.mrb[0].mxu0
    %v5431 = vadd.f32 0.0, %v5430
    %v5432 = vpop.f32.mrb[0].mxu0
    %5433 = vmatprep.mubr.f32.mxu0 0.0
    %5434 = vmatmul.mubr.f32.gmra.mrb[0].mxu0 %v5114
    %v5435 = vpop.f32.mrb[0].mxu0
    %v5436 = vadd.f32 0.0, %v5435
    %v5437 = vpop.f32.mrb[0].mxu0
    %5438 = vmatprep.mubr.f32.mxu0 0.0
    %5439 = vmatmul.mubr.f32.gmra.mrb[0].mxu0 %v5117
    %v5440 = vpop.f32.mrb[0].mxu0
    %v5441 = vadd.f32 0.0, %v5440
    %v5442 = vpop.f32.mrb[0].mxu0
    %5443 = vmatprep.mubr.f32.mxu0 0.0
    %5444 = vmatmul.mubr.f32.gmra.mrb[0].mxu0 %v5120
    %v5445 = vpop.f32.mrb[0].mxu0
    %v5446 = vadd.f32 0.0, %v5445
    %v5447 = vpop.f32.mrb[0].mxu0
    %5448 = vmatprep.mubr.f32.mxu0 0.0
    %5449 = vmatmul.mubr.f32.gmra.mrb[0].mxu0 %v5123
    %v5450 = vpop.f32.mrb[0].mxu0
    %v5451 = vadd.f32 0.0, %v5450
    %v5452 = vpop.f32.mrb[0].mxu0
    %5453 = vmatprep.mubr.f32.mxu0 0.0
    %5454 = vmatmul.mubr.f32.gmra.mrb[0].mxu0 %v5126
    %v5455 = vpop.f32.mrb[0].mxu0
    %v5456 = vadd.f32 0.0, %v5455
    %v5457 = vpop.f32.mrb[0].mxu0
    %5458 = vmatprep.mubr.f32.mxu0 0.0
    %5459 = vmatmul.mubr.f32.gmra.mrb[0].mxu0 %v5129
    %v5460 = vpop.f32.mrb[0].mxu0
    %v5461 = vadd.f32 0.0, %v5460
    %v5462 = vpop.f32.mrb[0].mxu0
    %5463 = vmatprep.mubr.f32.mxu0 0.0
    %5464 = vmatmul.mubr.f32.gmra.mrb[0].mxu0 %v5132
    %v5465 = vpop.f32.mrb[0].mxu0
    %v5466 = vadd.f32 0.0, %v5465
    %v5467 = vpop.f32.mrb[0].mxu0
    %5468 = vmatprep.mubr.f32.mxu0 0.0
    %5469 = vmatmul.mubr.f32.gmra.mrb[0].mxu0 %v5135
    %v5470 = vpop.f32.mrb[0].mxu0
    %v5471 = vadd.f32 0.0, %v5470
    %v5472 = vpop.f32.mrb[0].mxu0
    %5473 = vmatprep.mubr.f32.mxu0 0.0
    %5474 = vmatmul.mubr.f32.gmra.mrb[0].mxu0 %v5138
    %v5475 = vpop.f32.mrb[0].mxu0
    %v5476 = vadd.f32 0.0, %v5475
    %v5477 = vpop.f32.mrb[0].mxu0
    %5478 = vmatprep.mubr.f32.mxu0 0.0
    %5479 = vmatmul.mubr.f32.gmra.mrb[0].mxu0 %v5141
    %v5480 = vpop.f32.mrb[0].mxu0
    %v5481 = vadd.f32 0.0, %v5480
    %v5482 = vpop.f32.mrb[0].mxu0
    %5483 = vmatprep.mubr.f32.mxu0 0.0
    %5484 = vmatmul.mubr.f32.gmra.mrb[0].mxu0 %v5144
    %v5485 = vpop.f32.mrb[0].mxu0
    %v5486 = vadd.f32 0.0, %v5485
    %v5487 = vpop.f32.mrb[0].mxu0
    %5488 = vmatprep.mubr.f32.mxu0 0.0
    %5489 = vmatmul.mubr.f32.gmra.mrb[0].mxu0 %v5147
    %v5490 = vpop.f32.mrb[0].mxu0
    %v5491 = vadd.f32 0.0, %v5490
    %v5492 = vpop.f32.mrb[0].mxu0
    %5493 = vmatprep.mubr.f32.mxu0 0.0
    %5494 = vmatmul.mubr.f32.gmra.mrb[0].mxu0 %v5150
    %v5495 = vpop.f32.mrb[0].mxu0
    %v5496 = vadd.f32 0.0, %v5495
    %v5497 = vpop.f32.mrb[0].mxu0
    %5498 = vmatprep.mubr.f32.mxu0 0.0
    %5499 = vmatmul.mubr.f32.gmra.mrb[0].mxu0 %v5153
    %v5500 = vpop.f32.mrb[0].mxu0
    %v5501 = vadd.f32 0.0, %v5500
    %v5502 = vpop.f32.mrb[0].mxu0
    %5503 = vmatprep.mubr.f32.mxu0 0.0
    %5504 = vmatmul.mubr.f32.gmra.mrb[0].mxu0 %v5156
    %v5505 = vpop.f32.mrb[0].mxu0
    %v5506 = vadd.f32 0.0, %v5505
    %v5507 = vpop.f32.mrb[0].mxu0
    %5508 = vmatprep.mubr.f32.mxu0 0.0
    %5509 = vmatmul.mubr.f32.gmra.mrb[0].mxu0 %v5159
    %v5510 = vpop.f32.mrb[0].mxu0
    %v5511 = vadd.f32 0.0, %v5510
    %v5512 = vpop.f32.mrb[0].mxu0
    %5513 = vmatprep.mubr.f32.mxu0 0.0
    %5514 = vmatmul.mubr.f32.gmra.mrb[0].mxu0 %v5162
    %v5515 = vpop.f32.mrb[0].mxu0
    %v5516 = vadd.f32 0.0, %v5515
    %v5517 = vpop.f32.mrb[0].mxu0
    %5518 = vmatprep.mubr.f32.mxu0 0.0
    %5519 = vmatmul.mubr.f32.gmra.mrb[0].mxu0 %v5165
    %v5520 = vpop.f32.mrb[0].mxu0
    %v5521 = vadd.f32 0.0, %v5520
    %v5522 = vpop.f32.mrb[0].mxu0
    %5523 = vmatprep.mubr.f32.mxu0 0.0
    %5524 = vmatmul.mubr.f32.gmra.mrb[0].mxu0 %v5168
    %v5525 = vpop.f32.mrb[0].mxu0
    %v5526 = vadd.f32 0.0, %v5525
    %v5527 = vpop.f32.mrb[0].mxu0
    %5528 = vmatprep.mubr.f32.mxu0 0.0
    %5529 = vmatmul.mubr.f32.gmra.mrb[0].mxu0 %v5171
    %v5530 = vpop.f32.mrb[0].mxu0
    %v5531 = vadd.f32 0.0, %v5530
    %v5532 = vpop.f32.mrb[0].mxu0
    %5533 = vmatprep.mubr.f32.mxu0 0.0
    %5534 = vmatmul.mubr.f32.gmra.mrb[0].mxu0 %v5174
    %v5535 = vpop.f32.mrb[0].mxu0
    %v5536 = vadd.f32 0.0, %v5535
    %v5537 = vpop.f32.mrb[0].mxu0
    %5538 = vmatprep.mubr.f32.mxu0 0.0
    %5539 = vmatmul.mubr.f32.gmra.mrb[0].mxu0 %v5177
    %v5540 = vpop.f32.mrb[0].mxu0
    %v5541 = vadd.f32 0.0, %v5540
    %v5542 = vpop.f32.mrb[0].mxu0
    %5543 = vmatprep.mubr.f32.mxu0 0.0
    %5544 = vmatmul.mubr.f32.gmra.mrb[0].mxu0 %v5180
    %v5545 = vpop.f32.mrb[0].mxu0
    %v5546 = vadd.f32 0.0, %v5545
    %v5547 = vpop.f32.mrb[0].mxu0
    %5548 = vmatprep.mubr.f32.mxu0 0.0
    %5549 = vmatmul.mubr.f32.gmra.mrb[0].mxu0 %v5183
    %v5550 = vpop.f32.mrb[0].mxu0
    %v5551 = vadd.f32 0.0, %v5550
    %v5552 = vpop.f32.mrb[0].mxu0
    %5553 = vmatprep.mubr.f32.mxu0 0.0
    %5554 = vmatmul.mubr.f32.gmra.mrb[0].mxu0 %v5186
    %v5555 = vpop.f32.mrb[0].mxu0
    %v5556 = vadd.f32 0.0, %v5555
    %v5557 = vpop.f32.mrb[0].mxu0
    %5558 = vmatprep.mubr.f32.mxu0 0.0
    %5559 = vmatmul.mubr.f32.gmra.mrb[0].mxu0 %v5189
    %v5560 = vpop.f32.mrb[0].mxu0
    %v5561 = vadd.f32 0.0, %v5560
    %v5562 = vpop.f32.mrb[0].mxu0
    %5563 = vmatprep.mubr.f32.mxu0 0.0
    %5564 = vmatmul.mubr.f32.gmra.mrb[0].mxu0 %v5192
    %v5565 = vpop.f32.mrb[0].mxu0
    %v5566 = vadd.f32 0.0, %v5565
    %v5567 = vpop.f32.mrb[0].mxu0
    %5568 = vmatprep.mubr.f32.mxu0 0.0
    %5569 = vmatmul.mubr.f32.gmra.mrb[0].mxu0 %v5195
    %v5570 = vpop.f32.mrb[0].mxu0
    %v5571 = vadd.f32 0.0, %v5570
    %v5572 = vpop.f32.mrb[0].mxu0
    %5573 = vmatprep.mubr.f32.mxu0 0.0
    %5574 = vmatmul.mubr.f32.gmra.mrb[0].mxu0 %v5198
    %v5575 = vpop.f32.mrb[0].mxu0
    %v5576 = vadd.f32 0.0, %v5575
    %v5577 = vpop.f32.mrb[0].mxu0
    %5578 = vmatprep.mubr.f32.mxu0 0.0
    %5579 = vmatmul.mubr.f32.gmra.mrb[0].mxu0 %v5201
    %v5580 = vpop.f32.mrb[0].mxu0
    %v5581 = vadd.f32 0.0, %v5580
    %v5582 = vpop.f32.mrb[0].mxu0
    %5583 = vmatprep.mubr.f32.mxu0 0.0
    %5584 = vmatmul.mubr.f32.gmra.mrb[0].mxu0 %v5204
    %v5585 = vpop.f32.mrb[0].mxu0
    %v5586 = vadd.f32 0.0, %v5585
    %v5587 = vpop.f32.mrb[0].mxu0
    %5588 = vmatprep.mubr.f32.mxu0 0.0
    %5589 = vmatmul.mubr.f32.gmra.mrb[0].mxu0 %v5207
    %v5590 = vpop.f32.mrb[0].mxu0
    %v5591 = vadd.f32 0.0, %v5590
    %v5592 = vpop.f32.mrb[0].mxu0
    %5593 = vdwg.mxu0
    %v5594 = vadd.f32 %v4884, %v5276
    %v5595 = vadd.f32 %v4885, %v5281
    %v5596 = vadd.f32 %v4886, %v5286
    %v5597 = vadd.f32 %v4887, %v5291
    %v5598 = vadd.f32 %v4888, %v5296
    %v5599 = vadd.f32 %v4889, %v5301
    %v5600 = vadd.f32 %v4890, %v5306
    %v5601 = vadd.f32 %v4891, %v5311
    %v5602 = vadd.f32 %v4892, %v5316
    %v5603 = vadd.f32 %v4893, %v5321
    %v5604 = vadd.f32 %v4894, %v5326
    %v5605 = vadd.f32 %v4895, %v5331
    %v5606 = vadd.f32 %v4896, %v5336
    %v5607 = vadd.f32 %v4897, %v5341
    %v5608 = vadd.f32 %v4898, %v5346
    %v5609 = vadd.f32 %v4899, %v5351
    %v5610 = vadd.f32 %v4900, %v5356
    %v5611 = vadd.f32 %v4901, %v5361
    %v5612 = vadd.f32 %v4902, %v5366
    %v5613 = vadd.f32 %v4903, %v5371
    %v5614 = vadd.f32 %v4904, %v5376
    %v5615 = vadd.f32 %v4905, %v5381
    %v5616 = vadd.f32 %v4906, %v5386
    %v5617 = vadd.f32 %v4907, %v5391
    %v5618 = vadd.f32 %v4908, %v5396
    %v5619 = vadd.f32 %v4909, %v5401
    %v5620 = vadd.f32 %v4910, %v5406
    %v5621 = vadd.f32 %v4911, %v5411
    %v5622 = vadd.f32 %v4912, %v5416
    %v5623 = vadd.f32 %v4913, %v5421
    %v5624 = vadd.f32 %v4914, %v5426
    %v5625 = vadd.f32 %v4915, %v5431
    %v5626 = vadd.f32 %v4916, %v5436
    %v5627 = vadd.f32 %v4917, %v5441
    %v5628 = vadd.f32 %v4918, %v5446
    %v5629 = vadd.f32 %v4919, %v5451
    %v5630 = vadd.f32 %v4920, %v5456
    %v5631 = vadd.f32 %v4921, %v5461
    %v5632 = vadd.f32 %v4922, %v5466
    %v5633 = vadd.f32 %v4923, %v5471
    %v5634 = vadd.f32 %v4924, %v5476
    %v5635 = vadd.f32 %v4925, %v5481
    %v5636 = vadd.f32 %v4926, %v5486
    %v5637 = vadd.f32 %v4927, %v5491
    %v5638 = vadd.f32 %v4928, %v5496
    %v5639 = vadd.f32 %v4929, %v5501
    %v5640 = vadd.f32 %v4930, %v5506
    %v5641 = vadd.f32 %v4931, %v5511
    %v5642 = vadd.f32 %v4932, %v5516
    %v5643 = vadd.f32 %v4933, %v5521
    %v5644 = vadd.f32 %v4934, %v5526
    %v5645 = vadd.f32 %v4935, %v5531
    %v5646 = vadd.f32 %v4936, %v5536
    %v5647 = vadd.f32 %v4937, %v5541
    %v5648 = vadd.f32 %v4938, %v5546
    %v5649 = vadd.f32 %v4939, %v5551
    %v5650 = vadd.f32 %v4940, %v5556
    %v5651 = vadd.f32 %v4941, %v5561
    %v5652 = vadd.f32 %v4942, %v5566
    %v5653 = vadd.f32 %v4943, %v5571
    %v5654 = vadd.f32 %v4944, %v5576
    %v5655 = vadd.f32 %v4945, %v5581
    %v5656 = vadd.f32 %v4946, %v5586
    %v5657 = vadd.f32 %v4947, %v5591
    %s5658 = scalar_lea.vmem [#allocation2], 32
    %v5659 = vld [vmem:[%s5658] sm:$0xff]
    %v5660 = vld [vmem:[%s5658 + $0x10] sm:$0xff]
    %v5661 = vld [vmem:[%s5658 + $0x20] sm:$0xff]
    %v5662 = vld [vmem:[%s5658 + $0x30] sm:$0xff]
    %v5663 = vld [vmem:[%s5658 + $0x40] sm:$0xff]
    %v5664 = vld [vmem:[%s5658 + $0x50] sm:$0xff]
    %v5665 = vld [vmem:[%s5658 + $0x60] sm:$0xff]
    %v5666 = vld [vmem:[%s5658 + $0x70] sm:$0xff]
    %v5667 = vld [vmem:[%s5658 + $0xa0] sm:$0xff]
    %v5668 = vld [vmem:[%s5658 + $0xb0] sm:$0xff]
    %v5669 = vld [vmem:[%s5658 + $0xc0] sm:$0xff]
    %v5670 = vld [vmem:[%s5658 + $0xd0] sm:$0xff]
    %v5671 = vld [vmem:[%s5658 + $0xe0] sm:$0xff]
    %v5672 = vld [vmem:[%s5658 + $0xf0] sm:$0xff]
    %v5673 = vld [vmem:[%s5658 + $0x100] sm:$0xff]
    %v5674 = vld [vmem:[%s5658 + $0x110] sm:$0xff]
    %v5675 = vld [vmem:[%s5658 + $0x140] sm:$0xff]
    %v5676 = vld [vmem:[%s5658 + $0x150] sm:$0xff]
    %v5677 = vld [vmem:[%s5658 + $0x160] sm:$0xff]
    %v5678 = vld [vmem:[%s5658 + $0x170] sm:$0xff]
    %v5679 = vld [vmem:[%s5658 + $0x180] sm:$0xff]
    %v5680 = vld [vmem:[%s5658 + $0x190] sm:$0xff]
    %v5681 = vld [vmem:[%s5658 + $0x1a0] sm:$0xff]
    %v5682 = vld [vmem:[%s5658 + $0x1b0] sm:$0xff]
    %v5683 = vld [vmem:[%s5658 + $0x1e0] sm:$0xff]
    %v5684 = vld [vmem:[%s5658 + $0x1f0] sm:$0xff]
    %v5685 = vld [vmem:[%s5658 + $0x200] sm:$0xff]
    %v5686 = vld [vmem:[%s5658 + $0x210] sm:$0xff]
    %v5687 = vld [vmem:[%s5658 + $0x220] sm:$0xff]
    %v5688 = vld [vmem:[%s5658 + $0x230] sm:$0xff]
    %v5689 = vld [vmem:[%s5658 + $0x240] sm:$0xff]
    %v5690 = vld [vmem:[%s5658 + $0x250] sm:$0xff]
    %v5691 = vld [vmem:[%s5658 + $0x280] sm:$0xff]
    %v5692 = vld [vmem:[%s5658 + $0x290] sm:$0xff]
    %v5693 = vld [vmem:[%s5658 + $0x2a0] sm:$0xff]
    %v5694 = vld [vmem:[%s5658 + $0x2b0] sm:$0xff]
    %v5695 = vld [vmem:[%s5658 + $0x2c0] sm:$0xff]
    %v5696 = vld [vmem:[%s5658 + $0x2d0] sm:$0xff]
    %v5697 = vld [vmem:[%s5658 + $0x2e0] sm:$0xff]
    %v5698 = vld [vmem:[%s5658 + $0x2f0] sm:$0xff]
    %v5699 = vld [vmem:[%s5658 + $0x320] sm:$0xff]
    %v5700 = vld [vmem:[%s5658 + $0x330] sm:$0xff]
    %v5701 = vld [vmem:[%s5658 + $0x340] sm:$0xff]
    %v5702 = vld [vmem:[%s5658 + $0x350] sm:$0xff]
    %v5703 = vld [vmem:[%s5658 + $0x360] sm:$0xff]
    %v5704 = vld [vmem:[%s5658 + $0x370] sm:$0xff]
    %v5705 = vld [vmem:[%s5658 + $0x380] sm:$0xff]
    %v5706 = vld [vmem:[%s5658 + $0x390] sm:$0xff]
    %v5707 = vld [vmem:[%s5658 + $0x3c0] sm:$0xff]
    %v5708 = vld [vmem:[%s5658 + $0x3d0] sm:$0xff]
    %v5709 = vld [vmem:[%s5658 + $0x3e0] sm:$0xff]
    %v5710 = vld [vmem:[%s5658 + $0x3f0] sm:$0xff]
    %v5711 = vld [vmem:[%s5658 + $0x400] sm:$0xff]
    %v5712 = vld [vmem:[%s5658 + $0x410] sm:$0xff]
    %v5713 = vld [vmem:[%s5658 + $0x420] sm:$0xff]
    %v5714 = vld [vmem:[%s5658 + $0x430] sm:$0xff]
    %v5715 = vld [vmem:[%s5658 + $0x460] sm:$0xff]
    %v5716 = vld [vmem:[%s5658 + $0x470] sm:$0xff]
    %v5717 = vld [vmem:[%s5658 + $0x480] sm:$0xff]
    %v5718 = vld [vmem:[%s5658 + $0x490] sm:$0xff]
    %v5719 = vld [vmem:[%s5658 + $0x4a0] sm:$0xff]
    %v5720 = vld [vmem:[%s5658 + $0x4b0] sm:$0xff]
    %v5721 = vld [vmem:[%s5658 + $0x4c0] sm:$0xff]
    %v5722 = vld [vmem:[%s5658 + $0x4d0] sm:$0xff]
    %s5723 = scalar_lea.vmem %s5, 192
    %v5724 = vld [vmem:[%s5723] sm:$0xff]
    %v5725 = vld [vmem:[%s5723 + $0x8] sm:$0xff]
    %v5726 = vld [vmem:[%s5723 + $0x10] sm:$0xff]
    %v5727 = vld [vmem:[%s5723 + $0x18] sm:$0xff]
    %v5729 = vsel %vm717, %v5659, 0
    %v5732 = vsel %vm717, %v5660, 0
    %v5735 = vsel %vm717, %v5661, 0
    %v5738 = vsel %vm717, %v5662, 0
    %v5741 = vsel %vm717, %v5663, 0
    %v5744 = vsel %vm717, %v5664, 0
    %v5747 = vsel %vm717, %v5665, 0
    %v5750 = vsel %vm717, %v5666, 0
    %v5753 = vsel %vm717, %v5667, 0
    %v5756 = vsel %vm717, %v5668, 0
    %v5759 = vsel %vm717, %v5669, 0
    %v5762 = vsel %vm717, %v5670, 0
    %v5765 = vsel %vm717, %v5671, 0
    %v5768 = vsel %vm717, %v5672, 0
    %v5771 = vsel %vm717, %v5673, 0
    %v5774 = vsel %vm717, %v5674, 0
    %v5777 = vsel %vm717, %v5675, 0
    %v5780 = vsel %vm717, %v5676, 0
    %v5783 = vsel %vm717, %v5677, 0
    %v5786 = vsel %vm717, %v5678, 0
    %v5789 = vsel %vm717, %v5679, 0
    %v5792 = vsel %vm717, %v5680, 0
    %v5795 = vsel %vm717, %v5681, 0
    %v5798 = vsel %vm717, %v5682, 0
    %v5801 = vsel %vm717, %v5683, 0
    %v5804 = vsel %vm717, %v5684, 0
    %v5807 = vsel %vm717, %v5685, 0
    %v5810 = vsel %vm717, %v5686, 0
    %v5813 = vsel %vm717, %v5687, 0
    %v5816 = vsel %vm717, %v5688, 0
    %v5819 = vsel %vm717, %v5689, 0
    %v5822 = vsel %vm717, %v5690, 0
    %v5825 = vsel %vm717, %v5691, 0
    %v5828 = vsel %vm717, %v5692, 0
    %v5831 = vsel %vm717, %v5693, 0
    %v5834 = vsel %vm717, %v5694, 0
    %v5837 = vsel %vm717, %v5695, 0
    %v5840 = vsel %vm717, %v5696, 0
    %v5843 = vsel %vm717, %v5697, 0
    %v5846 = vsel %vm717, %v5698, 0
    %v5849 = vsel %vm717, %v5699, 0
    %v5852 = vsel %vm717, %v5700, 0
    %v5855 = vsel %vm717, %v5701, 0
    %v5858 = vsel %vm717, %v5702, 0
    %v5861 = vsel %vm717, %v5703, 0
    %v5864 = vsel %vm717, %v5704, 0
    %v5867 = vsel %vm717, %v5705, 0
    %v5870 = vsel %vm717, %v5706, 0
    %v5873 = vsel %vm717, %v5707, 0
    %v5876 = vsel %vm717, %v5708, 0
    %v5879 = vsel %vm717, %v5709, 0
    %v5882 = vsel %vm717, %v5710, 0
    %v5885 = vsel %vm717, %v5711, 0
    %v5888 = vsel %vm717, %v5712, 0
    %v5891 = vsel %vm717, %v5713, 0
    %v5894 = vsel %vm717, %v5714, 0
    %v5897 = vsel %vm717, %v5715, 0
    %v5900 = vsel %vm717, %v5716, 0
    %v5903 = vsel %vm717, %v5717, 0
    %v5906 = vsel %vm717, %v5718, 0
    %v5909 = vsel %vm717, %v5719, 0
    %v5912 = vsel %vm717, %v5720, 0
    %v5915 = vsel %vm717, %v5721, 0
    %v5918 = vsel %vm717, %v5722, 0
    %5920 = vmatprep.subr.mxu0 0.0
    %5921 = vmatpush1.msra.mxu0 %v5724
    %5922 = vmatprep.subr.mxu0 0.0
    %5923 = vmatpush1.msra.mxu0 %v5725
    %5924 = vmatprep.subr.mxu0 0.0
    %5925 = vmatpush1.msra.mxu0 %v5726
    %5926 = vmatprep.subr.mxu0 0.0
    %5927 = vmatpush1.msra.mxu0 %v5727
    %5928 = vmatprep.subr.mxu0 0.0
    %5929 = vmatpush1.msra.mxu0 0.0
    %5930 = vmatprep.subr.mxu0 0.0
    %5931 = vmatpush1.msra.mxu0 0.0
    %5932 = vmatprep.subr.mxu0 0.0
    %5933 = vmatpush1.msra.mxu0 0.0
    %5934 = vmatprep.subr.mxu0 0.0
    %5935 = vmatpush1.msra.mxu0 0.0
    %5936 = vmatprep.subr.mxu0 0.0
    %5937 = vmatpush1.msra.mxu0 0.0
    %5938 = vmatprep.subr.mxu0 0.0
    %5939 = vmatpush1.msra.mxu0 0.0
    %5940 = vmatprep.subr.mxu0 0.0
    %5941 = vmatpush1.msra.mxu0 0.0
    %5942 = vmatprep.subr.mxu0 0.0
    %5943 = vmatpush1.msra.mxu0 0.0
    %5944 = vmatprep.subr.mxu0 0.0
    %5945 = vmatpush1.msra.mxu0 0.0
    %5946 = vmatprep.subr.mxu0 0.0
    %5947 = vmatpush1.msra.mxu0 0.0
    %5948 = vmatprep.subr.mxu0 0.0
    %5949 = vmatpush1.msra.mxu0 0.0
    %5950 = vmatprep.subr.mxu0 0.0
    %5951 = vmatpush1.msra.mxu0 0.0
    %5952 = vmatprep.subr.mxu0 0.0
    %5953 = vmatpush1.msra.mxu0 0.0
    %5954 = vmatprep.subr.mxu0 0.0
    %5955 = vmatpush1.msra.mxu0 0.0
    %5956 = vmatprep.subr.mxu0 0.0
    %5957 = vmatpush1.msra.mxu0 0.0
    %5958 = vmatprep.subr.mxu0 0.0
    %5959 = vmatpush1.msra.mxu0 0.0
    %5960 = vmatprep.subr.mxu0 0.0
    %5961 = vmatpush1.msra.mxu0 0.0
    %5962 = vmatprep.subr.mxu0 0.0
    %5963 = vmatpush1.msra.mxu0 0.0
    %5964 = vmatprep.subr.mxu0 0.0
    %5965 = vmatpush1.msra.mxu0 0.0
    %5966 = vmatprep.subr.mxu0 0.0
    %5967 = vmatpush1.msra.mxu0 0.0
    %5968 = vmatprep.subr.mxu0 0.0
    %5969 = vmatpush1.msra.mxu0 0.0
    %5970 = vmatprep.subr.mxu0 0.0
    %5971 = vmatpush1.msra.mxu0 0.0
    %5972 = vmatprep.subr.mxu0 0.0
    %5973 = vmatpush1.msra.mxu0 0.0
    %5974 = vmatprep.subr.mxu0 0.0
    %5975 = vmatpush1.msra.mxu0 0.0
    %5976 = vmatprep.subr.mxu0 0.0
    %5977 = vmatpush1.msra.mxu0 0.0
    %5978 = vmatprep.subr.mxu0 0.0
    %5979 = vmatpush1.msra.mxu0 0.0
    %5980 = vmatprep.subr.mxu0 0.0
    %5981 = vmatpush1.msra.mxu0 0.0
    %5982 = vmatprep.subr.mxu0 0.0
    %5983 = vmatpush1.msra.mxu0 0.0
    %5984 = vmatprep.mubr.f32.mxu0 0.0
    %5985 = vmatmul.mubr.f32.gmra.mrb[0].mxu0 %v5729
    %v5986 = vpop.f32.mrb[0].mxu0
    %v5987 = vadd.f32 0.0, %v5986
    %v5988 = vpop.f32.mrb[0].mxu0
    %5989 = vmatprep.mubr.f32.mxu0 0.0
    %5990 = vmatmul.mubr.f32.gmra.mrb[0].mxu0 %v5732
    %v5991 = vpop.f32.mrb[0].mxu0
    %v5992 = vadd.f32 0.0, %v5991
    %v5993 = vpop.f32.mrb[0].mxu0
    %5994 = vmatprep.mubr.f32.mxu0 0.0
    %5995 = vmatmul.mubr.f32.gmra.mrb[0].mxu0 %v5735
    %v5996 = vpop.f32.mrb[0].mxu0
    %v5997 = vadd.f32 0.0, %v5996
    %v5998 = vpop.f32.mrb[0].mxu0
    %5999 = vmatprep.mubr.f32.mxu0 0.0
    %6000 = vmatmul.mubr.f32.gmra.mrb[0].mxu0 %v5738
    %v6001 = vpop.f32.mrb[0].mxu0
    %v6002 = vadd.f32 0.0, %v6001
    %v6003 = vpop.f32.mrb[0].mxu0
    %6004 = vmatprep.mubr.f32.mxu0 0.0
    %6005 = vmatmul.mubr.f32.gmra.mrb[0].mxu0 %v5741
    %v6006 = vpop.f32.mrb[0].mxu0
    %v6007 = vadd.f32 0.0, %v6006
    %v6008 = vpop.f32.mrb[0].mxu0
    %6009 = vmatprep.mubr.f32.mxu0 0.0
    %6010 = vmatmul.mubr.f32.gmra.mrb[0].mxu0 %v5744
    %v6011 = vpop.f32.mrb[0].mxu0
    %v6012 = vadd.f32 0.0, %v6011
    %v6013 = vpop.f32.mrb[0].mxu0
    %6014 = vmatprep.mubr.f32.mxu0 0.0
    %6015 = vmatmul.mubr.f32.gmra.mrb[0].mxu0 %v5747
    %v6016 = vpop.f32.mrb[0].mxu0
    %v6017 = vadd.f32 0.0, %v6016
    %v6018 = vpop.f32.mrb[0].mxu0
    %6019 = vmatprep.mubr.f32.mxu0 0.0
    %6020 = vmatmul.mubr.f32.gmra.mrb[0].mxu0 %v5750
    %v6021 = vpop.f32.mrb[0].mxu0
    %v6022 = vadd.f32 0.0, %v6021
    %v6023 = vpop.f32.mrb[0].mxu0
    %6024 = vmatprep.mubr.f32.mxu0 0.0
    %6025 = vmatmul.mubr.f32.gmra.mrb[0].mxu0 %v5753
    %v6026 = vpop.f32.mrb[0].mxu0
    %v6027 = vadd.f32 0.0, %v6026
    %v6028 = vpop.f32.mrb[0].mxu0
    %6029 = vmatprep.mubr.f32.mxu0 0.0
    %6030 = vmatmul.mubr.f32.gmra.mrb[0].mxu0 %v5756
    %v6031 = vpop.f32.mrb[0].mxu0
    %v6032 = vadd.f32 0.0, %v6031
    %v6033 = vpop.f32.mrb[0].mxu0
    %6034 = vmatprep.mubr.f32.mxu0 0.0
    %6035 = vmatmul.mubr.f32.gmra.mrb[0].mxu0 %v5759
    %v6036 = vpop.f32.mrb[0].mxu0
    %v6037 = vadd.f32 0.0, %v6036
    %v6038 = vpop.f32.mrb[0].mxu0
    %6039 = vmatprep.mubr.f32.mxu0 0.0
    %6040 = vmatmul.mubr.f32.gmra.mrb[0].mxu0 %v5762
    %v6041 = vpop.f32.mrb[0].mxu0
    %v6042 = vadd.f32 0.0, %v6041
    %v6043 = vpop.f32.mrb[0].mxu0
    %6044 = vmatprep.mubr.f32.mxu0 0.0
    %6045 = vmatmul.mubr.f32.gmra.mrb[0].mxu0 %v5765
    %v6046 = vpop.f32.mrb[0].mxu0
    %v6047 = vadd.f32 0.0, %v6046
    %v6048 = vpop.f32.mrb[0].mxu0
    %6049 = vmatprep.mubr.f32.mxu0 0.0
    %6050 = vmatmul.mubr.f32.gmra.mrb[0].mxu0 %v5768
    %v6051 = vpop.f32.mrb[0].mxu0
    %v6052 = vadd.f32 0.0, %v6051
    %v6053 = vpop.f32.mrb[0].mxu0
    %6054 = vmatprep.mubr.f32.mxu0 0.0
    %6055 = vmatmul.mubr.f32.gmra.mrb[0].mxu0 %v5771
    %v6056 = vpop.f32.mrb[0].mxu0
    %v6057 = vadd.f32 0.0, %v6056
    %v6058 = vpop.f32.mrb[0].mxu0
    %6059 = vmatprep.mubr.f32.mxu0 0.0
    %6060 = vmatmul.mubr.f32.gmra.mrb[0].mxu0 %v5774
    %v6061 = vpop.f32.mrb[0].mxu0
    %v6062 = vadd.f32 0.0, %v6061
    %v6063 = vpop.f32.mrb[0].mxu0
    %6064 = vmatprep.mubr.f32.mxu0 0.0
    %6065 = vmatmul.mubr.f32.gmra.mrb[0].mxu0 %v5777
    %v6066 = vpop.f32.mrb[0].mxu0
    %v6067 = vadd.f32 0.0, %v6066
    %v6068 = vpop.f32.mrb[0].mxu0
    %6069 = vmatprep.mubr.f32.mxu0 0.0
    %6070 = vmatmul.mubr.f32.gmra.mrb[0].mxu0 %v5780
    %v6071 = vpop.f32.mrb[0].mxu0
    %v6072 = vadd.f32 0.0, %v6071
    %v6073 = vpop.f32.mrb[0].mxu0
    %6074 = vmatprep.mubr.f32.mxu0 0.0
    %6075 = vmatmul.mubr.f32.gmra.mrb[0].mxu0 %v5783
    %v6076 = vpop.f32.mrb[0].mxu0
    %v6077 = vadd.f32 0.0, %v6076
    %v6078 = vpop.f32.mrb[0].mxu0
    %6079 = vmatprep.mubr.f32.mxu0 0.0
    %6080 = vmatmul.mubr.f32.gmra.mrb[0].mxu0 %v5786
    %v6081 = vpop.f32.mrb[0].mxu0
    %v6082 = vadd.f32 0.0, %v6081
    %v6083 = vpop.f32.mrb[0].mxu0
    %6084 = vmatprep.mubr.f32.mxu0 0.0
    %6085 = vmatmul.mubr.f32.gmra.mrb[0].mxu0 %v5789
    %v6086 = vpop.f32.mrb[0].mxu0
    %v6087 = vadd.f32 0.0, %v6086
    %v6088 = vpop.f32.mrb[0].mxu0
    %6089 = vmatprep.mubr.f32.mxu0 0.0
    %6090 = vmatmul.mubr.f32.gmra.mrb[0].mxu0 %v5792
    %v6091 = vpop.f32.mrb[0].mxu0
    %v6092 = vadd.f32 0.0, %v6091
    %v6093 = vpop.f32.mrb[0].mxu0
    %6094 = vmatprep.mubr.f32.mxu0 0.0
    %6095 = vmatmul.mubr.f32.gmra.mrb[0].mxu0 %v5795
    %v6096 = vpop.f32.mrb[0].mxu0
    %v6097 = vadd.f32 0.0, %v6096
    %v6098 = vpop.f32.mrb[0].mxu0
    %6099 = vmatprep.mubr.f32.mxu0 0.0
    %6100 = vmatmul.mubr.f32.gmra.mrb[0].mxu0 %v5798
    %v6101 = vpop.f32.mrb[0].mxu0
    %v6102 = vadd.f32 0.0, %v6101
    %v6103 = vpop.f32.mrb[0].mxu0
    %6104 = vmatprep.mubr.f32.mxu0 0.0
    %6105 = vmatmul.mubr.f32.gmra.mrb[0].mxu0 %v5801
    %v6106 = vpop.f32.mrb[0].mxu0
    %v6107 = vadd.f32 0.0, %v6106
    %v6108 = vpop.f32.mrb[0].mxu0
    %6109 = vmatprep.mubr.f32.mxu0 0.0
    %6110 = vmatmul.mubr.f32.gmra.mrb[0].mxu0 %v5804
    %v6111 = vpop.f32.mrb[0].mxu0
    %v6112 = vadd.f32 0.0, %v6111
    %v6113 = vpop.f32.mrb[0].mxu0
    %6114 = vmatprep.mubr.f32.mxu0 0.0
    %6115 = vmatmul.mubr.f32.gmra.mrb[0].mxu0 %v5807
    %v6116 = vpop.f32.mrb[0].mxu0
    %v6117 = vadd.f32 0.0, %v6116
    %v6118 = vpop.f32.mrb[0].mxu0
    %6119 = vmatprep.mubr.f32.mxu0 0.0
    %6120 = vmatmul.mubr.f32.gmra.mrb[0].mxu0 %v5810
    %v6121 = vpop.f32.mrb[0].mxu0
    %v6122 = vadd.f32 0.0, %v6121
    %v6123 = vpop.f32.mrb[0].mxu0
    %6124 = vmatprep.mubr.f32.mxu0 0.0
    %6125 = vmatmul.mubr.f32.gmra.mrb[0].mxu0 %v5813
    %v6126 = vpop.f32.mrb[0].mxu0
    %v6127 = vadd.f32 0.0, %v6126
    %v6128 = vpop.f32.mrb[0].mxu0
    %6129 = vmatprep.mubr.f32.mxu0 0.0
    %6130 = vmatmul.mubr.f32.gmra.mrb[0].mxu0 %v5816
    %v6131 = vpop.f32.mrb[0].mxu0
    %v6132 = vadd.f32 0.0, %v6131
    %v6133 = vpop.f32.mrb[0].mxu0
    %6134 = vmatprep.mubr.f32.mxu0 0.0
    %6135 = vmatmul.mubr.f32.gmra.mrb[0].mxu0 %v5819
    %v6136 = vpop.f32.mrb[0].mxu0
    %v6137 = vadd.f32 0.0, %v6136
    %v6138 = vpop.f32.mrb[0].mxu0
    %6139 = vmatprep.mubr.f32.mxu0 0.0
    %6140 = vmatmul.mubr.f32.gmra.mrb[0].mxu0 %v5822
    %v6141 = vpop.f32.mrb[0].mxu0
    %v6142 = vadd.f32 0.0, %v6141
    %v6143 = vpop.f32.mrb[0].mxu0
    %6144 = vmatprep.mubr.f32.mxu0 0.0
    %6145 = vmatmul.mubr.f32.gmra.mrb[0].mxu0 %v5825
    %v6146 = vpop.f32.mrb[0].mxu0
    %v6147 = vadd.f32 0.0, %v6146
    %v6148 = vpop.f32.mrb[0].mxu0
    %6149 = vmatprep.mubr.f32.mxu0 0.0
    %6150 = vmatmul.mubr.f32.gmra.mrb[0].mxu0 %v5828
    %v6151 = vpop.f32.mrb[0].mxu0
    %v6152 = vadd.f32 0.0, %v6151
    %v6153 = vpop.f32.mrb[0].mxu0
    %6154 = vmatprep.mubr.f32.mxu0 0.0
    %6155 = vmatmul.mubr.f32.gmra.mrb[0].mxu0 %v5831
    %v6156 = vpop.f32.mrb[0].mxu0
    %v6157 = vadd.f32 0.0, %v6156
    %v6158 = vpop.f32.mrb[0].mxu0
    %6159 = vmatprep.mubr.f32.mxu0 0.0
    %6160 = vmatmul.mubr.f32.gmra.mrb[0].mxu0 %v5834
    %v6161 = vpop.f32.mrb[0].mxu0
    %v6162 = vadd.f32 0.0, %v6161
    %v6163 = vpop.f32.mrb[0].mxu0
    %6164 = vmatprep.mubr.f32.mxu0 0.0
    %6165 = vmatmul.mubr.f32.gmra.mrb[0].mxu0 %v5837
    %v6166 = vpop.f32.mrb[0].mxu0
    %v6167 = vadd.f32 0.0, %v6166
    %v6168 = vpop.f32.mrb[0].mxu0
    %6169 = vmatprep.mubr.f32.mxu0 0.0
    %6170 = vmatmul.mubr.f32.gmra.mrb[0].mxu0 %v5840
    %v6171 = vpop.f32.mrb[0].mxu0
    %v6172 = vadd.f32 0.0, %v6171
    %v6173 = vpop.f32.mrb[0].mxu0
    %6174 = vmatprep.mubr.f32.mxu0 0.0
    %6175 = vmatmul.mubr.f32.gmra.mrb[0].mxu0 %v5843
    %v6176 = vpop.f32.mrb[0].mxu0
    %v6177 = vadd.f32 0.0, %v6176
    %v6178 = vpop.f32.mrb[0].mxu0
    %6179 = vmatprep.mubr.f32.mxu0 0.0
    %6180 = vmatmul.mubr.f32.gmra.mrb[0].mxu0 %v5846
    %v6181 = vpop.f32.mrb[0].mxu0
    %v6182 = vadd.f32 0.0, %v6181
    %v6183 = vpop.f32.mrb[0].mxu0
    %6184 = vmatprep.mubr.f32.mxu0 0.0
    %6185 = vmatmul.mubr.f32.gmra.mrb[0].mxu0 %v5849
    %v6186 = vpop.f32.mrb[0].mxu0
    %v6187 = vadd.f32 0.0, %v6186
    %v6188 = vpop.f32.mrb[0].mxu0
    %6189 = vmatprep.mubr.f32.mxu0 0.0
    %6190 = vmatmul.mubr.f32.gmra.mrb[0].mxu0 %v5852
    %v6191 = vpop.f32.mrb[0].mxu0
    %v6192 = vadd.f32 0.0, %v6191
    %v6193 = vpop.f32.mrb[0].mxu0
    %6194 = vmatprep.mubr.f32.mxu0 0.0
    %6195 = vmatmul.mubr.f32.gmra.mrb[0].mxu0 %v5855
    %v6196 = vpop.f32.mrb[0].mxu0
    %v6197 = vadd.f32 0.0, %v6196
    %v6198 = vpop.f32.mrb[0].mxu0
    %6199 = vmatprep.mubr.f32.mxu0 0.0
    %6200 = vmatmul.mubr.f32.gmra.mrb[0].mxu0 %v5858
    %v6201 = vpop.f32.mrb[0].mxu0
    %v6202 = vadd.f32 0.0, %v6201
    %v6203 = vpop.f32.mrb[0].mxu0
    %6204 = vmatprep.mubr.f32.mxu0 0.0
    %6205 = vmatmul.mubr.f32.gmra.mrb[0].mxu0 %v5861
    %v6206 = vpop.f32.mrb[0].mxu0
    %v6207 = vadd.f32 0.0, %v6206
    %v6208 = vpop.f32.mrb[0].mxu0
    %6209 = vmatprep.mubr.f32.mxu0 0.0
    %6210 = vmatmul.mubr.f32.gmra.mrb[0].mxu0 %v5864
    %v6211 = vpop.f32.mrb[0].mxu0
    %v6212 = vadd.f32 0.0, %v6211
    %v6213 = vpop.f32.mrb[0].mxu0
    %6214 = vmatprep.mubr.f32.mxu0 0.0
    %6215 = vmatmul.mubr.f32.gmra.mrb[0].mxu0 %v5867
    %v6216 = vpop.f32.mrb[0].mxu0
    %v6217 = vadd.f32 0.0, %v6216
    %v6218 = vpop.f32.mrb[0].mxu0
    %6219 = vmatprep.mubr.f32.mxu0 0.0
    %6220 = vmatmul.mubr.f32.gmra.mrb[0].mxu0 %v5870
    %v6221 = vpop.f32.mrb[0].mxu0
    %v6222 = vadd.f32 0.0, %v6221
    %v6223 = vpop.f32.mrb[0].mxu0
    %6224 = vmatprep.mubr.f32.mxu0 0.0
    %6225 = vmatmul.mubr.f32.gmra.mrb[0].mxu0 %v5873
    %v6226 = vpop.f32.mrb[0].mxu0
    %v6227 = vadd.f32 0.0, %v6226
    %v6228 = vpop.f32.mrb[0].mxu0
    %6229 = vmatprep.mubr.f32.mxu0 0.0
    %6230 = vmatmul.mubr.f32.gmra.mrb[0].mxu0 %v5876
    %v6231 = vpop.f32.mrb[0].mxu0
    %v6232 = vadd.f32 0.0, %v6231
    %v6233 = vpop.f32.mrb[0].mxu0
    %6234 = vmatprep.mubr.f32.mxu0 0.0
    %6235 = vmatmul.mubr.f32.gmra.mrb[0].mxu0 %v5879
    %v6236 = vpop.f32.mrb[0].mxu0
    %v6237 = vadd.f32 0.0, %v6236
    %v6238 = vpop.f32.mrb[0].mxu0
    %6239 = vmatprep.mubr.f32.mxu0 0.0
    %6240 = vmatmul.mubr.f32.gmra.mrb[0].mxu0 %v5882
    %v6241 = vpop.f32.mrb[0].mxu0
    %v6242 = vadd.f32 0.0, %v6241
    %v6243 = vpop.f32.mrb[0].mxu0
    %6244 = vmatprep.mubr.f32.mxu0 0.0
    %6245 = vmatmul.mubr.f32.gmra.mrb[0].mxu0 %v5885
    %v6246 = vpop.f32.mrb[0].mxu0
    %v6247 = vadd.f32 0.0, %v6246
    %v6248 = vpop.f32.mrb[0].mxu0
    %6249 = vmatprep.mubr.f32.mxu0 0.0
    %6250 = vmatmul.mubr.f32.gmra.mrb[0].mxu0 %v5888
    %v6251 = vpop.f32.mrb[0].mxu0
    %v6252 = vadd.f32 0.0, %v6251
    %v6253 = vpop.f32.mrb[0].mxu0
    %6254 = vmatprep.mubr.f32.mxu0 0.0
    %6255 = vmatmul.mubr.f32.gmra.mrb[0].mxu0 %v5891
    %v6256 = vpop.f32.mrb[0].mxu0
    %v6257 = vadd.f32 0.0, %v6256
    %v6258 = vpop.f32.mrb[0].mxu0
    %6259 = vmatprep.mubr.f32.mxu0 0.0
    %6260 = vmatmul.mubr.f32.gmra.mrb[0].mxu0 %v5894
    %v6261 = vpop.f32.mrb[0].mxu0
    %v6262 = vadd.f32 0.0, %v6261
    %v6263 = vpop.f32.mrb[0].mxu0
    %6264 = vmatprep.mubr.f32.mxu0 0.0
    %6265 = vmatmul.mubr.f32.gmra.mrb[0].mxu0 %v5897
    %v6266 = vpop.f32.mrb[0].mxu0
    %v6267 = vadd.f32 0.0, %v6266
    %v6268 = vpop.f32.mrb[0].mxu0
    %6269 = vmatprep.mubr.f32.mxu0 0.0
    %6270 = vmatmul.mubr.f32.gmra.mrb[0].mxu0 %v5900
    %v6271 = vpop.f32.mrb[0].mxu0
    %v6272 = vadd.f32 0.0, %v6271
    %v6273 = vpop.f32.mrb[0].mxu0
    %6274 = vmatprep.mubr.f32.mxu0 0.0
    %6275 = vmatmul.mubr.f32.gmra.mrb[0].mxu0 %v5903
    %v6276 = vpop.f32.mrb[0].mxu0
    %v6277 = vadd.f32 0.0, %v6276
    %v6278 = vpop.f32.mrb[0].mxu0
    %6279 = vmatprep.mubr.f32.mxu0 0.0
    %6280 = vmatmul.mubr.f32.gmra.mrb[0].mxu0 %v5906
    %v6281 = vpop.f32.mrb[0].mxu0
    %v6282 = vadd.f32 0.0, %v6281
    %v6283 = vpop.f32.mrb[0].mxu0
    %6284 = vmatprep.mubr.f32.mxu0 0.0
    %6285 = vmatmul.mubr.f32.gmra.mrb[0].mxu0 %v5909
    %v6286 = vpop.f32.mrb[0].mxu0
    %v6287 = vadd.f32 0.0, %v6286
    %v6288 = vpop.f32.mrb[0].mxu0
    %6289 = vmatprep.mubr.f32.mxu0 0.0
    %6290 = vmatmul.mubr.f32.gmra.mrb[0].mxu0 %v5912
    %v6291 = vpop.f32.mrb[0].mxu0
    %v6292 = vadd.f32 0.0, %v6291
    %v6293 = vpop.f32.mrb[0].mxu0
    %6294 = vmatprep.mubr.f32.mxu0 0.0
    %6295 = vmatmul.mubr.f32.gmra.mrb[0].mxu0 %v5915
    %v6296 = vpop.f32.mrb[0].mxu0
    %v6297 = vadd.f32 0.0, %v6296
    %v6298 = vpop.f32.mrb[0].mxu0
    %6299 = vmatprep.mubr.f32.mxu0 0.0
    %6300 = vmatmul.mubr.f32.gmra.mrb[0].mxu0 %v5918
    %v6301 = vpop.f32.mrb[0].mxu0
    %v6302 = vadd.f32 0.0, %v6301
    %v6303 = vpop.f32.mrb[0].mxu0
    %6304 = vdwg.mxu0
    %v6305 = vadd.f32 %v5594, %v5987
    %v6306 = vadd.f32 %v5595, %v5992
    %v6307 = vadd.f32 %v5596, %v5997
    %v6308 = vadd.f32 %v5597, %v6002
    %v6309 = vadd.f32 %v5598, %v6007
    %v6310 = vadd.f32 %v5599, %v6012
    %v6311 = vadd.f32 %v5600, %v6017
    %v6312 = vadd.f32 %v5601, %v6022
    %v6313 = vadd.f32 %v5602, %v6027
    %v6314 = vadd.f32 %v5603, %v6032
    %v6315 = vadd.f32 %v5604, %v6037
    %v6316 = vadd.f32 %v5605, %v6042
    %v6317 = vadd.f32 %v5606, %v6047
    %v6318 = vadd.f32 %v5607, %v6052
    %v6319 = vadd.f32 %v5608, %v6057
    %v6320 = vadd.f32 %v5609, %v6062
    %v6321 = vadd.f32 %v5610, %v6067
    %v6322 = vadd.f32 %v5611, %v6072
    %v6323 = vadd.f32 %v5612, %v6077
    %v6324 = vadd.f32 %v5613, %v6082
    %v6325 = vadd.f32 %v5614, %v6087
    %v6326 = vadd.f32 %v5615, %v6092
    %v6327 = vadd.f32 %v5616, %v6097
    %v6328 = vadd.f32 %v5617, %v6102
    %v6329 = vadd.f32 %v5618, %v6107
    %v6330 = vadd.f32 %v5619, %v6112
    %v6331 = vadd.f32 %v5620, %v6117
    %v6332 = vadd.f32 %v5621, %v6122
    %v6333 = vadd.f32 %v5622, %v6127
    %v6334 = vadd.f32 %v5623, %v6132
    %v6335 = vadd.f32 %v5624, %v6137
    %v6336 = vadd.f32 %v5625, %v6142
    %v6337 = vadd.f32 %v5626, %v6147
    %v6338 = vadd.f32 %v5627, %v6152
    %v6339 = vadd.f32 %v5628, %v6157
    %v6340 = vadd.f32 %v5629, %v6162
    %v6341 = vadd.f32 %v5630, %v6167
    %v6342 = vadd.f32 %v5631, %v6172
    %v6343 = vadd.f32 %v5632, %v6177
    %v6344 = vadd.f32 %v5633, %v6182
    %v6345 = vadd.f32 %v5634, %v6187
    %v6346 = vadd.f32 %v5635, %v6192
    %v6347 = vadd.f32 %v5636, %v6197
    %v6348 = vadd.f32 %v5637, %v6202
    %v6349 = vadd.f32 %v5638, %v6207
    %v6350 = vadd.f32 %v5639, %v6212
    %v6351 = vadd.f32 %v5640, %v6217
    %v6352 = vadd.f32 %v5641, %v6222
    %v6353 = vadd.f32 %v5642, %v6227
    %v6354 = vadd.f32 %v5643, %v6232
    %v6355 = vadd.f32 %v5644, %v6237
    %v6356 = vadd.f32 %v5645, %v6242
    %v6357 = vadd.f32 %v5646, %v6247
    %v6358 = vadd.f32 %v5647, %v6252
    %v6359 = vadd.f32 %v5648, %v6257
    %v6360 = vadd.f32 %v5649, %v6262
    %v6361 = vadd.f32 %v5650, %v6267
    %v6362 = vadd.f32 %v5651, %v6272
    %v6363 = vadd.f32 %v5652, %v6277
    %v6364 = vadd.f32 %v5653, %v6282
    %v6365 = vadd.f32 %v5654, %v6287
    %v6366 = vadd.f32 %v5655, %v6292
    %v6367 = vadd.f32 %v5656, %v6297
    %v6368 = vadd.f32 %v5657, %v6302
    %v6369 = vld [vmem:[%s5658 + $0x1] sm:$0xff]
    %v6370 = vld [vmem:[%s5658 + $0x11] sm:$0xff]
    %v6371 = vld [vmem:[%s5658 + $0x21] sm:$0xff]
    %v6372 = vld [vmem:[%s5658 + $0x31] sm:$0xff]
    %v6373 = vld [vmem:[%s5658 + $0x41] sm:$0xff]
    %v6374 = vld [vmem:[%s5658 + $0x51] sm:$0xff]
    %v6375 = vld [vmem:[%s5658 + $0x61] sm:$0xff]
    %v6376 = vld [vmem:[%s5658 + $0x71] sm:$0xff]
    %v6377 = vld [vmem:[%s5658 + $0xa1] sm:$0xff]
    %v6378 = vld [vmem:[%s5658 + $0xb1] sm:$0xff]
    %v6379 = vld [vmem:[%s5658 + $0xc1] sm:$0xff]
    %v6380 = vld [vmem:[%s5658 + $0xd1] sm:$0xff]
    %v6381 = vld [vmem:[%s5658 + $0xe1] sm:$0xff]
    %v6382 = vld [vmem:[%s5658 + $0xf1] sm:$0xff]
    %v6383 = vld [vmem:[%s5658 + $0x101] sm:$0xff]
    %v6384 = vld [vmem:[%s5658 + $0x111] sm:$0xff]
    %v6385 = vld [vmem:[%s5658 + $0x141] sm:$0xff]
    %v6386 = vld [vmem:[%s5658 + $0x151] sm:$0xff]
    %v6387 = vld [vmem:[%s5658 + $0x161] sm:$0xff]
    %v6388 = vld [vmem:[%s5658 + $0x171] sm:$0xff]
    %v6389 = vld [vmem:[%s5658 + $0x181] sm:$0xff]
    %v6390 = vld [vmem:[%s5658 + $0x191] sm:$0xff]
    %v6391 = vld [vmem:[%s5658 + $0x1a1] sm:$0xff]
    %v6392 = vld [vmem:[%s5658 + $0x1b1] sm:$0xff]
    %v6393 = vld [vmem:[%s5658 + $0x1e1] sm:$0xff]
    %v6394 = vld [vmem:[%s5658 + $0x1f1] sm:$0xff]
    %v6395 = vld [vmem:[%s5658 + $0x201] sm:$0xff]
    %v6396 = vld [vmem:[%s5658 + $0x211] sm:$0xff]
    %v6397 = vld [vmem:[%s5658 + $0x221] sm:$0xff]
    %v6398 = vld [vmem:[%s5658 + $0x231] sm:$0xff]
    %v6399 = vld [vmem:[%s5658 + $0x241] sm:$0xff]
    %v6400 = vld [vmem:[%s5658 + $0x251] sm:$0xff]
    %v6401 = vld [vmem:[%s5658 + $0x281] sm:$0xff]
    %v6402 = vld [vmem:[%s5658 + $0x291] sm:$0xff]
    %v6403 = vld [vmem:[%s5658 + $0x2a1] sm:$0xff]
    %v6404 = vld [vmem:[%s5658 + $0x2b1] sm:$0xff]
    %v6405 = vld [vmem:[%s5658 + $0x2c1] sm:$0xff]
    %v6406 = vld [vmem:[%s5658 + $0x2d1] sm:$0xff]
    %v6407 = vld [vmem:[%s5658 + $0x2e1] sm:$0xff]
    %v6408 = vld [vmem:[%s5658 + $0x2f1] sm:$0xff]
    %v6409 = vld [vmem:[%s5658 + $0x321] sm:$0xff]
    %v6410 = vld [vmem:[%s5658 + $0x331] sm:$0xff]
    %v6411 = vld [vmem:[%s5658 + $0x341] sm:$0xff]
    %v6412 = vld [vmem:[%s5658 + $0x351] sm:$0xff]
    %v6413 = vld [vmem:[%s5658 + $0x361] sm:$0xff]
    %v6414 = vld [vmem:[%s5658 + $0x371] sm:$0xff]
    %v6415 = vld [vmem:[%s5658 + $0x381] sm:$0xff]
    %v6416 = vld [vmem:[%s5658 + $0x391] sm:$0xff]
    %v6417 = vld [vmem:[%s5658 + $0x3c1] sm:$0xff]
    %v6418 = vld [vmem:[%s5658 + $0x3d1] sm:$0xff]
    %v6419 = vld [vmem:[%s5658 + $0x3e1] sm:$0xff]
    %v6420 = vld [vmem:[%s5658 + $0x3f1] sm:$0xff]
    %v6421 = vld [vmem:[%s5658 + $0x401] sm:$0xff]
    %v6422 = vld [vmem:[%s5658 + $0x411] sm:$0xff]
    %v6423 = vld [vmem:[%s5658 + $0x421] sm:$0xff]
    %v6424 = vld [vmem:[%s5658 + $0x431] sm:$0xff]
    %v6425 = vld [vmem:[%s5658 + $0x461] sm:$0xff]
    %v6426 = vld [vmem:[%s5658 + $0x471] sm:$0xff]
    %v6427 = vld [vmem:[%s5658 + $0x481] sm:$0xff]
    %v6428 = vld [vmem:[%s5658 + $0x491] sm:$0xff]
    %v6429 = vld [vmem:[%s5658 + $0x4a1] sm:$0xff]
    %v6430 = vld [vmem:[%s5658 + $0x4b1] sm:$0xff]
    %v6431 = vld [vmem:[%s5658 + $0x4c1] sm:$0xff]
    %v6432 = vld [vmem:[%s5658 + $0x4d1] sm:$0xff]
    %s6433 = scalar_lea.vmem %s5, 224
    %v6434 = vld [vmem:[%s6433] sm:$0xff]
    %v6435 = vld [vmem:[%s6433 + $0x8] sm:$0xff]
    %v6436 = vld [vmem:[%s6433 + $0x10] sm:$0xff]
    %v6437 = vld [vmem:[%s6433 + $0x18] sm:$0xff]
    %v6439 = vsel %vm717, %v6369, 0
    %v6442 = vsel %vm717, %v6370, 0
    %v6445 = vsel %vm717, %v6371, 0
    %v6448 = vsel %vm717, %v6372, 0
    %v6451 = vsel %vm717, %v6373, 0
    %v6454 = vsel %vm717, %v6374, 0
    %v6457 = vsel %vm717, %v6375, 0
    %v6460 = vsel %vm717, %v6376, 0
    %v6463 = vsel %vm717, %v6377, 0
    %v6466 = vsel %vm717, %v6378, 0
    %v6469 = vsel %vm717, %v6379, 0
    %v6472 = vsel %vm717, %v6380, 0
    %v6475 = vsel %vm717, %v6381, 0
    %v6478 = vsel %vm717, %v6382, 0
    %v6481 = vsel %vm717, %v6383, 0
    %v6484 = vsel %vm717, %v6384, 0
    %v6487 = vsel %vm717, %v6385, 0
    %v6490 = vsel %vm717, %v6386, 0
    %v6493 = vsel %vm717, %v6387, 0
    %v6496 = vsel %vm717, %v6388, 0
    %v6499 = vsel %vm717, %v6389, 0
    %v6502 = vsel %vm717, %v6390, 0
    %v6505 = vsel %vm717, %v6391, 0
    %v6508 = vsel %vm717, %v6392, 0
    %v6511 = vsel %vm717, %v6393, 0
    %v6514 = vsel %vm717, %v6394, 0
    %v6517 = vsel %vm717, %v6395, 0
    %v6520 = vsel %vm717, %v6396, 0
    %v6523 = vsel %vm717, %v6397, 0
    %v6526 = vsel %vm717, %v6398, 0
    %v6529 = vsel %vm717, %v6399, 0
    %v6532 = vsel %vm717, %v6400, 0
    %v6535 = vsel %vm717, %v6401, 0
    %v6538 = vsel %vm717, %v6402, 0
    %v6541 = vsel %vm717, %v6403, 0
    %v6544 = vsel %vm717, %v6404, 0
    %v6547 = vsel %vm717, %v6405, 0
    %v6550 = vsel %vm717, %v6406, 0
    %v6553 = vsel %vm717, %v6407, 0
    %v6556 = vsel %vm717, %v6408, 0
    %v6559 = vsel %vm717, %v6409, 0
    %v6562 = vsel %vm717, %v6410, 0
    %v6565 = vsel %vm717, %v6411, 0
    %v6568 = vsel %vm717, %v6412, 0
    %v6571 = vsel %vm717, %v6413, 0
    %v6574 = vsel %vm717, %v6414, 0
    %v6577 = vsel %vm717, %v6415, 0
    %v6580 = vsel %vm717, %v6416, 0
    %v6583 = vsel %vm717, %v6417, 0
    %v6586 = vsel %vm717, %v6418, 0
    %v6589 = vsel %vm717, %v6419, 0
    %v6592 = vsel %vm717, %v6420, 0
    %v6595 = vsel %vm717, %v6421, 0
    %v6598 = vsel %vm717, %v6422, 0
    %v6601 = vsel %vm717, %v6423, 0
    %v6604 = vsel %vm717, %v6424, 0
    %v6607 = vsel %vm717, %v6425, 0
    %v6610 = vsel %vm717, %v6426, 0
    %v6613 = vsel %vm717, %v6427, 0
    %v6616 = vsel %vm717, %v6428, 0
    %v6619 = vsel %vm717, %v6429, 0
    %v6622 = vsel %vm717, %v6430, 0
    %v6625 = vsel %vm717, %v6431, 0
    %v6628 = vsel %vm717, %v6432, 0
    %6630 = vmatprep.subr.mxu0 0.0
    %6631 = vmatpush1.msra.mxu0 %v6434
    %6632 = vmatprep.subr.mxu0 0.0
    %6633 = vmatpush1.msra.mxu0 %v6435
    %6634 = vmatprep.subr.mxu0 0.0
    %6635 = vmatpush1.msra.mxu0 %v6436
    %6636 = vmatprep.subr.mxu0 0.0
    %6637 = vmatpush1.msra.mxu0 %v6437
    %6638 = vmatprep.subr.mxu0 0.0
    %6639 = vmatpush1.msra.mxu0 0.0
    %6640 = vmatprep.subr.mxu0 0.0
    %6641 = vmatpush1.msra.mxu0 0.0
    %6642 = vmatprep.subr.mxu0 0.0
    %6643 = vmatpush1.msra.mxu0 0.0
    %6644 = vmatprep.subr.mxu0 0.0
    %6645 = vmatpush1.msra.mxu0 0.0
    %6646 = vmatprep.subr.mxu0 0.0
    %6647 = vmatpush1.msra.mxu0 0.0
    %6648 = vmatprep.subr.mxu0 0.0
    %6649 = vmatpush1.msra.mxu0 0.0
    %6650 = vmatprep.subr.mxu0 0.0
    %6651 = vmatpush1.msra.mxu0 0.0
    %6652 = vmatprep.subr.mxu0 0.0
    %6653 = vmatpush1.msra.mxu0 0.0
    %6654 = vmatprep.subr.mxu0 0.0
    %6655 = vmatpush1.msra.mxu0 0.0
    %6656 = vmatprep.subr.mxu0 0.0
    %6657 = vmatpush1.msra.mxu0 0.0
    %6658 = vmatprep.subr.mxu0 0.0
    %6659 = vmatpush1.msra.mxu0 0.0
    %6660 = vmatprep.subr.mxu0 0.0
    %6661 = vmatpush1.msra.mxu0 0.0
    %6662 = vmatprep.subr.mxu0 0.0
    %6663 = vmatpush1.msra.mxu0 0.0
    %6664 = vmatprep.subr.mxu0 0.0
    %6665 = vmatpush1.msra.mxu0 0.0
    %6666 = vmatprep.subr.mxu0 0.0
    %6667 = vmatpush1.msra.mxu0 0.0
    %6668 = vmatprep.subr.mxu0 0.0
    %6669 = vmatpush1.msra.mxu0 0.0
    %6670 = vmatprep.subr.mxu0 0.0
    %6671 = vmatpush1.msra.mxu0 0.0
    %6672 = vmatprep.subr.mxu0 0.0
    %6673 = vmatpush1.msra.mxu0 0.0
    %6674 = vmatprep.subr.mxu0 0.0
    %6675 = vmatpush1.msra.mxu0 0.0
    %6676 = vmatprep.subr.mxu0 0.0
    %6677 = vmatpush1.msra.mxu0 0.0
    %6678 = vmatprep.subr.mxu0 0.0
    %6679 = vmatpush1.msra.mxu0 0.0
    %6680 = vmatprep.subr.mxu0 0.0
    %6681 = vmatpush1.msra.mxu0 0.0
    %6682 = vmatprep.subr.mxu0 0.0
    %6683 = vmatpush1.msra.mxu0 0.0
    %6684 = vmatprep.subr.mxu0 0.0
    %6685 = vmatpush1.msra.mxu0 0.0
    %6686 = vmatprep.subr.mxu0 0.0
    %6687 = vmatpush1.msra.mxu0 0.0
    %6688 = vmatprep.subr.mxu0 0.0
    %6689 = vmatpush1.msra.mxu0 0.0
    %6690 = vmatprep.subr.mxu0 0.0
    %6691 = vmatpush1.msra.mxu0 0.0
    %6692 = vmatprep.subr.mxu0 0.0
    %6693 = vmatpush1.msra.mxu0 0.0
    %6694 = vmatprep.mubr.f32.mxu0 0.0
    %6695 = vmatmul.mubr.f32.gmra.mrb[0].mxu0 %v6439
    %v6696 = vpop.f32.mrb[0].mxu0
    %v6697 = vadd.f32 0.0, %v6696
    %v6698 = vpop.f32.mrb[0].mxu0
    %6699 = vmatprep.mubr.f32.mxu0 0.0
    %6700 = vmatmul.mubr.f32.gmra.mrb[0].mxu0 %v6442
    %v6701 = vpop.f32.mrb[0].mxu0
    %v6702 = vadd.f32 0.0, %v6701
    %v6703 = vpop.f32.mrb[0].mxu0
    %6704 = vmatprep.mubr.f32.mxu0 0.0
    %6705 = vmatmul.mubr.f32.gmra.mrb[0].mxu0 %v6445
    %v6706 = vpop.f32.mrb[0].mxu0
    %v6707 = vadd.f32 0.0, %v6706
    %v6708 = vpop.f32.mrb[0].mxu0
    %6709 = vmatprep.mubr.f32.mxu0 0.0
    %6710 = vmatmul.mubr.f32.gmra.mrb[0].mxu0 %v6448
    %v6711 = vpop.f32.mrb[0].mxu0
    %v6712 = vadd.f32 0.0, %v6711
    %v6713 = vpop.f32.mrb[0].mxu0
    %6714 = vmatprep.mubr.f32.mxu0 0.0
    %6715 = vmatmul.mubr.f32.gmra.mrb[0].mxu0 %v6451
    %v6716 = vpop.f32.mrb[0].mxu0
    %v6717 = vadd.f32 0.0, %v6716
    %v6718 = vpop.f32.mrb[0].mxu0
    %6719 = vmatprep.mubr.f32.mxu0 0.0
    %6720 = vmatmul.mubr.f32.gmra.mrb[0].mxu0 %v6454
    %v6721 = vpop.f32.mrb[0].mxu0
    %v6722 = vadd.f32 0.0, %v6721
    %v6723 = vpop.f32.mrb[0].mxu0
    %6724 = vmatprep.mubr.f32.mxu0 0.0
    %6725 = vmatmul.mubr.f32.gmra.mrb[0].mxu0 %v6457
    %v6726 = vpop.f32.mrb[0].mxu0
    %v6727 = vadd.f32 0.0, %v6726
    %v6728 = vpop.f32.mrb[0].mxu0
    %6729 = vmatprep.mubr.f32.mxu0 0.0
    %6730 = vmatmul.mubr.f32.gmra.mrb[0].mxu0 %v6460
    %v6731 = vpop.f32.mrb[0].mxu0
    %v6732 = vadd.f32 0.0, %v6731
    %v6733 = vpop.f32.mrb[0].mxu0
    %6734 = vmatprep.mubr.f32.mxu0 0.0
    %6735 = vmatmul.mubr.f32.gmra.mrb[0].mxu0 %v6463
    %v6736 = vpop.f32.mrb[0].mxu0
    %v6737 = vadd.f32 0.0, %v6736
    %v6738 = vpop.f32.mrb[0].mxu0
    %6739 = vmatprep.mubr.f32.mxu0 0.0
    %6740 = vmatmul.mubr.f32.gmra.mrb[0].mxu0 %v6466
    %v6741 = vpop.f32.mrb[0].mxu0
    %v6742 = vadd.f32 0.0, %v6741
    %v6743 = vpop.f32.mrb[0].mxu0
    %6744 = vmatprep.mubr.f32.mxu0 0.0
    %6745 = vmatmul.mubr.f32.gmra.mrb[0].mxu0 %v6469
    %v6746 = vpop.f32.mrb[0].mxu0
    %v6747 = vadd.f32 0.0, %v6746
    %v6748 = vpop.f32.mrb[0].mxu0
    %6749 = vmatprep.mubr.f32.mxu0 0.0
    %6750 = vmatmul.mubr.f32.gmra.mrb[0].mxu0 %v6472
    %v6751 = vpop.f32.mrb[0].mxu0
    %v6752 = vadd.f32 0.0, %v6751
    %v6753 = vpop.f32.mrb[0].mxu0
    %6754 = vmatprep.mubr.f32.mxu0 0.0
    %6755 = vmatmul.mubr.f32.gmra.mrb[0].mxu0 %v6475
    %v6756 = vpop.f32.mrb[0].mxu0
    %v6757 = vadd.f32 0.0, %v6756
    %v6758 = vpop.f32.mrb[0].mxu0
    %6759 = vmatprep.mubr.f32.mxu0 0.0
    %6760 = vmatmul.mubr.f32.gmra.mrb[0].mxu0 %v6478
    %v6761 = vpop.f32.mrb[0].mxu0
    %v6762 = vadd.f32 0.0, %v6761
    %v6763 = vpop.f32.mrb[0].mxu0
    %6764 = vmatprep.mubr.f32.mxu0 0.0
    %6765 = vmatmul.mubr.f32.gmra.mrb[0].mxu0 %v6481
    %v6766 = vpop.f32.mrb[0].mxu0
    %v6767 = vadd.f32 0.0, %v6766
    %v6768 = vpop.f32.mrb[0].mxu0
    %6769 = vmatprep.mubr.f32.mxu0 0.0
    %6770 = vmatmul.mubr.f32.gmra.mrb[0].mxu0 %v6484
    %v6771 = vpop.f32.mrb[0].mxu0
    %v6772 = vadd.f32 0.0, %v6771
    %v6773 = vpop.f32.mrb[0].mxu0
    %6774 = vmatprep.mubr.f32.mxu0 0.0
    %6775 = vmatmul.mubr.f32.gmra.mrb[0].mxu0 %v6487
    %v6776 = vpop.f32.mrb[0].mxu0
    %v6777 = vadd.f32 0.0, %v6776
    %v6778 = vpop.f32.mrb[0].mxu0
    %6779 = vmatprep.mubr.f32.mxu0 0.0
    %6780 = vmatmul.mubr.f32.gmra.mrb[0].mxu0 %v6490
    %v6781 = vpop.f32.mrb[0].mxu0
    %v6782 = vadd.f32 0.0, %v6781
    %v6783 = vpop.f32.mrb[0].mxu0
    %6784 = vmatprep.mubr.f32.mxu0 0.0
    %6785 = vmatmul.mubr.f32.gmra.mrb[0].mxu0 %v6493
    %v6786 = vpop.f32.mrb[0].mxu0
    %v6787 = vadd.f32 0.0, %v6786
    %v6788 = vpop.f32.mrb[0].mxu0
    %6789 = vmatprep.mubr.f32.mxu0 0.0
    %6790 = vmatmul.mubr.f32.gmra.mrb[0].mxu0 %v6496
    %v6791 = vpop.f32.mrb[0].mxu0
    %v6792 = vadd.f32 0.0, %v6791
    %v6793 = vpop.f32.mrb[0].mxu0
    %6794 = vmatprep.mubr.f32.mxu0 0.0
    %6795 = vmatmul.mubr.f32.gmra.mrb[0].mxu0 %v6499
    %v6796 = vpop.f32.mrb[0].mxu0
    %v6797 = vadd.f32 0.0, %v6796
    %v6798 = vpop.f32.mrb[0].mxu0
    %6799 = vmatprep.mubr.f32.mxu0 0.0
    %6800 = vmatmul.mubr.f32.gmra.mrb[0].mxu0 %v6502
    %v6801 = vpop.f32.mrb[0].mxu0
    %v6802 = vadd.f32 0.0, %v6801
    %v6803 = vpop.f32.mrb[0].mxu0
    %6804 = vmatprep.mubr.f32.mxu0 0.0
    %6805 = vmatmul.mubr.f32.gmra.mrb[0].mxu0 %v6505
    %v6806 = vpop.f32.mrb[0].mxu0
    %v6807 = vadd.f32 0.0, %v6806
    %v6808 = vpop.f32.mrb[0].mxu0
    %6809 = vmatprep.mubr.f32.mxu0 0.0
    %6810 = vmatmul.mubr.f32.gmra.mrb[0].mxu0 %v6508
    %v6811 = vpop.f32.mrb[0].mxu0
    %v6812 = vadd.f32 0.0, %v6811
    %v6813 = vpop.f32.mrb[0].mxu0
    %6814 = vmatprep.mubr.f32.mxu0 0.0
    %6815 = vmatmul.mubr.f32.gmra.mrb[0].mxu0 %v6511
    %v6816 = vpop.f32.mrb[0].mxu0
    %v6817 = vadd.f32 0.0, %v6816
    %v6818 = vpop.f32.mrb[0].mxu0
    %6819 = vmatprep.mubr.f32.mxu0 0.0
    %6820 = vmatmul.mubr.f32.gmra.mrb[0].mxu0 %v6514
    %v6821 = vpop.f32.mrb[0].mxu0
    %v6822 = vadd.f32 0.0, %v6821
    %v6823 = vpop.f32.mrb[0].mxu0
    %6824 = vmatprep.mubr.f32.mxu0 0.0
    %6825 = vmatmul.mubr.f32.gmra.mrb[0].mxu0 %v6517
    %v6826 = vpop.f32.mrb[0].mxu0
    %v6827 = vadd.f32 0.0, %v6826
    %v6828 = vpop.f32.mrb[0].mxu0
    %6829 = vmatprep.mubr.f32.mxu0 0.0
    %6830 = vmatmul.mubr.f32.gmra.mrb[0].mxu0 %v6520
    %v6831 = vpop.f32.mrb[0].mxu0
    %v6832 = vadd.f32 0.0, %v6831
    %v6833 = vpop.f32.mrb[0].mxu0
    %6834 = vmatprep.mubr.f32.mxu0 0.0
    %6835 = vmatmul.mubr.f32.gmra.mrb[0].mxu0 %v6523
    %v6836 = vpop.f32.mrb[0].mxu0
    %v6837 = vadd.f32 0.0, %v6836
    %v6838 = vpop.f32.mrb[0].mxu0
    %6839 = vmatprep.mubr.f32.mxu0 0.0
    %6840 = vmatmul.mubr.f32.gmra.mrb[0].mxu0 %v6526
    %v6841 = vpop.f32.mrb[0].mxu0
    %v6842 = vadd.f32 0.0, %v6841
    %v6843 = vpop.f32.mrb[0].mxu0
    %6844 = vmatprep.mubr.f32.mxu0 0.0
    %6845 = vmatmul.mubr.f32.gmra.mrb[0].mxu0 %v6529
    %v6846 = vpop.f32.mrb[0].mxu0
    %v6847 = vadd.f32 0.0, %v6846
    %v6848 = vpop.f32.mrb[0].mxu0
    %6849 = vmatprep.mubr.f32.mxu0 0.0
    %6850 = vmatmul.mubr.f32.gmra.mrb[0].mxu0 %v6532
    %v6851 = vpop.f32.mrb[0].mxu0
    %v6852 = vadd.f32 0.0, %v6851
    %v6853 = vpop.f32.mrb[0].mxu0
    %6854 = vmatprep.mubr.f32.mxu0 0.0
    %6855 = vmatmul.mubr.f32.gmra.mrb[0].mxu0 %v6535
    %v6856 = vpop.f32.mrb[0].mxu0
    %v6857 = vadd.f32 0.0, %v6856
    %v6858 = vpop.f32.mrb[0].mxu0
    %6859 = vmatprep.mubr.f32.mxu0 0.0
    %6860 = vmatmul.mubr.f32.gmra.mrb[0].mxu0 %v6538
    %v6861 = vpop.f32.mrb[0].mxu0
    %v6862 = vadd.f32 0.0, %v6861
    %v6863 = vpop.f32.mrb[0].mxu0
    %6864 = vmatprep.mubr.f32.mxu0 0.0
    %6865 = vmatmul.mubr.f32.gmra.mrb[0].mxu0 %v6541
    %v6866 = vpop.f32.mrb[0].mxu0
    %v6867 = vadd.f32 0.0, %v6866
    %v6868 = vpop.f32.mrb[0].mxu0
    %6869 = vmatprep.mubr.f32.mxu0 0.0
    %6870 = vmatmul.mubr.f32.gmra.mrb[0].mxu0 %v6544
    %v6871 = vpop.f32.mrb[0].mxu0
    %v6872 = vadd.f32 0.0, %v6871
    %v6873 = vpop.f32.mrb[0].mxu0
    %6874 = vmatprep.mubr.f32.mxu0 0.0
    %6875 = vmatmul.mubr.f32.gmra.mrb[0].mxu0 %v6547
    %v6876 = vpop.f32.mrb[0].mxu0
    %v6877 = vadd.f32 0.0, %v6876
    %v6878 = vpop.f32.mrb[0].mxu0
    %6879 = vmatprep.mubr.f32.mxu0 0.0
    %6880 = vmatmul.mubr.f32.gmra.mrb[0].mxu0 %v6550
    %v6881 = vpop.f32.mrb[0].mxu0
    %v6882 = vadd.f32 0.0, %v6881
    %v6883 = vpop.f32.mrb[0].mxu0
    %6884 = vmatprep.mubr.f32.mxu0 0.0
    %6885 = vmatmul.mubr.f32.gmra.mrb[0].mxu0 %v6553
    %v6886 = vpop.f32.mrb[0].mxu0
    %v6887 = vadd.f32 0.0, %v6886
    %v6888 = vpop.f32.mrb[0].mxu0
    %6889 = vmatprep.mubr.f32.mxu0 0.0
    %6890 = vmatmul.mubr.f32.gmra.mrb[0].mxu0 %v6556
    %v6891 = vpop.f32.mrb[0].mxu0
    %v6892 = vadd.f32 0.0, %v6891
    %v6893 = vpop.f32.mrb[0].mxu0
    %6894 = vmatprep.mubr.f32.mxu0 0.0
    %6895 = vmatmul.mubr.f32.gmra.mrb[0].mxu0 %v6559
    %v6896 = vpop.f32.mrb[0].mxu0
    %v6897 = vadd.f32 0.0, %v6896
    %v6898 = vpop.f32.mrb[0].mxu0
    %6899 = vmatprep.mubr.f32.mxu0 0.0
    %6900 = vmatmul.mubr.f32.gmra.mrb[0].mxu0 %v6562
    %v6901 = vpop.f32.mrb[0].mxu0
    %v6902 = vadd.f32 0.0, %v6901
    %v6903 = vpop.f32.mrb[0].mxu0
    %6904 = vmatprep.mubr.f32.mxu0 0.0
    %6905 = vmatmul.mubr.f32.gmra.mrb[0].mxu0 %v6565
    %v6906 = vpop.f32.mrb[0].mxu0
    %v6907 = vadd.f32 0.0, %v6906
    %v6908 = vpop.f32.mrb[0].mxu0
    %6909 = vmatprep.mubr.f32.mxu0 0.0
    %6910 = vmatmul.mubr.f32.gmra.mrb[0].mxu0 %v6568
    %v6911 = vpop.f32.mrb[0].mxu0
    %v6912 = vadd.f32 0.0, %v6911
    %v6913 = vpop.f32.mrb[0].mxu0
    %6914 = vmatprep.mubr.f32.mxu0 0.0
    %6915 = vmatmul.mubr.f32.gmra.mrb[0].mxu0 %v6571
    %v6916 = vpop.f32.mrb[0].mxu0
    %v6917 = vadd.f32 0.0, %v6916
    %v6918 = vpop.f32.mrb[0].mxu0
    %6919 = vmatprep.mubr.f32.mxu0 0.0
    %6920 = vmatmul.mubr.f32.gmra.mrb[0].mxu0 %v6574
    %v6921 = vpop.f32.mrb[0].mxu0
    %v6922 = vadd.f32 0.0, %v6921
    %v6923 = vpop.f32.mrb[0].mxu0
    %6924 = vmatprep.mubr.f32.mxu0 0.0
    %6925 = vmatmul.mubr.f32.gmra.mrb[0].mxu0 %v6577
    %v6926 = vpop.f32.mrb[0].mxu0
    %v6927 = vadd.f32 0.0, %v6926
    %v6928 = vpop.f32.mrb[0].mxu0
    %6929 = vmatprep.mubr.f32.mxu0 0.0
    %6930 = vmatmul.mubr.f32.gmra.mrb[0].mxu0 %v6580
    %v6931 = vpop.f32.mrb[0].mxu0
    %v6932 = vadd.f32 0.0, %v6931
    %v6933 = vpop.f32.mrb[0].mxu0
    %6934 = vmatprep.mubr.f32.mxu0 0.0
    %6935 = vmatmul.mubr.f32.gmra.mrb[0].mxu0 %v6583
    %v6936 = vpop.f32.mrb[0].mxu0
    %v6937 = vadd.f32 0.0, %v6936
    %v6938 = vpop.f32.mrb[0].mxu0
    %6939 = vmatprep.mubr.f32.mxu0 0.0
    %6940 = vmatmul.mubr.f32.gmra.mrb[0].mxu0 %v6586
    %v6941 = vpop.f32.mrb[0].mxu0
    %v6942 = vadd.f32 0.0, %v6941
    %v6943 = vpop.f32.mrb[0].mxu0
    %6944 = vmatprep.mubr.f32.mxu0 0.0
    %6945 = vmatmul.mubr.f32.gmra.mrb[0].mxu0 %v6589
    %v6946 = vpop.f32.mrb[0].mxu0
    %v6947 = vadd.f32 0.0, %v6946
    %v6948 = vpop.f32.mrb[0].mxu0
    %6949 = vmatprep.mubr.f32.mxu0 0.0
    %6950 = vmatmul.mubr.f32.gmra.mrb[0].mxu0 %v6592
    %v6951 = vpop.f32.mrb[0].mxu0
    %v6952 = vadd.f32 0.0, %v6951
    %v6953 = vpop.f32.mrb[0].mxu0
    %6954 = vmatprep.mubr.f32.mxu0 0.0
    %6955 = vmatmul.mubr.f32.gmra.mrb[0].mxu0 %v6595
    %v6956 = vpop.f32.mrb[0].mxu0
    %v6957 = vadd.f32 0.0, %v6956
    %v6958 = vpop.f32.mrb[0].mxu0
    %6959 = vmatprep.mubr.f32.mxu0 0.0
    %6960 = vmatmul.mubr.f32.gmra.mrb[0].mxu0 %v6598
    %v6961 = vpop.f32.mrb[0].mxu0
    %v6962 = vadd.f32 0.0, %v6961
    %v6963 = vpop.f32.mrb[0].mxu0
    %6964 = vmatprep.mubr.f32.mxu0 0.0
    %6965 = vmatmul.mubr.f32.gmra.mrb[0].mxu0 %v6601
    %v6966 = vpop.f32.mrb[0].mxu0
    %v6967 = vadd.f32 0.0, %v6966
    %v6968 = vpop.f32.mrb[0].mxu0
    %6969 = vmatprep.mubr.f32.mxu0 0.0
    %6970 = vmatmul.mubr.f32.gmra.mrb[0].mxu0 %v6604
    %v6971 = vpop.f32.mrb[0].mxu0
    %v6972 = vadd.f32 0.0, %v6971
    %v6973 = vpop.f32.mrb[0].mxu0
    %6974 = vmatprep.mubr.f32.mxu0 0.0
    %6975 = vmatmul.mubr.f32.gmra.mrb[0].mxu0 %v6607
    %v6976 = vpop.f32.mrb[0].mxu0
    %v6977 = vadd.f32 0.0, %v6976
    %v6978 = vpop.f32.mrb[0].mxu0
    %6979 = vmatprep.mubr.f32.mxu0 0.0
    %6980 = vmatmul.mubr.f32.gmra.mrb[0].mxu0 %v6610
    %v6981 = vpop.f32.mrb[0].mxu0
    %v6982 = vadd.f32 0.0, %v6981
    %v6983 = vpop.f32.mrb[0].mxu0
    %6984 = vmatprep.mubr.f32.mxu0 0.0
    %6985 = vmatmul.mubr.f32.gmra.mrb[0].mxu0 %v6613
    %v6986 = vpop.f32.mrb[0].mxu0
    %v6987 = vadd.f32 0.0, %v6986
    %v6988 = vpop.f32.mrb[0].mxu0
    %6989 = vmatprep.mubr.f32.mxu0 0.0
    %6990 = vmatmul.mubr.f32.gmra.mrb[0].mxu0 %v6616
    %v6991 = vpop.f32.mrb[0].mxu0
    %v6992 = vadd.f32 0.0, %v6991
    %v6993 = vpop.f32.mrb[0].mxu0
    %6994 = vmatprep.mubr.f32.mxu0 0.0
    %6995 = vmatmul.mubr.f32.gmra.mrb[0].mxu0 %v6619
    %v6996 = vpop.f32.mrb[0].mxu0
    %v6997 = vadd.f32 0.0, %v6996
    %v6998 = vpop.f32.mrb[0].mxu0
    %6999 = vmatprep.mubr.f32.mxu0 0.0
    %7000 = vmatmul.mubr.f32.gmra.mrb[0].mxu0 %v6622
    %v7001 = vpop.f32.mrb[0].mxu0
    %v7002 = vadd.f32 0.0, %v7001
    %v7003 = vpop.f32.mrb[0].mxu0
    %7004 = vmatprep.mubr.f32.mxu0 0.0
    %7005 = vmatmul.mubr.f32.gmra.mrb[0].mxu0 %v6625
    %v7006 = vpop.f32.mrb[0].mxu0
    %v7007 = vadd.f32 0.0, %v7006
    %v7008 = vpop.f32.mrb[0].mxu0
    %7009 = vmatprep.mubr.f32.mxu0 0.0
    %7010 = vmatmul.mubr.f32.gmra.mrb[0].mxu0 %v6628
    %v7011 = vpop.f32.mrb[0].mxu0
    %v7012 = vadd.f32 0.0, %v7011
    %v7013 = vpop.f32.mrb[0].mxu0
    %7014 = vdwg.mxu0
    %v7015 = vadd.f32 %v6305, %v6697
    %v7016 = vadd.f32 %v6306, %v6702
    %v7017 = vadd.f32 %v6307, %v6707
    %v7018 = vadd.f32 %v6308, %v6712
    %v7019 = vadd.f32 %v6309, %v6717
    %v7020 = vadd.f32 %v6310, %v6722
    %v7021 = vadd.f32 %v6311, %v6727
    %v7022 = vadd.f32 %v6312, %v6732
    %v7023 = vadd.f32 %v6313, %v6737
    %v7024 = vadd.f32 %v6314, %v6742
    %v7025 = vadd.f32 %v6315, %v6747
    %v7026 = vadd.f32 %v6316, %v6752
    %v7027 = vadd.f32 %v6317, %v6757
    %v7028 = vadd.f32 %v6318, %v6762
    %v7029 = vadd.f32 %v6319, %v6767
    %v7030 = vadd.f32 %v6320, %v6772
    %v7031 = vadd.f32 %v6321, %v6777
    %v7032 = vadd.f32 %v6322, %v6782
    %v7033 = vadd.f32 %v6323, %v6787
    %v7034 = vadd.f32 %v6324, %v6792
    %v7035 = vadd.f32 %v6325, %v6797
    %v7036 = vadd.f32 %v6326, %v6802
    %v7037 = vadd.f32 %v6327, %v6807
    %v7038 = vadd.f32 %v6328, %v6812
    %v7039 = vadd.f32 %v6329, %v6817
    %v7040 = vadd.f32 %v6330, %v6822
    %v7041 = vadd.f32 %v6331, %v6827
    %v7042 = vadd.f32 %v6332, %v6832
    %v7043 = vadd.f32 %v6333, %v6837
    %v7044 = vadd.f32 %v6334, %v6842
    %v7045 = vadd.f32 %v6335, %v6847
    %v7046 = vadd.f32 %v6336, %v6852
    %v7047 = vadd.f32 %v6337, %v6857
    %v7048 = vadd.f32 %v6338, %v6862
    %v7049 = vadd.f32 %v6339, %v6867
    %v7050 = vadd.f32 %v6340, %v6872
    %v7051 = vadd.f32 %v6341, %v6877
    %v7052 = vadd.f32 %v6342, %v6882
    %v7053 = vadd.f32 %v6343, %v6887
    %v7054 = vadd.f32 %v6344, %v6892
    %v7055 = vadd.f32 %v6345, %v6897
    %v7056 = vadd.f32 %v6346, %v6902
    %v7057 = vadd.f32 %v6347, %v6907
    %v7058 = vadd.f32 %v6348, %v6912
    %v7059 = vadd.f32 %v6349, %v6917
    %v7060 = vadd.f32 %v6350, %v6922
    %v7061 = vadd.f32 %v6351, %v6927
    %v7062 = vadd.f32 %v6352, %v6932
    %v7063 = vadd.f32 %v6353, %v6937
    %v7064 = vadd.f32 %v6354, %v6942
    %v7065 = vadd.f32 %v6355, %v6947
    %v7066 = vadd.f32 %v6356, %v6952
    %v7067 = vadd.f32 %v6357, %v6957
    %v7068 = vadd.f32 %v6358, %v6962
    %v7069 = vadd.f32 %v6359, %v6967
    %v7070 = vadd.f32 %v6360, %v6972
    %v7071 = vadd.f32 %v6361, %v6977
    %v7072 = vadd.f32 %v6362, %v6982
    %v7073 = vadd.f32 %v6363, %v6987
    %v7074 = vadd.f32 %v6364, %v6992
    %v7075 = vadd.f32 %v6365, %v6997
    %v7076 = vadd.f32 %v6366, %v7002
    %v7077 = vadd.f32 %v6367, %v7007
    %v7078 = vadd.f32 %v6368, %v7012
    %v7079 = vld [vmem:[%s5658 + $0x2] sm:$0xff]
    %v7080 = vld [vmem:[%s5658 + $0x12] sm:$0xff]
    %v7081 = vld [vmem:[%s5658 + $0x22] sm:$0xff]
    %v7082 = vld [vmem:[%s5658 + $0x32] sm:$0xff]
    %v7083 = vld [vmem:[%s5658 + $0x42] sm:$0xff]
    %v7084 = vld [vmem:[%s5658 + $0x52] sm:$0xff]
    %v7085 = vld [vmem:[%s5658 + $0x62] sm:$0xff]
    %v7086 = vld [vmem:[%s5658 + $0x72] sm:$0xff]
    %v7087 = vld [vmem:[%s5658 + $0xa2] sm:$0xff]
    %v7088 = vld [vmem:[%s5658 + $0xb2] sm:$0xff]
    %v7089 = vld [vmem:[%s5658 + $0xc2] sm:$0xff]
    %v7090 = vld [vmem:[%s5658 + $0xd2] sm:$0xff]
    %v7091 = vld [vmem:[%s5658 + $0xe2] sm:$0xff]
    %v7092 = vld [vmem:[%s5658 + $0xf2] sm:$0xff]
    %v7093 = vld [vmem:[%s5658 + $0x102] sm:$0xff]
    %v7094 = vld [vmem:[%s5658 + $0x112] sm:$0xff]
    %v7095 = vld [vmem:[%s5658 + $0x142] sm:$0xff]
    %v7096 = vld [vmem:[%s5658 + $0x152] sm:$0xff]
    %v7097 = vld [vmem:[%s5658 + $0x162] sm:$0xff]
    %v7098 = vld [vmem:[%s5658 + $0x172] sm:$0xff]
    %v7099 = vld [vmem:[%s5658 + $0x182] sm:$0xff]
    %v7100 = vld [vmem:[%s5658 + $0x192] sm:$0xff]
    %v7101 = vld [vmem:[%s5658 + $0x1a2] sm:$0xff]
    %v7102 = vld [vmem:[%s5658 + $0x1b2] sm:$0xff]
    %v7103 = vld [vmem:[%s5658 + $0x1e2] sm:$0xff]
    %v7104 = vld [vmem:[%s5658 + $0x1f2] sm:$0xff]
    %v7105 = vld [vmem:[%s5658 + $0x202] sm:$0xff]
    %v7106 = vld [vmem:[%s5658 + $0x212] sm:$0xff]
    %v7107 = vld [vmem:[%s5658 + $0x222] sm:$0xff]
    %v7108 = vld [vmem:[%s5658 + $0x232] sm:$0xff]
    %v7109 = vld [vmem:[%s5658 + $0x242] sm:$0xff]
    %v7110 = vld [vmem:[%s5658 + $0x252] sm:$0xff]
    %v7111 = vld [vmem:[%s5658 + $0x282] sm:$0xff]
    %v7112 = vld [vmem:[%s5658 + $0x292] sm:$0xff]
    %v7113 = vld [vmem:[%s5658 + $0x2a2] sm:$0xff]
    %v7114 = vld [vmem:[%s5658 + $0x2b2] sm:$0xff]
    %v7115 = vld [vmem:[%s5658 + $0x2c2] sm:$0xff]
    %v7116 = vld [vmem:[%s5658 + $0x2d2] sm:$0xff]
    %v7117 = vld [vmem:[%s5658 + $0x2e2] sm:$0xff]
    %v7118 = vld [vmem:[%s5658 + $0x2f2] sm:$0xff]
    %v7119 = vld [vmem:[%s5658 + $0x322] sm:$0xff]
    %v7120 = vld [vmem:[%s5658 + $0x332] sm:$0xff]
    %v7121 = vld [vmem:[%s5658 + $0x342] sm:$0xff]
    %v7122 = vld [vmem:[%s5658 + $0x352] sm:$0xff]
    %v7123 = vld [vmem:[%s5658 + $0x362] sm:$0xff]
    %v7124 = vld [vmem:[%s5658 + $0x372] sm:$0xff]
    %v7125 = vld [vmem:[%s5658 + $0x382] sm:$0xff]
    %v7126 = vld [vmem:[%s5658 + $0x392] sm:$0xff]
    %v7127 = vld [vmem:[%s5658 + $0x3c2] sm:$0xff]
    %v7128 = vld [vmem:[%s5658 + $0x3d2] sm:$0xff]
    %v7129 = vld [vmem:[%s5658 + $0x3e2] sm:$0xff]
    %v7130 = vld [vmem:[%s5658 + $0x3f2] sm:$0xff]
    %v7131 = vld [vmem:[%s5658 + $0x402] sm:$0xff]
    %v7132 = vld [vmem:[%s5658 + $0x412] sm:$0xff]
    %v7133 = vld [vmem:[%s5658 + $0x422] sm:$0xff]
    %v7134 = vld [vmem:[%s5658 + $0x432] sm:$0xff]
    %v7135 = vld [vmem:[%s5658 + $0x462] sm:$0xff]
    %v7136 = vld [vmem:[%s5658 + $0x472] sm:$0xff]
    %v7137 = vld [vmem:[%s5658 + $0x482] sm:$0xff]
    %v7138 = vld [vmem:[%s5658 + $0x492] sm:$0xff]
    %v7139 = vld [vmem:[%s5658 + $0x4a2] sm:$0xff]
    %v7140 = vld [vmem:[%s5658 + $0x4b2] sm:$0xff]
    %v7141 = vld [vmem:[%s5658 + $0x4c2] sm:$0xff]
    %v7142 = vld [vmem:[%s5658 + $0x4d2] sm:$0xff]
    %s7143 = scalar_lea.vmem %s5, 256
    %v7144 = vld [vmem:[%s7143] sm:$0xff]
    %v7145 = vld [vmem:[%s7143 + $0x8] sm:$0xff]
    %v7146 = vld [vmem:[%s7143 + $0x10] sm:$0xff]
    %v7147 = vld [vmem:[%s7143 + $0x18] sm:$0xff]
    %v7149 = vsel %vm717, %v7079, 0
    %v7152 = vsel %vm717, %v7080, 0
    %v7155 = vsel %vm717, %v7081, 0
    %v7158 = vsel %vm717, %v7082, 0
    %v7161 = vsel %vm717, %v7083, 0
    %v7164 = vsel %vm717, %v7084, 0
    %v7167 = vsel %vm717, %v7085, 0
    %v7170 = vsel %vm717, %v7086, 0
    %v7173 = vsel %vm717, %v7087, 0
    %v7176 = vsel %vm717, %v7088, 0
    %v7179 = vsel %vm717, %v7089, 0
    %v7182 = vsel %vm717, %v7090, 0
    %v7185 = vsel %vm717, %v7091, 0
    %v7188 = vsel %vm717, %v7092, 0
    %v7191 = vsel %vm717, %v7093, 0
    %v7194 = vsel %vm717, %v7094, 0
    %v7197 = vsel %vm717, %v7095, 0
    %v7200 = vsel %vm717, %v7096, 0
    %v7203 = vsel %vm717, %v7097, 0
    %v7206 = vsel %vm717, %v7098, 0
    %v7209 = vsel %vm717, %v7099, 0
    %v7212 = vsel %vm717, %v7100, 0
    %v7215 = vsel %vm717, %v7101, 0
    %v7218 = vsel %vm717, %v7102, 0
    %v7221 = vsel %vm717, %v7103, 0
    %v7224 = vsel %vm717, %v7104, 0
    %v7227 = vsel %vm717, %v7105, 0
    %v7230 = vsel %vm717, %v7106, 0
    %v7233 = vsel %vm717, %v7107, 0
    %v7236 = vsel %vm717, %v7108, 0
    %v7239 = vsel %vm717, %v7109, 0
    %v7242 = vsel %vm717, %v7110, 0
    %v7245 = vsel %vm717, %v7111, 0
    %v7248 = vsel %vm717, %v7112, 0
    %v7251 = vsel %vm717, %v7113, 0
    %v7254 = vsel %vm717, %v7114, 0
    %v7257 = vsel %vm717, %v7115, 0
    %v7260 = vsel %vm717, %v7116, 0
    %v7263 = vsel %vm717, %v7117, 0
    %v7266 = vsel %vm717, %v7118, 0
    %v7269 = vsel %vm717, %v7119, 0
    %v7272 = vsel %vm717, %v7120, 0
    %v7275 = vsel %vm717, %v7121, 0
    %v7278 = vsel %vm717, %v7122, 0
    %v7281 = vsel %vm717, %v7123, 0
    %v7284 = vsel %vm717, %v7124, 0
    %v7287 = vsel %vm717, %v7125, 0
    %v7290 = vsel %vm717, %v7126, 0
    %v7293 = vsel %vm717, %v7127, 0
    %v7296 = vsel %vm717, %v7128, 0
    %v7299 = vsel %vm717, %v7129, 0
    %v7302 = vsel %vm717, %v7130, 0
    %v7305 = vsel %vm717, %v7131, 0
    %v7308 = vsel %vm717, %v7132, 0
    %v7311 = vsel %vm717, %v7133, 0
    %v7314 = vsel %vm717, %v7134, 0
    %v7317 = vsel %vm717, %v7135, 0
    %v7320 = vsel %vm717, %v7136, 0
    %v7323 = vsel %vm717, %v7137, 0
    %v7326 = vsel %vm717, %v7138, 0
    %v7329 = vsel %vm717, %v7139, 0
    %v7332 = vsel %vm717, %v7140, 0
    %v7335 = vsel %vm717, %v7141, 0
    %v7338 = vsel %vm717, %v7142, 0
    %7340 = vmatprep.subr.mxu0 0.0
    %7341 = vmatpush1.msra.mxu0 %v7144
    %7342 = vmatprep.subr.mxu0 0.0
    %7343 = vmatpush1.msra.mxu0 %v7145
    %7344 = vmatprep.subr.mxu0 0.0
    %7345 = vmatpush1.msra.mxu0 %v7146
    %7346 = vmatprep.subr.mxu0 0.0
    %7347 = vmatpush1.msra.mxu0 %v7147
    %7348 = vmatprep.subr.mxu0 0.0
    %7349 = vmatpush1.msra.mxu0 0.0
    %7350 = vmatprep.subr.mxu0 0.0
    %7351 = vmatpush1.msra.mxu0 0.0
    %7352 = vmatprep.subr.mxu0 0.0
    %7353 = vmatpush1.msra.mxu0 0.0
    %7354 = vmatprep.subr.mxu0 0.0
    %7355 = vmatpush1.msra.mxu0 0.0
    %7356 = vmatprep.subr.mxu0 0.0
    %7357 = vmatpush1.msra.mxu0 0.0
    %7358 = vmatprep.subr.mxu0 0.0
    %7359 = vmatpush1.msra.mxu0 0.0
    %7360 = vmatprep.subr.mxu0 0.0
    %7361 = vmatpush1.msra.mxu0 0.0
    %7362 = vmatprep.subr.mxu0 0.0
    %7363 = vmatpush1.msra.mxu0 0.0
    %7364 = vmatprep.subr.mxu0 0.0
    %7365 = vmatpush1.msra.mxu0 0.0
    %7366 = vmatprep.subr.mxu0 0.0
    %7367 = vmatpush1.msra.mxu0 0.0
    %7368 = vmatprep.subr.mxu0 0.0
    %7369 = vmatpush1.msra.mxu0 0.0
    %7370 = vmatprep.subr.mxu0 0.0
    %7371 = vmatpush1.msra.mxu0 0.0
    %7372 = vmatprep.subr.mxu0 0.0
    %7373 = vmatpush1.msra.mxu0 0.0
    %7374 = vmatprep.subr.mxu0 0.0
    %7375 = vmatpush1.msra.mxu0 0.0
    %7376 = vmatprep.subr.mxu0 0.0
    %7377 = vmatpush1.msra.mxu0 0.0
    %7378 = vmatprep.subr.mxu0 0.0
    %7379 = vmatpush1.msra.mxu0 0.0
    %7380 = vmatprep.subr.mxu0 0.0
    %7381 = vmatpush1.msra.mxu0 0.0
    %7382 = vmatprep.subr.mxu0 0.0
    %7383 = vmatpush1.msra.mxu0 0.0
    %7384 = vmatprep.subr.mxu0 0.0
    %7385 = vmatpush1.msra.mxu0 0.0
    %7386 = vmatprep.subr.mxu0 0.0
    %7387 = vmatpush1.msra.mxu0 0.0
    %7388 = vmatprep.subr.mxu0 0.0
    %7389 = vmatpush1.msra.mxu0 0.0
    %7390 = vmatprep.subr.mxu0 0.0
    %7391 = vmatpush1.msra.mxu0 0.0
    %7392 = vmatprep.subr.mxu0 0.0
    %7393 = vmatpush1.msra.mxu0 0.0
    %7394 = vmatprep.subr.mxu0 0.0
    %7395 = vmatpush1.msra.mxu0 0.0
    %7396 = vmatprep.subr.mxu0 0.0
    %7397 = vmatpush1.msra.mxu0 0.0
    %7398 = vmatprep.subr.mxu0 0.0
    %7399 = vmatpush1.msra.mxu0 0.0
    %7400 = vmatprep.subr.mxu0 0.0
    %7401 = vmatpush1.msra.mxu0 0.0
    %7402 = vmatprep.subr.mxu0 0.0
    %7403 = vmatpush1.msra.mxu0 0.0
    %7404 = vmatprep.mubr.f32.mxu0 0.0
    %7405 = vmatmul.mubr.f32.gmra.mrb[0].mxu0 %v7149
    %v7406 = vpop.f32.mrb[0].mxu0
    %v7407 = vadd.f32 0.0, %v7406
    %v7408 = vpop.f32.mrb[0].mxu0
    %7409 = vmatprep.mubr.f32.mxu0 0.0
    %7410 = vmatmul.mubr.f32.gmra.mrb[0].mxu0 %v7152
    %v7411 = vpop.f32.mrb[0].mxu0
    %v7412 = vadd.f32 0.0, %v7411
    %v7413 = vpop.f32.mrb[0].mxu0
    %7414 = vmatprep.mubr.f32.mxu0 0.0
    %7415 = vmatmul.mubr.f32.gmra.mrb[0].mxu0 %v7155
    %v7416 = vpop.f32.mrb[0].mxu0
    %v7417 = vadd.f32 0.0, %v7416
    %v7418 = vpop.f32.mrb[0].mxu0
    %7419 = vmatprep.mubr.f32.mxu0 0.0
    %7420 = vmatmul.mubr.f32.gmra.mrb[0].mxu0 %v7158
    %v7421 = vpop.f32.mrb[0].mxu0
    %v7422 = vadd.f32 0.0, %v7421
    %v7423 = vpop.f32.mrb[0].mxu0
    %7424 = vmatprep.mubr.f32.mxu0 0.0
    %7425 = vmatmul.mubr.f32.gmra.mrb[0].mxu0 %v7161
    %v7426 = vpop.f32.mrb[0].mxu0
    %v7427 = vadd.f32 0.0, %v7426
    %v7428 = vpop.f32.mrb[0].mxu0
    %7429 = vmatprep.mubr.f32.mxu0 0.0
    %7430 = vmatmul.mubr.f32.gmra.mrb[0].mxu0 %v7164
    %v7431 = vpop.f32.mrb[0].mxu0
    %v7432 = vadd.f32 0.0, %v7431
    %v7433 = vpop.f32.mrb[0].mxu0
    %7434 = vmatprep.mubr.f32.mxu0 0.0
    %7435 = vmatmul.mubr.f32.gmra.mrb[0].mxu0 %v7167
    %v7436 = vpop.f32.mrb[0].mxu0
    %v7437 = vadd.f32 0.0, %v7436
    %v7438 = vpop.f32.mrb[0].mxu0
    %7439 = vmatprep.mubr.f32.mxu0 0.0
    %7440 = vmatmul.mubr.f32.gmra.mrb[0].mxu0 %v7170
    %v7441 = vpop.f32.mrb[0].mxu0
    %v7442 = vadd.f32 0.0, %v7441
    %v7443 = vpop.f32.mrb[0].mxu0
    %7444 = vmatprep.mubr.f32.mxu0 0.0
    %7445 = vmatmul.mubr.f32.gmra.mrb[0].mxu0 %v7173
    %v7446 = vpop.f32.mrb[0].mxu0
    %v7447 = vadd.f32 0.0, %v7446
    %v7448 = vpop.f32.mrb[0].mxu0
    %7449 = vmatprep.mubr.f32.mxu0 0.0
    %7450 = vmatmul.mubr.f32.gmra.mrb[0].mxu0 %v7176
    %v7451 = vpop.f32.mrb[0].mxu0
    %v7452 = vadd.f32 0.0, %v7451
    %v7453 = vpop.f32.mrb[0].mxu0
    %7454 = vmatprep.mubr.f32.mxu0 0.0
    %7455 = vmatmul.mubr.f32.gmra.mrb[0].mxu0 %v7179
    %v7456 = vpop.f32.mrb[0].mxu0
    %v7457 = vadd.f32 0.0, %v7456
    %v7458 = vpop.f32.mrb[0].mxu0
    %7459 = vmatprep.mubr.f32.mxu0 0.0
    %7460 = vmatmul.mubr.f32.gmra.mrb[0].mxu0 %v7182
    %v7461 = vpop.f32.mrb[0].mxu0
    %v7462 = vadd.f32 0.0, %v7461
    %v7463 = vpop.f32.mrb[0].mxu0
    %7464 = vmatprep.mubr.f32.mxu0 0.0
    %7465 = vmatmul.mubr.f32.gmra.mrb[0].mxu0 %v7185
    %v7466 = vpop.f32.mrb[0].mxu0
    %v7467 = vadd.f32 0.0, %v7466
    %v7468 = vpop.f32.mrb[0].mxu0
    %7469 = vmatprep.mubr.f32.mxu0 0.0
    %7470 = vmatmul.mubr.f32.gmra.mrb[0].mxu0 %v7188
    %v7471 = vpop.f32.mrb[0].mxu0
    %v7472 = vadd.f32 0.0, %v7471
    %v7473 = vpop.f32.mrb[0].mxu0
    %7474 = vmatprep.mubr.f32.mxu0 0.0
    %7475 = vmatmul.mubr.f32.gmra.mrb[0].mxu0 %v7191
    %v7476 = vpop.f32.mrb[0].mxu0
    %v7477 = vadd.f32 0.0, %v7476
    %v7478 = vpop.f32.mrb[0].mxu0
    %7479 = vmatprep.mubr.f32.mxu0 0.0
    %7480 = vmatmul.mubr.f32.gmra.mrb[0].mxu0 %v7194
    %v7481 = vpop.f32.mrb[0].mxu0
    %v7482 = vadd.f32 0.0, %v7481
    %v7483 = vpop.f32.mrb[0].mxu0
    %7484 = vmatprep.mubr.f32.mxu0 0.0
    %7485 = vmatmul.mubr.f32.gmra.mrb[0].mxu0 %v7197
    %v7486 = vpop.f32.mrb[0].mxu0
    %v7487 = vadd.f32 0.0, %v7486
    %v7488 = vpop.f32.mrb[0].mxu0
    %7489 = vmatprep.mubr.f32.mxu0 0.0
    %7490 = vmatmul.mubr.f32.gmra.mrb[0].mxu0 %v7200
    %v7491 = vpop.f32.mrb[0].mxu0
    %v7492 = vadd.f32 0.0, %v7491
    %v7493 = vpop.f32.mrb[0].mxu0
    %7494 = vmatprep.mubr.f32.mxu0 0.0
    %7495 = vmatmul.mubr.f32.gmra.mrb[0].mxu0 %v7203
    %v7496 = vpop.f32.mrb[0].mxu0
    %v7497 = vadd.f32 0.0, %v7496
    %v7498 = vpop.f32.mrb[0].mxu0
    %7499 = vmatprep.mubr.f32.mxu0 0.0
    %7500 = vmatmul.mubr.f32.gmra.mrb[0].mxu0 %v7206
    %v7501 = vpop.f32.mrb[0].mxu0
    %v7502 = vadd.f32 0.0, %v7501
    %v7503 = vpop.f32.mrb[0].mxu0
    %7504 = vmatprep.mubr.f32.mxu0 0.0
    %7505 = vmatmul.mubr.f32.gmra.mrb[0].mxu0 %v7209
    %v7506 = vpop.f32.mrb[0].mxu0
    %v7507 = vadd.f32 0.0, %v7506
    %v7508 = vpop.f32.mrb[0].mxu0
    %7509 = vmatprep.mubr.f32.mxu0 0.0
    %7510 = vmatmul.mubr.f32.gmra.mrb[0].mxu0 %v7212
    %v7511 = vpop.f32.mrb[0].mxu0
    %v7512 = vadd.f32 0.0, %v7511
    %v7513 = vpop.f32.mrb[0].mxu0
    %7514 = vmatprep.mubr.f32.mxu0 0.0
    %7515 = vmatmul.mubr.f32.gmra.mrb[0].mxu0 %v7215
    %v7516 = vpop.f32.mrb[0].mxu0
    %v7517 = vadd.f32 0.0, %v7516
    %v7518 = vpop.f32.mrb[0].mxu0
    %7519 = vmatprep.mubr.f32.mxu0 0.0
    %7520 = vmatmul.mubr.f32.gmra.mrb[0].mxu0 %v7218
    %v7521 = vpop.f32.mrb[0].mxu0
    %v7522 = vadd.f32 0.0, %v7521
    %v7523 = vpop.f32.mrb[0].mxu0
    %7524 = vmatprep.mubr.f32.mxu0 0.0
    %7525 = vmatmul.mubr.f32.gmra.mrb[0].mxu0 %v7221
    %v7526 = vpop.f32.mrb[0].mxu0
    %v7527 = vadd.f32 0.0, %v7526
    %v7528 = vpop.f32.mrb[0].mxu0
    %7529 = vmatprep.mubr.f32.mxu0 0.0
    %7530 = vmatmul.mubr.f32.gmra.mrb[0].mxu0 %v7224
    %v7531 = vpop.f32.mrb[0].mxu0
    %v7532 = vadd.f32 0.0, %v7531
    %v7533 = vpop.f32.mrb[0].mxu0
    %7534 = vmatprep.mubr.f32.mxu0 0.0
    %7535 = vmatmul.mubr.f32.gmra.mrb[0].mxu0 %v7227
    %v7536 = vpop.f32.mrb[0].mxu0
    %v7537 = vadd.f32 0.0, %v7536
    %v7538 = vpop.f32.mrb[0].mxu0
    %7539 = vmatprep.mubr.f32.mxu0 0.0
    %7540 = vmatmul.mubr.f32.gmra.mrb[0].mxu0 %v7230
    %v7541 = vpop.f32.mrb[0].mxu0
    %v7542 = vadd.f32 0.0, %v7541
    %v7543 = vpop.f32.mrb[0].mxu0
    %7544 = vmatprep.mubr.f32.mxu0 0.0
    %7545 = vmatmul.mubr.f32.gmra.mrb[0].mxu0 %v7233
    %v7546 = vpop.f32.mrb[0].mxu0
    %v7547 = vadd.f32 0.0, %v7546
    %v7548 = vpop.f32.mrb[0].mxu0
    %7549 = vmatprep.mubr.f32.mxu0 0.0
    %7550 = vmatmul.mubr.f32.gmra.mrb[0].mxu0 %v7236
    %v7551 = vpop.f32.mrb[0].mxu0
    %v7552 = vadd.f32 0.0, %v7551
    %v7553 = vpop.f32.mrb[0].mxu0
    %7554 = vmatprep.mubr.f32.mxu0 0.0
    %7555 = vmatmul.mubr.f32.gmra.mrb[0].mxu0 %v7239
    %v7556 = vpop.f32.mrb[0].mxu0
    %v7557 = vadd.f32 0.0, %v7556
    %v7558 = vpop.f32.mrb[0].mxu0
    %7559 = vmatprep.mubr.f32.mxu0 0.0
    %7560 = vmatmul.mubr.f32.gmra.mrb[0].mxu0 %v7242
    %v7561 = vpop.f32.mrb[0].mxu0
    %v7562 = vadd.f32 0.0, %v7561
    %v7563 = vpop.f32.mrb[0].mxu0
    %7564 = vmatprep.mubr.f32.mxu0 0.0
    %7565 = vmatmul.mubr.f32.gmra.mrb[0].mxu0 %v7245
    %v7566 = vpop.f32.mrb[0].mxu0
    %v7567 = vadd.f32 0.0, %v7566
    %v7568 = vpop.f32.mrb[0].mxu0
    %7569 = vmatprep.mubr.f32.mxu0 0.0
    %7570 = vmatmul.mubr.f32.gmra.mrb[0].mxu0 %v7248
    %v7571 = vpop.f32.mrb[0].mxu0
    %v7572 = vadd.f32 0.0, %v7571
    %v7573 = vpop.f32.mrb[0].mxu0
    %7574 = vmatprep.mubr.f32.mxu0 0.0
    %7575 = vmatmul.mubr.f32.gmra.mrb[0].mxu0 %v7251
    %v7576 = vpop.f32.mrb[0].mxu0
    %v7577 = vadd.f32 0.0, %v7576
    %v7578 = vpop.f32.mrb[0].mxu0
    %7579 = vmatprep.mubr.f32.mxu0 0.0
    %7580 = vmatmul.mubr.f32.gmra.mrb[0].mxu0 %v7254
    %v7581 = vpop.f32.mrb[0].mxu0
    %v7582 = vadd.f32 0.0, %v7581
    %v7583 = vpop.f32.mrb[0].mxu0
    %7584 = vmatprep.mubr.f32.mxu0 0.0
    %7585 = vmatmul.mubr.f32.gmra.mrb[0].mxu0 %v7257
    %v7586 = vpop.f32.mrb[0].mxu0
    %v7587 = vadd.f32 0.0, %v7586
    %v7588 = vpop.f32.mrb[0].mxu0
    %7589 = vmatprep.mubr.f32.mxu0 0.0
    %7590 = vmatmul.mubr.f32.gmra.mrb[0].mxu0 %v7260
    %v7591 = vpop.f32.mrb[0].mxu0
    %v7592 = vadd.f32 0.0, %v7591
    %v7593 = vpop.f32.mrb[0].mxu0
    %7594 = vmatprep.mubr.f32.mxu0 0.0
    %7595 = vmatmul.mubr.f32.gmra.mrb[0].mxu0 %v7263
    %v7596 = vpop.f32.mrb[0].mxu0
    %v7597 = vadd.f32 0.0, %v7596
    %v7598 = vpop.f32.mrb[0].mxu0
    %7599 = vmatprep.mubr.f32.mxu0 0.0
    %7600 = vmatmul.mubr.f32.gmra.mrb[0].mxu0 %v7266
    %v7601 = vpop.f32.mrb[0].mxu0
    %v7602 = vadd.f32 0.0, %v7601
    %v7603 = vpop.f32.mrb[0].mxu0
    %7604 = vmatprep.mubr.f32.mxu0 0.0
    %7605 = vmatmul.mubr.f32.gmra.mrb[0].mxu0 %v7269
    %v7606 = vpop.f32.mrb[0].mxu0
    %v7607 = vadd.f32 0.0, %v7606
    %v7608 = vpop.f32.mrb[0].mxu0
    %7609 = vmatprep.mubr.f32.mxu0 0.0
    %7610 = vmatmul.mubr.f32.gmra.mrb[0].mxu0 %v7272
    %v7611 = vpop.f32.mrb[0].mxu0
    %v7612 = vadd.f32 0.0, %v7611
    %v7613 = vpop.f32.mrb[0].mxu0
    %7614 = vmatprep.mubr.f32.mxu0 0.0
    %7615 = vmatmul.mubr.f32.gmra.mrb[0].mxu0 %v7275
    %v7616 = vpop.f32.mrb[0].mxu0
    %v7617 = vadd.f32 0.0, %v7616
    %v7618 = vpop.f32.mrb[0].mxu0
    %7619 = vmatprep.mubr.f32.mxu0 0.0
    %7620 = vmatmul.mubr.f32.gmra.mrb[0].mxu0 %v7278
    %v7621 = vpop.f32.mrb[0].mxu0
    %v7622 = vadd.f32 0.0, %v7621
    %v7623 = vpop.f32.mrb[0].mxu0
    %7624 = vmatprep.mubr.f32.mxu0 0.0
    %7625 = vmatmul.mubr.f32.gmra.mrb[0].mxu0 %v7281
    %v7626 = vpop.f32.mrb[0].mxu0
    %v7627 = vadd.f32 0.0, %v7626
    %v7628 = vpop.f32.mrb[0].mxu0
    %7629 = vmatprep.mubr.f32.mxu0 0.0
    %7630 = vmatmul.mubr.f32.gmra.mrb[0].mxu0 %v7284
    %v7631 = vpop.f32.mrb[0].mxu0
    %v7632 = vadd.f32 0.0, %v7631
    %v7633 = vpop.f32.mrb[0].mxu0
    %7634 = vmatprep.mubr.f32.mxu0 0.0
    %7635 = vmatmul.mubr.f32.gmra.mrb[0].mxu0 %v7287
    %v7636 = vpop.f32.mrb[0].mxu0
    %v7637 = vadd.f32 0.0, %v7636
    %v7638 = vpop.f32.mrb[0].mxu0
    %7639 = vmatprep.mubr.f32.mxu0 0.0
    %7640 = vmatmul.mubr.f32.gmra.mrb[0].mxu0 %v7290
    %v7641 = vpop.f32.mrb[0].mxu0
    %v7642 = vadd.f32 0.0, %v7641
    %v7643 = vpop.f32.mrb[0].mxu0
    %7644 = vmatprep.mubr.f32.mxu0 0.0
    %7645 = vmatmul.mubr.f32.gmra.mrb[0].mxu0 %v7293
    %v7646 = vpop.f32.mrb[0].mxu0
    %v7647 = vadd.f32 0.0, %v7646
    %v7648 = vpop.f32.mrb[0].mxu0
    %7649 = vmatprep.mubr.f32.mxu0 0.0
    %7650 = vmatmul.mubr.f32.gmra.mrb[0].mxu0 %v7296
    %v7651 = vpop.f32.mrb[0].mxu0
    %v7652 = vadd.f32 0.0, %v7651
    %v7653 = vpop.f32.mrb[0].mxu0
    %7654 = vmatprep.mubr.f32.mxu0 0.0
    %7655 = vmatmul.mubr.f32.gmra.mrb[0].mxu0 %v7299
    %v7656 = vpop.f32.mrb[0].mxu0
    %v7657 = vadd.f32 0.0, %v7656
    %v7658 = vpop.f32.mrb[0].mxu0
    %7659 = vmatprep.mubr.f32.mxu0 0.0
    %7660 = vmatmul.mubr.f32.gmra.mrb[0].mxu0 %v7302
    %v7661 = vpop.f32.mrb[0].mxu0
    %v7662 = vadd.f32 0.0, %v7661
    %v7663 = vpop.f32.mrb[0].mxu0
    %7664 = vmatprep.mubr.f32.mxu0 0.0
    %7665 = vmatmul.mubr.f32.gmra.mrb[0].mxu0 %v7305
    %v7666 = vpop.f32.mrb[0].mxu0
    %v7667 = vadd.f32 0.0, %v7666
    %v7668 = vpop.f32.mrb[0].mxu0
    %7669 = vmatprep.mubr.f32.mxu0 0.0
    %7670 = vmatmul.mubr.f32.gmra.mrb[0].mxu0 %v7308
    %v7671 = vpop.f32.mrb[0].mxu0
    %v7672 = vadd.f32 0.0, %v7671
    %v7673 = vpop.f32.mrb[0].mxu0
    %7674 = vmatprep.mubr.f32.mxu0 0.0
    %7675 = vmatmul.mubr.f32.gmra.mrb[0].mxu0 %v7311
    %v7676 = vpop.f32.mrb[0].mxu0
    %v7677 = vadd.f32 0.0, %v7676
    %v7678 = vpop.f32.mrb[0].mxu0
    %7679 = vmatprep.mubr.f32.mxu0 0.0
    %7680 = vmatmul.mubr.f32.gmra.mrb[0].mxu0 %v7314
    %v7681 = vpop.f32.mrb[0].mxu0
    %v7682 = vadd.f32 0.0, %v7681
    %v7683 = vpop.f32.mrb[0].mxu0
    %7684 = vmatprep.mubr.f32.mxu0 0.0
    %7685 = vmatmul.mubr.f32.gmra.mrb[0].mxu0 %v7317
    %v7686 = vpop.f32.mrb[0].mxu0
    %v7687 = vadd.f32 0.0, %v7686
    %v7688 = vpop.f32.mrb[0].mxu0
    %7689 = vmatprep.mubr.f32.mxu0 0.0
    %7690 = vmatmul.mubr.f32.gmra.mrb[0].mxu0 %v7320
    %v7691 = vpop.f32.mrb[0].mxu0
    %v7692 = vadd.f32 0.0, %v7691
    %v7693 = vpop.f32.mrb[0].mxu0
    %7694 = vmatprep.mubr.f32.mxu0 0.0
    %7695 = vmatmul.mubr.f32.gmra.mrb[0].mxu0 %v7323
    %v7696 = vpop.f32.mrb[0].mxu0
    %v7697 = vadd.f32 0.0, %v7696
    %v7698 = vpop.f32.mrb[0].mxu0
    %7699 = vmatprep.mubr.f32.mxu0 0.0
    %7700 = vmatmul.mubr.f32.gmra.mrb[0].mxu0 %v7326
    %v7701 = vpop.f32.mrb[0].mxu0
    %v7702 = vadd.f32 0.0, %v7701
    %v7703 = vpop.f32.mrb[0].mxu0
    %7704 = vmatprep.mubr.f32.mxu0 0.0
    %7705 = vmatmul.mubr.f32.gmra.mrb[0].mxu0 %v7329
    %v7706 = vpop.f32.mrb[0].mxu0
    %v7707 = vadd.f32 0.0, %v7706
    %v7708 = vpop.f32.mrb[0].mxu0
    %7709 = vmatprep.mubr.f32.mxu0 0.0
    %7710 = vmatmul.mubr.f32.gmra.mrb[0].mxu0 %v7332
    %v7711 = vpop.f32.mrb[0].mxu0
    %v7712 = vadd.f32 0.0, %v7711
    %v7713 = vpop.f32.mrb[0].mxu0
    %7714 = vmatprep.mubr.f32.mxu0 0.0
    %7715 = vmatmul.mubr.f32.gmra.mrb[0].mxu0 %v7335
    %v7716 = vpop.f32.mrb[0].mxu0
    %v7717 = vadd.f32 0.0, %v7716
    %v7718 = vpop.f32.mrb[0].mxu0
    %7719 = vmatprep.mubr.f32.mxu0 0.0
    %7720 = vmatmul.mubr.f32.gmra.mrb[0].mxu0 %v7338
    %v7721 = vpop.f32.mrb[0].mxu0
    %v7722 = vadd.f32 0.0, %v7721
    %v7723 = vpop.f32.mrb[0].mxu0
    %7724 = vdwg.mxu0
    %v7725 = vadd.f32 %v7015, %v7407
    %v7726 = vadd.f32 %v7016, %v7412
    %v7727 = vadd.f32 %v7017, %v7417
    %v7728 = vadd.f32 %v7018, %v7422
    %v7729 = vadd.f32 %v7019, %v7427
    %v7730 = vadd.f32 %v7020, %v7432
    %v7731 = vadd.f32 %v7021, %v7437
    %v7732 = vadd.f32 %v7022, %v7442
    %v7733 = vadd.f32 %v7023, %v7447
    %v7734 = vadd.f32 %v7024, %v7452
    %v7735 = vadd.f32 %v7025, %v7457
    %v7736 = vadd.f32 %v7026, %v7462
    %v7737 = vadd.f32 %v7027, %v7467
    %v7738 = vadd.f32 %v7028, %v7472
    %v7739 = vadd.f32 %v7029, %v7477
    %v7740 = vadd.f32 %v7030, %v7482
    %v7741 = vadd.f32 %v7031, %v7487
    %v7742 = vadd.f32 %v7032, %v7492
    %v7743 = vadd.f32 %v7033, %v7497
    %v7744 = vadd.f32 %v7034, %v7502
    %v7745 = vadd.f32 %v7035, %v7507
    %v7746 = vadd.f32 %v7036, %v7512
    %v7747 = vadd.f32 %v7037, %v7517
    %v7748 = vadd.f32 %v7038, %v7522
    %v7749 = vadd.f32 %v7039, %v7527
    %v7750 = vadd.f32 %v7040, %v7532
    %v7751 = vadd.f32 %v7041, %v7537
    %v7752 = vadd.f32 %v7042, %v7542
    %v7753 = vadd.f32 %v7043, %v7547
    %v7754 = vadd.f32 %v7044, %v7552
    %v7755 = vadd.f32 %v7045, %v7557
    %v7756 = vadd.f32 %v7046, %v7562
    %v7757 = vadd.f32 %v7047, %v7567
    %v7758 = vadd.f32 %v7048, %v7572
    %v7759 = vadd.f32 %v7049, %v7577
    %v7760 = vadd.f32 %v7050, %v7582
    %v7761 = vadd.f32 %v7051, %v7587
    %v7762 = vadd.f32 %v7052, %v7592
    %v7763 = vadd.f32 %v7053, %v7597
    %v7764 = vadd.f32 %v7054, %v7602
    %v7765 = vadd.f32 %v7055, %v7607
    %v7766 = vadd.f32 %v7056, %v7612
    %v7767 = vadd.f32 %v7057, %v7617
    %v7768 = vadd.f32 %v7058, %v7622
    %v7769 = vadd.f32 %v7059, %v7627
    %v7770 = vadd.f32 %v7060, %v7632
    %v7771 = vadd.f32 %v7061, %v7637
    %v7772 = vadd.f32 %v7062, %v7642
    %v7773 = vadd.f32 %v7063, %v7647
    %v7774 = vadd.f32 %v7064, %v7652
    %v7775 = vadd.f32 %v7065, %v7657
    %v7776 = vadd.f32 %v7066, %v7662
    %v7777 = vadd.f32 %v7067, %v7667
    %v7778 = vadd.f32 %v7068, %v7672
    %v7779 = vadd.f32 %v7069, %v7677
    %v7780 = vadd.f32 %v7070, %v7682
    %v7781 = vadd.f32 %v7071, %v7687
    %v7782 = vadd.f32 %v7072, %v7692
    %v7783 = vadd.f32 %v7073, %v7697
    %v7784 = vadd.f32 %v7074, %v7702
    %v7785 = vadd.f32 %v7075, %v7707
    %v7786 = vadd.f32 %v7076, %v7712
    %v7787 = vadd.f32 %v7077, %v7717
    %v7788 = vadd.f32 %v7078, %v7722
    %v7789 = vld [vmem:[%s6] sm:$0x1]
    %v7791 = vlaneseq
    %v7792 = vshrl.u32 %v7791, 7
    %v7793 = vsub.s32 0, %v7792
    %v7794 = vrot.slane %v7789, %v7793
    %v7796 = vadd.f32 %v7725, %v7794
    %v7797 = vadd.f32 %v7726, %v7794
    %v7798 = vadd.f32 %v7727, %v7794
    %v7799 = vadd.f32 %v7728, %v7794
    %v7800 = vadd.f32 %v7729, %v7794
    %v7801 = vadd.f32 %v7730, %v7794
    %v7802 = vadd.f32 %v7731, %v7794
    %v7803 = vadd.f32 %v7732, %v7794
    %v7804 = vadd.f32 %v7733, %v7794
    %v7805 = vadd.f32 %v7734, %v7794
    %v7806 = vadd.f32 %v7735, %v7794
    %v7807 = vadd.f32 %v7736, %v7794
    %v7808 = vadd.f32 %v7737, %v7794
    %v7809 = vadd.f32 %v7738, %v7794
    %v7810 = vadd.f32 %v7739, %v7794
    %v7811 = vadd.f32 %v7740, %v7794
    %v7812 = vadd.f32 %v7741, %v7794
    %v7813 = vadd.f32 %v7742, %v7794
    %v7814 = vadd.f32 %v7743, %v7794
    %v7815 = vadd.f32 %v7744, %v7794
    %v7816 = vadd.f32 %v7745, %v7794
    %v7817 = vadd.f32 %v7746, %v7794
    %v7818 = vadd.f32 %v7747, %v7794
    %v7819 = vadd.f32 %v7748, %v7794
    %v7820 = vadd.f32 %v7749, %v7794
    %v7821 = vadd.f32 %v7750, %v7794
    %v7822 = vadd.f32 %v7751, %v7794
    %v7823 = vadd.f32 %v7752, %v7794
    %v7824 = vadd.f32 %v7753, %v7794
    %v7825 = vadd.f32 %v7754, %v7794
    %v7826 = vadd.f32 %v7755, %v7794
    %v7827 = vadd.f32 %v7756, %v7794
    %v7828 = vadd.f32 %v7757, %v7794
    %v7829 = vadd.f32 %v7758, %v7794
    %v7830 = vadd.f32 %v7759, %v7794
    %v7831 = vadd.f32 %v7760, %v7794
    %v7832 = vadd.f32 %v7761, %v7794
    %v7833 = vadd.f32 %v7762, %v7794
    %v7834 = vadd.f32 %v7763, %v7794
    %v7835 = vadd.f32 %v7764, %v7794
    %v7836 = vadd.f32 %v7765, %v7794
    %v7837 = vadd.f32 %v7766, %v7794
    %v7838 = vadd.f32 %v7767, %v7794
    %v7839 = vadd.f32 %v7768, %v7794
    %v7840 = vadd.f32 %v7769, %v7794
    %v7841 = vadd.f32 %v7770, %v7794
    %v7842 = vadd.f32 %v7771, %v7794
    %v7843 = vadd.f32 %v7772, %v7794
    %v7844 = vadd.f32 %v7773, %v7794
    %v7845 = vadd.f32 %v7774, %v7794
    %v7846 = vadd.f32 %v7775, %v7794
    %v7847 = vadd.f32 %v7776, %v7794
    %v7848 = vadd.f32 %v7777, %v7794
    %v7849 = vadd.f32 %v7778, %v7794
    %v7850 = vadd.f32 %v7779, %v7794
    %v7851 = vadd.f32 %v7780, %v7794
    %v7852 = vadd.f32 %v7781, %v7794
    %v7853 = vadd.f32 %v7782, %v7794
    %v7854 = vadd.f32 %v7783, %v7794
    %v7855 = vadd.f32 %v7784, %v7794
    %v7856 = vadd.f32 %v7785, %v7794
    %v7857 = vadd.f32 %v7786, %v7794
    %v7858 = vadd.f32 %v7787, %v7794
    %v7859 = vadd.f32 %v7788, %v7794
    %v7860 = vld [vmem:[%s7] sm:$0x1]
    %v7861 = vld [vmem:[%s8] sm:$0x1]
    %v7862 = vsel %vm717, %v7796, 0.0
    %v7863 = vsel %vm717, %v7797, 0.0
    %v7864 = vadd.f32 %v7862, %v7863
    %v7865 = vsel %vm717, %v7798, 0.0
    %v7866 = vadd.f32 %v7864, %v7865
    %v7867 = vsel %vm717, %v7799, 0.0
    %v7868 = vadd.f32 %v7866, %v7867
    %v7869 = vsel %vm717, %v7800, 0.0
    %v7870 = vadd.f32 %v7868, %v7869
    %v7871 = vsel %vm717, %v7801, 0.0
    %v7872 = vadd.f32 %v7870, %v7871
    %v7873 = vsel %vm717, %v7802, 0.0
    %v7874 = vadd.f32 %v7872, %v7873
    %v7875 = vsel %vm717, %v7803, 0.0
    %v7876 = vadd.f32 %v7874, %v7875
    %v7877 = vsel %vm717, %v7804, 0.0
    %v7878 = vadd.f32 %v7876, %v7877
    %v7879 = vsel %vm717, %v7805, 0.0
    %v7880 = vadd.f32 %v7878, %v7879
    %v7881 = vsel %vm717, %v7806, 0.0
    %v7882 = vadd.f32 %v7880, %v7881
    %v7883 = vsel %vm717, %v7807, 0.0
    %v7884 = vadd.f32 %v7882, %v7883
    %v7885 = vsel %vm717, %v7808, 0.0
    %v7886 = vadd.f32 %v7884, %v7885
    %v7887 = vsel %vm717, %v7809, 0.0
    %v7888 = vadd.f32 %v7886, %v7887
    %v7889 = vsel %vm717, %v7810, 0.0
    %v7890 = vadd.f32 %v7888, %v7889
    %v7891 = vsel %vm717, %v7811, 0.0
    %v7892 = vadd.f32 %v7890, %v7891
    %v7893 = vrot.slane %v7892, 4
    %v7894 = vadd.f32 %v7892, %v7893
    %v7895 = vrot.slane %v7894, 2
    %v7896 = vadd.f32 %v7894, %v7895
    %v7897 = vrot.slane %v7896, 1
    %v7898 = vadd.f32 %v7896, %v7897
    %v7899 = vadd.f32 %v7898, 0.0
    %v7900 = vmul.f32 %v7796, %v7796
    %v7901 = vmul.f32 %v7797, %v7797
    %v7902 = vmul.f32 %v7798, %v7798
    %v7903 = vmul.f32 %v7799, %v7799
    %v7904 = vmul.f32 %v7800, %v7800
    %v7905 = vmul.f32 %v7801, %v7801
    %v7906 = vmul.f32 %v7802, %v7802
    %v7907 = vmul.f32 %v7803, %v7803
    %v7908 = vmul.f32 %v7804, %v7804
    %v7909 = vmul.f32 %v7805, %v7805
    %v7910 = vmul.f32 %v7806, %v7806
    %v7911 = vmul.f32 %v7807, %v7807
    %v7912 = vmul.f32 %v7808, %v7808
    %v7913 = vmul.f32 %v7809, %v7809
    %v7914 = vmul.f32 %v7810, %v7810
    %v7915 = vmul.f32 %v7811, %v7811
    %v7916 = vsel %vm717, %v7900, 0.0
    %v7917 = vsel %vm717, %v7901, 0.0
    %v7918 = vadd.f32 %v7916, %v7917
    %v7919 = vsel %vm717, %v7902, 0.0
    %v7920 = vadd.f32 %v7918, %v7919
    %v7921 = vsel %vm717, %v7903, 0.0
    %v7922 = vadd.f32 %v7920, %v7921
    %v7923 = vsel %vm717, %v7904, 0.0
    %v7924 = vadd.f32 %v7922, %v7923
    %v7925 = vsel %vm717, %v7905, 0.0
    %v7926 = vadd.f32 %v7924, %v7925
    %v7927 = vsel %vm717, %v7906, 0.0
    %v7928 = vadd.f32 %v7926, %v7927
    %v7929 = vsel %vm717, %v7907, 0.0
    %v7930 = vadd.f32 %v7928, %v7929
    %v7931 = vsel %vm717, %v7908, 0.0
    %v7932 = vadd.f32 %v7930, %v7931
    %v7933 = vsel %vm717, %v7909, 0.0
    %v7934 = vadd.f32 %v7932, %v7933
    %v7935 = vsel %vm717, %v7910, 0.0
    %v7936 = vadd.f32 %v7934, %v7935
    %v7937 = vsel %vm717, %v7911, 0.0
    %v7938 = vadd.f32 %v7936, %v7937
    %v7939 = vsel %vm717, %v7912, 0.0
    %v7940 = vadd.f32 %v7938, %v7939
    %v7941 = vsel %vm717, %v7913, 0.0
    %v7942 = vadd.f32 %v7940, %v7941
    %v7943 = vsel %vm717, %v7914, 0.0
    %v7944 = vadd.f32 %v7942, %v7943
    %v7945 = vsel %vm717, %v7915, 0.0
    %v7946 = vadd.f32 %v7944, %v7945
    %v7947 = vrot.slane %v7946, 4
    %v7948 = vadd.f32 %v7946, %v7947
    %v7949 = vrot.slane %v7948, 2
    %v7950 = vadd.f32 %v7948, %v7949
    %v7951 = vrot.slane %v7950, 1
    %v7952 = vadd.f32 %v7950, %v7951
    %v7953 = vadd.f32 %v7952, 0.0
    %v7954 = vsel %vm717, %v7812, 0.0
    %v7955 = vsel %vm717, %v7813, 0.0
    %v7956 = vadd.f32 %v7954, %v7955
    %v7957 = vsel %vm717, %v7814, 0.0
    %v7958 = vadd.f32 %v7956, %v7957
    %v7959 = vsel %vm717, %v7815, 0.0
    %v7960 = vadd.f32 %v7958, %v7959
    %v7961 = vsel %vm717, %v7816, 0.0
    %v7962 = vadd.f32 %v7960, %v7961
    %v7963 = vsel %vm717, %v7817, 0.0
    %v7964 = vadd.f32 %v7962, %v7963
    %v7965 = vsel %vm717, %v7818, 0.0
    %v7966 = vadd.f32 %v7964, %v7965
    %v7967 = vsel %vm717, %v7819, 0.0
    %v7968 = vadd.f32 %v7966, %v7967
    %v7969 = vsel %vm717, %v7820, 0.0
    %v7970 = vadd.f32 %v7968, %v7969
    %v7971 = vsel %vm717, %v7821, 0.0
    %v7972 = vadd.f32 %v7970, %v7971
    %v7973 = vsel %vm717, %v7822, 0.0
    %v7974 = vadd.f32 %v7972, %v7973
    %v7975 = vsel %vm717, %v7823, 0.0
    %v7976 = vadd.f32 %v7974, %v7975
    %v7977 = vsel %vm717, %v7824, 0.0
    %v7978 = vadd.f32 %v7976, %v7977
    %v7979 = vsel %vm717, %v7825, 0.0
    %v7980 = vadd.f32 %v7978, %v7979
    %v7981 = vsel %vm717, %v7826, 0.0
    %v7982 = vadd.f32 %v7980, %v7981
    %v7983 = vsel %vm717, %v7827, 0.0
    %v7984 = vadd.f32 %v7982, %v7983
    %v7985 = vrot.slane %v7984, 4
    %v7986 = vadd.f32 %v7984, %v7985
    %v7987 = vrot.slane %v7986, 2
    %v7988 = vadd.f32 %v7986, %v7987
    %v7989 = vrot.slane %v7988, 1
    %v7990 = vadd.f32 %v7988, %v7989
    %v7991 = vadd.f32 %v7899, %v7990
    %v7992 = vmul.f32 %v7812, %v7812
    %v7993 = vmul.f32 %v7813, %v7813
    %v7994 = vmul.f32 %v7814, %v7814
    %v7995 = vmul.f32 %v7815, %v7815
    %v7996 = vmul.f32 %v7816, %v7816
    %v7997 = vmul.f32 %v7817, %v7817
    %v7998 = vmul.f32 %v7818, %v7818
    %v7999 = vmul.f32 %v7819, %v7819
    %v8000 = vmul.f32 %v7820, %v7820
    %v8001 = vmul.f32 %v7821, %v7821
    %v8002 = vmul.f32 %v7822, %v7822
    %v8003 = vmul.f32 %v7823, %v7823
    %v8004 = vmul.f32 %v7824, %v7824
    %v8005 = vmul.f32 %v7825, %v7825
    %v8006 = vmul.f32 %v7826, %v7826
    %v8007 = vmul.f32 %v7827, %v7827
    %v8008 = vsel %vm717, %v7992, 0.0
    %v8009 = vsel %vm717, %v7993, 0.0
    %v8010 = vadd.f32 %v8008, %v8009
    %v8011 = vsel %vm717, %v7994, 0.0
    %v8012 = vadd.f32 %v8010, %v8011
    %v8013 = vsel %vm717, %v7995, 0.0
    %v8014 = vadd.f32 %v8012, %v8013
    %v8015 = vsel %vm717, %v7996, 0.0
    %v8016 = vadd.f32 %v8014, %v8015
    %v8017 = vsel %vm717, %v7997, 0.0
    %v8018 = vadd.f32 %v8016, %v8017
    %v8019 = vsel %vm717, %v7998, 0.0
    %v8020 = vadd.f32 %v8018, %v8019
    %v8021 = vsel %vm717, %v7999, 0.0
    %v8022 = vadd.f32 %v8020, %v8021
    %v8023 = vsel %vm717, %v8000, 0.0
    %v8024 = vadd.f32 %v8022, %v8023
    %v8025 = vsel %vm717, %v8001, 0.0
    %v8026 = vadd.f32 %v8024, %v8025
    %v8027 = vsel %vm717, %v8002, 0.0
    %v8028 = vadd.f32 %v8026, %v8027
    %v8029 = vsel %vm717, %v8003, 0.0
    %v8030 = vadd.f32 %v8028, %v8029
    %v8031 = vsel %vm717, %v8004, 0.0
    %v8032 = vadd.f32 %v8030, %v8031
    %v8033 = vsel %vm717, %v8005, 0.0
    %v8034 = vadd.f32 %v8032, %v8033
    %v8035 = vsel %vm717, %v8006, 0.0
    %v8036 = vadd.f32 %v8034, %v8035
    %v8037 = vsel %vm717, %v8007, 0.0
    %v8038 = vadd.f32 %v8036, %v8037
    %v8039 = vrot.slane %v8038, 4
    %v8040 = vadd.f32 %v8038, %v8039
    %v8041 = vrot.slane %v8040, 2
    %v8042 = vadd.f32 %v8040, %v8041
    %v8043 = vrot.slane %v8042, 1
    %v8044 = vadd.f32 %v8042, %v8043
    %v8045 = vadd.f32 %v7953, %v8044
    %v8046 = vsel %vm717, %v7828, 0.0
    %v8047 = vsel %vm717, %v7829, 0.0
    %v8048 = vadd.f32 %v8046, %v8047
    %v8049 = vsel %vm717, %v7830, 0.0
    %v8050 = vadd.f32 %v8048, %v8049
    %v8051 = vsel %vm717, %v7831, 0.0
    %v8052 = vadd.f32 %v8050, %v8051
    %v8053 = vsel %vm717, %v7832, 0.0
    %v8054 = vadd.f32 %v8052, %v8053
    %v8055 = vsel %vm717, %v7833, 0.0
    %v8056 = vadd.f32 %v8054, %v8055
    %v8057 = vsel %vm717, %v7834, 0.0
    %v8058 = vadd.f32 %v8056, %v8057
    %v8059 = vsel %vm717, %v7835, 0.0
    %v8060 = vadd.f32 %v8058, %v8059
    %v8061 = vsel %vm717, %v7836, 0.0
    %v8062 = vadd.f32 %v8060, %v8061
    %v8063 = vsel %vm717, %v7837, 0.0
    %v8064 = vadd.f32 %v8062, %v8063
    %v8065 = vsel %vm717, %v7838, 0.0
    %v8066 = vadd.f32 %v8064, %v8065
    %v8067 = vsel %vm717, %v7839, 0.0
    %v8068 = vadd.f32 %v8066, %v8067
    %v8069 = vsel %vm717, %v7840, 0.0
    %v8070 = vadd.f32 %v8068, %v8069
    %v8071 = vsel %vm717, %v7841, 0.0
    %v8072 = vadd.f32 %v8070, %v8071
    %v8073 = vsel %vm717, %v7842, 0.0
    %v8074 = vadd.f32 %v8072, %v8073
    %v8075 = vsel %vm717, %v7843, 0.0
    %v8076 = vadd.f32 %v8074, %v8075
    %v8077 = vrot.slane %v8076, 4
    %v8078 = vadd.f32 %v8076, %v8077
    %v8079 = vrot.slane %v8078, 2
    %v8080 = vadd.f32 %v8078, %v8079
    %v8081 = vrot.slane %v8080, 1
    %v8082 = vadd.f32 %v8080, %v8081
    %v8083 = vadd.f32 %v7991, %v8082
    %v8084 = vmul.f32 %v7828, %v7828
    %v8085 = vmul.f32 %v7829, %v7829
    %v8086 = vmul.f32 %v7830, %v7830
    %v8087 = vmul.f32 %v7831, %v7831
    %v8088 = vmul.f32 %v7832, %v7832
    %v8089 = vmul.f32 %v7833, %v7833
    %v8090 = vmul.f32 %v7834, %v7834
    %v8091 = vmul.f32 %v7835, %v7835
    %v8092 = vmul.f32 %v7836, %v7836
    %v8093 = vmul.f32 %v7837, %v7837
    %v8094 = vmul.f32 %v7838, %v7838
    %v8095 = vmul.f32 %v7839, %v7839
    %v8096 = vmul.f32 %v7840, %v7840
    %v8097 = vmul.f32 %v7841, %v7841
    %v8098 = vmul.f32 %v7842, %v7842
    %v8099 = vmul.f32 %v7843, %v7843
    %v8100 = vsel %vm717, %v8084, 0.0
    %v8101 = vsel %vm717, %v8085, 0.0
    %v8102 = vadd.f32 %v8100, %v8101
    %v8103 = vsel %vm717, %v8086, 0.0
    %v8104 = vadd.f32 %v8102, %v8103
    %v8105 = vsel %vm717, %v8087, 0.0
    %v8106 = vadd.f32 %v8104, %v8105
    %v8107 = vsel %vm717, %v8088, 0.0
    %v8108 = vadd.f32 %v8106, %v8107
    %v8109 = vsel %vm717, %v8089, 0.0
    %v8110 = vadd.f32 %v8108, %v8109
    %v8111 = vsel %vm717, %v8090, 0.0
    %v8112 = vadd.f32 %v8110, %v8111
    %v8113 = vsel %vm717, %v8091, 0.0
    %v8114 = vadd.f32 %v8112, %v8113
    %v8115 = vsel %vm717, %v8092, 0.0
    %v8116 = vadd.f32 %v8114, %v8115
    %v8117 = vsel %vm717, %v8093, 0.0
    %v8118 = vadd.f32 %v8116, %v8117
    %v8119 = vsel %vm717, %v8094, 0.0
    %v8120 = vadd.f32 %v8118, %v8119
    %v8121 = vsel %vm717, %v8095, 0.0
    %v8122 = vadd.f32 %v8120, %v8121
    %v8123 = vsel %vm717, %v8096, 0.0
    %v8124 = vadd.f32 %v8122, %v8123
    %v8125 = vsel %vm717, %v8097, 0.0
    %v8126 = vadd.f32 %v8124, %v8125
    %v8127 = vsel %vm717, %v8098, 0.0
    %v8128 = vadd.f32 %v8126, %v8127
    %v8129 = vsel %vm717, %v8099, 0.0
    %v8130 = vadd.f32 %v8128, %v8129
    %v8131 = vrot.slane %v8130, 4
    %v8132 = vadd.f32 %v8130, %v8131
    %v8133 = vrot.slane %v8132, 2
    %v8134 = vadd.f32 %v8132, %v8133
    %v8135 = vrot.slane %v8134, 1
    %v8136 = vadd.f32 %v8134, %v8135
    %v8137 = vadd.f32 %v8045, %v8136
    %v8138 = vsel %vm717, %v7844, 0.0
    %v8139 = vsel %vm717, %v7845, 0.0
    %v8140 = vadd.f32 %v8138, %v8139
    %v8141 = vsel %vm717, %v7846, 0.0
    %v8142 = vadd.f32 %v8140, %v8141
    %v8143 = vsel %vm717, %v7847, 0.0
    %v8144 = vadd.f32 %v8142, %v8143
    %v8145 = vsel %vm717, %v7848, 0.0
    %v8146 = vadd.f32 %v8144, %v8145
    %v8147 = vsel %vm717, %v7849, 0.0
    %v8148 = vadd.f32 %v8146, %v8147
    %v8149 = vsel %vm717, %v7850, 0.0
    %v8150 = vadd.f32 %v8148, %v8149
    %v8151 = vsel %vm717, %v7851, 0.0
    %v8152 = vadd.f32 %v8150, %v8151
    %v8153 = vsel %vm717, %v7852, 0.0
    %v8154 = vadd.f32 %v8152, %v8153
    %v8155 = vsel %vm717, %v7853, 0.0
    %v8156 = vadd.f32 %v8154, %v8155
    %v8157 = vsel %vm717, %v7854, 0.0
    %v8158 = vadd.f32 %v8156, %v8157
    %v8159 = vsel %vm717, %v7855, 0.0
    %v8160 = vadd.f32 %v8158, %v8159
    %v8161 = vsel %vm717, %v7856, 0.0
    %v8162 = vadd.f32 %v8160, %v8161
    %v8163 = vsel %vm717, %v7857, 0.0
    %v8164 = vadd.f32 %v8162, %v8163
    %v8165 = vsel %vm717, %v7858, 0.0
    %v8166 = vadd.f32 %v8164, %v8165
    %v8167 = vsel %vm717, %v7859, 0.0
    %v8168 = vadd.f32 %v8166, %v8167
    %v8169 = vrot.slane %v8168, 4
    %v8170 = vadd.f32 %v8168, %v8169
    %v8171 = vrot.slane %v8170, 2
    %v8172 = vadd.f32 %v8170, %v8171
    %v8173 = vrot.slane %v8172, 1
    %v8174 = vadd.f32 %v8172, %v8173
    %v8175 = vadd.f32 %v8083, %v8174
    %v8176 = vmul.f32 %v7844, %v7844
    %v8177 = vmul.f32 %v7845, %v7845
    %v8178 = vmul.f32 %v7846, %v7846
    %v8179 = vmul.f32 %v7847, %v7847
    %v8180 = vmul.f32 %v7848, %v7848
    %v8181 = vmul.f32 %v7849, %v7849
    %v8182 = vmul.f32 %v7850, %v7850
    %v8183 = vmul.f32 %v7851, %v7851
    %v8184 = vmul.f32 %v7852, %v7852
    %v8185 = vmul.f32 %v7853, %v7853
    %v8186 = vmul.f32 %v7854, %v7854
    %v8187 = vmul.f32 %v7855, %v7855
    %v8188 = vmul.f32 %v7856, %v7856
    %v8189 = vmul.f32 %v7857, %v7857
    %v8190 = vmul.f32 %v7858, %v7858
    %v8191 = vmul.f32 %v7859, %v7859
    %v8192 = vsel %vm717, %v8176, 0.0
    %v8193 = vsel %vm717, %v8177, 0.0
    %v8194 = vadd.f32 %v8192, %v8193
    %v8195 = vsel %vm717, %v8178, 0.0
    %v8196 = vadd.f32 %v8194, %v8195
    %v8197 = vsel %vm717, %v8179, 0.0
    %v8198 = vadd.f32 %v8196, %v8197
    %v8199 = vsel %vm717, %v8180, 0.0
    %v8200 = vadd.f32 %v8198, %v8199
    %v8201 = vsel %vm717, %v8181, 0.0
    %v8202 = vadd.f32 %v8200, %v8201
    %v8203 = vsel %vm717, %v8182, 0.0
    %v8204 = vadd.f32 %v8202, %v8203
    %v8205 = vsel %vm717, %v8183, 0.0
    %v8206 = vadd.f32 %v8204, %v8205
    %v8207 = vsel %vm717, %v8184, 0.0
    %v8208 = vadd.f32 %v8206, %v8207
    %v8209 = vsel %vm717, %v8185, 0.0
    %v8210 = vadd.f32 %v8208, %v8209
    %v8211 = vsel %vm717, %v8186, 0.0
    %v8212 = vadd.f32 %v8210, %v8211
    %v8213 = vsel %vm717, %v8187, 0.0
    %v8214 = vadd.f32 %v8212, %v8213
    %v8215 = vsel %vm717, %v8188, 0.0
    %v8216 = vadd.f32 %v8214, %v8215
    %v8217 = vsel %vm717, %v8189, 0.0
    %v8218 = vadd.f32 %v8216, %v8217
    %v8219 = vsel %vm717, %v8190, 0.0
    %v8220 = vadd.f32 %v8218, %v8219
    %v8221 = vsel %vm717, %v8191, 0.0
    %v8222 = vadd.f32 %v8220, %v8221
    %v8223 = vrot.slane %v8222, 4
    %v8224 = vadd.f32 %v8222, %v8223
    %v8225 = vrot.slane %v8224, 2
    %v8226 = vadd.f32 %v8224, %v8225
    %v8227 = vrot.slane %v8226, 1
    %v8228 = vadd.f32 %v8226, %v8227
    %v8229 = vadd.f32 %v8137, %v8228
    %v8230 = vmul.f32 %v8175, 0.001953125
    %v8231 = vmul.f32 %v8229, 0.001953125
    %v8232 = vmul.f32 %v8230, %v8230
    %v8233 = vsub.f32 %v8231, %v8232
    %v8234 = vadd.f32 %v8233, 1e-05
    %v8235 = vrsqrt.pop %v8234
    %v8236 = vmul.f32 %v7860, %v8235
    %v8237 = vmul.f32 %v8230, %v8236
    %v8238 = vsub.f32 %v7861, %v8237
    %v8240 = vlaneseq
    %v8241 = vshrl.u32 %v8240, 7
    %v8242 = vsub.s32 0, %v8241
    %v8243 = vrot.slane %v8236, %v8242
    %v8245 = vmul.f32 %v7796, %v8243
    %v8246 = vmul.f32 %v7797, %v8243
    %v8247 = vmul.f32 %v7798, %v8243
    %v8248 = vmul.f32 %v7799, %v8243
    %v8249 = vmul.f32 %v7800, %v8243
    %v8250 = vmul.f32 %v7801, %v8243
    %v8251 = vmul.f32 %v7802, %v8243
    %v8252 = vmul.f32 %v7803, %v8243
    %v8253 = vmul.f32 %v7804, %v8243
    %v8254 = vmul.f32 %v7805, %v8243
    %v8255 = vmul.f32 %v7806, %v8243
    %v8256 = vmul.f32 %v7807, %v8243
    %v8257 = vmul.f32 %v7808, %v8243
    %v8258 = vmul.f32 %v7809, %v8243
    %v8259 = vmul.f32 %v7810, %v8243
    %v8260 = vmul.f32 %v7811, %v8243
    %v8261 = vmul.f32 %v7812, %v8243
    %v8262 = vmul.f32 %v7813, %v8243
    %v8263 = vmul.f32 %v7814, %v8243
    %v8264 = vmul.f32 %v7815, %v8243
    %v8265 = vmul.f32 %v7816, %v8243
    %v8266 = vmul.f32 %v7817, %v8243
    %v8267 = vmul.f32 %v7818, %v8243
    %v8268 = vmul.f32 %v7819, %v8243
    %v8269 = vmul.f32 %v7820, %v8243
    %v8270 = vmul.f32 %v7821, %v8243
    %v8271 = vmul.f32 %v7822, %v8243
    %v8272 = vmul.f32 %v7823, %v8243
    %v8273 = vmul.f32 %v7824, %v8243
    %v8274 = vmul.f32 %v7825, %v8243
    %v8275 = vmul.f32 %v7826, %v8243
    %v8276 = vmul.f32 %v7827, %v8243
    %v8277 = vmul.f32 %v7828, %v8243
    %v8278 = vmul.f32 %v7829, %v8243
    %v8279 = vmul.f32 %v7830, %v8243
    %v8280 = vmul.f32 %v7831, %v8243
    %v8281 = vmul.f32 %v7832, %v8243
    %v8282 = vmul.f32 %v7833, %v8243
    %v8283 = vmul.f32 %v7834, %v8243
    %v8284 = vmul.f32 %v7835, %v8243
    %v8285 = vmul.f32 %v7836, %v8243
    %v8286 = vmul.f32 %v7837, %v8243
    %v8287 = vmul.f32 %v7838, %v8243
    %v8288 = vmul.f32 %v7839, %v8243
    %v8289 = vmul.f32 %v7840, %v8243
    %v8290 = vmul.f32 %v7841, %v8243
    %v8291 = vmul.f32 %v7842, %v8243
    %v8292 = vmul.f32 %v7843, %v8243
    %v8293 = vmul.f32 %v7844, %v8243
    %v8294 = vmul.f32 %v7845, %v8243
    %v8295 = vmul.f32 %v7846, %v8243
    %v8296 = vmul.f32 %v7847, %v8243
    %v8297 = vmul.f32 %v7848, %v8243
    %v8298 = vmul.f32 %v7849, %v8243
    %v8299 = vmul.f32 %v7850, %v8243
    %v8300 = vmul.f32 %v7851, %v8243
    %v8301 = vmul.f32 %v7852, %v8243
    %v8302 = vmul.f32 %v7853, %v8243
    %v8303 = vmul.f32 %v7854, %v8243
    %v8304 = vmul.f32 %v7855, %v8243
    %v8305 = vmul.f32 %v7856, %v8243
    %v8306 = vmul.f32 %v7857, %v8243
    %v8307 = vmul.f32 %v7858, %v8243
    %v8308 = vmul.f32 %v7859, %v8243
    %v8310 = vlaneseq
    %v8311 = vshrl.u32 %v8310, 7
    %v8312 = vsub.s32 0, %v8311
    %v8313 = vrot.slane %v8238, %v8312
    %v8315 = vadd.f32 %v8245, %v8313
    %v8316 = vadd.f32 %v8246, %v8313
    %v8317 = vadd.f32 %v8247, %v8313
    %v8318 = vadd.f32 %v8248, %v8313
    %v8319 = vadd.f32 %v8249, %v8313
    %v8320 = vadd.f32 %v8250, %v8313
    %v8321 = vadd.f32 %v8251, %v8313
    %v8322 = vadd.f32 %v8252, %v8313
    %v8323 = vadd.f32 %v8253, %v8313
    %v8324 = vadd.f32 %v8254, %v8313
    %v8325 = vadd.f32 %v8255, %v8313
    %v8326 = vadd.f32 %v8256, %v8313
    %v8327 = vadd.f32 %v8257, %v8313
    %v8328 = vadd.f32 %v8258, %v8313
    %v8329 = vadd.f32 %v8259, %v8313
    %v8330 = vadd.f32 %v8260, %v8313
    %v8331 = vadd.f32 %v8261, %v8313
    %v8332 = vadd.f32 %v8262, %v8313
    %v8333 = vadd.f32 %v8263, %v8313
    %v8334 = vadd.f32 %v8264, %v8313
    %v8335 = vadd.f32 %v8265, %v8313
    %v8336 = vadd.f32 %v8266, %v8313
    %v8337 = vadd.f32 %v8267, %v8313
    %v8338 = vadd.f32 %v8268, %v8313
    %v8339 = vadd.f32 %v8269, %v8313
    %v8340 = vadd.f32 %v8270, %v8313
    %v8341 = vadd.f32 %v8271, %v8313
    %v8342 = vadd.f32 %v8272, %v8313
    %v8343 = vadd.f32 %v8273, %v8313
    %v8344 = vadd.f32 %v8274, %v8313
    %v8345 = vadd.f32 %v8275, %v8313
    %v8346 = vadd.f32 %v8276, %v8313
    %v8347 = vadd.f32 %v8277, %v8313
    %v8348 = vadd.f32 %v8278, %v8313
    %v8349 = vadd.f32 %v8279, %v8313
    %v8350 = vadd.f32 %v8280, %v8313
    %v8351 = vadd.f32 %v8281, %v8313
    %v8352 = vadd.f32 %v8282, %v8313
    %v8353 = vadd.f32 %v8283, %v8313
    %v8354 = vadd.f32 %v8284, %v8313
    %v8355 = vadd.f32 %v8285, %v8313
    %v8356 = vadd.f32 %v8286, %v8313
    %v8357 = vadd.f32 %v8287, %v8313
    %v8358 = vadd.f32 %v8288, %v8313
    %v8359 = vadd.f32 %v8289, %v8313
    %v8360 = vadd.f32 %v8290, %v8313
    %v8361 = vadd.f32 %v8291, %v8313
    %v8362 = vadd.f32 %v8292, %v8313
    %v8363 = vadd.f32 %v8293, %v8313
    %v8364 = vadd.f32 %v8294, %v8313
    %v8365 = vadd.f32 %v8295, %v8313
    %v8366 = vadd.f32 %v8296, %v8313
    %v8367 = vadd.f32 %v8297, %v8313
    %v8368 = vadd.f32 %v8298, %v8313
    %v8369 = vadd.f32 %v8299, %v8313
    %v8370 = vadd.f32 %v8300, %v8313
    %v8371 = vadd.f32 %v8301, %v8313
    %v8372 = vadd.f32 %v8302, %v8313
    %v8373 = vadd.f32 %v8303, %v8313
    %v8374 = vadd.f32 %v8304, %v8313
    %v8375 = vadd.f32 %v8305, %v8313
    %v8376 = vadd.f32 %v8306, %v8313
    %v8377 = vadd.f32 %v8307, %v8313
    %v8378 = vadd.f32 %v8308, %v8313
    %v8379 = vmax.f32 %v8315, 0.0
    %v8380 = vmax.f32 %v8316, 0.0
    %v8381 = vmax.f32 %v8317, 0.0
    %v8382 = vmax.f32 %v8318, 0.0
    %v8383 = vmax.f32 %v8319, 0.0
    %v8384 = vmax.f32 %v8320, 0.0
    %v8385 = vmax.f32 %v8321, 0.0
    %v8386 = vmax.f32 %v8322, 0.0
    %v8387 = vmax.f32 %v8323, 0.0
    %v8388 = vmax.f32 %v8324, 0.0
    %v8389 = vmax.f32 %v8325, 0.0
    %v8390 = vmax.f32 %v8326, 0.0
    %v8391 = vmax.f32 %v8327, 0.0
    %v8392 = vmax.f32 %v8328, 0.0
    %v8393 = vmax.f32 %v8329, 0.0
    %v8394 = vmax.f32 %v8330, 0.0
    %v8395 = vmax.f32 %v8331, 0.0
    %v8396 = vmax.f32 %v8332, 0.0
    %v8397 = vmax.f32 %v8333, 0.0
    %v8398 = vmax.f32 %v8334, 0.0
    %v8399 = vmax.f32 %v8335, 0.0
    %v8400 = vmax.f32 %v8336, 0.0
    %v8401 = vmax.f32 %v8337, 0.0
    %v8402 = vmax.f32 %v8338, 0.0
    %v8403 = vmax.f32 %v8339, 0.0
    %v8404 = vmax.f32 %v8340, 0.0
    %v8405 = vmax.f32 %v8341, 0.0
    %v8406 = vmax.f32 %v8342, 0.0
    %v8407 = vmax.f32 %v8343, 0.0
    %v8408 = vmax.f32 %v8344, 0.0
    %v8409 = vmax.f32 %v8345, 0.0
    %v8410 = vmax.f32 %v8346, 0.0
    %v8411 = vmax.f32 %v8347, 0.0
    %v8412 = vmax.f32 %v8348, 0.0
    %v8413 = vmax.f32 %v8349, 0.0
    %v8414 = vmax.f32 %v8350, 0.0
    %v8415 = vmax.f32 %v8351, 0.0
    %v8416 = vmax.f32 %v8352, 0.0
    %v8417 = vmax.f32 %v8353, 0.0
    %v8418 = vmax.f32 %v8354, 0.0
    %v8419 = vmax.f32 %v8355, 0.0
    %v8420 = vmax.f32 %v8356, 0.0
    %v8421 = vmax.f32 %v8357, 0.0
    %v8422 = vmax.f32 %v8358, 0.0
    %v8423 = vmax.f32 %v8359, 0.0
    %v8424 = vmax.f32 %v8360, 0.0
    %v8425 = vmax.f32 %v8361, 0.0
    %v8426 = vmax.f32 %v8362, 0.0
    %v8427 = vmax.f32 %v8363, 0.0
    %v8428 = vmax.f32 %v8364, 0.0
    %v8429 = vmax.f32 %v8365, 0.0
    %v8430 = vmax.f32 %v8366, 0.0
    %v8431 = vmax.f32 %v8367, 0.0
    %v8432 = vmax.f32 %v8368, 0.0
    %v8433 = vmax.f32 %v8369, 0.0
    %v8434 = vmax.f32 %v8370, 0.0
    %v8435 = vmax.f32 %v8371, 0.0
    %v8436 = vmax.f32 %v8372, 0.0
    %v8437 = vmax.f32 %v8373, 0.0
    %v8438 = vmax.f32 %v8374, 0.0
    %v8439 = vmax.f32 %v8375, 0.0
    %v8440 = vmax.f32 %v8376, 0.0
    %v8441 = vmax.f32 %v8377, 0.0
    %v8442 = vmax.f32 %v8378, 0.0
    %v8443 = vsel %vm717, %v8379, 0.0
    %v8444 = vsel %vm717, %v8380, 0.0
    %v8445 = vadd.f32 %v8443, %v8444
    %v8446 = vsel %vm717, %v8381, 0.0
    %v8447 = vadd.f32 %v8445, %v8446
    %v8448 = vsel %vm717, %v8382, 0.0
    %v8449 = vadd.f32 %v8447, %v8448
    %v8450 = vsel %vm717, %v8383, 0.0
    %v8451 = vadd.f32 %v8449, %v8450
    %v8452 = vsel %vm717, %v8384, 0.0
    %v8453 = vadd.f32 %v8451, %v8452
    %v8454 = vsel %vm717, %v8385, 0.0
    %v8455 = vadd.f32 %v8453, %v8454
    %v8456 = vsel %vm717, %v8386, 0.0
    %v8457 = vadd.f32 %v8455, %v8456
    %v8458 = vrot.slane %v8457, 4
    %v8459 = vadd.f32 %v8457, %v8458
    %v8460 = vrot.slane %v8459, 2
    %v8461 = vadd.f32 %v8459, %v8460
    %v8462 = vrot.slane %v8461, 1
    %v8463 = vadd.f32 %v8461, %v8462
    %v8464 = vsel %vm717, %v8387, 0.0
    %v8465 = vsel %vm717, %v8388, 0.0
    %v8466 = vadd.f32 %v8464, %v8465
    %v8467 = vsel %vm717, %v8389, 0.0
    %v8468 = vadd.f32 %v8466, %v8467
    %v8469 = vsel %vm717, %v8390, 0.0
    %v8470 = vadd.f32 %v8468, %v8469
    %v8471 = vsel %vm717, %v8391, 0.0
    %v8472 = vadd.f32 %v8470, %v8471
    %v8473 = vsel %vm717, %v8392, 0.0
    %v8474 = vadd.f32 %v8472, %v8473
    %v8475 = vsel %vm717, %v8393, 0.0
    %v8476 = vadd.f32 %v8474, %v8475
    %v8477 = vsel %vm717, %v8394, 0.0
    %v8478 = vadd.f32 %v8476, %v8477
    %v8479 = vrot.slane %v8478, 4
    %v8480 = vadd.f32 %v8478, %v8479
    %v8481 = vrot.slane %v8480, 2
    %v8482 = vadd.f32 %v8480, %v8481
    %v8483 = vrot.slane %v8482, 1
    %v8484 = vadd.f32 %v8482, %v8483
    %v8485 = vsel %vm717, %v8395, 0.0
    %v8486 = vsel %vm717, %v8396, 0.0
    %v8487 = vadd.f32 %v8485, %v8486
    %v8488 = vsel %vm717, %v8397, 0.0
    %v8489 = vadd.f32 %v8487, %v8488
    %v8490 = vsel %vm717, %v8398, 0.0
    %v8491 = vadd.f32 %v8489, %v8490
    %v8492 = vsel %vm717, %v8399, 0.0
    %v8493 = vadd.f32 %v8491, %v8492
    %v8494 = vsel %vm717, %v8400, 0.0
    %v8495 = vadd.f32 %v8493, %v8494
    %v8496 = vsel %vm717, %v8401, 0.0
    %v8497 = vadd.f32 %v8495, %v8496
    %v8498 = vsel %vm717, %v8402, 0.0
    %v8499 = vadd.f32 %v8497, %v8498
    %v8500 = vrot.slane %v8499, 4
    %v8501 = vadd.f32 %v8499, %v8500
    %v8502 = vrot.slane %v8501, 2
    %v8503 = vadd.f32 %v8501, %v8502
    %v8504 = vrot.slane %v8503, 1
    %v8505 = vadd.f32 %v8503, %v8504
    %v8506 = vsel %vm717, %v8403, 0.0
    %v8507 = vsel %vm717, %v8404, 0.0
    %v8508 = vadd.f32 %v8506, %v8507
    %v8509 = vsel %vm717, %v8405, 0.0
    %v8510 = vadd.f32 %v8508, %v8509
    %v8511 = vsel %vm717, %v8406, 0.0
    %v8512 = vadd.f32 %v8510, %v8511
    %v8513 = vsel %vm717, %v8407, 0.0
    %v8514 = vadd.f32 %v8512, %v8513
    %v8515 = vsel %vm717, %v8408, 0.0
    %v8516 = vadd.f32 %v8514, %v8515
    %v8517 = vsel %vm717, %v8409, 0.0
    %v8518 = vadd.f32 %v8516, %v8517
    %v8519 = vsel %vm717, %v8410, 0.0
    %v8520 = vadd.f32 %v8518, %v8519
    %v8521 = vrot.slane %v8520, 4
    %v8522 = vadd.f32 %v8520, %v8521
    %v8523 = vrot.slane %v8522, 2
    %v8524 = vadd.f32 %v8522, %v8523
    %v8525 = vrot.slane %v8524, 1
    %v8526 = vadd.f32 %v8524, %v8525
    %v8527 = vsel %vm717, %v8411, 0.0
    %v8528 = vsel %vm717, %v8412, 0.0
    %v8529 = vadd.f32 %v8527, %v8528
    %v8530 = vsel %vm717, %v8413, 0.0
    %v8531 = vadd.f32 %v8529, %v8530
    %v8532 = vsel %vm717, %v8414, 0.0
    %v8533 = vadd.f32 %v8531, %v8532
    %v8534 = vsel %vm717, %v8415, 0.0
    %v8535 = vadd.f32 %v8533, %v8534
    %v8536 = vsel %vm717, %v8416, 0.0
    %v8537 = vadd.f32 %v8535, %v8536
    %v8538 = vsel %vm717, %v8417, 0.0
    %v8539 = vadd.f32 %v8537, %v8538
    %v8540 = vsel %vm717, %v8418, 0.0
    %v8541 = vadd.f32 %v8539, %v8540
    %v8542 = vrot.slane %v8541, 4
    %v8543 = vadd.f32 %v8541, %v8542
    %v8544 = vrot.slane %v8543, 2
    %v8545 = vadd.f32 %v8543, %v8544
    %v8546 = vrot.slane %v8545, 1
    %v8547 = vadd.f32 %v8545, %v8546
    %v8548 = vsel %vm717, %v8419, 0.0
    %v8549 = vsel %vm717, %v8420, 0.0
    %v8550 = vadd.f32 %v8548, %v8549
    %v8551 = vsel %vm717, %v8421, 0.0
    %v8552 = vadd.f32 %v8550, %v8551
    %v8553 = vsel %vm717, %v8422, 0.0
    %v8554 = vadd.f32 %v8552, %v8553
    %v8555 = vsel %vm717, %v8423, 0.0
    %v8556 = vadd.f32 %v8554, %v8555
    %v8557 = vsel %vm717, %v8424, 0.0
    %v8558 = vadd.f32 %v8556, %v8557
    %v8559 = vsel %vm717, %v8425, 0.0
    %v8560 = vadd.f32 %v8558, %v8559
    %v8561 = vsel %vm717, %v8426, 0.0
    %v8562 = vadd.f32 %v8560, %v8561
    %v8563 = vrot.slane %v8562, 4
    %v8564 = vadd.f32 %v8562, %v8563
    %v8565 = vrot.slane %v8564, 2
    %v8566 = vadd.f32 %v8564, %v8565
    %v8567 = vrot.slane %v8566, 1
    %v8568 = vadd.f32 %v8566, %v8567
    %v8569 = vsel %vm717, %v8427, 0.0
    %v8570 = vsel %vm717, %v8428, 0.0
    %v8571 = vadd.f32 %v8569, %v8570
    %v8572 = vsel %vm717, %v8429, 0.0
    %v8573 = vadd.f32 %v8571, %v8572
    %v8574 = vsel %vm717, %v8430, 0.0
    %v8575 = vadd.f32 %v8573, %v8574
    %v8576 = vsel %vm717, %v8431, 0.0
    %v8577 = vadd.f32 %v8575, %v8576
    %v8578 = vsel %vm717, %v8432, 0.0
    %v8579 = vadd.f32 %v8577, %v8578
    %v8580 = vsel %vm717, %v8433, 0.0
    %v8581 = vadd.f32 %v8579, %v8580
    %v8582 = vsel %vm717, %v8434, 0.0
    %v8583 = vadd.f32 %v8581, %v8582
    %v8584 = vrot.slane %v8583, 4
    %v8585 = vadd.f32 %v8583, %v8584
    %v8586 = vrot.slane %v8585, 2
    %v8587 = vadd.f32 %v8585, %v8586
    %v8588 = vrot.slane %v8587, 1
    %v8589 = vadd.f32 %v8587, %v8588
    %v8590 = vsel %vm717, %v8435, 0.0
    %v8591 = vsel %vm717, %v8436, 0.0
    %v8592 = vadd.f32 %v8590, %v8591
    %v8593 = vsel %vm717, %v8437, 0.0
    %v8594 = vadd.f32 %v8592, %v8593
    %v8595 = vsel %vm717, %v8438, 0.0
    %v8596 = vadd.f32 %v8594, %v8595
    %v8597 = vsel %vm717, %v8439, 0.0
    %v8598 = vadd.f32 %v8596, %v8597
    %v8599 = vsel %vm717, %v8440, 0.0
    %v8600 = vadd.f32 %v8598, %v8599
    %v8601 = vsel %vm717, %v8441, 0.0
    %v8602 = vadd.f32 %v8600, %v8601
    %v8603 = vsel %vm717, %v8442, 0.0
    %v8604 = vadd.f32 %v8602, %v8603
    %v8605 = vrot.slane %v8604, 4
    %v8606 = vadd.f32 %v8604, %v8605
    %v8607 = vrot.slane %v8606, 2
    %v8608 = vadd.f32 %v8606, %v8607
    %v8609 = vrot.slane %v8608, 1
    %v8610 = vadd.f32 %v8608, %v8609
    %v8611 = vrcp.pop 64.0
    %v8612 = vmul.f32 %v8463, %v8611
    %v8613 = vmul.f32 %v8484, %v8611
    %v8614 = vmul.f32 %v8505, %v8611
    %v8615 = vmul.f32 %v8526, %v8611
    %v8616 = vmul.f32 %v8547, %v8611
    %v8617 = vmul.f32 %v8568, %v8611
    %v8618 = vmul.f32 %v8589, %v8611
    %v8619 = vmul.f32 %v8610, %v8611
    %v8620 = vld [vmem:[%s9] sm:$0xff]
    %v8621 = vld [vmem:[%s9 + $0x8] sm:$0xff]
    %v8622 = vld [vmem:[%s9 + $0x10] sm:$0xff]
    %v8623 = vld [vmem:[%s9 + $0x18] sm:$0xff]
    %v8624 = vld [vmem:[%s10] sm:$0x1]
    %v8626 = vlaneseq
    %v8627 = vshrl.u32 %v8626, 7
    %v8628 = vsub.s32 0, %v8627
    %v8629 = vrot.slane %v8624, %v8628
    %vm8639 = vcmask 1041409
    %v8640 = vsel %vm8639, %v8613, %v8612
    %vm8641 = vcmask 1042434
    %v8642 = vsel %vm8641, %v8614, %v8640
    %vm8643 = vcmask 1043459
    %v8644 = vsel %vm8643, %v8615, %v8642
    %vm8645 = vcmask 1044484
    %v8646 = vsel %vm8645, %v8616, %v8644
    %vm8647 = vcmask 1045509
    %v8648 = vsel %vm8647, %v8617, %v8646
    %vm8649 = vcmask 1046534
    %v8650 = vsel %vm8649, %v8618, %v8648
    %vm8651 = vcmask 1047559
    %v8652 = vsel %vm8651, %v8619, %v8650
    %v8653 = vsel %vm717, %v8652, 0
    %8655 = vmatprep.subr.mxu0 0.0
    %8656 = vmatpush1.msra.mxu0 %v8620
    %8657 = vmatprep.subr.mxu0 0.0
    %8658 = vmatpush1.msra.mxu0 %v8621
    %8659 = vmatprep.subr.mxu0 0.0
    %8660 = vmatpush1.msra.mxu0 %v8622
    %8661 = vmatprep.subr.mxu0 0.0
    %8662 = vmatpush1.msra.mxu0 %v8623
    %8663 = vmatprep.subr.mxu0 0.0
    %8664 = vmatpush1.msra.mxu0 0.0
    %8665 = vmatprep.subr.mxu0 0.0
    %8666 = vmatpush1.msra.mxu0 0.0
    %8667 = vmatprep.subr.mxu0 0.0
    %8668 = vmatpush1.msra.mxu0 0.0
    %8669 = vmatprep.subr.mxu0 0.0
    %8670 = vmatpush1.msra.mxu0 0.0
    %8671 = vmatprep.subr.mxu0 0.0
    %8672 = vmatpush1.msra.mxu0 0.0
    %8673 = vmatprep.subr.mxu0 0.0
    %8674 = vmatpush1.msra.mxu0 0.0
    %8675 = vmatprep.subr.mxu0 0.0
    %8676 = vmatpush1.msra.mxu0 0.0
    %8677 = vmatprep.subr.mxu0 0.0
    %8678 = vmatpush1.msra.mxu0 0.0
    %8679 = vmatprep.subr.mxu0 0.0
    %8680 = vmatpush1.msra.mxu0 0.0
    %8681 = vmatprep.subr.mxu0 0.0
    %8682 = vmatpush1.msra.mxu0 0.0
    %8683 = vmatprep.subr.mxu0 0.0
    %8684 = vmatpush1.msra.mxu0 0.0
    %8685 = vmatprep.subr.mxu0 0.0
    %8686 = vmatpush1.msra.mxu0 0.0
    %8687 = vmatprep.subr.mxu0 0.0
    %8688 = vmatpush1.msra.mxu0 0.0
    %8689 = vmatprep.subr.mxu0 0.0
    %8690 = vmatpush1.msra.mxu0 0.0
    %8691 = vmatprep.subr.mxu0 0.0
    %8692 = vmatpush1.msra.mxu0 0.0
    %8693 = vmatprep.subr.mxu0 0.0
    %8694 = vmatpush1.msra.mxu0 0.0
    %8695 = vmatprep.subr.mxu0 0.0
    %8696 = vmatpush1.msra.mxu0 0.0
    %8697 = vmatprep.subr.mxu0 0.0
    %8698 = vmatpush1.msra.mxu0 0.0
    %8699 = vmatprep.subr.mxu0 0.0
    %8700 = vmatpush1.msra.mxu0 0.0
    %8701 = vmatprep.subr.mxu0 0.0
    %8702 = vmatpush1.msra.mxu0 0.0
    %8703 = vmatprep.subr.mxu0 0.0
    %8704 = vmatpush1.msra.mxu0 0.0
    %8705 = vmatprep.subr.mxu0 0.0
    %8706 = vmatpush1.msra.mxu0 0.0
    %8707 = vmatprep.subr.mxu0 0.0
    %8708 = vmatpush1.msra.mxu0 0.0
    %8709 = vmatprep.subr.mxu0 0.0
    %8710 = vmatpush1.msra.mxu0 0.0
    %8711 = vmatprep.subr.mxu0 0.0
    %8712 = vmatpush1.msra.mxu0 0.0
    %8713 = vmatprep.subr.mxu0 0.0
    %8714 = vmatpush1.msra.mxu0 0.0
    %8715 = vmatprep.subr.mxu0 0.0
    %8716 = vmatpush1.msra.mxu0 0.0
    %8717 = vmatprep.subr.mxu0 0.0
    %8718 = vmatpush1.msra.mxu0 0.0
    %8719 = vmatprep.mubr.f32.mxu0 0.0
    %8720 = vmatmul.mubr.f32.gmra.mrb[0].mxu0 %v8653
    %v8721 = vpop.f32.mrb[0].mxu0
    %v8722 = vadd.f32 %v8629, %v8721
    %v8723 = vpop.f32.mrb[0].mxu0
    %8724 = vdwg.mxu0
    %v8725 = vmax.f32 %v8722, 0.0
    %v8726 = vld [vmem:[%s11] sm:$0xff]
    %v8727 = vld [vmem:[%s11 + $0x8] sm:$0xff]
    %v8728 = vld [vmem:[%s11 + $0x10] sm:$0xff]
    %v8729 = vld [vmem:[%s11 + $0x18] sm:$0xff]
    %v8730 = vld [vmem:[%s12] sm:$0x1]
    %v8732 = vlaneseq
    %v8733 = vshrl.u32 %v8732, 7
    %v8734 = vsub.s32 0, %v8733
    %v8735 = vrot.slane %v8730, %v8734
    %v8738 = vsel %vm717, %v8725, 0
    %8740 = vmatprep.subr.mxu0 0.0
    %8741 = vmatpush1.msra.mxu0 %v8726
    %8742 = vmatprep.subr.mxu0 0.0
    %8743 = vmatpush1.msra.mxu0 %v8727
    %8744 = vmatprep.subr.mxu0 0.0
    %8745 = vmatpush1.msra.mxu0 %v8728
    %8746 = vmatprep.subr.mxu0 0.0
    %8747 = vmatpush1.msra.mxu0 %v8729
    %8748 = vmatprep.subr.mxu0 0.0
    %8749 = vmatpush1.msra.mxu0 0.0
    %8750 = vmatprep.subr.mxu0 0.0
    %8751 = vmatpush1.msra.mxu0 0.0
    %8752 = vmatprep.subr.mxu0 0.0
    %8753 = vmatpush1.msra.mxu0 0.0
    %8754 = vmatprep.subr.mxu0 0.0
    %8755 = vmatpush1.msra.mxu0 0.0
    %8756 = vmatprep.subr.mxu0 0.0
    %8757 = vmatpush1.msra.mxu0 0.0
    %8758 = vmatprep.subr.mxu0 0.0
    %8759 = vmatpush1.msra.mxu0 0.0
    %8760 = vmatprep.subr.mxu0 0.0
    %8761 = vmatpush1.msra.mxu0 0.0
    %8762 = vmatprep.subr.mxu0 0.0
    %8763 = vmatpush1.msra.mxu0 0.0
    %8764 = vmatprep.subr.mxu0 0.0
    %8765 = vmatpush1.msra.mxu0 0.0
    %8766 = vmatprep.subr.mxu0 0.0
    %8767 = vmatpush1.msra.mxu0 0.0
    %8768 = vmatprep.subr.mxu0 0.0
    %8769 = vmatpush1.msra.mxu0 0.0
    %8770 = vmatprep.subr.mxu0 0.0
    %8771 = vmatpush1.msra.mxu0 0.0
    %8772 = vmatprep.subr.mxu0 0.0
    %8773 = vmatpush1.msra.mxu0 0.0
    %8774 = vmatprep.subr.mxu0 0.0
    %8775 = vmatpush1.msra.mxu0 0.0
    %8776 = vmatprep.subr.mxu0 0.0
    %8777 = vmatpush1.msra.mxu0 0.0
    %8778 = vmatprep.subr.mxu0 0.0
    %8779 = vmatpush1.msra.mxu0 0.0
    %8780 = vmatprep.subr.mxu0 0.0
    %8781 = vmatpush1.msra.mxu0 0.0
    %8782 = vmatprep.subr.mxu0 0.0
    %8783 = vmatpush1.msra.mxu0 0.0
    %8784 = vmatprep.subr.mxu0 0.0
    %8785 = vmatpush1.msra.mxu0 0.0
    %8786 = vmatprep.subr.mxu0 0.0
    %8787 = vmatpush1.msra.mxu0 0.0
    %8788 = vmatprep.subr.mxu0 0.0
    %8789 = vmatpush1.msra.mxu0 0.0
    %8790 = vmatprep.subr.mxu0 0.0
    %8791 = vmatpush1.msra.mxu0 0.0
    %8792 = vmatprep.subr.mxu0 0.0
    %8793 = vmatpush1.msra.mxu0 0.0
    %8794 = vmatprep.subr.mxu0 0.0
    %8795 = vmatpush1.msra.mxu0 0.0
    %8796 = vmatprep.subr.mxu0 0.0
    %8797 = vmatpush1.msra.mxu0 0.0
    %8798 = vmatprep.subr.mxu0 0.0
    %8799 = vmatpush1.msra.mxu0 0.0
    %8800 = vmatprep.subr.mxu0 0.0
    %8801 = vmatpush1.msra.mxu0 0.0
    %8802 = vmatprep.subr.mxu0 0.0
    %8803 = vmatpush1.msra.mxu0 0.0
    %8804 = vmatprep.mubr.f32.mxu0 0.0
    %8805 = vmatmul.mubr.f32.gmra.mrb[0].mxu0 %v8738
    %v8806 = vpop.f32.mrb[0].mxu0
    %v8807 = vadd.f32 %v8735, %v8806
    %v8808 = vpop.f32.mrb[0].mxu0
    %8809 = vdwg.mxu0
    %v8810 = vmax.f32 %v8807, 0.0
    %v8811 = vsel %vm717, %v8810, 0.0
    %8812 = vadd.xlane.f32.xlu0 %v8811
    %v8813 = vpop.xlane.xlu0 %8812
    %v8814 = vrcp.pop 32.0
    %v8815 = vmul.f32 %v8813, %v8814
    %v8816 = vsub.f32 %v8810, %v8815
    %v8817 = vmul.f32 %v8816, %v8816
    %v8818 = vsel %vm717, %v8817, 0.0
    %8819 = vadd.xlane.f32.xlu0 %v8818
    %v8820 = vpop.xlane.xlu0 %8819
    %v8821 = vmul.f32 %v8820, %v8814
    %v8822 = vadd.f32 %v8821, 1e-05
    %v8823 = vrsqrt.pop %v8822
    %v8824 = vmul.f32 %v8816, %v8823
    %v8825 = vld [vmem:[%s13] sm:$0x1]
    %v8827 = vlaneseq
    %v8828 = vshrl.u32 %v8827, 7
    %v8829 = vsub.s32 0, %v8828
    %v8830 = vrot.slane %v8825, %v8829
    %v8832 = vmul.f32 %v8824, %v8830
    %v8833 = vld [vmem:[%s14] sm:$0x1]
    %v8835 = vlaneseq
    %v8836 = vshrl.u32 %v8835, 7
    %v8837 = vsub.s32 0, %v8836
    %v8838 = vrot.slane %v8833, %v8837
    %v8840 = vadd.f32 %v8832, %v8838
    %v8841 = vld [vmem:[%s15] sm:$0xff]
    %v8842 = vld [vmem:[%s15 + $0x8] sm:$0xff]
    %v8843 = vld [vmem:[%s15 + $0x10] sm:$0xff]
    %v8844 = vld [vmem:[%s15 + $0x18] sm:$0xff]
    %v8845 = vld [vmem:[%s16] sm:$0x1]
    %v8847 = vlaneseq
    %v8848 = vshrl.u32 %v8847, 7
    %v8849 = vsub.s32 0, %v8848
    %v8850 = vrot.slane %v8845, %v8849
    %v8853 = vsel %vm717, %v8840, 0
    %8855 = vmatprep.subr.mxu0 0.0
    %8856 = vmatpush1.msra.mxu0 %v8841
    %8857 = vmatprep.subr.mxu0 0.0
    %8858 = vmatpush1.msra.mxu0 %v8842
    %8859 = vmatprep.subr.mxu0 0.0
    %8860 = vmatpush1.msra.mxu0 %v8843
    %8861 = vmatprep.subr.mxu0 0.0
    %8862 = vmatpush1.msra.mxu0 %v8844
    %8863 = vmatprep.subr.mxu0 0.0
    %8864 = vmatpush1.msra.mxu0 0.0
    %8865 = vmatprep.subr.mxu0 0.0
    %8866 = vmatpush1.msra.mxu0 0.0
    %8867 = vmatprep.subr.mxu0 0.0
    %8868 = vmatpush1.msra.mxu0 0.0
    %8869 = vmatprep.subr.mxu0 0.0
    %8870 = vmatpush1.msra.mxu0 0.0
    %8871 = vmatprep.subr.mxu0 0.0
    %8872 = vmatpush1.msra.mxu0 0.0
    %8873 = vmatprep.subr.mxu0 0.0
    %8874 = vmatpush1.msra.mxu0 0.0
    %8875 = vmatprep.subr.mxu0 0.0
    %8876 = vmatpush1.msra.mxu0 0.0
    %8877 = vmatprep.subr.mxu0 0.0
    %8878 = vmatpush1.msra.mxu0 0.0
    %8879 = vmatprep.subr.mxu0 0.0
    %8880 = vmatpush1.msra.mxu0 0.0
    %8881 = vmatprep.subr.mxu0 0.0
    %8882 = vmatpush1.msra.mxu0 0.0
    %8883 = vmatprep.subr.mxu0 0.0
    %8884 = vmatpush1.msra.mxu0 0.0
    %8885 = vmatprep.subr.mxu0 0.0
    %8886 = vmatpush1.msra.mxu0 0.0
    %8887 = vmatprep.subr.mxu0 0.0
    %8888 = vmatpush1.msra.mxu0 0.0
    %8889 = vmatprep.subr.mxu0 0.0
    %8890 = vmatpush1.msra.mxu0 0.0
    %8891 = vmatprep.subr.mxu0 0.0
    %8892 = vmatpush1.msra.mxu0 0.0
    %8893 = vmatprep.subr.mxu0 0.0
    %8894 = vmatpush1.msra.mxu0 0.0
    %8895 = vmatprep.subr.mxu0 0.0
    %8896 = vmatpush1.msra.mxu0 0.0
    %8897 = vmatprep.subr.mxu0 0.0
    %8898 = vmatpush1.msra.mxu0 0.0
    %8899 = vmatprep.subr.mxu0 0.0
    %8900 = vmatpush1.msra.mxu0 0.0
    %8901 = vmatprep.subr.mxu0 0.0
    %8902 = vmatpush1.msra.mxu0 0.0
    %8903 = vmatprep.subr.mxu0 0.0
    %8904 = vmatpush1.msra.mxu0 0.0
    %8905 = vmatprep.subr.mxu0 0.0
    %8906 = vmatpush1.msra.mxu0 0.0
    %8907 = vmatprep.subr.mxu0 0.0
    %8908 = vmatpush1.msra.mxu0 0.0
    %8909 = vmatprep.subr.mxu0 0.0
    %8910 = vmatpush1.msra.mxu0 0.0
    %8911 = vmatprep.subr.mxu0 0.0
    %8912 = vmatpush1.msra.mxu0 0.0
    %8913 = vmatprep.subr.mxu0 0.0
    %8914 = vmatpush1.msra.mxu0 0.0
    %8915 = vmatprep.subr.mxu0 0.0
    %8916 = vmatpush1.msra.mxu0 0.0
    %8917 = vmatprep.subr.mxu0 0.0
    %8918 = vmatpush1.msra.mxu0 0.0
    %8919 = vmatprep.mubr.f32.mxu0 0.0
    %8920 = vmatmul.mubr.f32.gmra.mrb[0].mxu0 %v8853
    %v8921 = vpop.f32.mrb[0].mxu0
    %v8922 = vadd.f32 %v8850, %v8921
    %v8923 = vpop.f32.mrb[0].mxu0
    %8924 = vdwg.mxu0
    %vm8925 = vcmask 130048
    %8926 = vst.msk [vmem:[#allocation3] sm:$0xff] %vm8925, %v8922
    // Predicated region
    $region70: #{transe_forward.1} parent=1 // pred_check
      _
    $region71: #{transe_forward.1} parent=1 // pred_check_branch
      %8928 = sbr.rel (0) target = $region73
    $region72: #{transe_forward.1} parent=1 // pred_region
      %s8930 = ssub.s32 128, 128
      %8931 = vsyncadd [#allocation4], %s8930
      %s8933 = sshll.u32 [#allocation3], 4
      %s8934 = int_to_ptr.vmem [resolvable:$true] %s8933
      %8936 = dma.vmem_to_hbm [thread:$0]  %s8934, 128, %s17, [#allocation4]
    $region73: #{transe_forward.1} parent=1 // pred_fallthru
      _
    // Predicated region
    $region74: #{transe_forward.1} parent=1 // pred_check
      _
    $region75: #{transe_forward.1} parent=1 // pred_check_branch
      %8938 = sbr.rel (0) target = $region77
    $region76: #{transe_forward.1} parent=1 // pred_region
      %8939 = dma.done [#allocation4], 128
    $region77: #{transe_forward.1} parent=1 // pred_fallthru
      _
    %8940 = vsyncpa [#allocation4], 1

</llo_original>
